<compile_context>
chip_gen: v5e
topology: v5e:2x2
jax: 0.10.0
libtpu: 0.0.40
codegen_flags: <defaults>
</compile_context>

<pallas_src>
import functools
import math

import jax
import jax.numpy as jnp
from jax.experimental import pallas as pl
from jax.experimental.pallas import tpu as pltpu


# -----------------------------------------------------------------------------
# Model dimensions (small, synthetic)
# -----------------------------------------------------------------------------
B = 2                 # image batch
IMG = 16              # image resolution
IN_CH = 3             # image channels
PATCH = 8             # patch size -> 2x2 = 4 patches
VIS_WIDTH = 32        # visual transformer width
VIS_HEADS = 4
VIS_LAYERS = 2
TXT_WIDTH = 32        # text transformer width (= ctx_dim = ln_final dim)
TXT_HEADS = 4
TXT_LAYERS = 2
EMBED_DIM = 32        # joint embedding dim (visual proj / text proj output)
N_CLS = 3             # number of classes
CTX_LEN = 8           # text context length (seq)
N_CTX = 4             # number of learnable context tokens
STD = 0.02

# Matmul-operand / stored-weight dtype.  bf16 halves weight DMA and feeds the
# MXU at full rate on all generations; all LN / softmax / GELU / residual math
# stays in f32 (matmul accumulation is always preferred_element_type=f32).
MATMUL_DTYPE = jnp.bfloat16

_BLOCK_KEYS = ("ln1_g", "ln1_b", "w_qkv", "b_qkv", "w_out", "b_out",
               "ln2_g", "ln2_b", "w_fc", "b_fc", "w_proj", "b_proj")


# -----------------------------------------------------------------------------
# In-kernel helpers
# -----------------------------------------------------------------------------
def _mm(a, b):
    """2-D matmul on the MXU with f32 accumulation (operands cast to bf16)."""
    return jnp.dot(a.astype(MATMUL_DTYPE), b.astype(MATMUL_DTYPE),
                   preferred_element_type=jnp.float32)


def _ln(x, g, b, eps=1e-5):
    """LayerNorm over the last dim (f32).  x: (M, W); g, b: (1, W)."""
    mean = jnp.mean(x, axis=-1, keepdims=True)
    var = jnp.mean((x - mean) ** 2, axis=-1, keepdims=True)
    return (x - mean) * jax.lax.rsqrt(var + eps) * g + b


def _transformer_layer_step(x_sc, blk_refs, heads, mask):
    """One pre-LN residual attention block applied in-place to a VMEM scratch.

    x_sc: (Bx, S, W) VMEM scratch.  blk_refs: 12 per-layer weight refs, each
    with a leading size-1 layer dim selected by the BlockSpec index_map.
    mask: (S, S) additive attention mask value, or None.
    """
    (ln1_g_r, ln1_b_r, w_qkv_r, b_qkv_r, w_out_r, b_out_r,
     ln2_g_r, ln2_b_r, w_fc_r, b_fc_r, w_proj_r, b_proj_r) = blk_refs
    Bx, S, W = x_sc.shape
    H = heads
    Dh = W // H
    scale = 1.0 / math.sqrt(Dh)

    # Hoist weight loads out of the per-sample loop.
    ln1_g, ln1_b = ln1_g_r[0], ln1_b_r[0]
    ln2_g, ln2_b = ln2_g_r[0], ln2_b_r[0]
    w_qkv, b_qkv = w_qkv_r[0], b_qkv_r[0]
    w_out, b_out = w_out_r[0], b_out_r[0]
    w_fc, b_fc = w_fc_r[0], b_fc_r[0]
    w_proj, b_proj = w_proj_r[0], b_proj_r[0]

    for b in range(Bx):                      # tiny static batch (<= 3)
        xb = x_sc[b]                         # (S, W) f32

        # --- multi-head self-attention ---
        h1 = _ln(xb, ln1_g, ln1_b)
        qkv = _mm(h1, w_qkv) + b_qkv         # (S, 3W) f32
        head_outs = []
        # TODO(synk): at real CLIP seq lengths, tile the KV axis flash-style
        # (online softmax) instead of keeping full (S, S) score tiles live.
        for hh in range(H):
            lo = hh * Dh
            q = qkv[:, lo:lo + Dh].astype(MATMUL_DTYPE)
            k = qkv[:, W + lo:W + lo + Dh].astype(MATMUL_DTYPE)
            v = qkv[:, 2 * W + lo:2 * W + lo + Dh]
            s = jax.lax.dot_general(
                q, k, (((1,), (1,)), ((), ())),
                preferred_element_type=jnp.float32) * scale      # (S, S) f32
            if mask is not None:
                s = s + mask
            s = s - jnp.max(s, axis=-1, keepdims=True)
            p = jnp.exp(s)
            p = p * pl.reciprocal(jnp.sum(p, axis=-1, keepdims=True), approx=True)
            head_outs.append(_mm(p, v))                          # (S, Dh)
        # Concat heads in-register, then ONE full-K output projection.
        attn = jnp.concatenate(head_outs, axis=-1)               # (S, W)
        xb = xb + _mm(attn, w_out) + b_out

        # --- MLP: Linear -> QuickGELU -> Linear ---
        h2 = _ln(xb, ln2_g, ln2_b)
        m = _mm(h2, w_fc) + b_fc
        m = m * pl.reciprocal(1.0 + jnp.exp(-1.702 * m), approx=True)  # QuickGELU
        x_sc[b] = xb + _mm(m, w_proj) + b_proj       # single full-tile store


# -----------------------------------------------------------------------------
# The single fused kernel: whole CustomCLIP forward, grid = (num_layers,)
# -----------------------------------------------------------------------------
def _fused_clip_kernel(eot_ref, *refs, vis_heads, txt_heads):
    assert len(refs) == 45  # 41 inputs + 1 output + 3 scratch
    (patches_ref, w_patch_ref, cls_ref, vpos_ref,
     ln_pre_g_ref, ln_pre_b_ref) = refs[0:6]
    v_blk = refs[6:18]
    ln_post_g_ref, ln_post_b_ref, vproj_ref = refs[18:21]
    pfx_ref, ctx_ref, sfx_ref, tpos_ref = refs[21:25]
    t_blk = refs[25:37]
    ln_f_g_ref, ln_f_b_ref, tproj_ref = refs[37:40]
    scale_ref = refs[40]
    o_ref = refs[41]
    x_vis, x_txt, mask_sc = refs[42], refs[43], refs[44]

    l = pl.program_id(0)
    n_layers = pl.num_programs(0)
    Bi, Sv, Wv = x_vis.shape
    n_cls, Lt, Wt = x_txt.shape
    Np = Sv - 1

    @pl.when(l == 0)
    def _():
        # ---- vision stem: patch-embed matmul + [CLS] + pos + ln_pre ----
        pe = _mm(patches_ref[...], w_patch_ref[...])             # (Bi*Np, Wv)
        cls_row = cls_ref[...]                                   # (1, Wv)
        vpos = vpos_ref[...]                                     # (Sv, Wv)
        g, beta = ln_pre_g_ref[...], ln_pre_b_ref[...]
        for b in range(Bi):
            xb = jnp.concatenate([cls_row, pe[b * Np:(b + 1) * Np, :]], axis=0)
            x_vis[b] = _ln(xb + vpos, g, beta)                   # single store

        # ---- text stem (PromptLearner 'end'): [prefix | ctx | suffix] + pos ----
        ctx_v = ctx_ref[...]                                     # (n_ctx, Wt)
        tpos = tpos_ref[...]                                     # (Lt, Wt)
        for c in range(n_cls):
            prompt = jnp.concatenate([pfx_ref[c], ctx_v, sfx_ref[c]], axis=0)
            x_txt[c] = prompt + tpos                             # single store

        # ---- causal mask, built once and reused by every text layer ----
        row = jax.lax.broadcasted_iota(jnp.int32, (Lt, Lt), 0)
        col = jax.lax.broadcasted_iota(jnp.int32, (Lt, Lt), 1)
        mask_sc[...] = jnp.where(col > row, jnp.float32(-1e30), jnp.float32(0.0))

    # One vision layer + one text layer per grid step; per-layer weights are
    # streamed (double-buffered) by BlockSpec, activations stay in VMEM.
    _transformer_layer_step(x_vis, v_blk, vis_heads, mask=None)
    _transformer_layer_step(x_txt, t_blk, txt_heads, mask=mask_sc[...])

    @pl.when(l == n_layers - 1)
    def _():
        # ---- vision head: ln_post on [CLS] + visual projection ----
        g, beta = ln_post_g_ref[...], ln_post_b_ref[...]
        vproj = vproj_ref[...]
        img_rows = [_mm(_ln(x_vis[b, 0:1, :], g, beta), vproj) for b in range(Bi)]
        img = jnp.concatenate(img_rows, axis=0)                  # (Bi, EMBED)

        # ---- text head: ln_final on EOT row (scalar-prefetched index) + proj ----
        g2, beta2 = ln_f_g_ref[...], ln_f_b_ref[...]
        tproj = tproj_ref[...]
        txt_rows = []
        for c in range(n_cls):
            eot_row = x_txt[c, pl.ds(eot_ref[c], 1), :]          # (1, Wt)
            txt_rows.append(_mm(_ln(eot_row, g2, beta2), tproj))
        txt = jnp.concatenate(txt_rows, axis=0)                  # (n_cls, EMBED)

        # ---- L2-normalize, logit matmul, scale; ONE store of the output ----
        img = img * jax.lax.rsqrt(jnp.sum(img * img, axis=-1, keepdims=True))
        txt = txt * jax.lax.rsqrt(jnp.sum(txt * txt, axis=-1, keepdims=True))
        logits = jax.lax.dot_general(
            img, txt, (((1,), (1,)), ((), ())), preferred_element_type=jnp.float32)
        o_ref[...] = logits * jnp.exp(scale_ref[...])


# -----------------------------------------------------------------------------
# BlockSpec helpers (index_maps accept the trailing scalar-prefetch ref via *_)
# -----------------------------------------------------------------------------
def _full_spec(shape):
    """Whole array resident every grid step (constant block index).
    NOTE(v7x, real sizes): stem/head-only tensors should move to pl.ANY +
    manual DMA inside the pl.when blocks to free VMEM for weight buffers."""
    zeros = (0,) * len(shape)
    return pl.BlockSpec(tuple(shape), lambda l, *_: zeros)


def _layer_spec(shape):
    """Per-layer stacked weight: stream layer l's slice each grid step."""
    rest = tuple(shape[1:])
    zeros = (0,) * len(rest)
    return pl.BlockSpec((1,) + rest, lambda l, *_: (l,) + zeros)


# -----------------------------------------------------------------------------
# Forward: one pallas_call for the whole CustomCLIP forward pass
# -----------------------------------------------------------------------------
def custom_clip_forward(image, params):
    vis, txt, plr = params["visual"], params["text"], params["prompt_learner"]
    vblk, tblk = vis["blocks"], txt["blocks"]
    n_layers = vblk["w_qkv"].shape[0]
    # TODO(synk): unequal encoder depths would need pl.when(l < depth) guards.
    assert tblk["w_qkv"].shape[0] == n_layers

    Bi, C, Him, Wim = image.shape
    ps = PATCH
    gh, gw = Him // ps, Wim // ps
    Np = gh * gw
    Sv = Np + 1
    # Patch extraction is pure layout glue (Conv2d k=stride=patch, no bias ==
    # matmul over these rows); the patch-embed matmul itself runs in-kernel.
    patches = (image.reshape(Bi, C, gh, ps, gw, ps)
               .transpose(0, 2, 4, 1, 3, 5)
               .reshape(Bi * Np, C * ps * ps))

    # EOT position = argmax of token ids (as in the reference) -> scalar prefetch.
    eot_idx = jnp.argmax(params["tokenized_prompts"], axis=-1).astype(jnp.int32)
    n_cls, Lt = params["tokenized_prompts"].shape

    inputs = [patches, vis["w_patch"], vis["class_embedding"], vis["pos_embedding"],
              vis["ln_pre_g"], vis["ln_pre_b"]]
    inputs += [vblk[k] for k in _BLOCK_KEYS]
    inputs += [vis["ln_post_g"], vis["ln_post_b"], vis["visual_proj"]]
    inputs += [plr["token_prefix"], plr["ctx"], plr["token_suffix"], txt["pos_embedding"]]
    inputs += [tblk[k] for k in _BLOCK_KEYS]
    inputs += [txt["ln_final_g"], txt["ln_final_b"], txt["text_proj"]]
    inputs += [params["logit_scale"]]

    in_specs = [_full_spec(a.shape) for a in inputs[:6]]
    in_specs += [_layer_spec(vblk[k].shape) for k in _BLOCK_KEYS]
    in_specs += [_full_spec(a.shape) for a in inputs[18:25]]
    in_specs += [_layer_spec(tblk[k].shape) for k in _BLOCK_KEYS]
    in_specs += [_full_spec(a.shape) for a in inputs[37:41]]

    grid_spec = pltpu.PrefetchScalarGridSpec(
        num_scalar_prefetch=1,                 # eot_idx (SMEM int32)
        grid=(n_layers,),
        in_specs=in_specs,
        out_specs=pl.BlockSpec((Bi, n_cls), lambda l, *_: (0, 0)),
        scratch_shapes=[
            pltpu.VMEM((Bi, Sv, VIS_WIDTH), jnp.float32),   # vision activations
            pltpu.VMEM((n_cls, Lt, TXT_WIDTH), jnp.float32),  # text activations
            pltpu.VMEM((Lt, Lt), jnp.float32),              # causal mask
        ],
    )

    return pl.pallas_call(
        functools.partial(_fused_clip_kernel,
                          vis_heads=VIS_HEADS, txt_heads=TXT_HEADS),
        grid_spec=grid_spec,
        out_shape=jax.ShapeDtypeStruct((Bi, n_cls), jnp.float32),
        compiler_params=pltpu.CompilerParams(
            # Layers must run in order (VMEM-resident activations) -> arbitrary.
            # TODO(synk): on v7x, a leading "parallel" batch/class axis could use
            # the second TensorCore; kept single-axis to keep one launch total.
            dimension_semantics=("arbitrary",),
        ),
    )(eot_idx, *inputs)


# -----------------------------------------------------------------------------
# Deterministic parameter init (synthetic stand-in for a CLIP checkpoint)
# -----------------------------------------------------------------------------
def _init_blocks(key, n_layers, width):
    """Per-layer weights stacked along a leading num_layers axis.

    NOTE: w_qkv is applied as x @ w_qkv (W, 3W); real nn.MultiheadAttention
    in_proj_weight (3W, W) must be transposed when loading a checkpoint.
    Matmul weight matrices are stored in MATMUL_DTYPE; LN params / biases f32.
    """
    ks = jax.random.split(key, 4)

    def rnd(k, shape):
        return (STD * jax.random.normal(k, shape, jnp.float32)).astype(MATMUL_DTYPE)

    return {
        "ln1_g": jnp.ones((n_layers, 1, width), jnp.float32),
        "ln1_b": jnp.zeros((n_layers, 1, width), jnp.float32),
        "w_qkv": rnd(ks[0], (n_layers, width, 3 * width)),
        "b_qkv": jnp.zeros((n_layers, 1, 3 * width), jnp.float32),
        "w_out": rnd(ks[1], (n_layers, width, width)),
        "b_out": jnp.zeros((n_layers, 1, width), jnp.float32),
        "ln2_g": jnp.ones((n_layers, 1, width), jnp.float32),
        "ln2_b": jnp.zeros((n_layers, 1, width), jnp.float32),
        "w_fc": rnd(ks[2], (n_layers, width, 4 * width)),
        "b_fc": jnp.zeros((n_layers, 1, 4 * width), jnp.float32),
        "w_proj": rnd(ks[3], (n_layers, 4 * width, width)),
        "b_proj": jnp.zeros((n_layers, 1, width), jnp.float32),
    }


def init_params(key):
    keys = jax.random.split(key, 16)
    n_patches = (IMG // PATCH) ** 2

    def rnd(k, shape, dtype=jnp.float32):
        return (STD * jax.random.normal(k, shape, jnp.float32)).astype(dtype)

    visual = {
        "w_patch": rnd(keys[0], (IN_CH * PATCH * PATCH, VIS_WIDTH), MATMUL_DTYPE),
        "class_embedding": rnd(keys[1], (1, VIS_WIDTH)),
        "pos_embedding": rnd(keys[2], (n_patches + 1, VIS_WIDTH)),
        "ln_pre_g": jnp.ones((1, VIS_WIDTH), jnp.float32),
        "ln_pre_b": jnp.zeros((1, VIS_WIDTH), jnp.float32),
        "ln_post_g": jnp.ones((1, VIS_WIDTH), jnp.float32),
        "ln_post_b": jnp.zeros((1, VIS_WIDTH), jnp.float32),
        "visual_proj": rnd(keys[3], (VIS_WIDTH, EMBED_DIM), MATMUL_DTYPE),
        "blocks": _init_blocks(keys[4], VIS_LAYERS, VIS_WIDTH),
    }

    text = {
        "pos_embedding": rnd(keys[5], (CTX_LEN, TXT_WIDTH)),
        "ln_final_g": jnp.ones((1, TXT_WIDTH), jnp.float32),
        "ln_final_b": jnp.zeros((1, TXT_WIDTH), jnp.float32),
        "text_proj": rnd(keys[6], (TXT_WIDTH, EMBED_DIM), MATMUL_DTYPE),
        "blocks": _init_blocks(keys[7], TXT_LAYERS, TXT_WIDTH),
    }

    # PromptLearner buffers: SOS embedding prefix, suffix (class-name/EOT/pad
    # embeddings), learnable ctx (normal std=0.02) — synthetic token embeddings.
    n_suffix = CTX_LEN - 1 - N_CTX
    prompt_learner = {
        "ctx": rnd(keys[8], (N_CTX, TXT_WIDTH)),
        "token_prefix": rnd(keys[9], (N_CLS, 1, TXT_WIDTH)),
        "token_suffix": rnd(keys[10], (N_CLS, n_suffix, TXT_WIDTH)),
    }

    # Synthetic tokenized prompts (argmax picks the EOT-token position).
    # TODO(synk): real clip.tokenize/_Tokenizer has no Pallas/JAX equivalent.
    eot_pos = jnp.array([7, 7, 6], jnp.int32)
    tokenized = jnp.full((N_CLS, CTX_LEN), 5, jnp.int32)
    tokenized = tokenized.at[:, 0].set(49406)                          # SOS
    tokenized = tokenized.at[jnp.arange(N_CLS), eot_pos].set(49407)    # EOT

    return {
        "visual": visual,
        "text": text,
        "prompt_learner": prompt_learner,
        "tokenized_prompts": tokenized,
        "logit_scale": jnp.full((1, 1), math.log(1.0 / 0.07), jnp.float32),
    }


# -----------------------------------------------------------------------------
if __name__ == "__main__":
    key = jax.random.PRNGKey(0)
    params = init_params(key)

    image = jax.random.normal(
        jax.random.fold_in(key, 1234), (B, IN_CH, IMG, IMG), jnp.float32
    )

    fwd = jax.jit(custom_clip_forward)
    logits = jax.block_until_ready(fwd(image, params))

    assert logits.shape == (B, N_CLS), logits.shape
    assert bool(jnp.all(jnp.isfinite(logits)))
    print("KERNEL_OK")
</pallas_src>

<mosaic_0001>
module attributes {stable_mosaic.version = 11 : i64} {
  func.func @_fused_clip_kernel(%arg0: i32, %arg1: memref<3xi32, #tpu.memory_space<smem>>, %arg2: memref<8x192xf32, #tpu.memory_space<vmem>>, %arg3: memref<192x32xbf16, #tpu.memory_space<vmem>>, %arg4: memref<1x32xf32, #tpu.memory_space<vmem>>, %arg5: memref<5x32xf32, #tpu.memory_space<vmem>>, %arg6: memref<1x32xf32, #tpu.memory_space<vmem>>, %arg7: memref<1x32xf32, #tpu.memory_space<vmem>>, %arg8: memref<1x1x32xf32, #tpu.memory_space<vmem>>, %arg9: memref<1x1x32xf32, #tpu.memory_space<vmem>>, %arg10: memref<1x32x96xbf16, #tpu.memory_space<vmem>>, %arg11: memref<1x1x96xf32, #tpu.memory_space<vmem>>, %arg12: memref<1x32x32xbf16, #tpu.memory_space<vmem>>, %arg13: memref<1x1x32xf32, #tpu.memory_space<vmem>>, %arg14: memref<1x1x32xf32, #tpu.memory_space<vmem>>, %arg15: memref<1x1x32xf32, #tpu.memory_space<vmem>>, %arg16: memref<1x32x128xbf16, #tpu.memory_space<vmem>>, %arg17: memref<1x1x128xf32, #tpu.memory_space<vmem>>, %arg18: memref<1x128x32xbf16, #tpu.memory_space<vmem>>, %arg19: memref<1x1x32xf32, #tpu.memory_space<vmem>>, %arg20: memref<1x32xf32, #tpu.memory_space<vmem>>, %arg21: memref<1x32xf32, #tpu.memory_space<vmem>>, %arg22: memref<32x32xbf16, #tpu.memory_space<vmem>>, %arg23: memref<3x1x32xf32, #tpu.memory_space<vmem>>, %arg24: memref<4x32xf32, #tpu.memory_space<vmem>>, %arg25: memref<3x3x32xf32, #tpu.memory_space<vmem>>, %arg26: memref<8x32xf32, #tpu.memory_space<vmem>>, %arg27: memref<1x1x32xf32, #tpu.memory_space<vmem>>, %arg28: memref<1x1x32xf32, #tpu.memory_space<vmem>>, %arg29: memref<1x32x96xbf16, #tpu.memory_space<vmem>>, %arg30: memref<1x1x96xf32, #tpu.memory_space<vmem>>, %arg31: memref<1x32x32xbf16, #tpu.memory_space<vmem>>, %arg32: memref<1x1x32xf32, #tpu.memory_space<vmem>>, %arg33: memref<1x1x32xf32, #tpu.memory_space<vmem>>, %arg34: memref<1x1x32xf32, #tpu.memory_space<vmem>>, %arg35: memref<1x32x128xbf16, #tpu.memory_space<vmem>>, %arg36: memref<1x1x128xf32, #tpu.memory_space<vmem>>, %arg37: memref<1x128x32xbf16, #tpu.memory_space<vmem>>, %arg38: memref<1x1x32xf32, #tpu.memory_space<vmem>>, %arg39: memref<1x32xf32, #tpu.memory_space<vmem>>, %arg40: memref<1x32xf32, #tpu.memory_space<vmem>>, %arg41: memref<32x32xbf16, #tpu.memory_space<vmem>>, %arg42: memref<1x1xf32, #tpu.memory_space<vmem>>, %arg43: memref<2x3xf32, #tpu.memory_space<vmem>>, %arg44: memref<2x5x32xf32, #tpu.memory_space<vmem>>, %arg45: memref<3x8x32xf32, #tpu.memory_space<vmem>>, %arg46: memref<8x8xf32, #tpu.memory_space<vmem>>) attributes {dimension_semantics = [#tpu.dimension_semantics<arbitrary>], iteration_bounds = array<i64: 2>, scalar_prefetch = 1 : i64, scratch_operands = 3 : i64, tpu.core_type = #tpu.core_type<tc>, window_params = [{pipeline_mode = #tpu.pipeline_mode<synchronous>, transform_indices = @transform_0, window_bounds = array<i64: 8, 192>}, {pipeline_mode = #tpu.pipeline_mode<synchronous>, transform_indices = @transform_1, window_bounds = array<i64: 192, 32>}, {pipeline_mode = #tpu.pipeline_mode<synchronous>, transform_indices = @transform_2, window_bounds = array<i64: 1, 32>}, {pipeline_mode = #tpu.pipeline_mode<synchronous>, transform_indices = @transform_3, window_bounds = array<i64: 5, 32>}, {pipeline_mode = #tpu.pipeline_mode<synchronous>, transform_indices = @transform_4, window_bounds = array<i64: 1, 32>}, {pipeline_mode = #tpu.pipeline_mode<synchronous>, transform_indices = @transform_5, window_bounds = array<i64: 1, 32>}, {transform_indices = @transform_6, window_bounds = array<i64: 1, 1, 32>}, {transform_indices = @transform_7, window_bounds = array<i64: 1, 1, 32>}, {transform_indices = @transform_8, window_bounds = array<i64: 1, 32, 96>}, {transform_indices = @transform_9, window_bounds = array<i64: 1, 1, 96>}, {transform_indices = @transform_10, window_bounds = array<i64: 1, 32, 32>}, {transform_indices = @transform_11, window_bounds = array<i64: 1, 1, 32>}, {transform_indices = @transform_12, window_bounds = array<i64: 1, 1, 32>}, {transform_indices = @transform_13, window_bounds = array<i64: 1, 1, 32>}, {transform_indices = @transform_14, window_bounds = array<i64: 1, 32, 128>}, {transform_indices = @transform_15, window_bounds = array<i64: 1, 1, 128>}, {transform_indices = @transform_16, window_bounds = array<i64: 1, 128, 32>}, {transform_indices = @transform_17, window_bounds = array<i64: 1, 1, 32>}, {pipeline_mode = #tpu.pipeline_mode<synchronous>, transform_indices = @transform_18, window_bounds = array<i64: 1, 32>}, {pipeline_mode = #tpu.pipeline_mode<synchronous>, transform_indices = @transform_19, window_bounds = array<i64: 1, 32>}, {pipeline_mode = #tpu.pipeline_mode<synchronous>, transform_indices = @transform_20, window_bounds = array<i64: 32, 32>}, {pipeline_mode = #tpu.pipeline_mode<synchronous>, transform_indices = @transform_21, window_bounds = array<i64: 3, 1, 32>}, {pipeline_mode = #tpu.pipeline_mode<synchronous>, transform_indices = @transform_22, window_bounds = array<i64: 4, 32>}, {pipeline_mode = #tpu.pipeline_mode<synchronous>, transform_indices = @transform_23, window_bounds = array<i64: 3, 3, 32>}, {pipeline_mode = #tpu.pipeline_mode<synchronous>, transform_indices = @transform_24, window_bounds = array<i64: 8, 32>}, {transform_indices = @transform_25, window_bounds = array<i64: 1, 1, 32>}, {transform_indices = @transform_26, window_bounds = array<i64: 1, 1, 32>}, {transform_indices = @transform_27, window_bounds = array<i64: 1, 32, 96>}, {transform_indices = @transform_28, window_bounds = array<i64: 1, 1, 96>}, {transform_indices = @transform_29, window_bounds = array<i64: 1, 32, 32>}, {transform_indices = @transform_30, window_bounds = array<i64: 1, 1, 32>}, {transform_indices = @transform_31, window_bounds = array<i64: 1, 1, 32>}, {transform_indices = @transform_32, window_bounds = array<i64: 1, 1, 32>}, {transform_indices = @transform_33, window_bounds = array<i64: 1, 32, 128>}, {transform_indices = @transform_34, window_bounds = array<i64: 1, 1, 128>}, {transform_indices = @transform_35, window_bounds = array<i64: 1, 128, 32>}, {transform_indices = @transform_36, window_bounds = array<i64: 1, 1, 32>}, {pipeline_mode = #tpu.pipeline_mode<synchronous>, transform_indices = @transform_37, window_bounds = array<i64: 1, 32>}, {pipeline_mode = #tpu.pipeline_mode<synchronous>, transform_indices = @transform_38, window_bounds = array<i64: 1, 32>}, {pipeline_mode = #tpu.pipeline_mode<synchronous>, transform_indices = @transform_39, window_bounds = array<i64: 32, 32>}, {pipeline_mode = #tpu.pipeline_mode<synchronous>, transform_indices = @transform_40, window_bounds = array<i64: 1, 1>}, {pipeline_mode = #tpu.pipeline_mode<synchronous>, transform_indices = @transform_41, window_bounds = array<i64: 2, 3>}]} {
    %c0_i32 = arith.constant 0 : i32
    %0 = arith.cmpi eq, %arg0, %c0_i32 : i32
    %1 = arith.extui %0 : i1 to i32
    %c0_i32_0 = arith.constant 0 : i32
    %2 = arith.cmpi ne, %1, %c0_i32_0 : i32
    scf.if %2 {
      %c0_282 = arith.constant 0 : index
      %c0_283 = arith.constant 0 : index
      %862 = vector.load %arg2[%c0_282, %c0_283] : memref<8x192xf32, #tpu.memory_space<vmem>>, vector<8x192xf32>
      %c0_284 = arith.constant 0 : index
      %c0_285 = arith.constant 0 : index
      %863 = vector.load %arg3[%c0_284, %c0_285] : memref<192x32xbf16, #tpu.memory_space<vmem>>, vector<192x32xbf16>
      %864 = arith.truncf %862 : vector<8x192xf32> to vector<8x192xbf16>
      %cst_286 = arith.constant dense<0.000000e+00> : vector<8x32xf32>
      %865 = tpu.matmul %864, %863, %cst_286 {dimension_numbers = #tpu.dot_dimension_numbers<[1], [0], [0], [1], [0, 0, 1, 1], [], []>} : vector<8x192xbf16>, vector<192x32xbf16>, vector<8x32xf32> -> vector<8x32xf32>
      %c0_287 = arith.constant 0 : index
      %c0_288 = arith.constant 0 : index
      %866 = vector.load %arg4[%c0_287, %c0_288] : memref<1x32xf32, #tpu.memory_space<vmem>>, vector<1x32xf32>
      %c0_289 = arith.constant 0 : index
      %c0_290 = arith.constant 0 : index
      %867 = vector.load %arg5[%c0_289, %c0_290] : memref<5x32xf32, #tpu.memory_space<vmem>>, vector<5x32xf32>
      %c0_291 = arith.constant 0 : index
      %c0_292 = arith.constant 0 : index
      %868 = vector.load %arg6[%c0_291, %c0_292] : memref<1x32xf32, #tpu.memory_space<vmem>>, vector<1x32xf32>
      %c0_293 = arith.constant 0 : index
      %c0_294 = arith.constant 0 : index
      %869 = vector.load %arg7[%c0_293, %c0_294] : memref<1x32xf32, #tpu.memory_space<vmem>>, vector<1x32xf32>
      %870 = vector.extract_strided_slice %865 {offsets = [0, 0], sizes = [4, 32], strides = [1, 1]} : vector<8x32xf32> to vector<4x32xf32>
      %871 = tpu.concatenate %866, %870 in 0 : vector<1x32xf32>, vector<4x32xf32> -> vector<5x32xf32>
      %872 = arith.addf %871, %867 : vector<5x32xf32>
      %cst_295 = arith.constant dense<0.000000e+00> : vector<5xf32>
      %873 = vector.multi_reduction <add>, %872, %cst_295 [1] : vector<5x32xf32> to vector<5xf32>
      %874 = vector.shape_cast %873 : vector<5xf32> to vector<5x1xf32>
      %cst_296 = arith.constant 3.200000e+01 : f32
      %875 = vector.broadcast %cst_296 : f32 to vector<5x1xf32>
      %876 = arith.divf %874, %875 : vector<5x1xf32>
      %877 = vector.broadcast %876 : vector<5x1xf32> to vector<5x32xf32>
      %878 = arith.subf %872, %877 : vector<5x32xf32>
      %879 = arith.mulf %878, %878 : vector<5x32xf32>
      %cst_297 = arith.constant dense<0.000000e+00> : vector<5xf32>
      %880 = vector.multi_reduction <add>, %879, %cst_297 [1] : vector<5x32xf32> to vector<5xf32>
      %881 = vector.shape_cast %880 : vector<5xf32> to vector<5x1xf32>
      %cst_298 = arith.constant 3.200000e+01 : f32
      %882 = vector.broadcast %cst_298 : f32 to vector<5x1xf32>
      %883 = arith.divf %881, %882 : vector<5x1xf32>
      %884 = vector.broadcast %876 : vector<5x1xf32> to vector<5x32xf32>
      %885 = arith.subf %872, %884 : vector<5x32xf32>
      %cst_299 = arith.constant 9.99999974E-6 : f32
      %886 = vector.broadcast %cst_299 : f32 to vector<5x1xf32>
      %887 = arith.addf %883, %886 : vector<5x1xf32>
      %888 = math.rsqrt %887 : vector<5x1xf32>
      %889 = vector.broadcast %888 : vector<5x1xf32> to vector<5x32xf32>
      %890 = arith.mulf %885, %889 : vector<5x32xf32>
      %891 = vector.broadcast %868 : vector<1x32xf32> to vector<5x32xf32>
      %892 = arith.mulf %890, %891 : vector<5x32xf32>
      %893 = vector.broadcast %869 : vector<1x32xf32> to vector<5x32xf32>
      %894 = arith.addf %892, %893 : vector<5x32xf32>
      %c0_300 = arith.constant 0 : index
      %c0_301 = arith.constant 0 : index
      %c0_302 = arith.constant 0 : index
      %895 = vector.load %arg44[%c0_300, %c0_301, %c0_302] : memref<2x5x32xf32, #tpu.memory_space<vmem>>, vector<1x5x32xf32>
      %896 = vector.shape_cast %895 : vector<1x5x32xf32> to vector<5x32xf32>
      %897 = vector.shape_cast %894 : vector<5x32xf32> to vector<1x5x32xf32>
      tpu.vector_store %arg44[%c0_300, %c0_301, %c0_302], %897 {strides = array<i32>} : memref<2x5x32xf32, #tpu.memory_space<vmem>>, vector<1x5x32xf32>,
      %898 = vector.extract_strided_slice %865 {offsets = [4, 0], sizes = [4, 32], strides = [1, 1]} : vector<8x32xf32> to vector<4x32xf32>
      %899 = tpu.concatenate %866, %898 in 0 : vector<1x32xf32>, vector<4x32xf32> -> vector<5x32xf32>
      %900 = arith.addf %899, %867 : vector<5x32xf32>
      %cst_303 = arith.constant dense<0.000000e+00> : vector<5xf32>
      %901 = vector.multi_reduction <add>, %900, %cst_303 [1] : vector<5x32xf32> to vector<5xf32>
      %902 = vector.shape_cast %901 : vector<5xf32> to vector<5x1xf32>
      %cst_304 = arith.constant 3.200000e+01 : f32
      %903 = vector.broadcast %cst_304 : f32 to vector<5x1xf32>
      %904 = arith.divf %902, %903 : vector<5x1xf32>
      %905 = vector.broadcast %904 : vector<5x1xf32> to vector<5x32xf32>
      %906 = arith.subf %900, %905 : vector<5x32xf32>
      %907 = arith.mulf %906, %906 : vector<5x32xf32>
      %cst_305 = arith.constant dense<0.000000e+00> : vector<5xf32>
      %908 = vector.multi_reduction <add>, %907, %cst_305 [1] : vector<5x32xf32> to vector<5xf32>
      %909 = vector.shape_cast %908 : vector<5xf32> to vector<5x1xf32>
      %cst_306 = arith.constant 3.200000e+01 : f32
      %910 = vector.broadcast %cst_306 : f32 to vector<5x1xf32>
      %911 = arith.divf %909, %910 : vector<5x1xf32>
      %912 = vector.broadcast %904 : vector<5x1xf32> to vector<5x32xf32>
      %913 = arith.subf %900, %912 : vector<5x32xf32>
      %cst_307 = arith.constant 9.99999974E-6 : f32
      %914 = vector.broadcast %cst_307 : f32 to vector<5x1xf32>
      %915 = arith.addf %911, %914 : vector<5x1xf32>
      %916 = math.rsqrt %915 : vector<5x1xf32>
      %917 = vector.broadcast %916 : vector<5x1xf32> to vector<5x32xf32>
      %918 = arith.mulf %913, %917 : vector<5x32xf32>
      %919 = vector.broadcast %868 : vector<1x32xf32> to vector<5x32xf32>
      %920 = arith.mulf %918, %919 : vector<5x32xf32>
      %921 = vector.broadcast %869 : vector<1x32xf32> to vector<5x32xf32>
      %922 = arith.addf %920, %921 : vector<5x32xf32>
      %c1_308 = arith.constant 1 : index
      %c0_309 = arith.constant 0 : index
      %c0_310 = arith.constant 0 : index
      %923 = vector.load %arg44[%c1_308, %c0_309, %c0_310] : memref<2x5x32xf32, #tpu.memory_space<vmem>>, vector<1x5x32xf32>
      %924 = vector.shape_cast %923 : vector<1x5x32xf32> to vector<5x32xf32>
      %925 = vector.shape_cast %922 : vector<5x32xf32> to vector<1x5x32xf32>
      tpu.vector_store %arg44[%c1_308, %c0_309, %c0_310], %925 {strides = array<i32>} : memref<2x5x32xf32, #tpu.memory_space<vmem>>, vector<1x5x32xf32>,
      %c0_311 = arith.constant 0 : index
      %c0_312 = arith.constant 0 : index
      %926 = vector.load %arg24[%c0_311, %c0_312] : memref<4x32xf32, #tpu.memory_space<vmem>>, vector<4x32xf32>
      %c0_313 = arith.constant 0 : index
      %c0_314 = arith.constant 0 : index
      %927 = vector.load %arg26[%c0_313, %c0_314] : memref<8x32xf32, #tpu.memory_space<vmem>>, vector<8x32xf32>
      %c0_315 = arith.constant 0 : index
      %c0_316 = arith.constant 0 : index
      %c0_317 = arith.constant 0 : index
      %928 = vector.load %arg23[%c0_315, %c0_316, %c0_317] : memref<3x1x32xf32, #tpu.memory_space<vmem>>, vector<1x1x32xf32>
      %929 = vector.shape_cast %928 : vector<1x1x32xf32> to vector<1x32xf32>
      %c0_318 = arith.constant 0 : index
      %c0_319 = arith.constant 0 : index
      %c0_320 = arith.constant 0 : index
      %930 = vector.load %arg25[%c0_318, %c0_319, %c0_320] : memref<3x3x32xf32, #tpu.memory_space<vmem>>, vector<1x3x32xf32>
      %931 = vector.shape_cast %930 : vector<1x3x32xf32> to vector<3x32xf32>
      %932 = tpu.concatenate %929, %926, %931 in 0 : vector<1x32xf32>, vector<4x32xf32>, vector<3x32xf32> -> vector<8x32xf32>
      %933 = arith.addf %932, %927 : vector<8x32xf32>
      %c0_321 = arith.constant 0 : index
      %c0_322 = arith.constant 0 : index
      %c0_323 = arith.constant 0 : index
      %934 = vector.load %arg45[%c0_321, %c0_322, %c0_323] : memref<3x8x32xf32, #tpu.memory_space<vmem>>, vector<1x8x32xf32>
      %935 = vector.shape_cast %934 : vector<1x8x32xf32> to vector<8x32xf32>
      %936 = vector.shape_cast %933 : vector<8x32xf32> to vector<1x8x32xf32>
      tpu.vector_store %arg45[%c0_321, %c0_322, %c0_323], %936 {strides = array<i32>} : memref<3x8x32xf32, #tpu.memory_space<vmem>>, vector<1x8x32xf32>,
      %c1_324 = arith.constant 1 : index
      %c0_325 = arith.constant 0 : index
      %c0_326 = arith.constant 0 : index
      %937 = vector.load %arg23[%c1_324, %c0_325, %c0_326] : memref<3x1x32xf32, #tpu.memory_space<vmem>>, vector<1x1x32xf32>
      %938 = vector.shape_cast %937 : vector<1x1x32xf32> to vector<1x32xf32>
      %c1_327 = arith.constant 1 : index
      %c0_328 = arith.constant 0 : index
      %c0_329 = arith.constant 0 : index
      %939 = vector.load %arg25[%c1_327, %c0_328, %c0_329] : memref<3x3x32xf32, #tpu.memory_space<vmem>>, vector<1x3x32xf32>
      %940 = vector.shape_cast %939 : vector<1x3x32xf32> to vector<3x32xf32>
      %941 = tpu.concatenate %938, %926, %940 in 0 : vector<1x32xf32>, vector<4x32xf32>, vector<3x32xf32> -> vector<8x32xf32>
      %942 = arith.addf %941, %927 : vector<8x32xf32>
      %c1_330 = arith.constant 1 : index
      %c0_331 = arith.constant 0 : index
      %c0_332 = arith.constant 0 : index
      %943 = vector.load %arg45[%c1_330, %c0_331, %c0_332] : memref<3x8x32xf32, #tpu.memory_space<vmem>>, vector<1x8x32xf32>
      %944 = vector.shape_cast %943 : vector<1x8x32xf32> to vector<8x32xf32>
      %945 = vector.shape_cast %942 : vector<8x32xf32> to vector<1x8x32xf32>
      tpu.vector_store %arg45[%c1_330, %c0_331, %c0_332], %945 {strides = array<i32>} : memref<3x8x32xf32, #tpu.memory_space<vmem>>, vector<1x8x32xf32>,
      %c2_333 = arith.constant 2 : index
      %c0_334 = arith.constant 0 : index
      %c0_335 = arith.constant 0 : index
      %946 = vector.load %arg23[%c2_333, %c0_334, %c0_335] : memref<3x1x32xf32, #tpu.memory_space<vmem>>, vector<1x1x32xf32>
      %947 = vector.shape_cast %946 : vector<1x1x32xf32> to vector<1x32xf32>
      %c2_336 = arith.constant 2 : index
      %c0_337 = arith.constant 0 : index
      %c0_338 = arith.constant 0 : index
      %948 = vector.load %arg25[%c2_336, %c0_337, %c0_338] : memref<3x3x32xf32, #tpu.memory_space<vmem>>, vector<1x3x32xf32>
      %949 = vector.shape_cast %948 : vector<1x3x32xf32> to vector<3x32xf32>
      %950 = tpu.concatenate %947, %926, %949 in 0 : vector<1x32xf32>, vector<4x32xf32>, vector<3x32xf32> -> vector<8x32xf32>
      %951 = arith.addf %950, %927 : vector<8x32xf32>
      %c2_339 = arith.constant 2 : index
      %c0_340 = arith.constant 0 : index
      %c0_341 = arith.constant 0 : index
      %952 = vector.load %arg45[%c2_339, %c0_340, %c0_341] : memref<3x8x32xf32, #tpu.memory_space<vmem>>, vector<1x8x32xf32>
      %953 = vector.shape_cast %952 : vector<1x8x32xf32> to vector<8x32xf32>
      %954 = vector.shape_cast %951 : vector<8x32xf32> to vector<1x8x32xf32>
      tpu.vector_store %arg45[%c2_339, %c0_340, %c0_341], %954 {strides = array<i32>} : memref<3x8x32xf32, #tpu.memory_space<vmem>>, vector<1x8x32xf32>,
      %955 = tpu.iota {dimensions = array<i32: 0>} : vector<8x8xi32>
      %956 = tpu.iota {dimensions = array<i32: 1>} : vector<8x8xi32>
      %957 = arith.cmpi sgt, %956, %955 : vector<8x8xi32>
      %cst_342 = arith.constant -1.000000e+30 : f32
      %cst_343 = arith.constant 0.000000e+00 : f32
      %958 = vector.broadcast %cst_342 : f32 to vector<8x8xf32>
      %959 = vector.broadcast %cst_343 : f32 to vector<8x8xf32>
      %960 = arith.select %957, %958, %959 : vector<8x8xi1>, vector<8x8xf32>
      %c0_344 = arith.constant 0 : index
      %c0_345 = arith.constant 0 : index
      %961 = vector.load %arg46[%c0_344, %c0_345] : memref<8x8xf32, #tpu.memory_space<vmem>>, vector<8x8xf32>
      tpu.vector_store %arg46[%c0_344, %c0_345], %960 {strides = array<i32>} : memref<8x8xf32, #tpu.memory_space<vmem>>, vector<8x8xf32>,
    } else {
    }
    %c0 = arith.constant 0 : index
    %c0_1 = arith.constant 0 : index
    %c0_2 = arith.constant 0 : index
    %3 = vector.load %arg8[%c0, %c0_1, %c0_2] : memref<1x1x32xf32, #tpu.memory_space<vmem>>, vector<1x1x32xf32>
    %4 = vector.shape_cast %3 : vector<1x1x32xf32> to vector<1x32xf32>
    %c0_3 = arith.constant 0 : index
    %c0_4 = arith.constant 0 : index
    %c0_5 = arith.constant 0 : index
    %5 = vector.load %arg9[%c0_3, %c0_4, %c0_5] : memref<1x1x32xf32, #tpu.memory_space<vmem>>, vector<1x1x32xf32>
    %6 = vector.shape_cast %5 : vector<1x1x32xf32> to vector<1x32xf32>
    %c0_6 = arith.constant 0 : index
    %c0_7 = arith.constant 0 : index
    %c0_8 = arith.constant 0 : index
    %7 = vector.load %arg14[%c0_6, %c0_7, %c0_8] : memref<1x1x32xf32, #tpu.memory_space<vmem>>, vector<1x1x32xf32>
    %8 = vector.shape_cast %7 : vector<1x1x32xf32> to vector<1x32xf32>
    %c0_9 = arith.constant 0 : index
    %c0_10 = arith.constant 0 : index
    %c0_11 = arith.constant 0 : index
    %9 = vector.load %arg15[%c0_9, %c0_10, %c0_11] : memref<1x1x32xf32, #tpu.memory_space<vmem>>, vector<1x1x32xf32>
    %10 = vector.shape_cast %9 : vector<1x1x32xf32> to vector<1x32xf32>
    %c0_12 = arith.constant 0 : index
    %c0_13 = arith.constant 0 : index
    %c0_14 = arith.constant 0 : index
    %11 = vector.load %arg10[%c0_12, %c0_13, %c0_14] : memref<1x32x96xbf16, #tpu.memory_space<vmem>>, vector<1x32x96xbf16>
    %12 = vector.shape_cast %11 : vector<1x32x96xbf16> to vector<32x96xbf16>
    %c0_15 = arith.constant 0 : index
    %c0_16 = arith.constant 0 : index
    %c0_17 = arith.constant 0 : index
    %13 = vector.load %arg11[%c0_15, %c0_16, %c0_17] : memref<1x1x96xf32, #tpu.memory_space<vmem>>, vector<1x1x96xf32>
    %14 = vector.shape_cast %13 : vector<1x1x96xf32> to vector<1x96xf32>
    %c0_18 = arith.constant 0 : index
    %c0_19 = arith.constant 0 : index
    %c0_20 = arith.constant 0 : index
    %15 = vector.load %arg12[%c0_18, %c0_19, %c0_20] : memref<1x32x32xbf16, #tpu.memory_space<vmem>>, vector<1x32x32xbf16>
    %16 = vector.shape_cast %15 : vector<1x32x32xbf16> to vector<32x32xbf16>
    %c0_21 = arith.constant 0 : index
    %c0_22 = arith.constant 0 : index
    %c0_23 = arith.constant 0 : index
    %17 = vector.load %arg13[%c0_21, %c0_22, %c0_23] : memref<1x1x32xf32, #tpu.memory_space<vmem>>, vector<1x1x32xf32>
    %18 = vector.shape_cast %17 : vector<1x1x32xf32> to vector<1x32xf32>
    %c0_24 = arith.constant 0 : index
    %c0_25 = arith.constant 0 : index
    %c0_26 = arith.constant 0 : index
    %19 = vector.load %arg16[%c0_24, %c0_25, %c0_26] : memref<1x32x128xbf16, #tpu.memory_space<vmem>>, vector<1x32x128xbf16>
    %20 = vector.shape_cast %19 : vector<1x32x128xbf16> to vector<32x128xbf16>
    %c0_27 = arith.constant 0 : index
    %c0_28 = arith.constant 0 : index
    %c0_29 = arith.constant 0 : index
    %21 = vector.load %arg17[%c0_27, %c0_28, %c0_29] : memref<1x1x128xf32, #tpu.memory_space<vmem>>, vector<1x1x128xf32>
    %22 = vector.shape_cast %21 : vector<1x1x128xf32> to vector<1x128xf32>
    %c0_30 = arith.constant 0 : index
    %c0_31 = arith.constant 0 : index
    %c0_32 = arith.constant 0 : index
    %23 = vector.load %arg18[%c0_30, %c0_31, %c0_32] : memref<1x128x32xbf16, #tpu.memory_space<vmem>>, vector<1x128x32xbf16>
    %24 = vector.shape_cast %23 : vector<1x128x32xbf16> to vector<128x32xbf16>
    %c0_33 = arith.constant 0 : index
    %c0_34 = arith.constant 0 : index
    %c0_35 = arith.constant 0 : index
    %25 = vector.load %arg19[%c0_33, %c0_34, %c0_35] : memref<1x1x32xf32, #tpu.memory_space<vmem>>, vector<1x1x32xf32>
    %26 = vector.shape_cast %25 : vector<1x1x32xf32> to vector<1x32xf32>
    %c0_36 = arith.constant 0 : index
    %c0_37 = arith.constant 0 : index
    %c0_38 = arith.constant 0 : index
    %27 = vector.load %arg44[%c0_36, %c0_37, %c0_38] : memref<2x5x32xf32, #tpu.memory_space<vmem>>, vector<1x5x32xf32>
    %28 = vector.shape_cast %27 : vector<1x5x32xf32> to vector<5x32xf32>
    %cst = arith.constant dense<0.000000e+00> : vector<5xf32>
    %29 = vector.multi_reduction <add>, %28, %cst [1] : vector<5x32xf32> to vector<5xf32>
    %30 = vector.shape_cast %29 : vector<5xf32> to vector<5x1xf32>
    %cst_39 = arith.constant 3.200000e+01 : f32
    %31 = vector.broadcast %cst_39 : f32 to vector<5x1xf32>
    %32 = arith.divf %30, %31 : vector<5x1xf32>
    %33 = vector.broadcast %32 : vector<5x1xf32> to vector<5x32xf32>
    %34 = arith.subf %28, %33 : vector<5x32xf32>
    %35 = arith.mulf %34, %34 : vector<5x32xf32>
    %cst_40 = arith.constant dense<0.000000e+00> : vector<5xf32>
    %36 = vector.multi_reduction <add>, %35, %cst_40 [1] : vector<5x32xf32> to vector<5xf32>
    %37 = vector.shape_cast %36 : vector<5xf32> to vector<5x1xf32>
    %cst_41 = arith.constant 3.200000e+01 : f32
    %38 = vector.broadcast %cst_41 : f32 to vector<5x1xf32>
    %39 = arith.divf %37, %38 : vector<5x1xf32>
    %40 = vector.broadcast %32 : vector<5x1xf32> to vector<5x32xf32>
    %41 = arith.subf %28, %40 : vector<5x32xf32>
    %cst_42 = arith.constant 9.99999974E-6 : f32
    %42 = vector.broadcast %cst_42 : f32 to vector<5x1xf32>
    %43 = arith.addf %39, %42 : vector<5x1xf32>
    %44 = math.rsqrt %43 : vector<5x1xf32>
    %45 = vector.broadcast %44 : vector<5x1xf32> to vector<5x32xf32>
    %46 = arith.mulf %41, %45 : vector<5x32xf32>
    %47 = vector.broadcast %4 : vector<1x32xf32> to vector<5x32xf32>
    %48 = arith.mulf %46, %47 : vector<5x32xf32>
    %49 = vector.broadcast %6 : vector<1x32xf32> to vector<5x32xf32>
    %50 = arith.addf %48, %49 : vector<5x32xf32>
    %51 = arith.truncf %50 : vector<5x32xf32> to vector<5x32xbf16>
    %cst_43 = arith.constant dense<0.000000e+00> : vector<5x96xf32>
    %52 = tpu.matmul %51, %12, %cst_43 {dimension_numbers = #tpu.dot_dimension_numbers<[1], [0], [0], [1], [0, 0, 1, 1], [], []>} : vector<5x32xbf16>, vector<32x96xbf16>, vector<5x96xf32> -> vector<5x96xf32>
    %53 = vector.broadcast %14 : vector<1x96xf32> to vector<5x96xf32>
    %54 = arith.addf %52, %53 : vector<5x96xf32>
    %55 = vector.extract_strided_slice %54 {offsets = [0, 0], sizes = [5, 8], strides = [1, 1]} : vector<5x96xf32> to vector<5x8xf32>
    %56 = arith.truncf %55 : vector<5x8xf32> to vector<5x8xbf16>
    %57 = vector.extract_strided_slice %54 {offsets = [0, 32], sizes = [5, 8], strides = [1, 1]} : vector<5x96xf32> to vector<5x8xf32>
    %58 = arith.truncf %57 : vector<5x8xf32> to vector<5x8xbf16>
    %59 = vector.extract_strided_slice %54 {offsets = [0, 64], sizes = [5, 8], strides = [1, 1]} : vector<5x96xf32> to vector<5x8xf32>
    %cst_44 = arith.constant dense<0.000000e+00> : vector<5x5xf32>
    %60 = tpu.matmul %56, %58, %cst_44 {dimension_numbers = #tpu.dot_dimension_numbers<[1], [1], [0], [0], [0, 0, 1, 0], [], []>} : vector<5x8xbf16>, vector<5x8xbf16>, vector<5x5xf32> -> vector<5x5xf32>
    %cst_45 = arith.constant 0.353553385 : f32
    %61 = vector.broadcast %cst_45 : f32 to vector<5x5xf32>
    %62 = arith.mulf %60, %61 : vector<5x5xf32>
    %cst_46 = arith.constant dense<0xFF800000> : vector<5xf32>
    %63 = vector.multi_reduction <maximumf>, %62, %cst_46 [1] : vector<5x5xf32> to vector<5xf32>
    %64 = vector.shape_cast %63 : vector<5xf32> to vector<5x1xf32>
    %65 = vector.broadcast %64 : vector<5x1xf32> to vector<5x5xf32>
    %66 = arith.subf %62, %65 : vector<5x5xf32>
    %67 = math.exp %66 : vector<5x5xf32>
    %cst_47 = arith.constant dense<0.000000e+00> : vector<5xf32>
    %68 = vector.multi_reduction <add>, %67, %cst_47 [1] : vector<5x5xf32> to vector<5xf32>
    %69 = vector.shape_cast %68 : vector<5xf32> to vector<5x1xf32>
    %70 = tpu.reciprocal %69 {approx = true} : vector<5x1xf32> -> vector<5x1xf32>
    %71 = vector.broadcast %70 : vector<5x1xf32> to vector<5x5xf32>
    %72 = arith.mulf %67, %71 : vector<5x5xf32>
    %73 = arith.truncf %72 : vector<5x5xf32> to vector<5x5xbf16>
    %74 = arith.truncf %59 : vector<5x8xf32> to vector<5x8xbf16>
    %cst_48 = arith.constant dense<0.000000e+00> : vector<5x8xf32>
    %75 = tpu.matmul %73, %74, %cst_48 {dimension_numbers = #tpu.dot_dimension_numbers<[1], [0], [0], [1], [0, 0, 1, 1], [], []>} : vector<5x5xbf16>, vector<5x8xbf16>, vector<5x8xf32> -> vector<5x8xf32>
    %76 = vector.extract_strided_slice %54 {offsets = [0, 8], sizes = [5, 8], strides = [1, 1]} : vector<5x96xf32> to vector<5x8xf32>
    %77 = arith.truncf %76 : vector<5x8xf32> to vector<5x8xbf16>
    %78 = vector.extract_strided_slice %54 {offsets = [0, 40], sizes = [5, 8], strides = [1, 1]} : vector<5x96xf32> to vector<5x8xf32>
    %79 = arith.truncf %78 : vector<5x8xf32> to vector<5x8xbf16>
    %80 = vector.extract_strided_slice %54 {offsets = [0, 72], sizes = [5, 8], strides = [1, 1]} : vector<5x96xf32> to vector<5x8xf32>
    %cst_49 = arith.constant dense<0.000000e+00> : vector<5x5xf32>
    %81 = tpu.matmul %77, %79, %cst_49 {dimension_numbers = #tpu.dot_dimension_numbers<[1], [1], [0], [0], [0, 0, 1, 0], [], []>} : vector<5x8xbf16>, vector<5x8xbf16>, vector<5x5xf32> -> vector<5x5xf32>
    %cst_50 = arith.constant 0.353553385 : f32
    %82 = vector.broadcast %cst_50 : f32 to vector<5x5xf32>
    %83 = arith.mulf %81, %82 : vector<5x5xf32>
    %cst_51 = arith.constant dense<0xFF800000> : vector<5xf32>
    %84 = vector.multi_reduction <maximumf>, %83, %cst_51 [1] : vector<5x5xf32> to vector<5xf32>
    %85 = vector.shape_cast %84 : vector<5xf32> to vector<5x1xf32>
    %86 = vector.broadcast %85 : vector<5x1xf32> to vector<5x5xf32>
    %87 = arith.subf %83, %86 : vector<5x5xf32>
    %88 = math.exp %87 : vector<5x5xf32>
    %cst_52 = arith.constant dense<0.000000e+00> : vector<5xf32>
    %89 = vector.multi_reduction <add>, %88, %cst_52 [1] : vector<5x5xf32> to vector<5xf32>
    %90 = vector.shape_cast %89 : vector<5xf32> to vector<5x1xf32>
    %91 = tpu.reciprocal %90 {approx = true} : vector<5x1xf32> -> vector<5x1xf32>
    %92 = vector.broadcast %91 : vector<5x1xf32> to vector<5x5xf32>
    %93 = arith.mulf %88, %92 : vector<5x5xf32>
    %94 = arith.truncf %93 : vector<5x5xf32> to vector<5x5xbf16>
    %95 = arith.truncf %80 : vector<5x8xf32> to vector<5x8xbf16>
    %cst_53 = arith.constant dense<0.000000e+00> : vector<5x8xf32>
    %96 = tpu.matmul %94, %95, %cst_53 {dimension_numbers = #tpu.dot_dimension_numbers<[1], [0], [0], [1], [0, 0, 1, 1], [], []>} : vector<5x5xbf16>, vector<5x8xbf16>, vector<5x8xf32> -> vector<5x8xf32>
    %97 = vector.extract_strided_slice %54 {offsets = [0, 16], sizes = [5, 8], strides = [1, 1]} : vector<5x96xf32> to vector<5x8xf32>
    %98 = arith.truncf %97 : vector<5x8xf32> to vector<5x8xbf16>
    %99 = vector.extract_strided_slice %54 {offsets = [0, 48], sizes = [5, 8], strides = [1, 1]} : vector<5x96xf32> to vector<5x8xf32>
    %100 = arith.truncf %99 : vector<5x8xf32> to vector<5x8xbf16>
    %101 = vector.extract_strided_slice %54 {offsets = [0, 80], sizes = [5, 8], strides = [1, 1]} : vector<5x96xf32> to vector<5x8xf32>
    %cst_54 = arith.constant dense<0.000000e+00> : vector<5x5xf32>
    %102 = tpu.matmul %98, %100, %cst_54 {dimension_numbers = #tpu.dot_dimension_numbers<[1], [1], [0], [0], [0, 0, 1, 0], [], []>} : vector<5x8xbf16>, vector<5x8xbf16>, vector<5x5xf32> -> vector<5x5xf32>
    %cst_55 = arith.constant 0.353553385 : f32
    %103 = vector.broadcast %cst_55 : f32 to vector<5x5xf32>
    %104 = arith.mulf %102, %103 : vector<5x5xf32>
    %cst_56 = arith.constant dense<0xFF800000> : vector<5xf32>
    %105 = vector.multi_reduction <maximumf>, %104, %cst_56 [1] : vector<5x5xf32> to vector<5xf32>
    %106 = vector.shape_cast %105 : vector<5xf32> to vector<5x1xf32>
    %107 = vector.broadcast %106 : vector<5x1xf32> to vector<5x5xf32>
    %108 = arith.subf %104, %107 : vector<5x5xf32>
    %109 = math.exp %108 : vector<5x5xf32>
    %cst_57 = arith.constant dense<0.000000e+00> : vector<5xf32>
    %110 = vector.multi_reduction <add>, %109, %cst_57 [1] : vector<5x5xf32> to vector<5xf32>
    %111 = vector.shape_cast %110 : vector<5xf32> to vector<5x1xf32>
    %112 = tpu.reciprocal %111 {approx = true} : vector<5x1xf32> -> vector<5x1xf32>
    %113 = vector.broadcast %112 : vector<5x1xf32> to vector<5x5xf32>
    %114 = arith.mulf %109, %113 : vector<5x5xf32>
    %115 = arith.truncf %114 : vector<5x5xf32> to vector<5x5xbf16>
    %116 = arith.truncf %101 : vector<5x8xf32> to vector<5x8xbf16>
    %cst_58 = arith.constant dense<0.000000e+00> : vector<5x8xf32>
    %117 = tpu.matmul %115, %116, %cst_58 {dimension_numbers = #tpu.dot_dimension_numbers<[1], [0], [0], [1], [0, 0, 1, 1], [], []>} : vector<5x5xbf16>, vector<5x8xbf16>, vector<5x8xf32> -> vector<5x8xf32>
    %118 = vector.extract_strided_slice %54 {offsets = [0, 24], sizes = [5, 8], strides = [1, 1]} : vector<5x96xf32> to vector<5x8xf32>
    %119 = arith.truncf %118 : vector<5x8xf32> to vector<5x8xbf16>
    %120 = vector.extract_strided_slice %54 {offsets = [0, 56], sizes = [5, 8], strides = [1, 1]} : vector<5x96xf32> to vector<5x8xf32>
    %121 = arith.truncf %120 : vector<5x8xf32> to vector<5x8xbf16>
    %122 = vector.extract_strided_slice %54 {offsets = [0, 88], sizes = [5, 8], strides = [1, 1]} : vector<5x96xf32> to vector<5x8xf32>
    %cst_59 = arith.constant dense<0.000000e+00> : vector<5x5xf32>
    %123 = tpu.matmul %119, %121, %cst_59 {dimension_numbers = #tpu.dot_dimension_numbers<[1], [1], [0], [0], [0, 0, 1, 0], [], []>} : vector<5x8xbf16>, vector<5x8xbf16>, vector<5x5xf32> -> vector<5x5xf32>
    %cst_60 = arith.constant 0.353553385 : f32
    %124 = vector.broadcast %cst_60 : f32 to vector<5x5xf32>
    %125 = arith.mulf %123, %124 : vector<5x5xf32>
    %cst_61 = arith.constant dense<0xFF800000> : vector<5xf32>
    %126 = vector.multi_reduction <maximumf>, %125, %cst_61 [1] : vector<5x5xf32> to vector<5xf32>
    %127 = vector.shape_cast %126 : vector<5xf32> to vector<5x1xf32>
    %128 = vector.broadcast %127 : vector<5x1xf32> to vector<5x5xf32>
    %129 = arith.subf %125, %128 : vector<5x5xf32>
    %130 = math.exp %129 : vector<5x5xf32>
    %cst_62 = arith.constant dense<0.000000e+00> : vector<5xf32>
    %131 = vector.multi_reduction <add>, %130, %cst_62 [1] : vector<5x5xf32> to vector<5xf32>
    %132 = vector.shape_cast %131 : vector<5xf32> to vector<5x1xf32>
    %133 = tpu.reciprocal %132 {approx = true} : vector<5x1xf32> -> vector<5x1xf32>
    %134 = vector.broadcast %133 : vector<5x1xf32> to vector<5x5xf32>
    %135 = arith.mulf %130, %134 : vector<5x5xf32>
    %136 = arith.truncf %135 : vector<5x5xf32> to vector<5x5xbf16>
    %137 = arith.truncf %122 : vector<5x8xf32> to vector<5x8xbf16>
    %cst_63 = arith.constant dense<0.000000e+00> : vector<5x8xf32>
    %138 = tpu.matmul %136, %137, %cst_63 {dimension_numbers = #tpu.dot_dimension_numbers<[1], [0], [0], [1], [0, 0, 1, 1], [], []>} : vector<5x5xbf16>, vector<5x8xbf16>, vector<5x8xf32> -> vector<5x8xf32>
    %139 = tpu.concatenate %75, %96, %117, %138 in 1 : vector<5x8xf32>, vector<5x8xf32>, vector<5x8xf32>, vector<5x8xf32> -> vector<5x32xf32>
    %140 = arith.truncf %139 : vector<5x32xf32> to vector<5x32xbf16>
    %cst_64 = arith.constant dense<0.000000e+00> : vector<5x32xf32>
    %141 = tpu.matmul %140, %16, %cst_64 {dimension_numbers = #tpu.dot_dimension_numbers<[1], [0], [0], [1], [0, 0, 1, 1], [], []>} : vector<5x32xbf16>, vector<32x32xbf16>, vector<5x32xf32> -> vector<5x32xf32>
    %142 = arith.addf %28, %141 : vector<5x32xf32>
    %143 = vector.broadcast %18 : vector<1x32xf32> to vector<5x32xf32>
    %144 = arith.addf %142, %143 : vector<5x32xf32>
    %cst_65 = arith.constant dense<0.000000e+00> : vector<5xf32>
    %145 = vector.multi_reduction <add>, %144, %cst_65 [1] : vector<5x32xf32> to vector<5xf32>
    %146 = vector.shape_cast %145 : vector<5xf32> to vector<5x1xf32>
    %cst_66 = arith.constant 3.200000e+01 : f32
    %147 = vector.broadcast %cst_66 : f32 to vector<5x1xf32>
    %148 = arith.divf %146, %147 : vector<5x1xf32>
    %149 = vector.broadcast %148 : vector<5x1xf32> to vector<5x32xf32>
    %150 = arith.subf %144, %149 : vector<5x32xf32>
    %151 = arith.mulf %150, %150 : vector<5x32xf32>
    %cst_67 = arith.constant dense<0.000000e+00> : vector<5xf32>
    %152 = vector.multi_reduction <add>, %151, %cst_67 [1] : vector<5x32xf32> to vector<5xf32>
    %153 = vector.shape_cast %152 : vector<5xf32> to vector<5x1xf32>
    %cst_68 = arith.constant 3.200000e+01 : f32
    %154 = vector.broadcast %cst_68 : f32 to vector<5x1xf32>
    %155 = arith.divf %153, %154 : vector<5x1xf32>
    %156 = vector.broadcast %148 : vector<5x1xf32> to vector<5x32xf32>
    %157 = arith.subf %144, %156 : vector<5x32xf32>
    %cst_69 = arith.constant 9.99999974E-6 : f32
    %158 = vector.broadcast %cst_69 : f32 to vector<5x1xf32>
    %159 = arith.addf %155, %158 : vector<5x1xf32>
    %160 = math.rsqrt %159 : vector<5x1xf32>
    %161 = vector.broadcast %160 : vector<5x1xf32> to vector<5x32xf32>
    %162 = arith.mulf %157, %161 : vector<5x32xf32>
    %163 = vector.broadcast %8 : vector<1x32xf32> to vector<5x32xf32>
    %164 = arith.mulf %162, %163 : vector<5x32xf32>
    %165 = vector.broadcast %10 : vector<1x32xf32> to vector<5x32xf32>
    %166 = arith.addf %164, %165 : vector<5x32xf32>
    %167 = arith.truncf %166 : vector<5x32xf32> to vector<5x32xbf16>
    %cst_70 = arith.constant dense<0.000000e+00> : vector<5x128xf32>
    %168 = tpu.matmul %167, %20, %cst_70 {dimension_numbers = #tpu.dot_dimension_numbers<[1], [0], [0], [1], [0, 0, 1, 1], [], []>} : vector<5x32xbf16>, vector<32x128xbf16>, vector<5x128xf32> -> vector<5x128xf32>
    %169 = vector.broadcast %22 : vector<1x128xf32> to vector<5x128xf32>
    %170 = arith.addf %168, %169 : vector<5x128xf32>
    %cst_71 = arith.constant -1.702000e+00 : f32
    %171 = vector.broadcast %cst_71 : f32 to vector<5x128xf32>
    %172 = arith.mulf %171, %170 : vector<5x128xf32>
    %173 = math.exp %172 : vector<5x128xf32>
    %cst_72 = arith.constant 1.000000e+00 : f32
    %174 = vector.broadcast %cst_72 : f32 to vector<5x128xf32>
    %175 = arith.addf %174, %173 : vector<5x128xf32>
    %176 = tpu.reciprocal %175 {approx = true} : vector<5x128xf32> -> vector<5x128xf32>
    %177 = arith.mulf %170, %176 : vector<5x128xf32>
    %178 = arith.truncf %177 : vector<5x128xf32> to vector<5x128xbf16>
    %cst_73 = arith.constant dense<0.000000e+00> : vector<5x32xf32>
    %179 = tpu.matmul %178, %24, %cst_73 {dimension_numbers = #tpu.dot_dimension_numbers<[1], [0], [0], [1], [0, 0, 1, 1], [], []>} : vector<5x128xbf16>, vector<128x32xbf16>, vector<5x32xf32> -> vector<5x32xf32>
    %180 = arith.addf %144, %179 : vector<5x32xf32>
    %181 = vector.broadcast %26 : vector<1x32xf32> to vector<5x32xf32>
    %182 = arith.addf %180, %181 : vector<5x32xf32>
    %c0_74 = arith.constant 0 : index
    %c0_75 = arith.constant 0 : index
    %c0_76 = arith.constant 0 : index
    %183 = vector.load %arg44[%c0_74, %c0_75, %c0_76] : memref<2x5x32xf32, #tpu.memory_space<vmem>>, vector<1x5x32xf32>
    %184 = vector.shape_cast %183 : vector<1x5x32xf32> to vector<5x32xf32>
    %185 = vector.shape_cast %182 : vector<5x32xf32> to vector<1x5x32xf32>
    tpu.vector_store %arg44[%c0_74, %c0_75, %c0_76], %185 {strides = array<i32>} : memref<2x5x32xf32, #tpu.memory_space<vmem>>, vector<1x5x32xf32>,
    %c1 = arith.constant 1 : index
    %c0_77 = arith.constant 0 : index
    %c0_78 = arith.constant 0 : index
    %186 = vector.load %arg44[%c1, %c0_77, %c0_78] : memref<2x5x32xf32, #tpu.memory_space<vmem>>, vector<1x5x32xf32>
    %187 = vector.shape_cast %186 : vector<1x5x32xf32> to vector<5x32xf32>
    %cst_79 = arith.constant dense<0.000000e+00> : vector<5xf32>
    %188 = vector.multi_reduction <add>, %187, %cst_79 [1] : vector<5x32xf32> to vector<5xf32>
    %189 = vector.shape_cast %188 : vector<5xf32> to vector<5x1xf32>
    %cst_80 = arith.constant 3.200000e+01 : f32
    %190 = vector.broadcast %cst_80 : f32 to vector<5x1xf32>
    %191 = arith.divf %189, %190 : vector<5x1xf32>
    %192 = vector.broadcast %191 : vector<5x1xf32> to vector<5x32xf32>
    %193 = arith.subf %187, %192 : vector<5x32xf32>
    %194 = arith.mulf %193, %193 : vector<5x32xf32>
    %cst_81 = arith.constant dense<0.000000e+00> : vector<5xf32>
    %195 = vector.multi_reduction <add>, %194, %cst_81 [1] : vector<5x32xf32> to vector<5xf32>
    %196 = vector.shape_cast %195 : vector<5xf32> to vector<5x1xf32>
    %cst_82 = arith.constant 3.200000e+01 : f32
    %197 = vector.broadcast %cst_82 : f32 to vector<5x1xf32>
    %198 = arith.divf %196, %197 : vector<5x1xf32>
    %199 = vector.broadcast %191 : vector<5x1xf32> to vector<5x32xf32>
    %200 = arith.subf %187, %199 : vector<5x32xf32>
    %cst_83 = arith.constant 9.99999974E-6 : f32
    %201 = vector.broadcast %cst_83 : f32 to vector<5x1xf32>
    %202 = arith.addf %198, %201 : vector<5x1xf32>
    %203 = math.rsqrt %202 : vector<5x1xf32>
    %204 = vector.broadcast %203 : vector<5x1xf32> to vector<5x32xf32>
    %205 = arith.mulf %200, %204 : vector<5x32xf32>
    %206 = vector.broadcast %4 : vector<1x32xf32> to vector<5x32xf32>
    %207 = arith.mulf %205, %206 : vector<5x32xf32>
    %208 = vector.broadcast %6 : vector<1x32xf32> to vector<5x32xf32>
    %209 = arith.addf %207, %208 : vector<5x32xf32>
    %210 = arith.truncf %209 : vector<5x32xf32> to vector<5x32xbf16>
    %cst_84 = arith.constant dense<0.000000e+00> : vector<5x96xf32>
    %211 = tpu.matmul %210, %12, %cst_84 {dimension_numbers = #tpu.dot_dimension_numbers<[1], [0], [0], [1], [0, 0, 1, 1], [], []>} : vector<5x32xbf16>, vector<32x96xbf16>, vector<5x96xf32> -> vector<5x96xf32>
    %212 = vector.broadcast %14 : vector<1x96xf32> to vector<5x96xf32>
    %213 = arith.addf %211, %212 : vector<5x96xf32>
    %214 = vector.extract_strided_slice %213 {offsets = [0, 0], sizes = [5, 8], strides = [1, 1]} : vector<5x96xf32> to vector<5x8xf32>
    %215 = arith.truncf %214 : vector<5x8xf32> to vector<5x8xbf16>
    %216 = vector.extract_strided_slice %213 {offsets = [0, 32], sizes = [5, 8], strides = [1, 1]} : vector<5x96xf32> to vector<5x8xf32>
    %217 = arith.truncf %216 : vector<5x8xf32> to vector<5x8xbf16>
    %218 = vector.extract_strided_slice %213 {offsets = [0, 64], sizes = [5, 8], strides = [1, 1]} : vector<5x96xf32> to vector<5x8xf32>
    %cst_85 = arith.constant dense<0.000000e+00> : vector<5x5xf32>
    %219 = tpu.matmul %215, %217, %cst_85 {dimension_numbers = #tpu.dot_dimension_numbers<[1], [1], [0], [0], [0, 0, 1, 0], [], []>} : vector<5x8xbf16>, vector<5x8xbf16>, vector<5x5xf32> -> vector<5x5xf32>
    %cst_86 = arith.constant 0.353553385 : f32
    %220 = vector.broadcast %cst_86 : f32 to vector<5x5xf32>
    %221 = arith.mulf %219, %220 : vector<5x5xf32>
    %cst_87 = arith.constant dense<0xFF800000> : vector<5xf32>
    %222 = vector.multi_reduction <maximumf>, %221, %cst_87 [1] : vector<5x5xf32> to vector<5xf32>
    %223 = vector.shape_cast %222 : vector<5xf32> to vector<5x1xf32>
    %224 = vector.broadcast %223 : vector<5x1xf32> to vector<5x5xf32>
    %225 = arith.subf %221, %224 : vector<5x5xf32>
    %226 = math.exp %225 : vector<5x5xf32>
    %cst_88 = arith.constant dense<0.000000e+00> : vector<5xf32>
    %227 = vector.multi_reduction <add>, %226, %cst_88 [1] : vector<5x5xf32> to vector<5xf32>
    %228 = vector.shape_cast %227 : vector<5xf32> to vector<5x1xf32>
    %229 = tpu.reciprocal %228 {approx = true} : vector<5x1xf32> -> vector<5x1xf32>
    %230 = vector.broadcast %229 : vector<5x1xf32> to vector<5x5xf32>
    %231 = arith.mulf %226, %230 : vector<5x5xf32>
    %232 = arith.truncf %231 : vector<5x5xf32> to vector<5x5xbf16>
    %233 = arith.truncf %218 : vector<5x8xf32> to vector<5x8xbf16>
    %cst_89 = arith.constant dense<0.000000e+00> : vector<5x8xf32>
    %234 = tpu.matmul %232, %233, %cst_89 {dimension_numbers = #tpu.dot_dimension_numbers<[1], [0], [0], [1], [0, 0, 1, 1], [], []>} : vector<5x5xbf16>, vector<5x8xbf16>, vector<5x8xf32> -> vector<5x8xf32>
    %235 = vector.extract_strided_slice %213 {offsets = [0, 8], sizes = [5, 8], strides = [1, 1]} : vector<5x96xf32> to vector<5x8xf32>
    %236 = arith.truncf %235 : vector<5x8xf32> to vector<5x8xbf16>
    %237 = vector.extract_strided_slice %213 {offsets = [0, 40], sizes = [5, 8], strides = [1, 1]} : vector<5x96xf32> to vector<5x8xf32>
    %238 = arith.truncf %237 : vector<5x8xf32> to vector<5x8xbf16>
    %239 = vector.extract_strided_slice %213 {offsets = [0, 72], sizes = [5, 8], strides = [1, 1]} : vector<5x96xf32> to vector<5x8xf32>
    %cst_90 = arith.constant dense<0.000000e+00> : vector<5x5xf32>
    %240 = tpu.matmul %236, %238, %cst_90 {dimension_numbers = #tpu.dot_dimension_numbers<[1], [1], [0], [0], [0, 0, 1, 0], [], []>} : vector<5x8xbf16>, vector<5x8xbf16>, vector<5x5xf32> -> vector<5x5xf32>
    %cst_91 = arith.constant 0.353553385 : f32
    %241 = vector.broadcast %cst_91 : f32 to vector<5x5xf32>
    %242 = arith.mulf %240, %241 : vector<5x5xf32>
    %cst_92 = arith.constant dense<0xFF800000> : vector<5xf32>
    %243 = vector.multi_reduction <maximumf>, %242, %cst_92 [1] : vector<5x5xf32> to vector<5xf32>
    %244 = vector.shape_cast %243 : vector<5xf32> to vector<5x1xf32>
    %245 = vector.broadcast %244 : vector<5x1xf32> to vector<5x5xf32>
    %246 = arith.subf %242, %245 : vector<5x5xf32>
    %247 = math.exp %246 : vector<5x5xf32>
    %cst_93 = arith.constant dense<0.000000e+00> : vector<5xf32>
    %248 = vector.multi_reduction <add>, %247, %cst_93 [1] : vector<5x5xf32> to vector<5xf32>
    %249 = vector.shape_cast %248 : vector<5xf32> to vector<5x1xf32>
    %250 = tpu.reciprocal %249 {approx = true} : vector<5x1xf32> -> vector<5x1xf32>
    %251 = vector.broadcast %250 : vector<5x1xf32> to vector<5x5xf32>
    %252 = arith.mulf %247, %251 : vector<5x5xf32>
    %253 = arith.truncf %252 : vector<5x5xf32> to vector<5x5xbf16>
    %254 = arith.truncf %239 : vector<5x8xf32> to vector<5x8xbf16>
    %cst_94 = arith.constant dense<0.000000e+00> : vector<5x8xf32>
    %255 = tpu.matmul %253, %254, %cst_94 {dimension_numbers = #tpu.dot_dimension_numbers<[1], [0], [0], [1], [0, 0, 1, 1], [], []>} : vector<5x5xbf16>, vector<5x8xbf16>, vector<5x8xf32> -> vector<5x8xf32>
    %256 = vector.extract_strided_slice %213 {offsets = [0, 16], sizes = [5, 8], strides = [1, 1]} : vector<5x96xf32> to vector<5x8xf32>
    %257 = arith.truncf %256 : vector<5x8xf32> to vector<5x8xbf16>
    %258 = vector.extract_strided_slice %213 {offsets = [0, 48], sizes = [5, 8], strides = [1, 1]} : vector<5x96xf32> to vector<5x8xf32>
    %259 = arith.truncf %258 : vector<5x8xf32> to vector<5x8xbf16>
    %260 = vector.extract_strided_slice %213 {offsets = [0, 80], sizes = [5, 8], strides = [1, 1]} : vector<5x96xf32> to vector<5x8xf32>
    %cst_95 = arith.constant dense<0.000000e+00> : vector<5x5xf32>
    %261 = tpu.matmul %257, %259, %cst_95 {dimension_numbers = #tpu.dot_dimension_numbers<[1], [1], [0], [0], [0, 0, 1, 0], [], []>} : vector<5x8xbf16>, vector<5x8xbf16>, vector<5x5xf32> -> vector<5x5xf32>
    %cst_96 = arith.constant 0.353553385 : f32
    %262 = vector.broadcast %cst_96 : f32 to vector<5x5xf32>
    %263 = arith.mulf %261, %262 : vector<5x5xf32>
    %cst_97 = arith.constant dense<0xFF800000> : vector<5xf32>
    %264 = vector.multi_reduction <maximumf>, %263, %cst_97 [1] : vector<5x5xf32> to vector<5xf32>
    %265 = vector.shape_cast %264 : vector<5xf32> to vector<5x1xf32>
    %266 = vector.broadcast %265 : vector<5x1xf32> to vector<5x5xf32>
    %267 = arith.subf %263, %266 : vector<5x5xf32>
    %268 = math.exp %267 : vector<5x5xf32>
    %cst_98 = arith.constant dense<0.000000e+00> : vector<5xf32>
    %269 = vector.multi_reduction <add>, %268, %cst_98 [1] : vector<5x5xf32> to vector<5xf32>
    %270 = vector.shape_cast %269 : vector<5xf32> to vector<5x1xf32>
    %271 = tpu.reciprocal %270 {approx = true} : vector<5x1xf32> -> vector<5x1xf32>
    %272 = vector.broadcast %271 : vector<5x1xf32> to vector<5x5xf32>
    %273 = arith.mulf %268, %272 : vector<5x5xf32>
    %274 = arith.truncf %273 : vector<5x5xf32> to vector<5x5xbf16>
    %275 = arith.truncf %260 : vector<5x8xf32> to vector<5x8xbf16>
    %cst_99 = arith.constant dense<0.000000e+00> : vector<5x8xf32>
    %276 = tpu.matmul %274, %275, %cst_99 {dimension_numbers = #tpu.dot_dimension_numbers<[1], [0], [0], [1], [0, 0, 1, 1], [], []>} : vector<5x5xbf16>, vector<5x8xbf16>, vector<5x8xf32> -> vector<5x8xf32>
    %277 = vector.extract_strided_slice %213 {offsets = [0, 24], sizes = [5, 8], strides = [1, 1]} : vector<5x96xf32> to vector<5x8xf32>
    %278 = arith.truncf %277 : vector<5x8xf32> to vector<5x8xbf16>
    %279 = vector.extract_strided_slice %213 {offsets = [0, 56], sizes = [5, 8], strides = [1, 1]} : vector<5x96xf32> to vector<5x8xf32>
    %280 = arith.truncf %279 : vector<5x8xf32> to vector<5x8xbf16>
    %281 = vector.extract_strided_slice %213 {offsets = [0, 88], sizes = [5, 8], strides = [1, 1]} : vector<5x96xf32> to vector<5x8xf32>
    %cst_100 = arith.constant dense<0.000000e+00> : vector<5x5xf32>
    %282 = tpu.matmul %278, %280, %cst_100 {dimension_numbers = #tpu.dot_dimension_numbers<[1], [1], [0], [0], [0, 0, 1, 0], [], []>} : vector<5x8xbf16>, vector<5x8xbf16>, vector<5x5xf32> -> vector<5x5xf32>
    %cst_101 = arith.constant 0.353553385 : f32
    %283 = vector.broadcast %cst_101 : f32 to vector<5x5xf32>
    %284 = arith.mulf %282, %283 : vector<5x5xf32>
    %cst_102 = arith.constant dense<0xFF800000> : vector<5xf32>
    %285 = vector.multi_reduction <maximumf>, %284, %cst_102 [1] : vector<5x5xf32> to vector<5xf32>
    %286 = vector.shape_cast %285 : vector<5xf32> to vector<5x1xf32>
    %287 = vector.broadcast %286 : vector<5x1xf32> to vector<5x5xf32>
    %288 = arith.subf %284, %287 : vector<5x5xf32>
    %289 = math.exp %288 : vector<5x5xf32>
    %cst_103 = arith.constant dense<0.000000e+00> : vector<5xf32>
    %290 = vector.multi_reduction <add>, %289, %cst_103 [1] : vector<5x5xf32> to vector<5xf32>
    %291 = vector.shape_cast %290 : vector<5xf32> to vector<5x1xf32>
    %292 = tpu.reciprocal %291 {approx = true} : vector<5x1xf32> -> vector<5x1xf32>
    %293 = vector.broadcast %292 : vector<5x1xf32> to vector<5x5xf32>
    %294 = arith.mulf %289, %293 : vector<5x5xf32>
    %295 = arith.truncf %294 : vector<5x5xf32> to vector<5x5xbf16>
    %296 = arith.truncf %281 : vector<5x8xf32> to vector<5x8xbf16>
    %cst_104 = arith.constant dense<0.000000e+00> : vector<5x8xf32>
    %297 = tpu.matmul %295, %296, %cst_104 {dimension_numbers = #tpu.dot_dimension_numbers<[1], [0], [0], [1], [0, 0, 1, 1], [], []>} : vector<5x5xbf16>, vector<5x8xbf16>, vector<5x8xf32> -> vector<5x8xf32>
    %298 = tpu.concatenate %234, %255, %276, %297 in 1 : vector<5x8xf32>, vector<5x8xf32>, vector<5x8xf32>, vector<5x8xf32> -> vector<5x32xf32>
    %299 = arith.truncf %298 : vector<5x32xf32> to vector<5x32xbf16>
    %cst_105 = arith.constant dense<0.000000e+00> : vector<5x32xf32>
    %300 = tpu.matmul %299, %16, %cst_105 {dimension_numbers = #tpu.dot_dimension_numbers<[1], [0], [0], [1], [0, 0, 1, 1], [], []>} : vector<5x32xbf16>, vector<32x32xbf16>, vector<5x32xf32> -> vector<5x32xf32>
    %301 = arith.addf %187, %300 : vector<5x32xf32>
    %302 = vector.broadcast %18 : vector<1x32xf32> to vector<5x32xf32>
    %303 = arith.addf %301, %302 : vector<5x32xf32>
    %cst_106 = arith.constant dense<0.000000e+00> : vector<5xf32>
    %304 = vector.multi_reduction <add>, %303, %cst_106 [1] : vector<5x32xf32> to vector<5xf32>
    %305 = vector.shape_cast %304 : vector<5xf32> to vector<5x1xf32>
    %cst_107 = arith.constant 3.200000e+01 : f32
    %306 = vector.broadcast %cst_107 : f32 to vector<5x1xf32>
    %307 = arith.divf %305, %306 : vector<5x1xf32>
    %308 = vector.broadcast %307 : vector<5x1xf32> to vector<5x32xf32>
    %309 = arith.subf %303, %308 : vector<5x32xf32>
    %310 = arith.mulf %309, %309 : vector<5x32xf32>
    %cst_108 = arith.constant dense<0.000000e+00> : vector<5xf32>
    %311 = vector.multi_reduction <add>, %310, %cst_108 [1] : vector<5x32xf32> to vector<5xf32>
    %312 = vector.shape_cast %311 : vector<5xf32> to vector<5x1xf32>
    %cst_109 = arith.constant 3.200000e+01 : f32
    %313 = vector.broadcast %cst_109 : f32 to vector<5x1xf32>
    %314 = arith.divf %312, %313 : vector<5x1xf32>
    %315 = vector.broadcast %307 : vector<5x1xf32> to vector<5x32xf32>
    %316 = arith.subf %303, %315 : vector<5x32xf32>
    %cst_110 = arith.constant 9.99999974E-6 : f32
    %317 = vector.broadcast %cst_110 : f32 to vector<5x1xf32>
    %318 = arith.addf %314, %317 : vector<5x1xf32>
    %319 = math.rsqrt %318 : vector<5x1xf32>
    %320 = vector.broadcast %319 : vector<5x1xf32> to vector<5x32xf32>
    %321 = arith.mulf %316, %320 : vector<5x32xf32>
    %322 = vector.broadcast %8 : vector<1x32xf32> to vector<5x32xf32>
    %323 = arith.mulf %321, %322 : vector<5x32xf32>
    %324 = vector.broadcast %10 : vector<1x32xf32> to vector<5x32xf32>
    %325 = arith.addf %323, %324 : vector<5x32xf32>
    %326 = arith.truncf %325 : vector<5x32xf32> to vector<5x32xbf16>
    %cst_111 = arith.constant dense<0.000000e+00> : vector<5x128xf32>
    %327 = tpu.matmul %326, %20, %cst_111 {dimension_numbers = #tpu.dot_dimension_numbers<[1], [0], [0], [1], [0, 0, 1, 1], [], []>} : vector<5x32xbf16>, vector<32x128xbf16>, vector<5x128xf32> -> vector<5x128xf32>
    %328 = vector.broadcast %22 : vector<1x128xf32> to vector<5x128xf32>
    %329 = arith.addf %327, %328 : vector<5x128xf32>
    %cst_112 = arith.constant -1.702000e+00 : f32
    %330 = vector.broadcast %cst_112 : f32 to vector<5x128xf32>
    %331 = arith.mulf %330, %329 : vector<5x128xf32>
    %332 = math.exp %331 : vector<5x128xf32>
    %cst_113 = arith.constant 1.000000e+00 : f32
    %333 = vector.broadcast %cst_113 : f32 to vector<5x128xf32>
    %334 = arith.addf %333, %332 : vector<5x128xf32>
    %335 = tpu.reciprocal %334 {approx = true} : vector<5x128xf32> -> vector<5x128xf32>
    %336 = arith.mulf %329, %335 : vector<5x128xf32>
    %337 = arith.truncf %336 : vector<5x128xf32> to vector<5x128xbf16>
    %cst_114 = arith.constant dense<0.000000e+00> : vector<5x32xf32>
    %338 = tpu.matmul %337, %24, %cst_114 {dimension_numbers = #tpu.dot_dimension_numbers<[1], [0], [0], [1], [0, 0, 1, 1], [], []>} : vector<5x128xbf16>, vector<128x32xbf16>, vector<5x32xf32> -> vector<5x32xf32>
    %339 = arith.addf %303, %338 : vector<5x32xf32>
    %340 = vector.broadcast %26 : vector<1x32xf32> to vector<5x32xf32>
    %341 = arith.addf %339, %340 : vector<5x32xf32>
    %c1_115 = arith.constant 1 : index
    %c0_116 = arith.constant 0 : index
    %c0_117 = arith.constant 0 : index
    %342 = vector.load %arg44[%c1_115, %c0_116, %c0_117] : memref<2x5x32xf32, #tpu.memory_space<vmem>>, vector<1x5x32xf32>
    %343 = vector.shape_cast %342 : vector<1x5x32xf32> to vector<5x32xf32>
    %344 = vector.shape_cast %341 : vector<5x32xf32> to vector<1x5x32xf32>
    tpu.vector_store %arg44[%c1_115, %c0_116, %c0_117], %344 {strides = array<i32>} : memref<2x5x32xf32, #tpu.memory_space<vmem>>, vector<1x5x32xf32>,
    %c0_118 = arith.constant 0 : index
    %c0_119 = arith.constant 0 : index
    %345 = vector.load %arg46[%c0_118, %c0_119] : memref<8x8xf32, #tpu.memory_space<vmem>>, vector<8x8xf32>
    %c0_120 = arith.constant 0 : index
    %c0_121 = arith.constant 0 : index
    %c0_122 = arith.constant 0 : index
    %346 = vector.load %arg27[%c0_120, %c0_121, %c0_122] : memref<1x1x32xf32, #tpu.memory_space<vmem>>, vector<1x1x32xf32>
    %347 = vector.shape_cast %346 : vector<1x1x32xf32> to vector<1x32xf32>
    %c0_123 = arith.constant 0 : index
    %c0_124 = arith.constant 0 : index
    %c0_125 = arith.constant 0 : index
    %348 = vector.load %arg28[%c0_123, %c0_124, %c0_125] : memref<1x1x32xf32, #tpu.memory_space<vmem>>, vector<1x1x32xf32>
    %349 = vector.shape_cast %348 : vector<1x1x32xf32> to vector<1x32xf32>
    %c0_126 = arith.constant 0 : index
    %c0_127 = arith.constant 0 : index
    %c0_128 = arith.constant 0 : index
    %350 = vector.load %arg33[%c0_126, %c0_127, %c0_128] : memref<1x1x32xf32, #tpu.memory_space<vmem>>, vector<1x1x32xf32>
    %351 = vector.shape_cast %350 : vector<1x1x32xf32> to vector<1x32xf32>
    %c0_129 = arith.constant 0 : index
    %c0_130 = arith.constant 0 : index
    %c0_131 = arith.constant 0 : index
    %352 = vector.load %arg34[%c0_129, %c0_130, %c0_131] : memref<1x1x32xf32, #tpu.memory_space<vmem>>, vector<1x1x32xf32>
    %353 = vector.shape_cast %352 : vector<1x1x32xf32> to vector<1x32xf32>
    %c0_132 = arith.constant 0 : index
    %c0_133 = arith.constant 0 : index
    %c0_134 = arith.constant 0 : index
    %354 = vector.load %arg29[%c0_132, %c0_133, %c0_134] : memref<1x32x96xbf16, #tpu.memory_space<vmem>>, vector<1x32x96xbf16>
    %355 = vector.shape_cast %354 : vector<1x32x96xbf16> to vector<32x96xbf16>
    %c0_135 = arith.constant 0 : index
    %c0_136 = arith.constant 0 : index
    %c0_137 = arith.constant 0 : index
    %356 = vector.load %arg30[%c0_135, %c0_136, %c0_137] : memref<1x1x96xf32, #tpu.memory_space<vmem>>, vector<1x1x96xf32>
    %357 = vector.shape_cast %356 : vector<1x1x96xf32> to vector<1x96xf32>
    %c0_138 = arith.constant 0 : index
    %c0_139 = arith.constant 0 : index
    %c0_140 = arith.constant 0 : index
    %358 = vector.load %arg31[%c0_138, %c0_139, %c0_140] : memref<1x32x32xbf16, #tpu.memory_space<vmem>>, vector<1x32x32xbf16>
    %359 = vector.shape_cast %358 : vector<1x32x32xbf16> to vector<32x32xbf16>
    %c0_141 = arith.constant 0 : index
    %c0_142 = arith.constant 0 : index
    %c0_143 = arith.constant 0 : index
    %360 = vector.load %arg32[%c0_141, %c0_142, %c0_143] : memref<1x1x32xf32, #tpu.memory_space<vmem>>, vector<1x1x32xf32>
    %361 = vector.shape_cast %360 : vector<1x1x32xf32> to vector<1x32xf32>
    %c0_144 = arith.constant 0 : index
    %c0_145 = arith.constant 0 : index
    %c0_146 = arith.constant 0 : index
    %362 = vector.load %arg35[%c0_144, %c0_145, %c0_146] : memref<1x32x128xbf16, #tpu.memory_space<vmem>>, vector<1x32x128xbf16>
    %363 = vector.shape_cast %362 : vector<1x32x128xbf16> to vector<32x128xbf16>
    %c0_147 = arith.constant 0 : index
    %c0_148 = arith.constant 0 : index
    %c0_149 = arith.constant 0 : index
    %364 = vector.load %arg36[%c0_147, %c0_148, %c0_149] : memref<1x1x128xf32, #tpu.memory_space<vmem>>, vector<1x1x128xf32>
    %365 = vector.shape_cast %364 : vector<1x1x128xf32> to vector<1x128xf32>
    %c0_150 = arith.constant 0 : index
    %c0_151 = arith.constant 0 : index
    %c0_152 = arith.constant 0 : index
    %366 = vector.load %arg37[%c0_150, %c0_151, %c0_152] : memref<1x128x32xbf16, #tpu.memory_space<vmem>>, vector<1x128x32xbf16>
    %367 = vector.shape_cast %366 : vector<1x128x32xbf16> to vector<128x32xbf16>
    %c0_153 = arith.constant 0 : index
    %c0_154 = arith.constant 0 : index
    %c0_155 = arith.constant 0 : index
    %368 = vector.load %arg38[%c0_153, %c0_154, %c0_155] : memref<1x1x32xf32, #tpu.memory_space<vmem>>, vector<1x1x32xf32>
    %369 = vector.shape_cast %368 : vector<1x1x32xf32> to vector<1x32xf32>
    %c0_156 = arith.constant 0 : index
    %c0_157 = arith.constant 0 : index
    %c0_158 = arith.constant 0 : index
    %370 = vector.load %arg45[%c0_156, %c0_157, %c0_158] : memref<3x8x32xf32, #tpu.memory_space<vmem>>, vector<1x8x32xf32>
    %371 = vector.shape_cast %370 : vector<1x8x32xf32> to vector<8x32xf32>
    %cst_159 = arith.constant dense<0.000000e+00> : vector<8xf32>
    %372 = vector.multi_reduction <add>, %371, %cst_159 [1] : vector<8x32xf32> to vector<8xf32>
    %373 = vector.shape_cast %372 : vector<8xf32> to vector<8x1xf32>
    %cst_160 = arith.constant 3.200000e+01 : f32
    %374 = vector.broadcast %cst_160 : f32 to vector<8x1xf32>
    %375 = arith.divf %373, %374 : vector<8x1xf32>
    %376 = vector.broadcast %375 : vector<8x1xf32> to vector<8x32xf32>
    %377 = arith.subf %371, %376 : vector<8x32xf32>
    %378 = arith.mulf %377, %377 : vector<8x32xf32>
    %cst_161 = arith.constant dense<0.000000e+00> : vector<8xf32>
    %379 = vector.multi_reduction <add>, %378, %cst_161 [1] : vector<8x32xf32> to vector<8xf32>
    %380 = vector.shape_cast %379 : vector<8xf32> to vector<8x1xf32>
    %cst_162 = arith.constant 3.200000e+01 : f32
    %381 = vector.broadcast %cst_162 : f32 to vector<8x1xf32>
    %382 = arith.divf %380, %381 : vector<8x1xf32>
    %383 = vector.broadcast %375 : vector<8x1xf32> to vector<8x32xf32>
    %384 = arith.subf %371, %383 : vector<8x32xf32>
    %cst_163 = arith.constant 9.99999974E-6 : f32
    %385 = vector.broadcast %cst_163 : f32 to vector<8x1xf32>
    %386 = arith.addf %382, %385 : vector<8x1xf32>
    %387 = math.rsqrt %386 : vector<8x1xf32>
    %388 = vector.broadcast %387 : vector<8x1xf32> to vector<8x32xf32>
    %389 = arith.mulf %384, %388 : vector<8x32xf32>
    %390 = vector.broadcast %347 : vector<1x32xf32> to vector<8x32xf32>
    %391 = arith.mulf %389, %390 : vector<8x32xf32>
    %392 = vector.broadcast %349 : vector<1x32xf32> to vector<8x32xf32>
    %393 = arith.addf %391, %392 : vector<8x32xf32>
    %394 = arith.truncf %393 : vector<8x32xf32> to vector<8x32xbf16>
    %cst_164 = arith.constant dense<0.000000e+00> : vector<8x96xf32>
    %395 = tpu.matmul %394, %355, %cst_164 {dimension_numbers = #tpu.dot_dimension_numbers<[1], [0], [0], [1], [0, 0, 1, 1], [], []>} : vector<8x32xbf16>, vector<32x96xbf16>, vector<8x96xf32> -> vector<8x96xf32>
    %396 = vector.broadcast %357 : vector<1x96xf32> to vector<8x96xf32>
    %397 = arith.addf %395, %396 : vector<8x96xf32>
    %398 = vector.extract_strided_slice %397 {offsets = [0, 0], sizes = [8, 8], strides = [1, 1]} : vector<8x96xf32> to vector<8x8xf32>
    %399 = arith.truncf %398 : vector<8x8xf32> to vector<8x8xbf16>
    %400 = vector.extract_strided_slice %397 {offsets = [0, 32], sizes = [8, 8], strides = [1, 1]} : vector<8x96xf32> to vector<8x8xf32>
    %401 = arith.truncf %400 : vector<8x8xf32> to vector<8x8xbf16>
    %402 = vector.extract_strided_slice %397 {offsets = [0, 64], sizes = [8, 8], strides = [1, 1]} : vector<8x96xf32> to vector<8x8xf32>
    %cst_165 = arith.constant dense<0.000000e+00> : vector<8x8xf32>
    %403 = tpu.matmul %399, %401, %cst_165 {dimension_numbers = #tpu.dot_dimension_numbers<[1], [1], [0], [0], [0, 0, 1, 0], [], []>} : vector<8x8xbf16>, vector<8x8xbf16>, vector<8x8xf32> -> vector<8x8xf32>
    %cst_166 = arith.constant 0.353553385 : f32
    %404 = vector.broadcast %cst_166 : f32 to vector<8x8xf32>
    %405 = arith.mulf %403, %404 : vector<8x8xf32>
    %406 = arith.addf %405, %345 : vector<8x8xf32>
    %cst_167 = arith.constant dense<0xFF800000> : vector<8xf32>
    %407 = vector.multi_reduction <maximumf>, %406, %cst_167 [1] : vector<8x8xf32> to vector<8xf32>
    %408 = vector.shape_cast %407 : vector<8xf32> to vector<8x1xf32>
    %409 = vector.broadcast %408 : vector<8x1xf32> to vector<8x8xf32>
    %410 = arith.subf %406, %409 : vector<8x8xf32>
    %411 = math.exp %410 : vector<8x8xf32>
    %cst_168 = arith.constant dense<0.000000e+00> : vector<8xf32>
    %412 = vector.multi_reduction <add>, %411, %cst_168 [1] : vector<8x8xf32> to vector<8xf32>
    %413 = vector.shape_cast %412 : vector<8xf32> to vector<8x1xf32>
    %414 = tpu.reciprocal %413 {approx = true} : vector<8x1xf32> -> vector<8x1xf32>
    %415 = vector.broadcast %414 : vector<8x1xf32> to vector<8x8xf32>
    %416 = arith.mulf %411, %415 : vector<8x8xf32>
    %417 = arith.truncf %416 : vector<8x8xf32> to vector<8x8xbf16>
    %418 = arith.truncf %402 : vector<8x8xf32> to vector<8x8xbf16>
    %cst_169 = arith.constant dense<0.000000e+00> : vector<8x8xf32>
    %419 = tpu.matmul %417, %418, %cst_169 {dimension_numbers = #tpu.dot_dimension_numbers<[1], [0], [0], [1], [0, 0, 1, 1], [], []>} : vector<8x8xbf16>, vector<8x8xbf16>, vector<8x8xf32> -> vector<8x8xf32>
    %420 = vector.extract_strided_slice %397 {offsets = [0, 8], sizes = [8, 8], strides = [1, 1]} : vector<8x96xf32> to vector<8x8xf32>
    %421 = arith.truncf %420 : vector<8x8xf32> to vector<8x8xbf16>
    %422 = vector.extract_strided_slice %397 {offsets = [0, 40], sizes = [8, 8], strides = [1, 1]} : vector<8x96xf32> to vector<8x8xf32>
    %423 = arith.truncf %422 : vector<8x8xf32> to vector<8x8xbf16>
    %424 = vector.extract_strided_slice %397 {offsets = [0, 72], sizes = [8, 8], strides = [1, 1]} : vector<8x96xf32> to vector<8x8xf32>
    %cst_170 = arith.constant dense<0.000000e+00> : vector<8x8xf32>
    %425 = tpu.matmul %421, %423, %cst_170 {dimension_numbers = #tpu.dot_dimension_numbers<[1], [1], [0], [0], [0, 0, 1, 0], [], []>} : vector<8x8xbf16>, vector<8x8xbf16>, vector<8x8xf32> -> vector<8x8xf32>
    %cst_171 = arith.constant 0.353553385 : f32
    %426 = vector.broadcast %cst_171 : f32 to vector<8x8xf32>
    %427 = arith.mulf %425, %426 : vector<8x8xf32>
    %428 = arith.addf %427, %345 : vector<8x8xf32>
    %cst_172 = arith.constant dense<0xFF800000> : vector<8xf32>
    %429 = vector.multi_reduction <maximumf>, %428, %cst_172 [1] : vector<8x8xf32> to vector<8xf32>
    %430 = vector.shape_cast %429 : vector<8xf32> to vector<8x1xf32>
    %431 = vector.broadcast %430 : vector<8x1xf32> to vector<8x8xf32>
    %432 = arith.subf %428, %431 : vector<8x8xf32>
    %433 = math.exp %432 : vector<8x8xf32>
    %cst_173 = arith.constant dense<0.000000e+00> : vector<8xf32>
    %434 = vector.multi_reduction <add>, %433, %cst_173 [1] : vector<8x8xf32> to vector<8xf32>
    %435 = vector.shape_cast %434 : vector<8xf32> to vector<8x1xf32>
    %436 = tpu.reciprocal %435 {approx = true} : vector<8x1xf32> -> vector<8x1xf32>
    %437 = vector.broadcast %436 : vector<8x1xf32> to vector<8x8xf32>
    %438 = arith.mulf %433, %437 : vector<8x8xf32>
    %439 = arith.truncf %438 : vector<8x8xf32> to vector<8x8xbf16>
    %440 = arith.truncf %424 : vector<8x8xf32> to vector<8x8xbf16>
    %cst_174 = arith.constant dense<0.000000e+00> : vector<8x8xf32>
    %441 = tpu.matmul %439, %440, %cst_174 {dimension_numbers = #tpu.dot_dimension_numbers<[1], [0], [0], [1], [0, 0, 1, 1], [], []>} : vector<8x8xbf16>, vector<8x8xbf16>, vector<8x8xf32> -> vector<8x8xf32>
    %442 = vector.extract_strided_slice %397 {offsets = [0, 16], sizes = [8, 8], strides = [1, 1]} : vector<8x96xf32> to vector<8x8xf32>
    %443 = arith.truncf %442 : vector<8x8xf32> to vector<8x8xbf16>
    %444 = vector.extract_strided_slice %397 {offsets = [0, 48], sizes = [8, 8], strides = [1, 1]} : vector<8x96xf32> to vector<8x8xf32>
    %445 = arith.truncf %444 : vector<8x8xf32> to vector<8x8xbf16>
    %446 = vector.extract_strided_slice %397 {offsets = [0, 80], sizes = [8, 8], strides = [1, 1]} : vector<8x96xf32> to vector<8x8xf32>
    %cst_175 = arith.constant dense<0.000000e+00> : vector<8x8xf32>
    %447 = tpu.matmul %443, %445, %cst_175 {dimension_numbers = #tpu.dot_dimension_numbers<[1], [1], [0], [0], [0, 0, 1, 0], [], []>} : vector<8x8xbf16>, vector<8x8xbf16>, vector<8x8xf32> -> vector<8x8xf32>
    %cst_176 = arith.constant 0.353553385 : f32
    %448 = vector.broadcast %cst_176 : f32 to vector<8x8xf32>
    %449 = arith.mulf %447, %448 : vector<8x8xf32>
    %450 = arith.addf %449, %345 : vector<8x8xf32>
    %cst_177 = arith.constant dense<0xFF800000> : vector<8xf32>
    %451 = vector.multi_reduction <maximumf>, %450, %cst_177 [1] : vector<8x8xf32> to vector<8xf32>
    %452 = vector.shape_cast %451 : vector<8xf32> to vector<8x1xf32>
    %453 = vector.broadcast %452 : vector<8x1xf32> to vector<8x8xf32>
    %454 = arith.subf %450, %453 : vector<8x8xf32>
    %455 = math.exp %454 : vector<8x8xf32>
    %cst_178 = arith.constant dense<0.000000e+00> : vector<8xf32>
    %456 = vector.multi_reduction <add>, %455, %cst_178 [1] : vector<8x8xf32> to vector<8xf32>
    %457 = vector.shape_cast %456 : vector<8xf32> to vector<8x1xf32>
    %458 = tpu.reciprocal %457 {approx = true} : vector<8x1xf32> -> vector<8x1xf32>
    %459 = vector.broadcast %458 : vector<8x1xf32> to vector<8x8xf32>
    %460 = arith.mulf %455, %459 : vector<8x8xf32>
    %461 = arith.truncf %460 : vector<8x8xf32> to vector<8x8xbf16>
    %462 = arith.truncf %446 : vector<8x8xf32> to vector<8x8xbf16>
    %cst_179 = arith.constant dense<0.000000e+00> : vector<8x8xf32>
    %463 = tpu.matmul %461, %462, %cst_179 {dimension_numbers = #tpu.dot_dimension_numbers<[1], [0], [0], [1], [0, 0, 1, 1], [], []>} : vector<8x8xbf16>, vector<8x8xbf16>, vector<8x8xf32> -> vector<8x8xf32>
    %464 = vector.extract_strided_slice %397 {offsets = [0, 24], sizes = [8, 8], strides = [1, 1]} : vector<8x96xf32> to vector<8x8xf32>
    %465 = arith.truncf %464 : vector<8x8xf32> to vector<8x8xbf16>
    %466 = vector.extract_strided_slice %397 {offsets = [0, 56], sizes = [8, 8], strides = [1, 1]} : vector<8x96xf32> to vector<8x8xf32>
    %467 = arith.truncf %466 : vector<8x8xf32> to vector<8x8xbf16>
    %468 = vector.extract_strided_slice %397 {offsets = [0, 88], sizes = [8, 8], strides = [1, 1]} : vector<8x96xf32> to vector<8x8xf32>
    %cst_180 = arith.constant dense<0.000000e+00> : vector<8x8xf32>
    %469 = tpu.matmul %465, %467, %cst_180 {dimension_numbers = #tpu.dot_dimension_numbers<[1], [1], [0], [0], [0, 0, 1, 0], [], []>} : vector<8x8xbf16>, vector<8x8xbf16>, vector<8x8xf32> -> vector<8x8xf32>
    %cst_181 = arith.constant 0.353553385 : f32
    %470 = vector.broadcast %cst_181 : f32 to vector<8x8xf32>
    %471 = arith.mulf %469, %470 : vector<8x8xf32>
    %472 = arith.addf %471, %345 : vector<8x8xf32>
    %cst_182 = arith.constant dense<0xFF800000> : vector<8xf32>
    %473 = vector.multi_reduction <maximumf>, %472, %cst_182 [1] : vector<8x8xf32> to vector<8xf32>
    %474 = vector.shape_cast %473 : vector<8xf32> to vector<8x1xf32>
    %475 = vector.broadcast %474 : vector<8x1xf32> to vector<8x8xf32>
    %476 = arith.subf %472, %475 : vector<8x8xf32>
    %477 = math.exp %476 : vector<8x8xf32>
    %cst_183 = arith.constant dense<0.000000e+00> : vector<8xf32>
    %478 = vector.multi_reduction <add>, %477, %cst_183 [1] : vector<8x8xf32> to vector<8xf32>
    %479 = vector.shape_cast %478 : vector<8xf32> to vector<8x1xf32>
    %480 = tpu.reciprocal %479 {approx = true} : vector<8x1xf32> -> vector<8x1xf32>
    %481 = vector.broadcast %480 : vector<8x1xf32> to vector<8x8xf32>
    %482 = arith.mulf %477, %481 : vector<8x8xf32>
    %483 = arith.truncf %482 : vector<8x8xf32> to vector<8x8xbf16>
    %484 = arith.truncf %468 : vector<8x8xf32> to vector<8x8xbf16>
    %cst_184 = arith.constant dense<0.000000e+00> : vector<8x8xf32>
    %485 = tpu.matmul %483, %484, %cst_184 {dimension_numbers = #tpu.dot_dimension_numbers<[1], [0], [0], [1], [0, 0, 1, 1], [], []>} : vector<8x8xbf16>, vector<8x8xbf16>, vector<8x8xf32> -> vector<8x8xf32>
    %486 = tpu.concatenate %419, %441, %463, %485 in 1 : vector<8x8xf32>, vector<8x8xf32>, vector<8x8xf32>, vector<8x8xf32> -> vector<8x32xf32>
    %487 = arith.truncf %486 : vector<8x32xf32> to vector<8x32xbf16>
    %cst_185 = arith.constant dense<0.000000e+00> : vector<8x32xf32>
    %488 = tpu.matmul %487, %359, %cst_185 {dimension_numbers = #tpu.dot_dimension_numbers<[1], [0], [0], [1], [0, 0, 1, 1], [], []>} : vector<8x32xbf16>, vector<32x32xbf16>, vector<8x32xf32> -> vector<8x32xf32>
    %489 = arith.addf %371, %488 : vector<8x32xf32>
    %490 = vector.broadcast %361 : vector<1x32xf32> to vector<8x32xf32>
    %491 = arith.addf %489, %490 : vector<8x32xf32>
    %cst_186 = arith.constant dense<0.000000e+00> : vector<8xf32>
    %492 = vector.multi_reduction <add>, %491, %cst_186 [1] : vector<8x32xf32> to vector<8xf32>
    %493 = vector.shape_cast %492 : vector<8xf32> to vector<8x1xf32>
    %cst_187 = arith.constant 3.200000e+01 : f32
    %494 = vector.broadcast %cst_187 : f32 to vector<8x1xf32>
    %495 = arith.divf %493, %494 : vector<8x1xf32>
    %496 = vector.broadcast %495 : vector<8x1xf32> to vector<8x32xf32>
    %497 = arith.subf %491, %496 : vector<8x32xf32>
    %498 = arith.mulf %497, %497 : vector<8x32xf32>
    %cst_188 = arith.constant dense<0.000000e+00> : vector<8xf32>
    %499 = vector.multi_reduction <add>, %498, %cst_188 [1] : vector<8x32xf32> to vector<8xf32>
    %500 = vector.shape_cast %499 : vector<8xf32> to vector<8x1xf32>
    %cst_189 = arith.constant 3.200000e+01 : f32
    %501 = vector.broadcast %cst_189 : f32 to vector<8x1xf32>
    %502 = arith.divf %500, %501 : vector<8x1xf32>
    %503 = vector.broadcast %495 : vector<8x1xf32> to vector<8x32xf32>
    %504 = arith.subf %491, %503 : vector<8x32xf32>
    %cst_190 = arith.constant 9.99999974E-6 : f32
    %505 = vector.broadcast %cst_190 : f32 to vector<8x1xf32>
    %506 = arith.addf %502, %505 : vector<8x1xf32>
    %507 = math.rsqrt %506 : vector<8x1xf32>
    %508 = vector.broadcast %507 : vector<8x1xf32> to vector<8x32xf32>
    %509 = arith.mulf %504, %508 : vector<8x32xf32>
    %510 = vector.broadcast %351 : vector<1x32xf32> to vector<8x32xf32>
    %511 = arith.mulf %509, %510 : vector<8x32xf32>
    %512 = vector.broadcast %353 : vector<1x32xf32> to vector<8x32xf32>
    %513 = arith.addf %511, %512 : vector<8x32xf32>
    %514 = arith.truncf %513 : vector<8x32xf32> to vector<8x32xbf16>
    %cst_191 = arith.constant dense<0.000000e+00> : vector<8x128xf32>
    %515 = tpu.matmul %514, %363, %cst_191 {dimension_numbers = #tpu.dot_dimension_numbers<[1], [0], [0], [1], [0, 0, 1, 1], [], []>} : vector<8x32xbf16>, vector<32x128xbf16>, vector<8x128xf32> -> vector<8x128xf32>
    %516 = vector.broadcast %365 : vector<1x128xf32> to vector<8x128xf32>
    %517 = arith.addf %515, %516 : vector<8x128xf32>
    %cst_192 = arith.constant -1.702000e+00 : f32
    %518 = vector.broadcast %cst_192 : f32 to vector<8x128xf32>
    %519 = arith.mulf %518, %517 : vector<8x128xf32>
    %520 = math.exp %519 : vector<8x128xf32>
    %cst_193 = arith.constant 1.000000e+00 : f32
    %521 = vector.broadcast %cst_193 : f32 to vector<8x128xf32>
    %522 = arith.addf %521, %520 : vector<8x128xf32>
    %523 = tpu.reciprocal %522 {approx = true} : vector<8x128xf32> -> vector<8x128xf32>
    %524 = arith.mulf %517, %523 : vector<8x128xf32>
    %525 = arith.truncf %524 : vector<8x128xf32> to vector<8x128xbf16>
    %cst_194 = arith.constant dense<0.000000e+00> : vector<8x32xf32>
    %526 = tpu.matmul %525, %367, %cst_194 {dimension_numbers = #tpu.dot_dimension_numbers<[1], [0], [0], [1], [0, 0, 1, 1], [], []>} : vector<8x128xbf16>, vector<128x32xbf16>, vector<8x32xf32> -> vector<8x32xf32>
    %527 = arith.addf %491, %526 : vector<8x32xf32>
    %528 = vector.broadcast %369 : vector<1x32xf32> to vector<8x32xf32>
    %529 = arith.addf %527, %528 : vector<8x32xf32>
    %c0_195 = arith.constant 0 : index
    %c0_196 = arith.constant 0 : index
    %c0_197 = arith.constant 0 : index
    %530 = vector.load %arg45[%c0_195, %c0_196, %c0_197] : memref<3x8x32xf32, #tpu.memory_space<vmem>>, vector<1x8x32xf32>
    %531 = vector.shape_cast %530 : vector<1x8x32xf32> to vector<8x32xf32>
    %532 = vector.shape_cast %529 : vector<8x32xf32> to vector<1x8x32xf32>
    tpu.vector_store %arg45[%c0_195, %c0_196, %c0_197], %532 {strides = array<i32>} : memref<3x8x32xf32, #tpu.memory_space<vmem>>, vector<1x8x32xf32>,
    %c1_198 = arith.constant 1 : index
    %c0_199 = arith.constant 0 : index
    %c0_200 = arith.constant 0 : index
    %533 = vector.load %arg45[%c1_198, %c0_199, %c0_200] : memref<3x8x32xf32, #tpu.memory_space<vmem>>, vector<1x8x32xf32>
    %534 = vector.shape_cast %533 : vector<1x8x32xf32> to vector<8x32xf32>
    %cst_201 = arith.constant dense<0.000000e+00> : vector<8xf32>
    %535 = vector.multi_reduction <add>, %534, %cst_201 [1] : vector<8x32xf32> to vector<8xf32>
    %536 = vector.shape_cast %535 : vector<8xf32> to vector<8x1xf32>
    %cst_202 = arith.constant 3.200000e+01 : f32
    %537 = vector.broadcast %cst_202 : f32 to vector<8x1xf32>
    %538 = arith.divf %536, %537 : vector<8x1xf32>
    %539 = vector.broadcast %538 : vector<8x1xf32> to vector<8x32xf32>
    %540 = arith.subf %534, %539 : vector<8x32xf32>
    %541 = arith.mulf %540, %540 : vector<8x32xf32>
    %cst_203 = arith.constant dense<0.000000e+00> : vector<8xf32>
    %542 = vector.multi_reduction <add>, %541, %cst_203 [1] : vector<8x32xf32> to vector<8xf32>
    %543 = vector.shape_cast %542 : vector<8xf32> to vector<8x1xf32>
    %cst_204 = arith.constant 3.200000e+01 : f32
    %544 = vector.broadcast %cst_204 : f32 to vector<8x1xf32>
    %545 = arith.divf %543, %544 : vector<8x1xf32>
    %546 = vector.broadcast %538 : vector<8x1xf32> to vector<8x32xf32>
    %547 = arith.subf %534, %546 : vector<8x32xf32>
    %cst_205 = arith.constant 9.99999974E-6 : f32
    %548 = vector.broadcast %cst_205 : f32 to vector<8x1xf32>
    %549 = arith.addf %545, %548 : vector<8x1xf32>
    %550 = math.rsqrt %549 : vector<8x1xf32>
    %551 = vector.broadcast %550 : vector<8x1xf32> to vector<8x32xf32>
    %552 = arith.mulf %547, %551 : vector<8x32xf32>
    %553 = vector.broadcast %347 : vector<1x32xf32> to vector<8x32xf32>
    %554 = arith.mulf %552, %553 : vector<8x32xf32>
    %555 = vector.broadcast %349 : vector<1x32xf32> to vector<8x32xf32>
    %556 = arith.addf %554, %555 : vector<8x32xf32>
    %557 = arith.truncf %556 : vector<8x32xf32> to vector<8x32xbf16>
    %cst_206 = arith.constant dense<0.000000e+00> : vector<8x96xf32>
    %558 = tpu.matmul %557, %355, %cst_206 {dimension_numbers = #tpu.dot_dimension_numbers<[1], [0], [0], [1], [0, 0, 1, 1], [], []>} : vector<8x32xbf16>, vector<32x96xbf16>, vector<8x96xf32> -> vector<8x96xf32>
    %559 = vector.broadcast %357 : vector<1x96xf32> to vector<8x96xf32>
    %560 = arith.addf %558, %559 : vector<8x96xf32>
    %561 = vector.extract_strided_slice %560 {offsets = [0, 0], sizes = [8, 8], strides = [1, 1]} : vector<8x96xf32> to vector<8x8xf32>
    %562 = arith.truncf %561 : vector<8x8xf32> to vector<8x8xbf16>
    %563 = vector.extract_strided_slice %560 {offsets = [0, 32], sizes = [8, 8], strides = [1, 1]} : vector<8x96xf32> to vector<8x8xf32>
    %564 = arith.truncf %563 : vector<8x8xf32> to vector<8x8xbf16>
    %565 = vector.extract_strided_slice %560 {offsets = [0, 64], sizes = [8, 8], strides = [1, 1]} : vector<8x96xf32> to vector<8x8xf32>
    %cst_207 = arith.constant dense<0.000000e+00> : vector<8x8xf32>
    %566 = tpu.matmul %562, %564, %cst_207 {dimension_numbers = #tpu.dot_dimension_numbers<[1], [1], [0], [0], [0, 0, 1, 0], [], []>} : vector<8x8xbf16>, vector<8x8xbf16>, vector<8x8xf32> -> vector<8x8xf32>
    %cst_208 = arith.constant 0.353553385 : f32
    %567 = vector.broadcast %cst_208 : f32 to vector<8x8xf32>
    %568 = arith.mulf %566, %567 : vector<8x8xf32>
    %569 = arith.addf %568, %345 : vector<8x8xf32>
    %cst_209 = arith.constant dense<0xFF800000> : vector<8xf32>
    %570 = vector.multi_reduction <maximumf>, %569, %cst_209 [1] : vector<8x8xf32> to vector<8xf32>
    %571 = vector.shape_cast %570 : vector<8xf32> to vector<8x1xf32>
    %572 = vector.broadcast %571 : vector<8x1xf32> to vector<8x8xf32>
    %573 = arith.subf %569, %572 : vector<8x8xf32>
    %574 = math.exp %573 : vector<8x8xf32>
    %cst_210 = arith.constant dense<0.000000e+00> : vector<8xf32>
    %575 = vector.multi_reduction <add>, %574, %cst_210 [1] : vector<8x8xf32> to vector<8xf32>
    %576 = vector.shape_cast %575 : vector<8xf32> to vector<8x1xf32>
    %577 = tpu.reciprocal %576 {approx = true} : vector<8x1xf32> -> vector<8x1xf32>
    %578 = vector.broadcast %577 : vector<8x1xf32> to vector<8x8xf32>
    %579 = arith.mulf %574, %578 : vector<8x8xf32>
    %580 = arith.truncf %579 : vector<8x8xf32> to vector<8x8xbf16>
    %581 = arith.truncf %565 : vector<8x8xf32> to vector<8x8xbf16>
    %cst_211 = arith.constant dense<0.000000e+00> : vector<8x8xf32>
    %582 = tpu.matmul %580, %581, %cst_211 {dimension_numbers = #tpu.dot_dimension_numbers<[1], [0], [0], [1], [0, 0, 1, 1], [], []>} : vector<8x8xbf16>, vector<8x8xbf16>, vector<8x8xf32> -> vector<8x8xf32>
    %583 = vector.extract_strided_slice %560 {offsets = [0, 8], sizes = [8, 8], strides = [1, 1]} : vector<8x96xf32> to vector<8x8xf32>
    %584 = arith.truncf %583 : vector<8x8xf32> to vector<8x8xbf16>
    %585 = vector.extract_strided_slice %560 {offsets = [0, 40], sizes = [8, 8], strides = [1, 1]} : vector<8x96xf32> to vector<8x8xf32>
    %586 = arith.truncf %585 : vector<8x8xf32> to vector<8x8xbf16>
    %587 = vector.extract_strided_slice %560 {offsets = [0, 72], sizes = [8, 8], strides = [1, 1]} : vector<8x96xf32> to vector<8x8xf32>
    %cst_212 = arith.constant dense<0.000000e+00> : vector<8x8xf32>
    %588 = tpu.matmul %584, %586, %cst_212 {dimension_numbers = #tpu.dot_dimension_numbers<[1], [1], [0], [0], [0, 0, 1, 0], [], []>} : vector<8x8xbf16>, vector<8x8xbf16>, vector<8x8xf32> -> vector<8x8xf32>
    %cst_213 = arith.constant 0.353553385 : f32
    %589 = vector.broadcast %cst_213 : f32 to vector<8x8xf32>
    %590 = arith.mulf %588, %589 : vector<8x8xf32>
    %591 = arith.addf %590, %345 : vector<8x8xf32>
    %cst_214 = arith.constant dense<0xFF800000> : vector<8xf32>
    %592 = vector.multi_reduction <maximumf>, %591, %cst_214 [1] : vector<8x8xf32> to vector<8xf32>
    %593 = vector.shape_cast %592 : vector<8xf32> to vector<8x1xf32>
    %594 = vector.broadcast %593 : vector<8x1xf32> to vector<8x8xf32>
    %595 = arith.subf %591, %594 : vector<8x8xf32>
    %596 = math.exp %595 : vector<8x8xf32>
    %cst_215 = arith.constant dense<0.000000e+00> : vector<8xf32>
    %597 = vector.multi_reduction <add>, %596, %cst_215 [1] : vector<8x8xf32> to vector<8xf32>
    %598 = vector.shape_cast %597 : vector<8xf32> to vector<8x1xf32>
    %599 = tpu.reciprocal %598 {approx = true} : vector<8x1xf32> -> vector<8x1xf32>
    %600 = vector.broadcast %599 : vector<8x1xf32> to vector<8x8xf32>
    %601 = arith.mulf %596, %600 : vector<8x8xf32>
    %602 = arith.truncf %601 : vector<8x8xf32> to vector<8x8xbf16>
    %603 = arith.truncf %587 : vector<8x8xf32> to vector<8x8xbf16>
    %cst_216 = arith.constant dense<0.000000e+00> : vector<8x8xf32>
    %604 = tpu.matmul %602, %603, %cst_216 {dimension_numbers = #tpu.dot_dimension_numbers<[1], [0], [0], [1], [0, 0, 1, 1], [], []>} : vector<8x8xbf16>, vector<8x8xbf16>, vector<8x8xf32> -> vector<8x8xf32>
    %605 = vector.extract_strided_slice %560 {offsets = [0, 16], sizes = [8, 8], strides = [1, 1]} : vector<8x96xf32> to vector<8x8xf32>
    %606 = arith.truncf %605 : vector<8x8xf32> to vector<8x8xbf16>
    %607 = vector.extract_strided_slice %560 {offsets = [0, 48], sizes = [8, 8], strides = [1, 1]} : vector<8x96xf32> to vector<8x8xf32>
    %608 = arith.truncf %607 : vector<8x8xf32> to vector<8x8xbf16>
    %609 = vector.extract_strided_slice %560 {offsets = [0, 80], sizes = [8, 8], strides = [1, 1]} : vector<8x96xf32> to vector<8x8xf32>
    %cst_217 = arith.constant dense<0.000000e+00> : vector<8x8xf32>
    %610 = tpu.matmul %606, %608, %cst_217 {dimension_numbers = #tpu.dot_dimension_numbers<[1], [1], [0], [0], [0, 0, 1, 0], [], []>} : vector<8x8xbf16>, vector<8x8xbf16>, vector<8x8xf32> -> vector<8x8xf32>
    %cst_218 = arith.constant 0.353553385 : f32
    %611 = vector.broadcast %cst_218 : f32 to vector<8x8xf32>
    %612 = arith.mulf %610, %611 : vector<8x8xf32>
    %613 = arith.addf %612, %345 : vector<8x8xf32>
    %cst_219 = arith.constant dense<0xFF800000> : vector<8xf32>
    %614 = vector.multi_reduction <maximumf>, %613, %cst_219 [1] : vector<8x8xf32> to vector<8xf32>
    %615 = vector.shape_cast %614 : vector<8xf32> to vector<8x1xf32>
    %616 = vector.broadcast %615 : vector<8x1xf32> to vector<8x8xf32>
    %617 = arith.subf %613, %616 : vector<8x8xf32>
    %618 = math.exp %617 : vector<8x8xf32>
    %cst_220 = arith.constant dense<0.000000e+00> : vector<8xf32>
    %619 = vector.multi_reduction <add>, %618, %cst_220 [1] : vector<8x8xf32> to vector<8xf32>
    %620 = vector.shape_cast %619 : vector<8xf32> to vector<8x1xf32>
    %621 = tpu.reciprocal %620 {approx = true} : vector<8x1xf32> -> vector<8x1xf32>
    %622 = vector.broadcast %621 : vector<8x1xf32> to vector<8x8xf32>
    %623 = arith.mulf %618, %622 : vector<8x8xf32>
    %624 = arith.truncf %623 : vector<8x8xf32> to vector<8x8xbf16>
    %625 = arith.truncf %609 : vector<8x8xf32> to vector<8x8xbf16>
    %cst_221 = arith.constant dense<0.000000e+00> : vector<8x8xf32>
    %626 = tpu.matmul %624, %625, %cst_221 {dimension_numbers = #tpu.dot_dimension_numbers<[1], [0], [0], [1], [0, 0, 1, 1], [], []>} : vector<8x8xbf16>, vector<8x8xbf16>, vector<8x8xf32> -> vector<8x8xf32>
    %627 = vector.extract_strided_slice %560 {offsets = [0, 24], sizes = [8, 8], strides = [1, 1]} : vector<8x96xf32> to vector<8x8xf32>
    %628 = arith.truncf %627 : vector<8x8xf32> to vector<8x8xbf16>
    %629 = vector.extract_strided_slice %560 {offsets = [0, 56], sizes = [8, 8], strides = [1, 1]} : vector<8x96xf32> to vector<8x8xf32>
    %630 = arith.truncf %629 : vector<8x8xf32> to vector<8x8xbf16>
    %631 = vector.extract_strided_slice %560 {offsets = [0, 88], sizes = [8, 8], strides = [1, 1]} : vector<8x96xf32> to vector<8x8xf32>
    %cst_222 = arith.constant dense<0.000000e+00> : vector<8x8xf32>
    %632 = tpu.matmul %628, %630, %cst_222 {dimension_numbers = #tpu.dot_dimension_numbers<[1], [1], [0], [0], [0, 0, 1, 0], [], []>} : vector<8x8xbf16>, vector<8x8xbf16>, vector<8x8xf32> -> vector<8x8xf32>
    %cst_223 = arith.constant 0.353553385 : f32
    %633 = vector.broadcast %cst_223 : f32 to vector<8x8xf32>
    %634 = arith.mulf %632, %633 : vector<8x8xf32>
    %635 = arith.addf %634, %345 : vector<8x8xf32>
    %cst_224 = arith.constant dense<0xFF800000> : vector<8xf32>
    %636 = vector.multi_reduction <maximumf>, %635, %cst_224 [1] : vector<8x8xf32> to vector<8xf32>
    %637 = vector.shape_cast %636 : vector<8xf32> to vector<8x1xf32>
    %638 = vector.broadcast %637 : vector<8x1xf32> to vector<8x8xf32>
    %639 = arith.subf %635, %638 : vector<8x8xf32>
    %640 = math.exp %639 : vector<8x8xf32>
    %cst_225 = arith.constant dense<0.000000e+00> : vector<8xf32>
    %641 = vector.multi_reduction <add>, %640, %cst_225 [1] : vector<8x8xf32> to vector<8xf32>
    %642 = vector.shape_cast %641 : vector<8xf32> to vector<8x1xf32>
    %643 = tpu.reciprocal %642 {approx = true} : vector<8x1xf32> -> vector<8x1xf32>
    %644 = vector.broadcast %643 : vector<8x1xf32> to vector<8x8xf32>
    %645 = arith.mulf %640, %644 : vector<8x8xf32>
    %646 = arith.truncf %645 : vector<8x8xf32> to vector<8x8xbf16>
    %647 = arith.truncf %631 : vector<8x8xf32> to vector<8x8xbf16>
    %cst_226 = arith.constant dense<0.000000e+00> : vector<8x8xf32>
    %648 = tpu.matmul %646, %647, %cst_226 {dimension_numbers = #tpu.dot_dimension_numbers<[1], [0], [0], [1], [0, 0, 1, 1], [], []>} : vector<8x8xbf16>, vector<8x8xbf16>, vector<8x8xf32> -> vector<8x8xf32>
    %649 = tpu.concatenate %582, %604, %626, %648 in 1 : vector<8x8xf32>, vector<8x8xf32>, vector<8x8xf32>, vector<8x8xf32> -> vector<8x32xf32>
    %650 = arith.truncf %649 : vector<8x32xf32> to vector<8x32xbf16>
    %cst_227 = arith.constant dense<0.000000e+00> : vector<8x32xf32>
    %651 = tpu.matmul %650, %359, %cst_227 {dimension_numbers = #tpu.dot_dimension_numbers<[1], [0], [0], [1], [0, 0, 1, 1], [], []>} : vector<8x32xbf16>, vector<32x32xbf16>, vector<8x32xf32> -> vector<8x32xf32>
    %652 = arith.addf %534, %651 : vector<8x32xf32>
    %653 = vector.broadcast %361 : vector<1x32xf32> to vector<8x32xf32>
    %654 = arith.addf %652, %653 : vector<8x32xf32>
    %cst_228 = arith.constant dense<0.000000e+00> : vector<8xf32>
    %655 = vector.multi_reduction <add>, %654, %cst_228 [1] : vector<8x32xf32> to vector<8xf32>
    %656 = vector.shape_cast %655 : vector<8xf32> to vector<8x1xf32>
    %cst_229 = arith.constant 3.200000e+01 : f32
    %657 = vector.broadcast %cst_229 : f32 to vector<8x1xf32>
    %658 = arith.divf %656, %657 : vector<8x1xf32>
    %659 = vector.broadcast %658 : vector<8x1xf32> to vector<8x32xf32>
    %660 = arith.subf %654, %659 : vector<8x32xf32>
    %661 = arith.mulf %660, %660 : vector<8x32xf32>
    %cst_230 = arith.constant dense<0.000000e+00> : vector<8xf32>
    %662 = vector.multi_reduction <add>, %661, %cst_230 [1] : vector<8x32xf32> to vector<8xf32>
    %663 = vector.shape_cast %662 : vector<8xf32> to vector<8x1xf32>
    %cst_231 = arith.constant 3.200000e+01 : f32
    %664 = vector.broadcast %cst_231 : f32 to vector<8x1xf32>
    %665 = arith.divf %663, %664 : vector<8x1xf32>
    %666 = vector.broadcast %658 : vector<8x1xf32> to vector<8x32xf32>
    %667 = arith.subf %654, %666 : vector<8x32xf32>
    %cst_232 = arith.constant 9.99999974E-6 : f32
    %668 = vector.broadcast %cst_232 : f32 to vector<8x1xf32>
    %669 = arith.addf %665, %668 : vector<8x1xf32>
    %670 = math.rsqrt %669 : vector<8x1xf32>
    %671 = vector.broadcast %670 : vector<8x1xf32> to vector<8x32xf32>
    %672 = arith.mulf %667, %671 : vector<8x32xf32>
    %673 = vector.broadcast %351 : vector<1x32xf32> to vector<8x32xf32>
    %674 = arith.mulf %672, %673 : vector<8x32xf32>
    %675 = vector.broadcast %353 : vector<1x32xf32> to vector<8x32xf32>
    %676 = arith.addf %674, %675 : vector<8x32xf32>
    %677 = arith.truncf %676 : vector<8x32xf32> to vector<8x32xbf16>
    %cst_233 = arith.constant dense<0.000000e+00> : vector<8x128xf32>
    %678 = tpu.matmul %677, %363, %cst_233 {dimension_numbers = #tpu.dot_dimension_numbers<[1], [0], [0], [1], [0, 0, 1, 1], [], []>} : vector<8x32xbf16>, vector<32x128xbf16>, vector<8x128xf32> -> vector<8x128xf32>
    %679 = vector.broadcast %365 : vector<1x128xf32> to vector<8x128xf32>
    %680 = arith.addf %678, %679 : vector<8x128xf32>
    %cst_234 = arith.constant -1.702000e+00 : f32
    %681 = vector.broadcast %cst_234 : f32 to vector<8x128xf32>
    %682 = arith.mulf %681, %680 : vector<8x128xf32>
    %683 = math.exp %682 : vector<8x128xf32>
    %cst_235 = arith.constant 1.000000e+00 : f32
    %684 = vector.broadcast %cst_235 : f32 to vector<8x128xf32>
    %685 = arith.addf %684, %683 : vector<8x128xf32>
    %686 = tpu.reciprocal %685 {approx = true} : vector<8x128xf32> -> vector<8x128xf32>
    %687 = arith.mulf %680, %686 : vector<8x128xf32>
    %688 = arith.truncf %687 : vector<8x128xf32> to vector<8x128xbf16>
    %cst_236 = arith.constant dense<0.000000e+00> : vector<8x32xf32>
    %689 = tpu.matmul %688, %367, %cst_236 {dimension_numbers = #tpu.dot_dimension_numbers<[1], [0], [0], [1], [0, 0, 1, 1], [], []>} : vector<8x128xbf16>, vector<128x32xbf16>, vector<8x32xf32> -> vector<8x32xf32>
    %690 = arith.addf %654, %689 : vector<8x32xf32>
    %691 = vector.broadcast %369 : vector<1x32xf32> to vector<8x32xf32>
    %692 = arith.addf %690, %691 : vector<8x32xf32>
    %c1_237 = arith.constant 1 : index
    %c0_238 = arith.constant 0 : index
    %c0_239 = arith.constant 0 : index
    %693 = vector.load %arg45[%c1_237, %c0_238, %c0_239] : memref<3x8x32xf32, #tpu.memory_space<vmem>>, vector<1x8x32xf32>
    %694 = vector.shape_cast %693 : vector<1x8x32xf32> to vector<8x32xf32>
    %695 = vector.shape_cast %692 : vector<8x32xf32> to vector<1x8x32xf32>
    tpu.vector_store %arg45[%c1_237, %c0_238, %c0_239], %695 {strides = array<i32>} : memref<3x8x32xf32, #tpu.memory_space<vmem>>, vector<1x8x32xf32>,
    %c2 = arith.constant 2 : index
    %c0_240 = arith.constant 0 : index
    %c0_241 = arith.constant 0 : index
    %696 = vector.load %arg45[%c2, %c0_240, %c0_241] : memref<3x8x32xf32, #tpu.memory_space<vmem>>, vector<1x8x32xf32>
    %697 = vector.shape_cast %696 : vector<1x8x32xf32> to vector<8x32xf32>
    %cst_242 = arith.constant dense<0.000000e+00> : vector<8xf32>
    %698 = vector.multi_reduction <add>, %697, %cst_242 [1] : vector<8x32xf32> to vector<8xf32>
    %699 = vector.shape_cast %698 : vector<8xf32> to vector<8x1xf32>
    %cst_243 = arith.constant 3.200000e+01 : f32
    %700 = vector.broadcast %cst_243 : f32 to vector<8x1xf32>
    %701 = arith.divf %699, %700 : vector<8x1xf32>
    %702 = vector.broadcast %701 : vector<8x1xf32> to vector<8x32xf32>
    %703 = arith.subf %697, %702 : vector<8x32xf32>
    %704 = arith.mulf %703, %703 : vector<8x32xf32>
    %cst_244 = arith.constant dense<0.000000e+00> : vector<8xf32>
    %705 = vector.multi_reduction <add>, %704, %cst_244 [1] : vector<8x32xf32> to vector<8xf32>
    %706 = vector.shape_cast %705 : vector<8xf32> to vector<8x1xf32>
    %cst_245 = arith.constant 3.200000e+01 : f32
    %707 = vector.broadcast %cst_245 : f32 to vector<8x1xf32>
    %708 = arith.divf %706, %707 : vector<8x1xf32>
    %709 = vector.broadcast %701 : vector<8x1xf32> to vector<8x32xf32>
    %710 = arith.subf %697, %709 : vector<8x32xf32>
    %cst_246 = arith.constant 9.99999974E-6 : f32
    %711 = vector.broadcast %cst_246 : f32 to vector<8x1xf32>
    %712 = arith.addf %708, %711 : vector<8x1xf32>
    %713 = math.rsqrt %712 : vector<8x1xf32>
    %714 = vector.broadcast %713 : vector<8x1xf32> to vector<8x32xf32>
    %715 = arith.mulf %710, %714 : vector<8x32xf32>
    %716 = vector.broadcast %347 : vector<1x32xf32> to vector<8x32xf32>
    %717 = arith.mulf %715, %716 : vector<8x32xf32>
    %718 = vector.broadcast %349 : vector<1x32xf32> to vector<8x32xf32>
    %719 = arith.addf %717, %718 : vector<8x32xf32>
    %720 = arith.truncf %719 : vector<8x32xf32> to vector<8x32xbf16>
    %cst_247 = arith.constant dense<0.000000e+00> : vector<8x96xf32>
    %721 = tpu.matmul %720, %355, %cst_247 {dimension_numbers = #tpu.dot_dimension_numbers<[1], [0], [0], [1], [0, 0, 1, 1], [], []>} : vector<8x32xbf16>, vector<32x96xbf16>, vector<8x96xf32> -> vector<8x96xf32>
    %722 = vector.broadcast %357 : vector<1x96xf32> to vector<8x96xf32>
    %723 = arith.addf %721, %722 : vector<8x96xf32>
    %724 = vector.extract_strided_slice %723 {offsets = [0, 0], sizes = [8, 8], strides = [1, 1]} : vector<8x96xf32> to vector<8x8xf32>
    %725 = arith.truncf %724 : vector<8x8xf32> to vector<8x8xbf16>
    %726 = vector.extract_strided_slice %723 {offsets = [0, 32], sizes = [8, 8], strides = [1, 1]} : vector<8x96xf32> to vector<8x8xf32>
    %727 = arith.truncf %726 : vector<8x8xf32> to vector<8x8xbf16>
    %728 = vector.extract_strided_slice %723 {offsets = [0, 64], sizes = [8, 8], strides = [1, 1]} : vector<8x96xf32> to vector<8x8xf32>
    %cst_248 = arith.constant dense<0.000000e+00> : vector<8x8xf32>
    %729 = tpu.matmul %725, %727, %cst_248 {dimension_numbers = #tpu.dot_dimension_numbers<[1], [1], [0], [0], [0, 0, 1, 0], [], []>} : vector<8x8xbf16>, vector<8x8xbf16>, vector<8x8xf32> -> vector<8x8xf32>
    %cst_249 = arith.constant 0.353553385 : f32
    %730 = vector.broadcast %cst_249 : f32 to vector<8x8xf32>
    %731 = arith.mulf %729, %730 : vector<8x8xf32>
    %732 = arith.addf %731, %345 : vector<8x8xf32>
    %cst_250 = arith.constant dense<0xFF800000> : vector<8xf32>
    %733 = vector.multi_reduction <maximumf>, %732, %cst_250 [1] : vector<8x8xf32> to vector<8xf32>
    %734 = vector.shape_cast %733 : vector<8xf32> to vector<8x1xf32>
    %735 = vector.broadcast %734 : vector<8x1xf32> to vector<8x8xf32>
    %736 = arith.subf %732, %735 : vector<8x8xf32>
    %737 = math.exp %736 : vector<8x8xf32>
    %cst_251 = arith.constant dense<0.000000e+00> : vector<8xf32>
    %738 = vector.multi_reduction <add>, %737, %cst_251 [1] : vector<8x8xf32> to vector<8xf32>
    %739 = vector.shape_cast %738 : vector<8xf32> to vector<8x1xf32>
    %740 = tpu.reciprocal %739 {approx = true} : vector<8x1xf32> -> vector<8x1xf32>
    %741 = vector.broadcast %740 : vector<8x1xf32> to vector<8x8xf32>
    %742 = arith.mulf %737, %741 : vector<8x8xf32>
    %743 = arith.truncf %742 : vector<8x8xf32> to vector<8x8xbf16>
    %744 = arith.truncf %728 : vector<8x8xf32> to vector<8x8xbf16>
    %cst_252 = arith.constant dense<0.000000e+00> : vector<8x8xf32>
    %745 = tpu.matmul %743, %744, %cst_252 {dimension_numbers = #tpu.dot_dimension_numbers<[1], [0], [0], [1], [0, 0, 1, 1], [], []>} : vector<8x8xbf16>, vector<8x8xbf16>, vector<8x8xf32> -> vector<8x8xf32>
    %746 = vector.extract_strided_slice %723 {offsets = [0, 8], sizes = [8, 8], strides = [1, 1]} : vector<8x96xf32> to vector<8x8xf32>
    %747 = arith.truncf %746 : vector<8x8xf32> to vector<8x8xbf16>
    %748 = vector.extract_strided_slice %723 {offsets = [0, 40], sizes = [8, 8], strides = [1, 1]} : vector<8x96xf32> to vector<8x8xf32>
    %749 = arith.truncf %748 : vector<8x8xf32> to vector<8x8xbf16>
    %750 = vector.extract_strided_slice %723 {offsets = [0, 72], sizes = [8, 8], strides = [1, 1]} : vector<8x96xf32> to vector<8x8xf32>
    %cst_253 = arith.constant dense<0.000000e+00> : vector<8x8xf32>
    %751 = tpu.matmul %747, %749, %cst_253 {dimension_numbers = #tpu.dot_dimension_numbers<[1], [1], [0], [0], [0, 0, 1, 0], [], []>} : vector<8x8xbf16>, vector<8x8xbf16>, vector<8x8xf32> -> vector<8x8xf32>
    %cst_254 = arith.constant 0.353553385 : f32
    %752 = vector.broadcast %cst_254 : f32 to vector<8x8xf32>
    %753 = arith.mulf %751, %752 : vector<8x8xf32>
    %754 = arith.addf %753, %345 : vector<8x8xf32>
    %cst_255 = arith.constant dense<0xFF800000> : vector<8xf32>
    %755 = vector.multi_reduction <maximumf>, %754, %cst_255 [1] : vector<8x8xf32> to vector<8xf32>
    %756 = vector.shape_cast %755 : vector<8xf32> to vector<8x1xf32>
    %757 = vector.broadcast %756 : vector<8x1xf32> to vector<8x8xf32>
    %758 = arith.subf %754, %757 : vector<8x8xf32>
    %759 = math.exp %758 : vector<8x8xf32>
    %cst_256 = arith.constant dense<0.000000e+00> : vector<8xf32>
    %760 = vector.multi_reduction <add>, %759, %cst_256 [1] : vector<8x8xf32> to vector<8xf32>
    %761 = vector.shape_cast %760 : vector<8xf32> to vector<8x1xf32>
    %762 = tpu.reciprocal %761 {approx = true} : vector<8x1xf32> -> vector<8x1xf32>
    %763 = vector.broadcast %762 : vector<8x1xf32> to vector<8x8xf32>
    %764 = arith.mulf %759, %763 : vector<8x8xf32>
    %765 = arith.truncf %764 : vector<8x8xf32> to vector<8x8xbf16>
    %766 = arith.truncf %750 : vector<8x8xf32> to vector<8x8xbf16>
    %cst_257 = arith.constant dense<0.000000e+00> : vector<8x8xf32>
    %767 = tpu.matmul %765, %766, %cst_257 {dimension_numbers = #tpu.dot_dimension_numbers<[1], [0], [0], [1], [0, 0, 1, 1], [], []>} : vector<8x8xbf16>, vector<8x8xbf16>, vector<8x8xf32> -> vector<8x8xf32>
    %768 = vector.extract_strided_slice %723 {offsets = [0, 16], sizes = [8, 8], strides = [1, 1]} : vector<8x96xf32> to vector<8x8xf32>
    %769 = arith.truncf %768 : vector<8x8xf32> to vector<8x8xbf16>
    %770 = vector.extract_strided_slice %723 {offsets = [0, 48], sizes = [8, 8], strides = [1, 1]} : vector<8x96xf32> to vector<8x8xf32>
    %771 = arith.truncf %770 : vector<8x8xf32> to vector<8x8xbf16>
    %772 = vector.extract_strided_slice %723 {offsets = [0, 80], sizes = [8, 8], strides = [1, 1]} : vector<8x96xf32> to vector<8x8xf32>
    %cst_258 = arith.constant dense<0.000000e+00> : vector<8x8xf32>
    %773 = tpu.matmul %769, %771, %cst_258 {dimension_numbers = #tpu.dot_dimension_numbers<[1], [1], [0], [0], [0, 0, 1, 0], [], []>} : vector<8x8xbf16>, vector<8x8xbf16>, vector<8x8xf32> -> vector<8x8xf32>
    %cst_259 = arith.constant 0.353553385 : f32
    %774 = vector.broadcast %cst_259 : f32 to vector<8x8xf32>
    %775 = arith.mulf %773, %774 : vector<8x8xf32>
    %776 = arith.addf %775, %345 : vector<8x8xf32>
    %cst_260 = arith.constant dense<0xFF800000> : vector<8xf32>
    %777 = vector.multi_reduction <maximumf>, %776, %cst_260 [1] : vector<8x8xf32> to vector<8xf32>
    %778 = vector.shape_cast %777 : vector<8xf32> to vector<8x1xf32>
    %779 = vector.broadcast %778 : vector<8x1xf32> to vector<8x8xf32>
    %780 = arith.subf %776, %779 : vector<8x8xf32>
    %781 = math.exp %780 : vector<8x8xf32>
    %cst_261 = arith.constant dense<0.000000e+00> : vector<8xf32>
    %782 = vector.multi_reduction <add>, %781, %cst_261 [1] : vector<8x8xf32> to vector<8xf32>
    %783 = vector.shape_cast %782 : vector<8xf32> to vector<8x1xf32>
    %784 = tpu.reciprocal %783 {approx = true} : vector<8x1xf32> -> vector<8x1xf32>
    %785 = vector.broadcast %784 : vector<8x1xf32> to vector<8x8xf32>
    %786 = arith.mulf %781, %785 : vector<8x8xf32>
    %787 = arith.truncf %786 : vector<8x8xf32> to vector<8x8xbf16>
    %788 = arith.truncf %772 : vector<8x8xf32> to vector<8x8xbf16>
    %cst_262 = arith.constant dense<0.000000e+00> : vector<8x8xf32>
    %789 = tpu.matmul %787, %788, %cst_262 {dimension_numbers = #tpu.dot_dimension_numbers<[1], [0], [0], [1], [0, 0, 1, 1], [], []>} : vector<8x8xbf16>, vector<8x8xbf16>, vector<8x8xf32> -> vector<8x8xf32>
    %790 = vector.extract_strided_slice %723 {offsets = [0, 24], sizes = [8, 8], strides = [1, 1]} : vector<8x96xf32> to vector<8x8xf32>
    %791 = arith.truncf %790 : vector<8x8xf32> to vector<8x8xbf16>
    %792 = vector.extract_strided_slice %723 {offsets = [0, 56], sizes = [8, 8], strides = [1, 1]} : vector<8x96xf32> to vector<8x8xf32>
    %793 = arith.truncf %792 : vector<8x8xf32> to vector<8x8xbf16>
    %794 = vector.extract_strided_slice %723 {offsets = [0, 88], sizes = [8, 8], strides = [1, 1]} : vector<8x96xf32> to vector<8x8xf32>
    %cst_263 = arith.constant dense<0.000000e+00> : vector<8x8xf32>
    %795 = tpu.matmul %791, %793, %cst_263 {dimension_numbers = #tpu.dot_dimension_numbers<[1], [1], [0], [0], [0, 0, 1, 0], [], []>} : vector<8x8xbf16>, vector<8x8xbf16>, vector<8x8xf32> -> vector<8x8xf32>
    %cst_264 = arith.constant 0.353553385 : f32
    %796 = vector.broadcast %cst_264 : f32 to vector<8x8xf32>
    %797 = arith.mulf %795, %796 : vector<8x8xf32>
    %798 = arith.addf %797, %345 : vector<8x8xf32>
    %cst_265 = arith.constant dense<0xFF800000> : vector<8xf32>
    %799 = vector.multi_reduction <maximumf>, %798, %cst_265 [1] : vector<8x8xf32> to vector<8xf32>
    %800 = vector.shape_cast %799 : vector<8xf32> to vector<8x1xf32>
    %801 = vector.broadcast %800 : vector<8x1xf32> to vector<8x8xf32>
    %802 = arith.subf %798, %801 : vector<8x8xf32>
    %803 = math.exp %802 : vector<8x8xf32>
    %cst_266 = arith.constant dense<0.000000e+00> : vector<8xf32>
    %804 = vector.multi_reduction <add>, %803, %cst_266 [1] : vector<8x8xf32> to vector<8xf32>
    %805 = vector.shape_cast %804 : vector<8xf32> to vector<8x1xf32>
    %806 = tpu.reciprocal %805 {approx = true} : vector<8x1xf32> -> vector<8x1xf32>
    %807 = vector.broadcast %806 : vector<8x1xf32> to vector<8x8xf32>
    %808 = arith.mulf %803, %807 : vector<8x8xf32>
    %809 = arith.truncf %808 : vector<8x8xf32> to vector<8x8xbf16>
    %810 = arith.truncf %794 : vector<8x8xf32> to vector<8x8xbf16>
    %cst_267 = arith.constant dense<0.000000e+00> : vector<8x8xf32>
    %811 = tpu.matmul %809, %810, %cst_267 {dimension_numbers = #tpu.dot_dimension_numbers<[1], [0], [0], [1], [0, 0, 1, 1], [], []>} : vector<8x8xbf16>, vector<8x8xbf16>, vector<8x8xf32> -> vector<8x8xf32>
    %812 = tpu.concatenate %745, %767, %789, %811 in 1 : vector<8x8xf32>, vector<8x8xf32>, vector<8x8xf32>, vector<8x8xf32> -> vector<8x32xf32>
    %813 = arith.truncf %812 : vector<8x32xf32> to vector<8x32xbf16>
    %cst_268 = arith.constant dense<0.000000e+00> : vector<8x32xf32>
    %814 = tpu.matmul %813, %359, %cst_268 {dimension_numbers = #tpu.dot_dimension_numbers<[1], [0], [0], [1], [0, 0, 1, 1], [], []>} : vector<8x32xbf16>, vector<32x32xbf16>, vector<8x32xf32> -> vector<8x32xf32>
    %815 = arith.addf %697, %814 : vector<8x32xf32>
    %816 = vector.broadcast %361 : vector<1x32xf32> to vector<8x32xf32>
    %817 = arith.addf %815, %816 : vector<8x32xf32>
    %cst_269 = arith.constant dense<0.000000e+00> : vector<8xf32>
    %818 = vector.multi_reduction <add>, %817, %cst_269 [1] : vector<8x32xf32> to vector<8xf32>
    %819 = vector.shape_cast %818 : vector<8xf32> to vector<8x1xf32>
    %cst_270 = arith.constant 3.200000e+01 : f32
    %820 = vector.broadcast %cst_270 : f32 to vector<8x1xf32>
    %821 = arith.divf %819, %820 : vector<8x1xf32>
    %822 = vector.broadcast %821 : vector<8x1xf32> to vector<8x32xf32>
    %823 = arith.subf %817, %822 : vector<8x32xf32>
    %824 = arith.mulf %823, %823 : vector<8x32xf32>
    %cst_271 = arith.constant dense<0.000000e+00> : vector<8xf32>
    %825 = vector.multi_reduction <add>, %824, %cst_271 [1] : vector<8x32xf32> to vector<8xf32>
    %826 = vector.shape_cast %825 : vector<8xf32> to vector<8x1xf32>
    %cst_272 = arith.constant 3.200000e+01 : f32
    %827 = vector.broadcast %cst_272 : f32 to vector<8x1xf32>
    %828 = arith.divf %826, %827 : vector<8x1xf32>
    %829 = vector.broadcast %821 : vector<8x1xf32> to vector<8x32xf32>
    %830 = arith.subf %817, %829 : vector<8x32xf32>
    %cst_273 = arith.constant 9.99999974E-6 : f32
    %831 = vector.broadcast %cst_273 : f32 to vector<8x1xf32>
    %832 = arith.addf %828, %831 : vector<8x1xf32>
    %833 = math.rsqrt %832 : vector<8x1xf32>
    %834 = vector.broadcast %833 : vector<8x1xf32> to vector<8x32xf32>
    %835 = arith.mulf %830, %834 : vector<8x32xf32>
    %836 = vector.broadcast %351 : vector<1x32xf32> to vector<8x32xf32>
    %837 = arith.mulf %835, %836 : vector<8x32xf32>
    %838 = vector.broadcast %353 : vector<1x32xf32> to vector<8x32xf32>
    %839 = arith.addf %837, %838 : vector<8x32xf32>
    %840 = arith.truncf %839 : vector<8x32xf32> to vector<8x32xbf16>
    %cst_274 = arith.constant dense<0.000000e+00> : vector<8x128xf32>
    %841 = tpu.matmul %840, %363, %cst_274 {dimension_numbers = #tpu.dot_dimension_numbers<[1], [0], [0], [1], [0, 0, 1, 1], [], []>} : vector<8x32xbf16>, vector<32x128xbf16>, vector<8x128xf32> -> vector<8x128xf32>
    %842 = vector.broadcast %365 : vector<1x128xf32> to vector<8x128xf32>
    %843 = arith.addf %841, %842 : vector<8x128xf32>
    %cst_275 = arith.constant -1.702000e+00 : f32
    %844 = vector.broadcast %cst_275 : f32 to vector<8x128xf32>
    %845 = arith.mulf %844, %843 : vector<8x128xf32>
    %846 = math.exp %845 : vector<8x128xf32>
    %cst_276 = arith.constant 1.000000e+00 : f32
    %847 = vector.broadcast %cst_276 : f32 to vector<8x128xf32>
    %848 = arith.addf %847, %846 : vector<8x128xf32>
    %849 = tpu.reciprocal %848 {approx = true} : vector<8x128xf32> -> vector<8x128xf32>
    %850 = arith.mulf %843, %849 : vector<8x128xf32>
    %851 = arith.truncf %850 : vector<8x128xf32> to vector<8x128xbf16>
    %cst_277 = arith.constant dense<0.000000e+00> : vector<8x32xf32>
    %852 = tpu.matmul %851, %367, %cst_277 {dimension_numbers = #tpu.dot_dimension_numbers<[1], [0], [0], [1], [0, 0, 1, 1], [], []>} : vector<8x128xbf16>, vector<128x32xbf16>, vector<8x32xf32> -> vector<8x32xf32>
    %853 = arith.addf %817, %852 : vector<8x32xf32>
    %854 = vector.broadcast %369 : vector<1x32xf32> to vector<8x32xf32>
    %855 = arith.addf %853, %854 : vector<8x32xf32>
    %c2_278 = arith.constant 2 : index
    %c0_279 = arith.constant 0 : index
    %c0_280 = arith.constant 0 : index
    %856 = vector.load %arg45[%c2_278, %c0_279, %c0_280] : memref<3x8x32xf32, #tpu.memory_space<vmem>>, vector<1x8x32xf32>
    %857 = vector.shape_cast %856 : vector<1x8x32xf32> to vector<8x32xf32>
    %858 = vector.shape_cast %855 : vector<8x32xf32> to vector<1x8x32xf32>
    tpu.vector_store %arg45[%c2_278, %c0_279, %c0_280], %858 {strides = array<i32>} : memref<3x8x32xf32, #tpu.memory_space<vmem>>, vector<1x8x32xf32>,
    %c1_i32 = arith.constant 1 : i32
    %859 = arith.cmpi eq, %arg0, %c1_i32 : i32
    %860 = arith.extui %859 : i1 to i32
    %c0_i32_281 = arith.constant 0 : i32
    %861 = arith.cmpi ne, %860, %c0_i32_281 : i32
    scf.if %861 {
      %c0_282 = arith.constant 0 : index
      %c0_283 = arith.constant 0 : index
      %862 = vector.load %arg20[%c0_282, %c0_283] : memref<1x32xf32, #tpu.memory_space<vmem>>, vector<1x32xf32>
      %c0_284 = arith.constant 0 : index
      %c0_285 = arith.constant 0 : index
      %863 = vector.load %arg21[%c0_284, %c0_285] : memref<1x32xf32, #tpu.memory_space<vmem>>, vector<1x32xf32>
      %c0_286 = arith.constant 0 : index
      %c0_287 = arith.constant 0 : index
      %864 = vector.load %arg22[%c0_286, %c0_287] : memref<32x32xbf16, #tpu.memory_space<vmem>>, vector<32x32xbf16>
      %c0_288 = arith.constant 0 : index
      %c0_289 = arith.constant 0 : index
      %c0_290 = arith.constant 0 : index
      %865 = vector.load %arg44[%c0_288, %c0_289, %c0_290] : memref<2x5x32xf32, #tpu.memory_space<vmem>>, vector<1x1x32xf32>
      %866 = vector.shape_cast %865 : vector<1x1x32xf32> to vector<1x32xf32>
      %cst_291 = arith.constant dense<0.000000e+00> : vector<1xf32>
      %867 = vector.multi_reduction <add>, %866, %cst_291 [1] : vector<1x32xf32> to vector<1xf32>
      %868 = vector.shape_cast %867 : vector<1xf32> to vector<1x1xf32>
      %cst_292 = arith.constant 3.200000e+01 : f32
      %869 = vector.broadcast %cst_292 : f32 to vector<1x1xf32>
      %870 = arith.divf %868, %869 : vector<1x1xf32>
      %871 = vector.broadcast %870 : vector<1x1xf32> to vector<1x32xf32>
      %872 = arith.subf %866, %871 : vector<1x32xf32>
      %873 = arith.mulf %872, %872 : vector<1x32xf32>
      %cst_293 = arith.constant dense<0.000000e+00> : vector<1xf32>
      %874 = vector.multi_reduction <add>, %873, %cst_293 [1] : vector<1x32xf32> to vector<1xf32>
      %875 = vector.shape_cast %874 : vector<1xf32> to vector<1x1xf32>
      %cst_294 = arith.constant 3.200000e+01 : f32
      %876 = vector.broadcast %cst_294 : f32 to vector<1x1xf32>
      %877 = arith.divf %875, %876 : vector<1x1xf32>
      %878 = vector.broadcast %870 : vector<1x1xf32> to vector<1x32xf32>
      %879 = arith.subf %866, %878 : vector<1x32xf32>
      %cst_295 = arith.constant 9.99999974E-6 : f32
      %880 = vector.broadcast %cst_295 : f32 to vector<1x1xf32>
      %881 = arith.addf %877, %880 : vector<1x1xf32>
      %882 = math.rsqrt %881 : vector<1x1xf32>
      %883 = vector.broadcast %882 : vector<1x1xf32> to vector<1x32xf32>
      %884 = arith.mulf %879, %883 : vector<1x32xf32>
      %885 = arith.mulf %884, %862 : vector<1x32xf32>
      %886 = arith.addf %885, %863 : vector<1x32xf32>
      %887 = arith.truncf %886 : vector<1x32xf32> to vector<1x32xbf16>
      %cst_296 = arith.constant dense<0.000000e+00> : vector<1x32xf32>
      %888 = tpu.matmul %887, %864, %cst_296 {dimension_numbers = #tpu.dot_dimension_numbers<[1], [0], [0], [1], [0, 0, 1, 1], [], []>} : vector<1x32xbf16>, vector<32x32xbf16>, vector<1x32xf32> -> vector<1x32xf32>
      %c1_297 = arith.constant 1 : index
      %c0_298 = arith.constant 0 : index
      %c0_299 = arith.constant 0 : index
      %889 = vector.load %arg44[%c1_297, %c0_298, %c0_299] : memref<2x5x32xf32, #tpu.memory_space<vmem>>, vector<1x1x32xf32>
      %890 = vector.shape_cast %889 : vector<1x1x32xf32> to vector<1x32xf32>
      %cst_300 = arith.constant dense<0.000000e+00> : vector<1xf32>
      %891 = vector.multi_reduction <add>, %890, %cst_300 [1] : vector<1x32xf32> to vector<1xf32>
      %892 = vector.shape_cast %891 : vector<1xf32> to vector<1x1xf32>
      %cst_301 = arith.constant 3.200000e+01 : f32
      %893 = vector.broadcast %cst_301 : f32 to vector<1x1xf32>
      %894 = arith.divf %892, %893 : vector<1x1xf32>
      %895 = vector.broadcast %894 : vector<1x1xf32> to vector<1x32xf32>
      %896 = arith.subf %890, %895 : vector<1x32xf32>
      %897 = arith.mulf %896, %896 : vector<1x32xf32>
      %cst_302 = arith.constant dense<0.000000e+00> : vector<1xf32>
      %898 = vector.multi_reduction <add>, %897, %cst_302 [1] : vector<1x32xf32> to vector<1xf32>
      %899 = vector.shape_cast %898 : vector<1xf32> to vector<1x1xf32>
      %cst_303 = arith.constant 3.200000e+01 : f32
      %900 = vector.broadcast %cst_303 : f32 to vector<1x1xf32>
      %901 = arith.divf %899, %900 : vector<1x1xf32>
      %902 = vector.broadcast %894 : vector<1x1xf32> to vector<1x32xf32>
      %903 = arith.subf %890, %902 : vector<1x32xf32>
      %cst_304 = arith.constant 9.99999974E-6 : f32
      %904 = vector.broadcast %cst_304 : f32 to vector<1x1xf32>
      %905 = arith.addf %901, %904 : vector<1x1xf32>
      %906 = math.rsqrt %905 : vector<1x1xf32>
      %907 = vector.broadcast %906 : vector<1x1xf32> to vector<1x32xf32>
      %908 = arith.mulf %903, %907 : vector<1x32xf32>
      %909 = arith.mulf %908, %862 : vector<1x32xf32>
      %910 = arith.addf %909, %863 : vector<1x32xf32>
      %911 = arith.truncf %910 : vector<1x32xf32> to vector<1x32xbf16>
      %cst_305 = arith.constant dense<0.000000e+00> : vector<1x32xf32>
      %912 = tpu.matmul %911, %864, %cst_305 {dimension_numbers = #tpu.dot_dimension_numbers<[1], [0], [0], [1], [0, 0, 1, 1], [], []>} : vector<1x32xbf16>, vector<32x32xbf16>, vector<1x32xf32> -> vector<1x32xf32>
      %913 = tpu.concatenate %888, %912 in 0 : vector<1x32xf32>, vector<1x32xf32> -> vector<2x32xf32>
      %c0_306 = arith.constant 0 : index
      %c0_307 = arith.constant 0 : index
      %914 = vector.load %arg39[%c0_306, %c0_307] : memref<1x32xf32, #tpu.memory_space<vmem>>, vector<1x32xf32>
      %c0_308 = arith.constant 0 : index
      %c0_309 = arith.constant 0 : index
      %915 = vector.load %arg40[%c0_308, %c0_309] : memref<1x32xf32, #tpu.memory_space<vmem>>, vector<1x32xf32>
      %c0_310 = arith.constant 0 : index
      %c0_311 = arith.constant 0 : index
      %916 = vector.load %arg41[%c0_310, %c0_311] : memref<32x32xbf16, #tpu.memory_space<vmem>>, vector<32x32xbf16>
      %c0_312 = arith.constant 0 : index
      %917 = memref.load %arg1[%c0_312] : memref<3xi32, #tpu.memory_space<smem>>
      %c0_313 = arith.constant 0 : index
      %918 = arith.index_cast %917 : i32 to index
      %c0_314 = arith.constant 0 : index
      %919 = vector.load %arg45[%c0_313, %918, %c0_314] : memref<3x8x32xf32, #tpu.memory_space<vmem>>, vector<1x1x32xf32>
      %920 = vector.shape_cast %919 : vector<1x1x32xf32> to vector<1x32xf32>
      %cst_315 = arith.constant dense<0.000000e+00> : vector<1xf32>
      %921 = vector.multi_reduction <add>, %920, %cst_315 [1] : vector<1x32xf32> to vector<1xf32>
      %922 = vector.shape_cast %921 : vector<1xf32> to vector<1x1xf32>
      %cst_316 = arith.constant 3.200000e+01 : f32
      %923 = vector.broadcast %cst_316 : f32 to vector<1x1xf32>
      %924 = arith.divf %922, %923 : vector<1x1xf32>
      %925 = vector.broadcast %924 : vector<1x1xf32> to vector<1x32xf32>
      %926 = arith.subf %920, %925 : vector<1x32xf32>
      %927 = arith.mulf %926, %926 : vector<1x32xf32>
      %cst_317 = arith.constant dense<0.000000e+00> : vector<1xf32>
      %928 = vector.multi_reduction <add>, %927, %cst_317 [1] : vector<1x32xf32> to vector<1xf32>
      %929 = vector.shape_cast %928 : vector<1xf32> to vector<1x1xf32>
      %cst_318 = arith.constant 3.200000e+01 : f32
      %930 = vector.broadcast %cst_318 : f32 to vector<1x1xf32>
      %931 = arith.divf %929, %930 : vector<1x1xf32>
      %932 = vector.broadcast %924 : vector<1x1xf32> to vector<1x32xf32>
      %933 = arith.subf %920, %932 : vector<1x32xf32>
      %cst_319 = arith.constant 9.99999974E-6 : f32
      %934 = vector.broadcast %cst_319 : f32 to vector<1x1xf32>
      %935 = arith.addf %931, %934 : vector<1x1xf32>
      %936 = math.rsqrt %935 : vector<1x1xf32>
      %937 = vector.broadcast %936 : vector<1x1xf32> to vector<1x32xf32>
      %938 = arith.mulf %933, %937 : vector<1x32xf32>
      %939 = arith.mulf %938, %914 : vector<1x32xf32>
      %940 = arith.addf %939, %915 : vector<1x32xf32>
      %941 = arith.truncf %940 : vector<1x32xf32> to vector<1x32xbf16>
      %cst_320 = arith.constant dense<0.000000e+00> : vector<1x32xf32>
      %942 = tpu.matmul %941, %916, %cst_320 {dimension_numbers = #tpu.dot_dimension_numbers<[1], [0], [0], [1], [0, 0, 1, 1], [], []>} : vector<1x32xbf16>, vector<32x32xbf16>, vector<1x32xf32> -> vector<1x32xf32>
      %c1_321 = arith.constant 1 : index
      %943 = memref.load %arg1[%c1_321] : memref<3xi32, #tpu.memory_space<smem>>
      %c1_322 = arith.constant 1 : index
      %944 = arith.index_cast %943 : i32 to index
      %c0_323 = arith.constant 0 : index
      %945 = vector.load %arg45[%c1_322, %944, %c0_323] : memref<3x8x32xf32, #tpu.memory_space<vmem>>, vector<1x1x32xf32>
      %946 = vector.shape_cast %945 : vector<1x1x32xf32> to vector<1x32xf32>
      %cst_324 = arith.constant dense<0.000000e+00> : vector<1xf32>
      %947 = vector.multi_reduction <add>, %946, %cst_324 [1] : vector<1x32xf32> to vector<1xf32>
      %948 = vector.shape_cast %947 : vector<1xf32> to vector<1x1xf32>
      %cst_325 = arith.constant 3.200000e+01 : f32
      %949 = vector.broadcast %cst_325 : f32 to vector<1x1xf32>
      %950 = arith.divf %948, %949 : vector<1x1xf32>
      %951 = vector.broadcast %950 : vector<1x1xf32> to vector<1x32xf32>
      %952 = arith.subf %946, %951 : vector<1x32xf32>
      %953 = arith.mulf %952, %952 : vector<1x32xf32>
      %cst_326 = arith.constant dense<0.000000e+00> : vector<1xf32>
      %954 = vector.multi_reduction <add>, %953, %cst_326 [1] : vector<1x32xf32> to vector<1xf32>
      %955 = vector.shape_cast %954 : vector<1xf32> to vector<1x1xf32>
      %cst_327 = arith.constant 3.200000e+01 : f32
      %956 = vector.broadcast %cst_327 : f32 to vector<1x1xf32>
      %957 = arith.divf %955, %956 : vector<1x1xf32>
      %958 = vector.broadcast %950 : vector<1x1xf32> to vector<1x32xf32>
      %959 = arith.subf %946, %958 : vector<1x32xf32>
      %cst_328 = arith.constant 9.99999974E-6 : f32
      %960 = vector.broadcast %cst_328 : f32 to vector<1x1xf32>
      %961 = arith.addf %957, %960 : vector<1x1xf32>
      %962 = math.rsqrt %961 : vector<1x1xf32>
      %963 = vector.broadcast %962 : vector<1x1xf32> to vector<1x32xf32>
      %964 = arith.mulf %959, %963 : vector<1x32xf32>
      %965 = arith.mulf %964, %914 : vector<1x32xf32>
      %966 = arith.addf %965, %915 : vector<1x32xf32>
      %967 = arith.truncf %966 : vector<1x32xf32> to vector<1x32xbf16>
      %cst_329 = arith.constant dense<0.000000e+00> : vector<1x32xf32>
      %968 = tpu.matmul %967, %916, %cst_329 {dimension_numbers = #tpu.dot_dimension_numbers<[1], [0], [0], [1], [0, 0, 1, 1], [], []>} : vector<1x32xbf16>, vector<32x32xbf16>, vector<1x32xf32> -> vector<1x32xf32>
      %c2_330 = arith.constant 2 : index
      %969 = memref.load %arg1[%c2_330] : memref<3xi32, #tpu.memory_space<smem>>
      %c2_331 = arith.constant 2 : index
      %970 = arith.index_cast %969 : i32 to index
      %c0_332 = arith.constant 0 : index
      %971 = vector.load %arg45[%c2_331, %970, %c0_332] : memref<3x8x32xf32, #tpu.memory_space<vmem>>, vector<1x1x32xf32>
      %972 = vector.shape_cast %971 : vector<1x1x32xf32> to vector<1x32xf32>
      %cst_333 = arith.constant dense<0.000000e+00> : vector<1xf32>
      %973 = vector.multi_reduction <add>, %972, %cst_333 [1] : vector<1x32xf32> to vector<1xf32>
      %974 = vector.shape_cast %973 : vector<1xf32> to vector<1x1xf32>
      %cst_334 = arith.constant 3.200000e+01 : f32
      %975 = vector.broadcast %cst_334 : f32 to vector<1x1xf32>
      %976 = arith.divf %974, %975 : vector<1x1xf32>
      %977 = vector.broadcast %976 : vector<1x1xf32> to vector<1x32xf32>
      %978 = arith.subf %972, %977 : vector<1x32xf32>
      %979 = arith.mulf %978, %978 : vector<1x32xf32>
      %cst_335 = arith.constant dense<0.000000e+00> : vector<1xf32>
      %980 = vector.multi_reduction <add>, %979, %cst_335 [1] : vector<1x32xf32> to vector<1xf32>
      %981 = vector.shape_cast %980 : vector<1xf32> to vector<1x1xf32>
      %cst_336 = arith.constant 3.200000e+01 : f32
      %982 = vector.broadcast %cst_336 : f32 to vector<1x1xf32>
      %983 = arith.divf %981, %982 : vector<1x1xf32>
      %984 = vector.broadcast %976 : vector<1x1xf32> to vector<1x32xf32>
      %985 = arith.subf %972, %984 : vector<1x32xf32>
      %cst_337 = arith.constant 9.99999974E-6 : f32
      %986 = vector.broadcast %cst_337 : f32 to vector<1x1xf32>
      %987 = arith.addf %983, %986 : vector<1x1xf32>
      %988 = math.rsqrt %987 : vector<1x1xf32>
      %989 = vector.broadcast %988 : vector<1x1xf32> to vector<1x32xf32>
      %990 = arith.mulf %985, %989 : vector<1x32xf32>
      %991 = arith.mulf %990, %914 : vector<1x32xf32>
      %992 = arith.addf %991, %915 : vector<1x32xf32>
      %993 = arith.truncf %992 : vector<1x32xf32> to vector<1x32xbf16>
      %cst_338 = arith.constant dense<0.000000e+00> : vector<1x32xf32>
      %994 = tpu.matmul %993, %916, %cst_338 {dimension_numbers = #tpu.dot_dimension_numbers<[1], [0], [0], [1], [0, 0, 1, 1], [], []>} : vector<1x32xbf16>, vector<32x32xbf16>, vector<1x32xf32> -> vector<1x32xf32>
      %995 = tpu.concatenate %942, %968, %994 in 0 : vector<1x32xf32>, vector<1x32xf32>, vector<1x32xf32> -> vector<3x32xf32>
      %996 = arith.mulf %913, %913 : vector<2x32xf32>
      %cst_339 = arith.constant dense<0.000000e+00> : vector<2xf32>
      %997 = vector.multi_reduction <add>, %996, %cst_339 [1] : vector<2x32xf32> to vector<2xf32>
      %998 = vector.shape_cast %997 : vector<2xf32> to vector<2x1xf32>
      %999 = math.rsqrt %998 : vector<2x1xf32>
      %1000 = vector.broadcast %999 : vector<2x1xf32> to vector<2x32xf32>
      %1001 = arith.mulf %913, %1000 : vector<2x32xf32>
      %1002 = arith.mulf %995, %995 : vector<3x32xf32>
      %cst_340 = arith.constant dense<0.000000e+00> : vector<3xf32>
      %1003 = vector.multi_reduction <add>, %1002, %cst_340 [1] : vector<3x32xf32> to vector<3xf32>
      %1004 = vector.shape_cast %1003 : vector<3xf32> to vector<3x1xf32>
      %1005 = math.rsqrt %1004 : vector<3x1xf32>
      %1006 = vector.broadcast %1005 : vector<3x1xf32> to vector<3x32xf32>
      %1007 = arith.mulf %995, %1006 : vector<3x32xf32>
      %cst_341 = arith.constant dense<0.000000e+00> : vector<2x3xf32>
      %1008 = tpu.matmul %1001, %1007, %cst_341 {dimension_numbers = #tpu.dot_dimension_numbers<[1], [1], [0], [0], [0, 0, 1, 0], [], []>} : vector<2x32xf32>, vector<3x32xf32>, vector<2x3xf32> -> vector<2x3xf32>
      %c0_342 = arith.constant 0 : index
      %c0_343 = arith.constant 0 : index
      %1009 = vector.load %arg42[%c0_342, %c0_343] : memref<1x1xf32, #tpu.memory_space<vmem>>, vector<1x1xf32>
      %1010 = math.exp %1009 : vector<1x1xf32>
      %1011 = vector.broadcast %1010 : vector<1x1xf32> to vector<2x3xf32>
      %1012 = arith.mulf %1008, %1011 : vector<2x3xf32>
      %c0_344 = arith.constant 0 : index
      %c0_345 = arith.constant 0 : index
      %1013 = vector.load %arg43[%c0_344, %c0_345] : memref<2x3xf32, #tpu.memory_space<vmem>>, vector<2x3xf32>
      tpu.vector_store %arg43[%c0_344, %c0_345], %1012 {strides = array<i32>} : memref<2x3xf32, #tpu.memory_space<vmem>>, vector<2x3xf32>,
    } else {
    }
    return
  }
  func.func @transform_0(%arg0: i32, %arg1: memref<3xi32, #tpu.memory_space<smem>>) -> (i32, i32) {
    %c0_i32 = arith.constant 0 : i32
    %c0_i32_0 = arith.constant 0 : i32
    %c0_i32_1 = arith.constant 0 : i32
    return %c0_i32, %c0_i32_0 : i32, i32
  }
  func.func @transform_1(%arg0: i32, %arg1: memref<3xi32, #tpu.memory_space<smem>>) -> (i32, i32) {
    %c0_i32 = arith.constant 0 : i32
    %c0_i32_0 = arith.constant 0 : i32
    %c0_i32_1 = arith.constant 0 : i32
    return %c0_i32, %c0_i32_0 : i32, i32
  }
  func.func @transform_2(%arg0: i32, %arg1: memref<3xi32, #tpu.memory_space<smem>>) -> (i32, i32) {
    %c0_i32 = arith.constant 0 : i32
    %c0_i32_0 = arith.constant 0 : i32
    %c0_i32_1 = arith.constant 0 : i32
    return %c0_i32, %c0_i32_0 : i32, i32
  }
  func.func @transform_3(%arg0: i32, %arg1: memref<3xi32, #tpu.memory_space<smem>>) -> (i32, i32) {
    %c0_i32 = arith.constant 0 : i32
    %c0_i32_0 = arith.constant 0 : i32
    %c0_i32_1 = arith.constant 0 : i32
    return %c0_i32, %c0_i32_0 : i32, i32
  }
  func.func @transform_4(%arg0: i32, %arg1: memref<3xi32, #tpu.memory_space<smem>>) -> (i32, i32) {
    %c0_i32 = arith.constant 0 : i32
    %c0_i32_0 = arith.constant 0 : i32
    %c0_i32_1 = arith.constant 0 : i32
    return %c0_i32, %c0_i32_0 : i32, i32
  }
  func.func @transform_5(%arg0: i32, %arg1: memref<3xi32, #tpu.memory_space<smem>>) -> (i32, i32) {
    %c0_i32 = arith.constant 0 : i32
    %c0_i32_0 = arith.constant 0 : i32
    %c0_i32_1 = arith.constant 0 : i32
    return %c0_i32, %c0_i32_0 : i32, i32
  }
  func.func @transform_6(%arg0: i32, %arg1: memref<3xi32, #tpu.memory_space<smem>>) -> (i32, i32, i32) {
    %c0_i32 = arith.constant 0 : i32
    %c0_i32_0 = arith.constant 0 : i32
    %c0_i32_1 = arith.constant 0 : i32
    return %arg0, %c0_i32, %c0_i32_0 : i32, i32, i32
  }
  func.func @transform_7(%arg0: i32, %arg1: memref<3xi32, #tpu.memory_space<smem>>) -> (i32, i32, i32) {
    %c0_i32 = arith.constant 0 : i32
    %c0_i32_0 = arith.constant 0 : i32
    %c0_i32_1 = arith.constant 0 : i32
    return %arg0, %c0_i32, %c0_i32_0 : i32, i32, i32
  }
  func.func @transform_8(%arg0: i32, %arg1: memref<3xi32, #tpu.memory_space<smem>>) -> (i32, i32, i32) {
    %c0_i32 = arith.constant 0 : i32
    %c0_i32_0 = arith.constant 0 : i32
    %c0_i32_1 = arith.constant 0 : i32
    return %arg0, %c0_i32, %c0_i32_0 : i32, i32, i32
  }
  func.func @transform_9(%arg0: i32, %arg1: memref<3xi32, #tpu.memory_space<smem>>) -> (i32, i32, i32) {
    %c0_i32 = arith.constant 0 : i32
    %c0_i32_0 = arith.constant 0 : i32
    %c0_i32_1 = arith.constant 0 : i32
    return %arg0, %c0_i32, %c0_i32_0 : i32, i32, i32
  }
  func.func @transform_10(%arg0: i32, %arg1: memref<3xi32, #tpu.memory_space<smem>>) -> (i32, i32, i32) {
    %c0_i32 = arith.constant 0 : i32
    %c0_i32_0 = arith.constant 0 : i32
    %c0_i32_1 = arith.constant 0 : i32
    return %arg0, %c0_i32, %c0_i32_0 : i32, i32, i32
  }
  func.func @transform_11(%arg0: i32, %arg1: memref<3xi32, #tpu.memory_space<smem>>) -> (i32, i32, i32) {
    %c0_i32 = arith.constant 0 : i32
    %c0_i32_0 = arith.constant 0 : i32
    %c0_i32_1 = arith.constant 0 : i32
    return %arg0, %c0_i32, %c0_i32_0 : i32, i32, i32
  }
  func.func @transform_12(%arg0: i32, %arg1: memref<3xi32, #tpu.memory_space<smem>>) -> (i32, i32, i32) {
    %c0_i32 = arith.constant 0 : i32
    %c0_i32_0 = arith.constant 0 : i32
    %c0_i32_1 = arith.constant 0 : i32
    return %arg0, %c0_i32, %c0_i32_0 : i32, i32, i32
  }
  func.func @transform_13(%arg0: i32, %arg1: memref<3xi32, #tpu.memory_space<smem>>) -> (i32, i32, i32) {
    %c0_i32 = arith.constant 0 : i32
    %c0_i32_0 = arith.constant 0 : i32
    %c0_i32_1 = arith.constant 0 : i32
    return %arg0, %c0_i32, %c0_i32_0 : i32, i32, i32
  }
  func.func @transform_14(%arg0: i32, %arg1: memref<3xi32, #tpu.memory_space<smem>>) -> (i32, i32, i32) {
    %c0_i32 = arith.constant 0 : i32
    %c0_i32_0 = arith.constant 0 : i32
    %c0_i32_1 = arith.constant 0 : i32
    return %arg0, %c0_i32, %c0_i32_0 : i32, i32, i32
  }
  func.func @transform_15(%arg0: i32, %arg1: memref<3xi32, #tpu.memory_space<smem>>) -> (i32, i32, i32) {
    %c0_i32 = arith.constant 0 : i32
    %c0_i32_0 = arith.constant 0 : i32
    %c0_i32_1 = arith.constant 0 : i32
    return %arg0, %c0_i32, %c0_i32_0 : i32, i32, i32
  }
  func.func @transform_16(%arg0: i32, %arg1: memref<3xi32, #tpu.memory_space<smem>>) -> (i32, i32, i32) {
    %c0_i32 = arith.constant 0 : i32
    %c0_i32_0 = arith.constant 0 : i32
    %c0_i32_1 = arith.constant 0 : i32
    return %arg0, %c0_i32, %c0_i32_0 : i32, i32, i32
  }
  func.func @transform_17(%arg0: i32, %arg1: memref<3xi32, #tpu.memory_space<smem>>) -> (i32, i32, i32) {
    %c0_i32 = arith.constant 0 : i32
    %c0_i32_0 = arith.constant 0 : i32
    %c0_i32_1 = arith.constant 0 : i32
    return %arg0, %c0_i32, %c0_i32_0 : i32, i32, i32
  }
  func.func @transform_18(%arg0: i32, %arg1: memref<3xi32, #tpu.memory_space<smem>>) -> (i32, i32) {
    %c0_i32 = arith.constant 0 : i32
    %c0_i32_0 = arith.constant 0 : i32
    %c0_i32_1 = arith.constant 0 : i32
    return %c0_i32, %c0_i32_0 : i32, i32
  }
  func.func @transform_19(%arg0: i32, %arg1: memref<3xi32, #tpu.memory_space<smem>>) -> (i32, i32) {
    %c0_i32 = arith.constant 0 : i32
    %c0_i32_0 = arith.constant 0 : i32
    %c0_i32_1 = arith.constant 0 : i32
    return %c0_i32, %c0_i32_0 : i32, i32
  }
  func.func @transform_20(%arg0: i32, %arg1: memref<3xi32, #tpu.memory_space<smem>>) -> (i32, i32) {
    %c0_i32 = arith.constant 0 : i32
    %c0_i32_0 = arith.constant 0 : i32
    %c0_i32_1 = arith.constant 0 : i32
    return %c0_i32, %c0_i32_0 : i32, i32
  }
  func.func @transform_21(%arg0: i32, %arg1: memref<3xi32, #tpu.memory_space<smem>>) -> (i32, i32, i32) {
    %c0_i32 = arith.constant 0 : i32
    %c0_i32_0 = arith.constant 0 : i32
    %c0_i32_1 = arith.constant 0 : i32
    %c0_i32_2 = arith.constant 0 : i32
    return %c0_i32, %c0_i32_0, %c0_i32_1 : i32, i32, i32
  }
  func.func @transform_22(%arg0: i32, %arg1: memref<3xi32, #tpu.memory_space<smem>>) -> (i32, i32) {
    %c0_i32 = arith.constant 0 : i32
    %c0_i32_0 = arith.constant 0 : i32
    %c0_i32_1 = arith.constant 0 : i32
    return %c0_i32, %c0_i32_0 : i32, i32
  }
  func.func @transform_23(%arg0: i32, %arg1: memref<3xi32, #tpu.memory_space<smem>>) -> (i32, i32, i32) {
    %c0_i32 = arith.constant 0 : i32
    %c0_i32_0 = arith.constant 0 : i32
    %c0_i32_1 = arith.constant 0 : i32
    %c0_i32_2 = arith.constant 0 : i32
    return %c0_i32, %c0_i32_0, %c0_i32_1 : i32, i32, i32
  }
  func.func @transform_24(%arg0: i32, %arg1: memref<3xi32, #tpu.memory_space<smem>>) -> (i32, i32) {
    %c0_i32 = arith.constant 0 : i32
    %c0_i32_0 = arith.constant 0 : i32
    %c0_i32_1 = arith.constant 0 : i32
    return %c0_i32, %c0_i32_0 : i32, i32
  }
  func.func @transform_25(%arg0: i32, %arg1: memref<3xi32, #tpu.memory_space<smem>>) -> (i32, i32, i32) {
    %c0_i32 = arith.constant 0 : i32
    %c0_i32_0 = arith.constant 0 : i32
    %c0_i32_1 = arith.constant 0 : i32
    return %arg0, %c0_i32, %c0_i32_0 : i32, i32, i32
  }
  func.func @transform_26(%arg0: i32, %arg1: memref<3xi32, #tpu.memory_space<smem>>) -> (i32, i32, i32) {
    %c0_i32 = arith.constant 0 : i32
    %c0_i32_0 = arith.constant 0 : i32
    %c0_i32_1 = arith.constant 0 : i32
    return %arg0, %c0_i32, %c0_i32_0 : i32, i32, i32
  }
  func.func @transform_27(%arg0: i32, %arg1: memref<3xi32, #tpu.memory_space<smem>>) -> (i32, i32, i32) {
    %c0_i32 = arith.constant 0 : i32
    %c0_i32_0 = arith.constant 0 : i32
    %c0_i32_1 = arith.constant 0 : i32
    return %arg0, %c0_i32, %c0_i32_0 : i32, i32, i32
  }
  func.func @transform_28(%arg0: i32, %arg1: memref<3xi32, #tpu.memory_space<smem>>) -> (i32, i32, i32) {
    %c0_i32 = arith.constant 0 : i32
    %c0_i32_0 = arith.constant 0 : i32
    %c0_i32_1 = arith.constant 0 : i32
    return %arg0, %c0_i32, %c0_i32_0 : i32, i32, i32
  }
  func.func @transform_29(%arg0: i32, %arg1: memref<3xi32, #tpu.memory_space<smem>>) -> (i32, i32, i32) {
    %c0_i32 = arith.constant 0 : i32
    %c0_i32_0 = arith.constant 0 : i32
    %c0_i32_1 = arith.constant 0 : i32
    return %arg0, %c0_i32, %c0_i32_0 : i32, i32, i32
  }
  func.func @transform_30(%arg0: i32, %arg1: memref<3xi32, #tpu.memory_space<smem>>) -> (i32, i32, i32) {
    %c0_i32 = arith.constant 0 : i32
    %c0_i32_0 = arith.constant 0 : i32
    %c0_i32_1 = arith.constant 0 : i32
    return %arg0, %c0_i32, %c0_i32_0 : i32, i32, i32
  }
  func.func @transform_31(%arg0: i32, %arg1: memref<3xi32, #tpu.memory_space<smem>>) -> (i32, i32, i32) {
    %c0_i32 = arith.constant 0 : i32
    %c0_i32_0 = arith.constant 0 : i32
    %c0_i32_1 = arith.constant 0 : i32
    return %arg0, %c0_i32, %c0_i32_0 : i32, i32, i32
  }
  func.func @transform_32(%arg0: i32, %arg1: memref<3xi32, #tpu.memory_space<smem>>) -> (i32, i32, i32) {
    %c0_i32 = arith.constant 0 : i32
    %c0_i32_0 = arith.constant 0 : i32
    %c0_i32_1 = arith.constant 0 : i32
    return %arg0, %c0_i32, %c0_i32_0 : i32, i32, i32
  }
  func.func @transform_33(%arg0: i32, %arg1: memref<3xi32, #tpu.memory_space<smem>>) -> (i32, i32, i32) {
    %c0_i32 = arith.constant 0 : i32
    %c0_i32_0 = arith.constant 0 : i32
    %c0_i32_1 = arith.constant 0 : i32
    return %arg0, %c0_i32, %c0_i32_0 : i32, i32, i32
  }
  func.func @transform_34(%arg0: i32, %arg1: memref<3xi32, #tpu.memory_space<smem>>) -> (i32, i32, i32) {
    %c0_i32 = arith.constant 0 : i32
    %c0_i32_0 = arith.constant 0 : i32
    %c0_i32_1 = arith.constant 0 : i32
    return %arg0, %c0_i32, %c0_i32_0 : i32, i32, i32
  }
  func.func @transform_35(%arg0: i32, %arg1: memref<3xi32, #tpu.memory_space<smem>>) -> (i32, i32, i32) {
    %c0_i32 = arith.constant 0 : i32
    %c0_i32_0 = arith.constant 0 : i32
    %c0_i32_1 = arith.constant 0 : i32
    return %arg0, %c0_i32, %c0_i32_0 : i32, i32, i32
  }
  func.func @transform_36(%arg0: i32, %arg1: memref<3xi32, #tpu.memory_space<smem>>) -> (i32, i32, i32) {
    %c0_i32 = arith.constant 0 : i32
    %c0_i32_0 = arith.constant 0 : i32
    %c0_i32_1 = arith.constant 0 : i32
    return %arg0, %c0_i32, %c0_i32_0 : i32, i32, i32
  }
  func.func @transform_37(%arg0: i32, %arg1: memref<3xi32, #tpu.memory_space<smem>>) -> (i32, i32) {
    %c0_i32 = arith.constant 0 : i32
    %c0_i32_0 = arith.constant 0 : i32
    %c0_i32_1 = arith.constant 0 : i32
    return %c0_i32, %c0_i32_0 : i32, i32
  }
  func.func @transform_38(%arg0: i32, %arg1: memref<3xi32, #tpu.memory_space<smem>>) -> (i32, i32) {
    %c0_i32 = arith.constant 0 : i32
    %c0_i32_0 = arith.constant 0 : i32
    %c0_i32_1 = arith.constant 0 : i32
    return %c0_i32, %c0_i32_0 : i32, i32
  }
  func.func @transform_39(%arg0: i32, %arg1: memref<3xi32, #tpu.memory_space<smem>>) -> (i32, i32) {
    %c0_i32 = arith.constant 0 : i32
    %c0_i32_0 = arith.constant 0 : i32
    %c0_i32_1 = arith.constant 0 : i32
    return %c0_i32, %c0_i32_0 : i32, i32
  }
  func.func @transform_40(%arg0: i32, %arg1: memref<3xi32, #tpu.memory_space<smem>>) -> (i32, i32) {
    %c0_i32 = arith.constant 0 : i32
    %c0_i32_0 = arith.constant 0 : i32
    %c0_i32_1 = arith.constant 0 : i32
    return %c0_i32, %c0_i32_0 : i32, i32
  }
  func.func @transform_41(%arg0: i32, %arg1: memref<3xi32, #tpu.memory_space<smem>>) -> (i32, i32) {
    %c0_i32 = arith.constant 0 : i32
    %c0_i32_0 = arith.constant 0 : i32
    %c0_i32_1 = arith.constant 0 : i32
    return %c0_i32, %c0_i32_0 : i32, i32
  }
}

</mosaic_0001>

<llo_original>
// kernel: custom_clip_forward.1
$region0: #{custom_clip_forward.1}
  #allocation0 [shape = 'u32[]', space=smem, size = 0x4, offset = 0x4, fixed_abs, tag = 'smem constant byte address 0x4 - core index']
  #allocation1 [shape = 'u32[72,128]{1,0:T(1,128)}', space=vmem, size = 0x9000, scoped, tag = 'internal scratch']
  #allocation2 [shape = 'f32[2,5,32]{2,1,0:T(8,128)}', space=vmem, size = 0x2000, scoped, tag = 'scratch operand']
  #allocation3 [shape = 'f32[3,8,32]{2,1,0:T(8,128)}', space=vmem, size = 0x3000, scoped, tag = 'scratch operand']
  #allocation4 [shape = 'f32[8,8]{1,0:T(8,128)}', space=vmem, size = 0x1000, scoped, tag = 'scratch operand']
  #allocation5 [shape = 's32[1]{0}', space=sflag, size = 0x4, scoped, tag = 'scoped memory for custom_clip_forward.1']
  #allocation6 [shape = 'u8[512]{0}', space=smem, size = 0x200, scoped, tag = 'prefetched SMEM operand 0']
  #allocation7 [shape = 'f32[1,1]{1,0:T(1,128)S(1)}', space=vmem, size = 0x200, scoped, tag = 'scoped memory for custom_clip_forward.1']
  %s0 = inlined_call_operand.smem [shape: u32[43], index: -1, kind: input, shape index: {}]
  %s1 = sld [smem:[%s0]]
  %s2 = scalar_lea.smem %s0, 1
  %s3 = sld [smem:[%s2]]
  %s4 = scalar_lea.smem %s0, 2
  %s5 = sld [smem:[%s4]]
  %s6 = scalar_lea.smem %s0, 3
  %s7 = sld [smem:[%s6]]
  %s8 = scalar_lea.smem %s0, 4
  %s9 = sld [smem:[%s8]]
  %s10 = scalar_lea.smem %s0, 5
  %s11 = sld [smem:[%s10]]
  %s12 = scalar_lea.smem %s0, 6
  %s13 = sld [smem:[%s12]]
  %s14 = scalar_lea.smem %s0, 7
  %s15 = sld [smem:[%s14]]
  %s16 = scalar_lea.smem %s0, 8
  %s17 = sld [smem:[%s16]]
  %s18 = scalar_lea.smem %s0, 9
  %s19 = sld [smem:[%s18]]
  %s20 = scalar_lea.smem %s0, 10
  %s21 = sld [smem:[%s20]]
  %s22 = scalar_lea.smem %s0, 11
  %s23 = sld [smem:[%s22]]
  %s24 = scalar_lea.smem %s0, 12
  %s25 = sld [smem:[%s24]]
  %s26 = scalar_lea.smem %s0, 13
  %s27 = sld [smem:[%s26]]
  %s28 = scalar_lea.smem %s0, 14
  %s29 = sld [smem:[%s28]]
  %s30 = scalar_lea.smem %s0, 15
  %s31 = sld [smem:[%s30]]
  %s32 = scalar_lea.smem %s0, 16
  %s33 = sld [smem:[%s32]]
  %s34 = scalar_lea.smem %s0, 17
  %s35 = sld [smem:[%s34]]
  %s36 = scalar_lea.smem %s0, 18
  %s37 = sld [smem:[%s36]]
  %s38 = scalar_lea.smem %s0, 19
  %s39 = sld [smem:[%s38]]
  %s40 = scalar_lea.smem %s0, 20
  %s41 = sld [smem:[%s40]]
  %s42 = scalar_lea.smem %s0, 21
  %s43 = sld [smem:[%s42]]
  %s44 = scalar_lea.smem %s0, 22
  %s45 = sld [smem:[%s44]]
  %s46 = scalar_lea.smem %s0, 23
  %s47 = sld [smem:[%s46]]
  %s48 = scalar_lea.smem %s0, 24
  %s49 = sld [smem:[%s48]]
  %s50 = scalar_lea.smem %s0, 25
  %s51 = sld [smem:[%s50]]
  %s52 = scalar_lea.smem %s0, 26
  %s53 = sld [smem:[%s52]]
  %s54 = scalar_lea.smem %s0, 27
  %s55 = sld [smem:[%s54]]
  %s56 = scalar_lea.smem %s0, 28
  %s57 = sld [smem:[%s56]]
  %s58 = scalar_lea.smem %s0, 29
  %s59 = sld [smem:[%s58]]
  %s60 = scalar_lea.smem %s0, 30
  %s61 = sld [smem:[%s60]]
  %s62 = scalar_lea.smem %s0, 31
  %s63 = sld [smem:[%s62]]
  %s64 = scalar_lea.smem %s0, 32
  %s65 = sld [smem:[%s64]]
  %s66 = scalar_lea.smem %s0, 33
  %s67 = sld [smem:[%s66]]
  %s68 = scalar_lea.smem %s0, 34
  %s69 = sld [smem:[%s68]]
  %s70 = scalar_lea.smem %s0, 35
  %s71 = sld [smem:[%s70]]
  %s72 = scalar_lea.smem %s0, 36
  %s73 = sld [smem:[%s72]]
  %s74 = scalar_lea.smem %s0, 37
  %s75 = sld [smem:[%s74]]
  %s76 = scalar_lea.smem %s0, 38
  %s77 = sld [smem:[%s76]]
  %s78 = scalar_lea.smem %s0, 39
  %s79 = sld [smem:[%s78]]
  %s80 = scalar_lea.smem %s0, 40
  %s81 = sld [smem:[%s80]]
  %s82 = scalar_lea.smem %s0, 41
  %s83 = sld [smem:[%s82]]
  %s84 = scalar_lea.smem %s0, 42
  %s85 = sld [smem:[%s84]]
  %s86 = sld [smem:[#allocation0]]
  $region205: #{custom_clip_forward.1} parent=0
    _
  %s88 = ssub.s32 1, %s86
  %s89 = scalar_select 0, %s88, %s86
  %s91 = sshll.u32 %s1, 4
  %s92 = int_to_ptr.vmem [resolvable:$true] %s91
  %94 = dma.vmem_to_smem %s92, 16, [#allocation6], [#allocation5]
  %v95 = vstv %s83
  %96 = vst [vmem:[#allocation7] sm:$0x1] %v95
  %98 = dma.done [#allocation5], 16
  %99 = sfence
  $region1: #{custom_clip_forward.1} parent=0
    #allocation8 [shape = 'u8[1024]{0}', space=vmem, size = 0x400, scoped, tag = 'output window, operand 0, single buffered']
    #allocation9 [shape = 's32[2]{0}', space=sflag, size = 0x8, scoped, tag = 'scoped memory for custom_clip_forward.1']
    %100 = vsyncpa [#allocation9], 0
    loop: start=0, step=1, limit=4
    $region2: #{custom_clip_forward.1} parent=1 // loop_pre_header
      _
    $region3: #{custom_clip_forward.1} parent=1 // loop_header
      %s102 = sphi 0, %s106
      %p103 = scmp.ge.s32.totalorder %s102, 4
      %s110 = sphi 0, %s110
      %s112 = sphi 0, %s110
      %s113 = sphi 0, %s112
      %s127 = sphi 0, %s113
      %s131 = sphi 0, %s131
      %s133 = sphi 0, %s131
      %s134 = sphi 0, %s133
      %s148 = sphi 0, %s134
      %s152 = sphi 0, %s152
      %s154 = sphi 0, %s152
      %s155 = sphi 0, %s154
      %s169 = sphi 0, %s155
      %s173 = sphi 0, %s173
      %s175 = sphi 0, %s173
      %s176 = sphi 0, %s175
      %s190 = sphi 0, %s176
      %s194 = sphi 0, %s194
      %s196 = sphi 0, %s194
      %s197 = sphi 0, %s196
      %s211 = sphi 0, %s197
      %s215 = sphi 0, %s215
      %s217 = sphi 0, %s215
      %s218 = sphi 0, %s217
      %s232 = sphi 0, %s218
      %s238 = sphi 0, %s240
      %s241 = sphi 0, %s238
      %s242 = sphi 0, %s241
      %s258 = sphi 0, %s242
      %s264 = sphi 0, %s266
      %s267 = sphi 0, %s264
      %s268 = sphi 0, %s267
      %s284 = sphi 0, %s268
      %s290 = sphi 0, %s292
      %s293 = sphi 0, %s290
      %s294 = sphi 0, %s293
      %s310 = sphi 0, %s294
      %s316 = sphi 0, %s318
      %s319 = sphi 0, %s316
      %s320 = sphi 0, %s319
      %s336 = sphi 0, %s320
      %s342 = sphi 0, %s344
      %s345 = sphi 0, %s342
      %s346 = sphi 0, %s345
      %s362 = sphi 0, %s346
      %s368 = sphi 0, %s370
      %s371 = sphi 0, %s368
      %s372 = sphi 0, %s371
      %s388 = sphi 0, %s372
      %s394 = sphi 0, %s396
      %s397 = sphi 0, %s394
      %s398 = sphi 0, %s397
      %s414 = sphi 0, %s398
      %s420 = sphi 0, %s422
      %s423 = sphi 0, %s420
      %s424 = sphi 0, %s423
      %s440 = sphi 0, %s424
      %s446 = sphi 0, %s448
      %s449 = sphi 0, %s446
      %s450 = sphi 0, %s449
      %s466 = sphi 0, %s450
      %s472 = sphi 0, %s474
      %s475 = sphi 0, %s472
      %s476 = sphi 0, %s475
      %s492 = sphi 0, %s476
      %s498 = sphi 0, %s500
      %s501 = sphi 0, %s498
      %s502 = sphi 0, %s501
      %s518 = sphi 0, %s502
      %s524 = sphi 0, %s526
      %s527 = sphi 0, %s524
      %s528 = sphi 0, %s527
      %s544 = sphi 0, %s528
      %s548 = sphi 0, %s548
      %s550 = sphi 0, %s548
      %s551 = sphi 0, %s550
      %s565 = sphi 0, %s551
      %s569 = sphi 0, %s569
      %s571 = sphi 0, %s569
      %s572 = sphi 0, %s571
      %s586 = sphi 0, %s572
      %s590 = sphi 0, %s590
      %s592 = sphi 0, %s590
      %s593 = sphi 0, %s592
      %s607 = sphi 0, %s593
      %s611 = sphi 0, %s611
      %s613 = sphi 0, %s611
      %s614 = sphi 0, %s613
      %s628 = sphi 0, %s614
      %s632 = sphi 0, %s632
      %s634 = sphi 0, %s632
      %s635 = sphi 0, %s634
      %s649 = sphi 0, %s635
      %s653 = sphi 0, %s653
      %s655 = sphi 0, %s653
      %s656 = sphi 0, %s655
      %s670 = sphi 0, %s656
      %s674 = sphi 0, %s674
      %s676 = sphi 0, %s674
      %s677 = sphi 0, %s676
      %s691 = sphi 0, %s677
      %s697 = sphi 0, %s699
      %s700 = sphi 0, %s697
      %s701 = sphi 0, %s700
      %s717 = sphi 0, %s701
      %s723 = sphi 0, %s725
      %s726 = sphi 0, %s723
      %s727 = sphi 0, %s726
      %s743 = sphi 0, %s727
      %s749 = sphi 0, %s751
      %s752 = sphi 0, %s749
      %s753 = sphi 0, %s752
      %s769 = sphi 0, %s753
      %s775 = sphi 0, %s777
      %s778 = sphi 0, %s775
      %s779 = sphi 0, %s778
      %s795 = sphi 0, %s779
      %s801 = sphi 0, %s803
      %s804 = sphi 0, %s801
      %s805 = sphi 0, %s804
      %s821 = sphi 0, %s805
      %s827 = sphi 0, %s829
      %s830 = sphi 0, %s827
      %s831 = sphi 0, %s830
      %s847 = sphi 0, %s831
      %s853 = sphi 0, %s855
      %s856 = sphi 0, %s853
      %s857 = sphi 0, %s856
      %s873 = sphi 0, %s857
      %s879 = sphi 0, %s881
      %s882 = sphi 0, %s879
      %s883 = sphi 0, %s882
      %s899 = sphi 0, %s883
      %s905 = sphi 0, %s907
      %s908 = sphi 0, %s905
      %s909 = sphi 0, %s908
      %s925 = sphi 0, %s909
      %s931 = sphi 0, %s933
      %s934 = sphi 0, %s931
      %s935 = sphi 0, %s934
      %s951 = sphi 0, %s935
      %s957 = sphi 0, %s959
      %s960 = sphi 0, %s957
      %s961 = sphi 0, %s960
      %s977 = sphi 0, %s961
      %s983 = sphi 0, %s985
      %s986 = sphi 0, %s983
      %s987 = sphi 0, %s986
      %s1003 = sphi 0, %s987
      %s1007 = sphi 0, %s1007
      %s1009 = sphi 0, %s1007
      %s1010 = sphi 0, %s1009
      %s1024 = sphi 0, %s1010
      %s1028 = sphi 0, %s1028
      %s1030 = sphi 0, %s1028
      %s1031 = sphi 0, %s1030
      %s1045 = sphi 0, %s1031
      %s1049 = sphi 0, %s1049
      %s1051 = sphi 0, %s1049
      %s1052 = sphi 0, %s1051
      %s1066 = sphi 0, %s1052
      %s1070 = sphi 0, %s1070
      %s1072 = sphi 0, %s1070
      %s1073 = sphi 0, %s1072
      %s1087 = sphi 0, %s1073
      %s1091 = sphi 0, %s1091
      %s1093 = sphi 0, %s1091
      %s1094 = sphi 0, %s1093
      %s1108 = sphi 0, %s1094
    $region4: #{custom_clip_forward.1} parent=1 // loop_header_branch
      %105 = sbr.rel (%p103) target = $region8
    $region5: #{custom_clip_forward.1} parent=1 // loop_body
      %s107 = ssub.s32 %s102, 1
      %s108 = ssub.s32 %s102, 2
      %s109 = sadd.s32 %s102, 1
      %s111 = sadd.s32 %s110, 1
      %p114 = scmp.eq.s32.totalorder %s102, 1
      %p115 = scmp.ne.s32.totalorder %s110, %s112
      %p116 = scmp.eq.s32.totalorder %s102, 0
      %p117 = por %p115, %p116
      %p118 = scmp.ne.s32.totalorder %s110, %s112
      %p119 = scmp.eq.s32.totalorder %s107, 1
      %p120 = por %p118, %p119
      %p121 = scmp.ne.s32.totalorder %s112, %s113
      %p122 = scmp.eq.s32.totalorder %s107, 0
      %p123 = por %p121, %p122
      %p124 = scmp.ne.s32.totalorder %s112, %s113
      %p125 = scmp.eq.s32.totalorder %s108, 1
      %p126 = por %p124, %p125
      %p128 = scmp.ne.s32.totalorder %s113, %s127
      %p129 = scmp.eq.s32.totalorder %s108, 0
      %p130 = por %p128, %p129
      %s132 = sadd.s32 %s131, 1
      %p135 = scmp.eq.s32.totalorder %s102, 1
      %p136 = scmp.ne.s32.totalorder %s131, %s133
      %p137 = scmp.eq.s32.totalorder %s102, 0
      %p138 = por %p136, %p137
      %p139 = scmp.ne.s32.totalorder %s131, %s133
      %p140 = scmp.eq.s32.totalorder %s107, 1
      %p141 = por %p139, %p140
      %p142 = scmp.ne.s32.totalorder %s133, %s134
      %p143 = scmp.eq.s32.totalorder %s107, 0
      %p144 = por %p142, %p143
      %p145 = scmp.ne.s32.totalorder %s133, %s134
      %p146 = scmp.eq.s32.totalorder %s108, 1
      %p147 = por %p145, %p146
      %p149 = scmp.ne.s32.totalorder %s134, %s148
      %p150 = scmp.eq.s32.totalorder %s108, 0
      %p151 = por %p149, %p150
      %s153 = sadd.s32 %s152, 1
      %p156 = scmp.eq.s32.totalorder %s102, 1
      %p157 = scmp.ne.s32.totalorder %s152, %s154
      %p158 = scmp.eq.s32.totalorder %s102, 0
      %p159 = por %p157, %p158
      %p160 = scmp.ne.s32.totalorder %s152, %s154
      %p161 = scmp.eq.s32.totalorder %s107, 1
      %p162 = por %p160, %p161
      %p163 = scmp.ne.s32.totalorder %s154, %s155
      %p164 = scmp.eq.s32.totalorder %s107, 0
      %p165 = por %p163, %p164
      %p166 = scmp.ne.s32.totalorder %s154, %s155
      %p167 = scmp.eq.s32.totalorder %s108, 1
      %p168 = por %p166, %p167
      %p170 = scmp.ne.s32.totalorder %s155, %s169
      %p171 = scmp.eq.s32.totalorder %s108, 0
      %p172 = por %p170, %p171
      %s174 = sadd.s32 %s173, 1
      %p177 = scmp.eq.s32.totalorder %s102, 1
      %p178 = scmp.ne.s32.totalorder %s173, %s175
      %p179 = scmp.eq.s32.totalorder %s102, 0
      %p180 = por %p178, %p179
      %p181 = scmp.ne.s32.totalorder %s173, %s175
      %p182 = scmp.eq.s32.totalorder %s107, 1
      %p183 = por %p181, %p182
      %p184 = scmp.ne.s32.totalorder %s175, %s176
      %p185 = scmp.eq.s32.totalorder %s107, 0
      %p186 = por %p184, %p185
      %p187 = scmp.ne.s32.totalorder %s175, %s176
      %p188 = scmp.eq.s32.totalorder %s108, 1
      %p189 = por %p187, %p188
      %p191 = scmp.ne.s32.totalorder %s176, %s190
      %p192 = scmp.eq.s32.totalorder %s108, 0
      %p193 = por %p191, %p192
      %s195 = sadd.s32 %s194, 1
      %p198 = scmp.eq.s32.totalorder %s102, 1
      %p199 = scmp.ne.s32.totalorder %s194, %s196
      %p200 = scmp.eq.s32.totalorder %s102, 0
      %p201 = por %p199, %p200
      %p202 = scmp.ne.s32.totalorder %s194, %s196
      %p203 = scmp.eq.s32.totalorder %s107, 1
      %p204 = por %p202, %p203
      %p205 = scmp.ne.s32.totalorder %s196, %s197
      %p206 = scmp.eq.s32.totalorder %s107, 0
      %p207 = por %p205, %p206
      %p208 = scmp.ne.s32.totalorder %s196, %s197
      %p209 = scmp.eq.s32.totalorder %s108, 1
      %p210 = por %p208, %p209
      %p212 = scmp.ne.s32.totalorder %s197, %s211
      %p213 = scmp.eq.s32.totalorder %s108, 0
      %p214 = por %p212, %p213
      %s216 = sadd.s32 %s215, 1
      %p219 = scmp.eq.s32.totalorder %s102, 1
      %p220 = scmp.ne.s32.totalorder %s215, %s217
      %p221 = scmp.eq.s32.totalorder %s102, 0
      %p222 = por %p220, %p221
      %p223 = scmp.ne.s32.totalorder %s215, %s217
      %p224 = scmp.eq.s32.totalorder %s107, 1
      %p225 = por %p223, %p224
      %p226 = scmp.ne.s32.totalorder %s217, %s218
      %p227 = scmp.eq.s32.totalorder %s107, 0
      %p228 = por %p226, %p227
      %p229 = scmp.ne.s32.totalorder %s217, %s218
      %p230 = scmp.eq.s32.totalorder %s108, 1
      %p231 = por %p229, %p230
      %p233 = scmp.ne.s32.totalorder %s218, %s232
      %p234 = scmp.eq.s32.totalorder %s108, 0
      %p235 = por %p233, %p234
      %s236 = ssub.s32 %s102, %s109
      %p237 = scmp.eq.s32.totalorder %s236, 0
      %s239 = sadd.s32 %s238, 1
      %s240 = scalar_select %p237, %s238, %s239
      %p243 = pneg %p237
      %p244 = scmp.eq.s32.totalorder %s102, 1
      %p245 = por %p243, %p244
      %p246 = scmp.ne.s32.totalorder %s238, %s241
      %p247 = scmp.eq.s32.totalorder %s102, 0
      %p248 = por %p246, %p247
      %p249 = scmp.ne.s32.totalorder %s238, %s241
      %p250 = scmp.eq.s32.totalorder %s107, 1
      %p251 = por %p249, %p250
      %p252 = scmp.ne.s32.totalorder %s241, %s242
      %p253 = scmp.eq.s32.totalorder %s107, 0
      %p254 = por %p252, %p253
      %p255 = scmp.ne.s32.totalorder %s241, %s242
      %p256 = scmp.eq.s32.totalorder %s108, 1
      %p257 = por %p255, %p256
      %p259 = scmp.ne.s32.totalorder %s242, %s258
      %p260 = scmp.eq.s32.totalorder %s108, 0
      %p261 = por %p259, %p260
      %s262 = ssub.s32 %s102, %s109
      %p263 = scmp.eq.s32.totalorder %s262, 0
      %s265 = sadd.s32 %s264, 1
      %s266 = scalar_select %p263, %s264, %s265
      %p269 = pneg %p263
      %p270 = scmp.eq.s32.totalorder %s102, 1
      %p271 = por %p269, %p270
      %p272 = scmp.ne.s32.totalorder %s264, %s267
      %p273 = scmp.eq.s32.totalorder %s102, 0
      %p274 = por %p272, %p273
      %p275 = scmp.ne.s32.totalorder %s264, %s267
      %p276 = scmp.eq.s32.totalorder %s107, 1
      %p277 = por %p275, %p276
      %p278 = scmp.ne.s32.totalorder %s267, %s268
      %p279 = scmp.eq.s32.totalorder %s107, 0
      %p280 = por %p278, %p279
      %p281 = scmp.ne.s32.totalorder %s267, %s268
      %p282 = scmp.eq.s32.totalorder %s108, 1
      %p283 = por %p281, %p282
      %p285 = scmp.ne.s32.totalorder %s268, %s284
      %p286 = scmp.eq.s32.totalorder %s108, 0
      %p287 = por %p285, %p286
      %s288 = ssub.s32 %s102, %s109
      %p289 = scmp.eq.s32.totalorder %s288, 0
      %s291 = sadd.s32 %s290, 1
      %s292 = scalar_select %p289, %s290, %s291
      %p295 = pneg %p289
      %p296 = scmp.eq.s32.totalorder %s102, 1
      %p297 = por %p295, %p296
      %p298 = scmp.ne.s32.totalorder %s290, %s293
      %p299 = scmp.eq.s32.totalorder %s102, 0
      %p300 = por %p298, %p299
      %p301 = scmp.ne.s32.totalorder %s290, %s293
      %p302 = scmp.eq.s32.totalorder %s107, 1
      %p303 = por %p301, %p302
      %p304 = scmp.ne.s32.totalorder %s293, %s294
      %p305 = scmp.eq.s32.totalorder %s107, 0
      %p306 = por %p304, %p305
      %p307 = scmp.ne.s32.totalorder %s293, %s294
      %p308 = scmp.eq.s32.totalorder %s108, 1
      %p309 = por %p307, %p308
      %p311 = scmp.ne.s32.totalorder %s294, %s310
      %p312 = scmp.eq.s32.totalorder %s108, 0
      %p313 = por %p311, %p312
      %s314 = ssub.s32 %s102, %s109
      %p315 = scmp.eq.s32.totalorder %s314, 0
      %s317 = sadd.s32 %s316, 1
      %s318 = scalar_select %p315, %s316, %s317
      %p321 = pneg %p315
      %p322 = scmp.eq.s32.totalorder %s102, 1
      %p323 = por %p321, %p322
      %p324 = scmp.ne.s32.totalorder %s316, %s319
      %p325 = scmp.eq.s32.totalorder %s102, 0
      %p326 = por %p324, %p325
      %p327 = scmp.ne.s32.totalorder %s316, %s319
      %p328 = scmp.eq.s32.totalorder %s107, 1
      %p329 = por %p327, %p328
      %p330 = scmp.ne.s32.totalorder %s319, %s320
      %p331 = scmp.eq.s32.totalorder %s107, 0
      %p332 = por %p330, %p331
      %p333 = scmp.ne.s32.totalorder %s319, %s320
      %p334 = scmp.eq.s32.totalorder %s108, 1
      %p335 = por %p333, %p334
      %p337 = scmp.ne.s32.totalorder %s320, %s336
      %p338 = scmp.eq.s32.totalorder %s108, 0
      %p339 = por %p337, %p338
      %s340 = ssub.s32 %s102, %s109
      %p341 = scmp.eq.s32.totalorder %s340, 0
      %s343 = sadd.s32 %s342, 1
      %s344 = scalar_select %p341, %s342, %s343
      %p347 = pneg %p341
      %p348 = scmp.eq.s32.totalorder %s102, 1
      %p349 = por %p347, %p348
      %p350 = scmp.ne.s32.totalorder %s342, %s345
      %p351 = scmp.eq.s32.totalorder %s102, 0
      %p352 = por %p350, %p351
      %p353 = scmp.ne.s32.totalorder %s342, %s345
      %p354 = scmp.eq.s32.totalorder %s107, 1
      %p355 = por %p353, %p354
      %p356 = scmp.ne.s32.totalorder %s345, %s346
      %p357 = scmp.eq.s32.totalorder %s107, 0
      %p358 = por %p356, %p357
      %p359 = scmp.ne.s32.totalorder %s345, %s346
      %p360 = scmp.eq.s32.totalorder %s108, 1
      %p361 = por %p359, %p360
      %p363 = scmp.ne.s32.totalorder %s346, %s362
      %p364 = scmp.eq.s32.totalorder %s108, 0
      %p365 = por %p363, %p364
      %s366 = ssub.s32 %s102, %s109
      %p367 = scmp.eq.s32.totalorder %s366, 0
      %s369 = sadd.s32 %s368, 1
      %s370 = scalar_select %p367, %s368, %s369
      %p373 = pneg %p367
      %p374 = scmp.eq.s32.totalorder %s102, 1
      %p375 = por %p373, %p374
      %p376 = scmp.ne.s32.totalorder %s368, %s371
      %p377 = scmp.eq.s32.totalorder %s102, 0
      %p378 = por %p376, %p377
      %p379 = scmp.ne.s32.totalorder %s368, %s371
      %p380 = scmp.eq.s32.totalorder %s107, 1
      %p381 = por %p379, %p380
      %p382 = scmp.ne.s32.totalorder %s371, %s372
      %p383 = scmp.eq.s32.totalorder %s107, 0
      %p384 = por %p382, %p383
      %p385 = scmp.ne.s32.totalorder %s371, %s372
      %p386 = scmp.eq.s32.totalorder %s108, 1
      %p387 = por %p385, %p386
      %p389 = scmp.ne.s32.totalorder %s372, %s388
      %p390 = scmp.eq.s32.totalorder %s108, 0
      %p391 = por %p389, %p390
      %s392 = ssub.s32 %s102, %s109
      %p393 = scmp.eq.s32.totalorder %s392, 0
      %s395 = sadd.s32 %s394, 1
      %s396 = scalar_select %p393, %s394, %s395
      %p399 = pneg %p393
      %p400 = scmp.eq.s32.totalorder %s102, 1
      %p401 = por %p399, %p400
      %p402 = scmp.ne.s32.totalorder %s394, %s397
      %p403 = scmp.eq.s32.totalorder %s102, 0
      %p404 = por %p402, %p403
      %p405 = scmp.ne.s32.totalorder %s394, %s397
      %p406 = scmp.eq.s32.totalorder %s107, 1
      %p407 = por %p405, %p406
      %p408 = scmp.ne.s32.totalorder %s397, %s398
      %p409 = scmp.eq.s32.totalorder %s107, 0
      %p410 = por %p408, %p409
      %p411 = scmp.ne.s32.totalorder %s397, %s398
      %p412 = scmp.eq.s32.totalorder %s108, 1
      %p413 = por %p411, %p412
      %p415 = scmp.ne.s32.totalorder %s398, %s414
      %p416 = scmp.eq.s32.totalorder %s108, 0
      %p417 = por %p415, %p416
      %s418 = ssub.s32 %s102, %s109
      %p419 = scmp.eq.s32.totalorder %s418, 0
      %s421 = sadd.s32 %s420, 1
      %s422 = scalar_select %p419, %s420, %s421
      %p425 = pneg %p419
      %p426 = scmp.eq.s32.totalorder %s102, 1
      %p427 = por %p425, %p426
      %p428 = scmp.ne.s32.totalorder %s420, %s423
      %p429 = scmp.eq.s32.totalorder %s102, 0
      %p430 = por %p428, %p429
      %p431 = scmp.ne.s32.totalorder %s420, %s423
      %p432 = scmp.eq.s32.totalorder %s107, 1
      %p433 = por %p431, %p432
      %p434 = scmp.ne.s32.totalorder %s423, %s424
      %p435 = scmp.eq.s32.totalorder %s107, 0
      %p436 = por %p434, %p435
      %p437 = scmp.ne.s32.totalorder %s423, %s424
      %p438 = scmp.eq.s32.totalorder %s108, 1
      %p439 = por %p437, %p438
      %p441 = scmp.ne.s32.totalorder %s424, %s440
      %p442 = scmp.eq.s32.totalorder %s108, 0
      %p443 = por %p441, %p442
      %s444 = ssub.s32 %s102, %s109
      %p445 = scmp.eq.s32.totalorder %s444, 0
      %s447 = sadd.s32 %s446, 1
      %s448 = scalar_select %p445, %s446, %s447
      %p451 = pneg %p445
      %p452 = scmp.eq.s32.totalorder %s102, 1
      %p453 = por %p451, %p452
      %p454 = scmp.ne.s32.totalorder %s446, %s449
      %p455 = scmp.eq.s32.totalorder %s102, 0
      %p456 = por %p454, %p455
      %p457 = scmp.ne.s32.totalorder %s446, %s449
      %p458 = scmp.eq.s32.totalorder %s107, 1
      %p459 = por %p457, %p458
      %p460 = scmp.ne.s32.totalorder %s449, %s450
      %p461 = scmp.eq.s32.totalorder %s107, 0
      %p462 = por %p460, %p461
      %p463 = scmp.ne.s32.totalorder %s449, %s450
      %p464 = scmp.eq.s32.totalorder %s108, 1
      %p465 = por %p463, %p464
      %p467 = scmp.ne.s32.totalorder %s450, %s466
      %p468 = scmp.eq.s32.totalorder %s108, 0
      %p469 = por %p467, %p468
      %s470 = ssub.s32 %s102, %s109
      %p471 = scmp.eq.s32.totalorder %s470, 0
      %s473 = sadd.s32 %s472, 1
      %s474 = scalar_select %p471, %s472, %s473
      %p477 = pneg %p471
      %p478 = scmp.eq.s32.totalorder %s102, 1
      %p479 = por %p477, %p478
      %p480 = scmp.ne.s32.totalorder %s472, %s475
      %p481 = scmp.eq.s32.totalorder %s102, 0
      %p482 = por %p480, %p481
      %p483 = scmp.ne.s32.totalorder %s472, %s475
      %p484 = scmp.eq.s32.totalorder %s107, 1
      %p485 = por %p483, %p484
      %p486 = scmp.ne.s32.totalorder %s475, %s476
      %p487 = scmp.eq.s32.totalorder %s107, 0
      %p488 = por %p486, %p487
      %p489 = scmp.ne.s32.totalorder %s475, %s476
      %p490 = scmp.eq.s32.totalorder %s108, 1
      %p491 = por %p489, %p490
      %p493 = scmp.ne.s32.totalorder %s476, %s492
      %p494 = scmp.eq.s32.totalorder %s108, 0
      %p495 = por %p493, %p494
      %s496 = ssub.s32 %s102, %s109
      %p497 = scmp.eq.s32.totalorder %s496, 0
      %s499 = sadd.s32 %s498, 1
      %s500 = scalar_select %p497, %s498, %s499
      %p503 = pneg %p497
      %p504 = scmp.eq.s32.totalorder %s102, 1
      %p505 = por %p503, %p504
      %p506 = scmp.ne.s32.totalorder %s498, %s501
      %p507 = scmp.eq.s32.totalorder %s102, 0
      %p508 = por %p506, %p507
      %p509 = scmp.ne.s32.totalorder %s498, %s501
      %p510 = scmp.eq.s32.totalorder %s107, 1
      %p511 = por %p509, %p510
      %p512 = scmp.ne.s32.totalorder %s501, %s502
      %p513 = scmp.eq.s32.totalorder %s107, 0
      %p514 = por %p512, %p513
      %p515 = scmp.ne.s32.totalorder %s501, %s502
      %p516 = scmp.eq.s32.totalorder %s108, 1
      %p517 = por %p515, %p516
      %p519 = scmp.ne.s32.totalorder %s502, %s518
      %p520 = scmp.eq.s32.totalorder %s108, 0
      %p521 = por %p519, %p520
      %s522 = ssub.s32 %s102, %s109
      %p523 = scmp.eq.s32.totalorder %s522, 0
      %s525 = sadd.s32 %s524, 1
      %s526 = scalar_select %p523, %s524, %s525
      %p529 = pneg %p523
      %p530 = scmp.eq.s32.totalorder %s102, 1
      %p531 = por %p529, %p530
      %p532 = scmp.ne.s32.totalorder %s524, %s527
      %p533 = scmp.eq.s32.totalorder %s102, 0
      %p534 = por %p532, %p533
      %p535 = scmp.ne.s32.totalorder %s524, %s527
      %p536 = scmp.eq.s32.totalorder %s107, 1
      %p537 = por %p535, %p536
      %p538 = scmp.ne.s32.totalorder %s527, %s528
      %p539 = scmp.eq.s32.totalorder %s107, 0
      %p540 = por %p538, %p539
      %p541 = scmp.ne.s32.totalorder %s527, %s528
      %p542 = scmp.eq.s32.totalorder %s108, 1
      %p543 = por %p541, %p542
      %p545 = scmp.ne.s32.totalorder %s528, %s544
      %p546 = scmp.eq.s32.totalorder %s108, 0
      %p547 = por %p545, %p546
      %s549 = sadd.s32 %s548, 1
      %p552 = scmp.eq.s32.totalorder %s102, 1
      %p553 = scmp.ne.s32.totalorder %s548, %s550
      %p554 = scmp.eq.s32.totalorder %s102, 0
      %p555 = por %p553, %p554
      %p556 = scmp.ne.s32.totalorder %s548, %s550
      %p557 = scmp.eq.s32.totalorder %s107, 1
      %p558 = por %p556, %p557
      %p559 = scmp.ne.s32.totalorder %s550, %s551
      %p560 = scmp.eq.s32.totalorder %s107, 0
      %p561 = por %p559, %p560
      %p562 = scmp.ne.s32.totalorder %s550, %s551
      %p563 = scmp.eq.s32.totalorder %s108, 1
      %p564 = por %p562, %p563
      %p566 = scmp.ne.s32.totalorder %s551, %s565
      %p567 = scmp.eq.s32.totalorder %s108, 0
      %p568 = por %p566, %p567
      %s570 = sadd.s32 %s569, 1
      %p573 = scmp.eq.s32.totalorder %s102, 1
      %p574 = scmp.ne.s32.totalorder %s569, %s571
      %p575 = scmp.eq.s32.totalorder %s102, 0
      %p576 = por %p574, %p575
      %p577 = scmp.ne.s32.totalorder %s569, %s571
      %p578 = scmp.eq.s32.totalorder %s107, 1
      %p579 = por %p577, %p578
      %p580 = scmp.ne.s32.totalorder %s571, %s572
      %p581 = scmp.eq.s32.totalorder %s107, 0
      %p582 = por %p580, %p581
      %p583 = scmp.ne.s32.totalorder %s571, %s572
      %p584 = scmp.eq.s32.totalorder %s108, 1
      %p585 = por %p583, %p584
      %p587 = scmp.ne.s32.totalorder %s572, %s586
      %p588 = scmp.eq.s32.totalorder %s108, 0
      %p589 = por %p587, %p588
      %s591 = sadd.s32 %s590, 1
      %p594 = scmp.eq.s32.totalorder %s102, 1
      %p595 = scmp.ne.s32.totalorder %s590, %s592
      %p596 = scmp.eq.s32.totalorder %s102, 0
      %p597 = por %p595, %p596
      %p598 = scmp.ne.s32.totalorder %s590, %s592
      %p599 = scmp.eq.s32.totalorder %s107, 1
      %p600 = por %p598, %p599
      %p601 = scmp.ne.s32.totalorder %s592, %s593
      %p602 = scmp.eq.s32.totalorder %s107, 0
      %p603 = por %p601, %p602
      %p604 = scmp.ne.s32.totalorder %s592, %s593
      %p605 = scmp.eq.s32.totalorder %s108, 1
      %p606 = por %p604, %p605
      %p608 = scmp.ne.s32.totalorder %s593, %s607
      %p609 = scmp.eq.s32.totalorder %s108, 0
      %p610 = por %p608, %p609
      %s612 = sadd.s32 %s611, 1
      %p615 = scmp.eq.s32.totalorder %s102, 1
      %p616 = scmp.ne.s32.totalorder %s611, %s613
      %p617 = scmp.eq.s32.totalorder %s102, 0
      %p618 = por %p616, %p617
      %p619 = scmp.ne.s32.totalorder %s611, %s613
      %p620 = scmp.eq.s32.totalorder %s107, 1
      %p621 = por %p619, %p620
      %p622 = scmp.ne.s32.totalorder %s613, %s614
      %p623 = scmp.eq.s32.totalorder %s107, 0
      %p624 = por %p622, %p623
      %p625 = scmp.ne.s32.totalorder %s613, %s614
      %p626 = scmp.eq.s32.totalorder %s108, 1
      %p627 = por %p625, %p626
      %p629 = scmp.ne.s32.totalorder %s614, %s628
      %p630 = scmp.eq.s32.totalorder %s108, 0
      %p631 = por %p629, %p630
      %s633 = sadd.s32 %s632, 1
      %p636 = scmp.eq.s32.totalorder %s102, 1
      %p637 = scmp.ne.s32.totalorder %s632, %s634
      %p638 = scmp.eq.s32.totalorder %s102, 0
      %p639 = por %p637, %p638
      %p640 = scmp.ne.s32.totalorder %s632, %s634
      %p641 = scmp.eq.s32.totalorder %s107, 1
      %p642 = por %p640, %p641
      %p643 = scmp.ne.s32.totalorder %s634, %s635
      %p644 = scmp.eq.s32.totalorder %s107, 0
      %p645 = por %p643, %p644
      %p646 = scmp.ne.s32.totalorder %s634, %s635
      %p647 = scmp.eq.s32.totalorder %s108, 1
      %p648 = por %p646, %p647
      %p650 = scmp.ne.s32.totalorder %s635, %s649
      %p651 = scmp.eq.s32.totalorder %s108, 0
      %p652 = por %p650, %p651
      %s654 = sadd.s32 %s653, 1
      %p657 = scmp.eq.s32.totalorder %s102, 1
      %p658 = scmp.ne.s32.totalorder %s653, %s655
      %p659 = scmp.eq.s32.totalorder %s102, 0
      %p660 = por %p658, %p659
      %p661 = scmp.ne.s32.totalorder %s653, %s655
      %p662 = scmp.eq.s32.totalorder %s107, 1
      %p663 = por %p661, %p662
      %p664 = scmp.ne.s32.totalorder %s655, %s656
      %p665 = scmp.eq.s32.totalorder %s107, 0
      %p666 = por %p664, %p665
      %p667 = scmp.ne.s32.totalorder %s655, %s656
      %p668 = scmp.eq.s32.totalorder %s108, 1
      %p669 = por %p667, %p668
      %p671 = scmp.ne.s32.totalorder %s656, %s670
      %p672 = scmp.eq.s32.totalorder %s108, 0
      %p673 = por %p671, %p672
      %s675 = sadd.s32 %s674, 1
      %p678 = scmp.eq.s32.totalorder %s102, 1
      %p679 = scmp.ne.s32.totalorder %s674, %s676
      %p680 = scmp.eq.s32.totalorder %s102, 0
      %p681 = por %p679, %p680
      %p682 = scmp.ne.s32.totalorder %s674, %s676
      %p683 = scmp.eq.s32.totalorder %s107, 1
      %p684 = por %p682, %p683
      %p685 = scmp.ne.s32.totalorder %s676, %s677
      %p686 = scmp.eq.s32.totalorder %s107, 0
      %p687 = por %p685, %p686
      %p688 = scmp.ne.s32.totalorder %s676, %s677
      %p689 = scmp.eq.s32.totalorder %s108, 1
      %p690 = por %p688, %p689
      %p692 = scmp.ne.s32.totalorder %s677, %s691
      %p693 = scmp.eq.s32.totalorder %s108, 0
      %p694 = por %p692, %p693
      %s695 = ssub.s32 %s102, %s109
      %p696 = scmp.eq.s32.totalorder %s695, 0
      %s698 = sadd.s32 %s697, 1
      %s699 = scalar_select %p696, %s697, %s698
      %p702 = pneg %p696
      %p703 = scmp.eq.s32.totalorder %s102, 1
      %p704 = por %p702, %p703
      %p705 = scmp.ne.s32.totalorder %s697, %s700
      %p706 = scmp.eq.s32.totalorder %s102, 0
      %p707 = por %p705, %p706
      %p708 = scmp.ne.s32.totalorder %s697, %s700
      %p709 = scmp.eq.s32.totalorder %s107, 1
      %p710 = por %p708, %p709
      %p711 = scmp.ne.s32.totalorder %s700, %s701
      %p712 = scmp.eq.s32.totalorder %s107, 0
      %p713 = por %p711, %p712
      %p714 = scmp.ne.s32.totalorder %s700, %s701
      %p715 = scmp.eq.s32.totalorder %s108, 1
      %p716 = por %p714, %p715
      %p718 = scmp.ne.s32.totalorder %s701, %s717
      %p719 = scmp.eq.s32.totalorder %s108, 0
      %p720 = por %p718, %p719
      %s721 = ssub.s32 %s102, %s109
      %p722 = scmp.eq.s32.totalorder %s721, 0
      %s724 = sadd.s32 %s723, 1
      %s725 = scalar_select %p722, %s723, %s724
      %p728 = pneg %p722
      %p729 = scmp.eq.s32.totalorder %s102, 1
      %p730 = por %p728, %p729
      %p731 = scmp.ne.s32.totalorder %s723, %s726
      %p732 = scmp.eq.s32.totalorder %s102, 0
      %p733 = por %p731, %p732
      %p734 = scmp.ne.s32.totalorder %s723, %s726
      %p735 = scmp.eq.s32.totalorder %s107, 1
      %p736 = por %p734, %p735
      %p737 = scmp.ne.s32.totalorder %s726, %s727
      %p738 = scmp.eq.s32.totalorder %s107, 0
      %p739 = por %p737, %p738
      %p740 = scmp.ne.s32.totalorder %s726, %s727
      %p741 = scmp.eq.s32.totalorder %s108, 1
      %p742 = por %p740, %p741
      %p744 = scmp.ne.s32.totalorder %s727, %s743
      %p745 = scmp.eq.s32.totalorder %s108, 0
      %p746 = por %p744, %p745
      %s747 = ssub.s32 %s102, %s109
      %p748 = scmp.eq.s32.totalorder %s747, 0
      %s750 = sadd.s32 %s749, 1
      %s751 = scalar_select %p748, %s749, %s750
      %p754 = pneg %p748
      %p755 = scmp.eq.s32.totalorder %s102, 1
      %p756 = por %p754, %p755
      %p757 = scmp.ne.s32.totalorder %s749, %s752
      %p758 = scmp.eq.s32.totalorder %s102, 0
      %p759 = por %p757, %p758
      %p760 = scmp.ne.s32.totalorder %s749, %s752
      %p761 = scmp.eq.s32.totalorder %s107, 1
      %p762 = por %p760, %p761
      %p763 = scmp.ne.s32.totalorder %s752, %s753
      %p764 = scmp.eq.s32.totalorder %s107, 0
      %p765 = por %p763, %p764
      %p766 = scmp.ne.s32.totalorder %s752, %s753
      %p767 = scmp.eq.s32.totalorder %s108, 1
      %p768 = por %p766, %p767
      %p770 = scmp.ne.s32.totalorder %s753, %s769
      %p771 = scmp.eq.s32.totalorder %s108, 0
      %p772 = por %p770, %p771
      %s773 = ssub.s32 %s102, %s109
      %p774 = scmp.eq.s32.totalorder %s773, 0
      %s776 = sadd.s32 %s775, 1
      %s777 = scalar_select %p774, %s775, %s776
      %p780 = pneg %p774
      %p781 = scmp.eq.s32.totalorder %s102, 1
      %p782 = por %p780, %p781
      %p783 = scmp.ne.s32.totalorder %s775, %s778
      %p784 = scmp.eq.s32.totalorder %s102, 0
      %p785 = por %p783, %p784
      %p786 = scmp.ne.s32.totalorder %s775, %s778
      %p787 = scmp.eq.s32.totalorder %s107, 1
      %p788 = por %p786, %p787
      %p789 = scmp.ne.s32.totalorder %s778, %s779
      %p790 = scmp.eq.s32.totalorder %s107, 0
      %p791 = por %p789, %p790
      %p792 = scmp.ne.s32.totalorder %s778, %s779
      %p793 = scmp.eq.s32.totalorder %s108, 1
      %p794 = por %p792, %p793
      %p796 = scmp.ne.s32.totalorder %s779, %s795
      %p797 = scmp.eq.s32.totalorder %s108, 0
      %p798 = por %p796, %p797
      %s799 = ssub.s32 %s102, %s109
      %p800 = scmp.eq.s32.totalorder %s799, 0
      %s802 = sadd.s32 %s801, 1
      %s803 = scalar_select %p800, %s801, %s802
      %p806 = pneg %p800
      %p807 = scmp.eq.s32.totalorder %s102, 1
      %p808 = por %p806, %p807
      %p809 = scmp.ne.s32.totalorder %s801, %s804
      %p810 = scmp.eq.s32.totalorder %s102, 0
      %p811 = por %p809, %p810
      %p812 = scmp.ne.s32.totalorder %s801, %s804
      %p813 = scmp.eq.s32.totalorder %s107, 1
      %p814 = por %p812, %p813
      %p815 = scmp.ne.s32.totalorder %s804, %s805
      %p816 = scmp.eq.s32.totalorder %s107, 0
      %p817 = por %p815, %p816
      %p818 = scmp.ne.s32.totalorder %s804, %s805
      %p819 = scmp.eq.s32.totalorder %s108, 1
      %p820 = por %p818, %p819
      %p822 = scmp.ne.s32.totalorder %s805, %s821
      %p823 = scmp.eq.s32.totalorder %s108, 0
      %p824 = por %p822, %p823
      %s825 = ssub.s32 %s102, %s109
      %p826 = scmp.eq.s32.totalorder %s825, 0
      %s828 = sadd.s32 %s827, 1
      %s829 = scalar_select %p826, %s827, %s828
      %p832 = pneg %p826
      %p833 = scmp.eq.s32.totalorder %s102, 1
      %p834 = por %p832, %p833
      %p835 = scmp.ne.s32.totalorder %s827, %s830
      %p836 = scmp.eq.s32.totalorder %s102, 0
      %p837 = por %p835, %p836
      %p838 = scmp.ne.s32.totalorder %s827, %s830
      %p839 = scmp.eq.s32.totalorder %s107, 1
      %p840 = por %p838, %p839
      %p841 = scmp.ne.s32.totalorder %s830, %s831
      %p842 = scmp.eq.s32.totalorder %s107, 0
      %p843 = por %p841, %p842
      %p844 = scmp.ne.s32.totalorder %s830, %s831
      %p845 = scmp.eq.s32.totalorder %s108, 1
      %p846 = por %p844, %p845
      %p848 = scmp.ne.s32.totalorder %s831, %s847
      %p849 = scmp.eq.s32.totalorder %s108, 0
      %p850 = por %p848, %p849
      %s851 = ssub.s32 %s102, %s109
      %p852 = scmp.eq.s32.totalorder %s851, 0
      %s854 = sadd.s32 %s853, 1
      %s855 = scalar_select %p852, %s853, %s854
      %p858 = pneg %p852
      %p859 = scmp.eq.s32.totalorder %s102, 1
      %p860 = por %p858, %p859
      %p861 = scmp.ne.s32.totalorder %s853, %s856
      %p862 = scmp.eq.s32.totalorder %s102, 0
      %p863 = por %p861, %p862
      %p864 = scmp.ne.s32.totalorder %s853, %s856
      %p865 = scmp.eq.s32.totalorder %s107, 1
      %p866 = por %p864, %p865
      %p867 = scmp.ne.s32.totalorder %s856, %s857
      %p868 = scmp.eq.s32.totalorder %s107, 0
      %p869 = por %p867, %p868
      %p870 = scmp.ne.s32.totalorder %s856, %s857
      %p871 = scmp.eq.s32.totalorder %s108, 1
      %p872 = por %p870, %p871
      %p874 = scmp.ne.s32.totalorder %s857, %s873
      %p875 = scmp.eq.s32.totalorder %s108, 0
      %p876 = por %p874, %p875
      %s877 = ssub.s32 %s102, %s109
      %p878 = scmp.eq.s32.totalorder %s877, 0
      %s880 = sadd.s32 %s879, 1
      %s881 = scalar_select %p878, %s879, %s880
      %p884 = pneg %p878
      %p885 = scmp.eq.s32.totalorder %s102, 1
      %p886 = por %p884, %p885
      %p887 = scmp.ne.s32.totalorder %s879, %s882
      %p888 = scmp.eq.s32.totalorder %s102, 0
      %p889 = por %p887, %p888
      %p890 = scmp.ne.s32.totalorder %s879, %s882
      %p891 = scmp.eq.s32.totalorder %s107, 1
      %p892 = por %p890, %p891
      %p893 = scmp.ne.s32.totalorder %s882, %s883
      %p894 = scmp.eq.s32.totalorder %s107, 0
      %p895 = por %p893, %p894
      %p896 = scmp.ne.s32.totalorder %s882, %s883
      %p897 = scmp.eq.s32.totalorder %s108, 1
      %p898 = por %p896, %p897
      %p900 = scmp.ne.s32.totalorder %s883, %s899
      %p901 = scmp.eq.s32.totalorder %s108, 0
      %p902 = por %p900, %p901
      %s903 = ssub.s32 %s102, %s109
      %p904 = scmp.eq.s32.totalorder %s903, 0
      %s906 = sadd.s32 %s905, 1
      %s907 = scalar_select %p904, %s905, %s906
      %p910 = pneg %p904
      %p911 = scmp.eq.s32.totalorder %s102, 1
      %p912 = por %p910, %p911
      %p913 = scmp.ne.s32.totalorder %s905, %s908
      %p914 = scmp.eq.s32.totalorder %s102, 0
      %p915 = por %p913, %p914
      %p916 = scmp.ne.s32.totalorder %s905, %s908
      %p917 = scmp.eq.s32.totalorder %s107, 1
      %p918 = por %p916, %p917
      %p919 = scmp.ne.s32.totalorder %s908, %s909
      %p920 = scmp.eq.s32.totalorder %s107, 0
      %p921 = por %p919, %p920
      %p922 = scmp.ne.s32.totalorder %s908, %s909
      %p923 = scmp.eq.s32.totalorder %s108, 1
      %p924 = por %p922, %p923
      %p926 = scmp.ne.s32.totalorder %s909, %s925
      %p927 = scmp.eq.s32.totalorder %s108, 0
      %p928 = por %p926, %p927
      %s929 = ssub.s32 %s102, %s109
      %p930 = scmp.eq.s32.totalorder %s929, 0
      %s932 = sadd.s32 %s931, 1
      %s933 = scalar_select %p930, %s931, %s932
      %p936 = pneg %p930
      %p937 = scmp.eq.s32.totalorder %s102, 1
      %p938 = por %p936, %p937
      %p939 = scmp.ne.s32.totalorder %s931, %s934
      %p940 = scmp.eq.s32.totalorder %s102, 0
      %p941 = por %p939, %p940
      %p942 = scmp.ne.s32.totalorder %s931, %s934
      %p943 = scmp.eq.s32.totalorder %s107, 1
      %p944 = por %p942, %p943
      %p945 = scmp.ne.s32.totalorder %s934, %s935
      %p946 = scmp.eq.s32.totalorder %s107, 0
      %p947 = por %p945, %p946
      %p948 = scmp.ne.s32.totalorder %s934, %s935
      %p949 = scmp.eq.s32.totalorder %s108, 1
      %p950 = por %p948, %p949
      %p952 = scmp.ne.s32.totalorder %s935, %s951
      %p953 = scmp.eq.s32.totalorder %s108, 0
      %p954 = por %p952, %p953
      %s955 = ssub.s32 %s102, %s109
      %p956 = scmp.eq.s32.totalorder %s955, 0
      %s958 = sadd.s32 %s957, 1
      %s959 = scalar_select %p956, %s957, %s958
      %p962 = pneg %p956
      %p963 = scmp.eq.s32.totalorder %s102, 1
      %p964 = por %p962, %p963
      %p965 = scmp.ne.s32.totalorder %s957, %s960
      %p966 = scmp.eq.s32.totalorder %s102, 0
      %p967 = por %p965, %p966
      %p968 = scmp.ne.s32.totalorder %s957, %s960
      %p969 = scmp.eq.s32.totalorder %s107, 1
      %p970 = por %p968, %p969
      %p971 = scmp.ne.s32.totalorder %s960, %s961
      %p972 = scmp.eq.s32.totalorder %s107, 0
      %p973 = por %p971, %p972
      %p974 = scmp.ne.s32.totalorder %s960, %s961
      %p975 = scmp.eq.s32.totalorder %s108, 1
      %p976 = por %p974, %p975
      %p978 = scmp.ne.s32.totalorder %s961, %s977
      %p979 = scmp.eq.s32.totalorder %s108, 0
      %p980 = por %p978, %p979
      %s981 = ssub.s32 %s102, %s109
      %p982 = scmp.eq.s32.totalorder %s981, 0
      %s984 = sadd.s32 %s983, 1
      %s985 = scalar_select %p982, %s983, %s984
      %p988 = pneg %p982
      %p989 = scmp.eq.s32.totalorder %s102, 1
      %p990 = por %p988, %p989
      %p991 = scmp.ne.s32.totalorder %s983, %s986
      %p992 = scmp.eq.s32.totalorder %s102, 0
      %p993 = por %p991, %p992
      %p994 = scmp.ne.s32.totalorder %s983, %s986
      %p995 = scmp.eq.s32.totalorder %s107, 1
      %p996 = por %p994, %p995
      %p997 = scmp.ne.s32.totalorder %s986, %s987
      %p998 = scmp.eq.s32.totalorder %s107, 0
      %p999 = por %p997, %p998
      %p1000 = scmp.ne.s32.totalorder %s986, %s987
      %p1001 = scmp.eq.s32.totalorder %s108, 1
      %p1002 = por %p1000, %p1001
      %p1004 = scmp.ne.s32.totalorder %s987, %s1003
      %p1005 = scmp.eq.s32.totalorder %s108, 0
      %p1006 = por %p1004, %p1005
      %s1008 = sadd.s32 %s1007, 1
      %p1011 = scmp.eq.s32.totalorder %s102, 1
      %p1012 = scmp.ne.s32.totalorder %s1007, %s1009
      %p1013 = scmp.eq.s32.totalorder %s102, 0
      %p1014 = por %p1012, %p1013
      %p1015 = scmp.ne.s32.totalorder %s1007, %s1009
      %p1016 = scmp.eq.s32.totalorder %s107, 1
      %p1017 = por %p1015, %p1016
      %p1018 = scmp.ne.s32.totalorder %s1009, %s1010
      %p1019 = scmp.eq.s32.totalorder %s107, 0
      %p1020 = por %p1018, %p1019
      %p1021 = scmp.ne.s32.totalorder %s1009, %s1010
      %p1022 = scmp.eq.s32.totalorder %s108, 1
      %p1023 = por %p1021, %p1022
      %p1025 = scmp.ne.s32.totalorder %s1010, %s1024
      %p1026 = scmp.eq.s32.totalorder %s108, 0
      %p1027 = por %p1025, %p1026
      %s1029 = sadd.s32 %s1028, 1
      %p1032 = scmp.eq.s32.totalorder %s102, 1
      %p1033 = scmp.ne.s32.totalorder %s1028, %s1030
      %p1034 = scmp.eq.s32.totalorder %s102, 0
      %p1035 = por %p1033, %p1034
      %p1036 = scmp.ne.s32.totalorder %s1028, %s1030
      %p1037 = scmp.eq.s32.totalorder %s107, 1
      %p1038 = por %p1036, %p1037
      %p1039 = scmp.ne.s32.totalorder %s1030, %s1031
      %p1040 = scmp.eq.s32.totalorder %s107, 0
      %p1041 = por %p1039, %p1040
      %p1042 = scmp.ne.s32.totalorder %s1030, %s1031
      %p1043 = scmp.eq.s32.totalorder %s108, 1
      %p1044 = por %p1042, %p1043
      %p1046 = scmp.ne.s32.totalorder %s1031, %s1045
      %p1047 = scmp.eq.s32.totalorder %s108, 0
      %p1048 = por %p1046, %p1047
      %s1050 = sadd.s32 %s1049, 1
      %p1053 = scmp.eq.s32.totalorder %s102, 1
      %p1054 = scmp.ne.s32.totalorder %s1049, %s1051
      %p1055 = scmp.eq.s32.totalorder %s102, 0
      %p1056 = por %p1054, %p1055
      %p1057 = scmp.ne.s32.totalorder %s1049, %s1051
      %p1058 = scmp.eq.s32.totalorder %s107, 1
      %p1059 = por %p1057, %p1058
      %p1060 = scmp.ne.s32.totalorder %s1051, %s1052
      %p1061 = scmp.eq.s32.totalorder %s107, 0
      %p1062 = por %p1060, %p1061
      %p1063 = scmp.ne.s32.totalorder %s1051, %s1052
      %p1064 = scmp.eq.s32.totalorder %s108, 1
      %p1065 = por %p1063, %p1064
      %p1067 = scmp.ne.s32.totalorder %s1052, %s1066
      %p1068 = scmp.eq.s32.totalorder %s108, 0
      %p1069 = por %p1067, %p1068
      %s1071 = sadd.s32 %s1070, 1
      %p1074 = scmp.eq.s32.totalorder %s102, 1
      %p1075 = scmp.ne.s32.totalorder %s1070, %s1072
      %p1076 = scmp.eq.s32.totalorder %s102, 0
      %p1077 = por %p1075, %p1076
      %p1078 = scmp.ne.s32.totalorder %s1070, %s1072
      %p1079 = scmp.eq.s32.totalorder %s107, 1
      %p1080 = por %p1078, %p1079
      %p1081 = scmp.ne.s32.totalorder %s1072, %s1073
      %p1082 = scmp.eq.s32.totalorder %s107, 0
      %p1083 = por %p1081, %p1082
      %p1084 = scmp.ne.s32.totalorder %s1072, %s1073
      %p1085 = scmp.eq.s32.totalorder %s108, 1
      %p1086 = por %p1084, %p1085
      %p1088 = scmp.ne.s32.totalorder %s1073, %s1087
      %p1089 = scmp.eq.s32.totalorder %s108, 0
      %p1090 = por %p1088, %p1089
      %s1092 = sadd.s32 %s1091, 1
      %p1095 = scmp.eq.s32.totalorder %s102, 1
      %p1096 = scmp.ne.s32.totalorder %s1091, %s1093
      %p1097 = scmp.eq.s32.totalorder %s102, 0
      %p1098 = por %p1096, %p1097
      %p1099 = scmp.ne.s32.totalorder %s1091, %s1093
      %p1100 = scmp.eq.s32.totalorder %s107, 1
      %p1101 = por %p1099, %p1100
      %p1102 = scmp.ne.s32.totalorder %s1093, %s1094
      %p1103 = scmp.eq.s32.totalorder %s107, 0
      %p1104 = por %p1102, %p1103
      %p1105 = scmp.ne.s32.totalorder %s1093, %s1094
      %p1106 = scmp.eq.s32.totalorder %s108, 1
      %p1107 = por %p1105, %p1106
      %p1109 = scmp.ne.s32.totalorder %s1094, %s1108
      %p1110 = scmp.eq.s32.totalorder %s108, 0
      %p1111 = por %p1109, %p1110
      %p1112 = scmp.le.s32.totalorder 1, %s102
      %p1113 = scmp.lt.s32.totalorder %s102, 3
      %p1114 = pnand %p1112, %p1113
      %p1115 = pneg %p1114
      // Predicated region
      $region9: #{custom_clip_forward.1} parent=5 // pred_check
        _
      $region10: #{custom_clip_forward.1} parent=5 // pred_check_branch
        %1117 = sbr.rel (%p1114) target = $region12
      $region11: #{custom_clip_forward.1} parent=5 // pred_region
        %s1118 = ssub.s32 %s102, 1
        // Predicated region
        $region13: #{custom_clip_forward.1} parent=11 // pred_check
          %p1119 = pneg %p123
        $region14: #{custom_clip_forward.1} parent=11 // pred_check_branch
          %1121 = sbr.rel (%p1119) target = $region16
        $region15: #{custom_clip_forward.1} parent=11 // pred_region
          _
        $region16: #{custom_clip_forward.1} parent=11 // pred_fallthru
          _
        // Predicated region
        $region17: #{custom_clip_forward.1} parent=11 // pred_check
          %p1122 = pneg %p144
        $region18: #{custom_clip_forward.1} parent=11 // pred_check_branch
          %1124 = sbr.rel (%p1122) target = $region20
        $region19: #{custom_clip_forward.1} parent=11 // pred_region
          _
        $region20: #{custom_clip_forward.1} parent=11 // pred_fallthru
          _
        // Predicated region
        $region21: #{custom_clip_forward.1} parent=11 // pred_check
          %p1125 = pneg %p165
        $region22: #{custom_clip_forward.1} parent=11 // pred_check_branch
          %1127 = sbr.rel (%p1125) target = $region24
        $region23: #{custom_clip_forward.1} parent=11 // pred_region
          _
        $region24: #{custom_clip_forward.1} parent=11 // pred_fallthru
          _
        // Predicated region
        $region25: #{custom_clip_forward.1} parent=11 // pred_check
          %p1128 = pneg %p186
        $region26: #{custom_clip_forward.1} parent=11 // pred_check_branch
          %1130 = sbr.rel (%p1128) target = $region28
        $region27: #{custom_clip_forward.1} parent=11 // pred_region
          _
        $region28: #{custom_clip_forward.1} parent=11 // pred_fallthru
          _
        // Predicated region
        $region29: #{custom_clip_forward.1} parent=11 // pred_check
          %p1131 = pneg %p207
        $region30: #{custom_clip_forward.1} parent=11 // pred_check_branch
          %1133 = sbr.rel (%p1131) target = $region32
        $region31: #{custom_clip_forward.1} parent=11 // pred_region
          _
        $region32: #{custom_clip_forward.1} parent=11 // pred_fallthru
          _
        // Predicated region
        $region33: #{custom_clip_forward.1} parent=11 // pred_check
          %p1134 = pneg %p228
        $region34: #{custom_clip_forward.1} parent=11 // pred_check_branch
          %1136 = sbr.rel (%p1134) target = $region36
        $region35: #{custom_clip_forward.1} parent=11 // pred_region
          _
        $region36: #{custom_clip_forward.1} parent=11 // pred_fallthru
          _
        // Predicated region
        $region37: #{custom_clip_forward.1} parent=11 // pred_check
          %p1137 = pneg %p561
        $region38: #{custom_clip_forward.1} parent=11 // pred_check_branch
          %1139 = sbr.rel (%p1137) target = $region40
        $region39: #{custom_clip_forward.1} parent=11 // pred_region
          _
        $region40: #{custom_clip_forward.1} parent=11 // pred_fallthru
          _
        // Predicated region
        $region41: #{custom_clip_forward.1} parent=11 // pred_check
          %p1140 = pneg %p582
        $region42: #{custom_clip_forward.1} parent=11 // pred_check_branch
          %1142 = sbr.rel (%p1140) target = $region44
        $region43: #{custom_clip_forward.1} parent=11 // pred_region
          _
        $region44: #{custom_clip_forward.1} parent=11 // pred_fallthru
          _
        // Predicated region
        $region45: #{custom_clip_forward.1} parent=11 // pred_check
          %p1143 = pneg %p603
        $region46: #{custom_clip_forward.1} parent=11 // pred_check_branch
          %1145 = sbr.rel (%p1143) target = $region48
        $region47: #{custom_clip_forward.1} parent=11 // pred_region
          _
        $region48: #{custom_clip_forward.1} parent=11 // pred_fallthru
          _
        // Predicated region
        $region49: #{custom_clip_forward.1} parent=11 // pred_check
          %p1146 = pneg %p624
        $region50: #{custom_clip_forward.1} parent=11 // pred_check_branch
          %1148 = sbr.rel (%p1146) target = $region52
        $region51: #{custom_clip_forward.1} parent=11 // pred_region
          _
        $region52: #{custom_clip_forward.1} parent=11 // pred_fallthru
          _
        // Predicated region
        $region53: #{custom_clip_forward.1} parent=11 // pred_check
          %p1149 = pneg %p645
        $region54: #{custom_clip_forward.1} parent=11 // pred_check_branch
          %1151 = sbr.rel (%p1149) target = $region56
        $region55: #{custom_clip_forward.1} parent=11 // pred_region
          _
        $region56: #{custom_clip_forward.1} parent=11 // pred_fallthru
          _
        // Predicated region
        $region57: #{custom_clip_forward.1} parent=11 // pred_check
          %p1152 = pneg %p666
        $region58: #{custom_clip_forward.1} parent=11 // pred_check_branch
          %1154 = sbr.rel (%p1152) target = $region60
        $region59: #{custom_clip_forward.1} parent=11 // pred_region
          _
        $region60: #{custom_clip_forward.1} parent=11 // pred_fallthru
          _
        // Predicated region
        $region61: #{custom_clip_forward.1} parent=11 // pred_check
          %p1155 = pneg %p687
        $region62: #{custom_clip_forward.1} parent=11 // pred_check_branch
          %1157 = sbr.rel (%p1155) target = $region64
        $region63: #{custom_clip_forward.1} parent=11 // pred_region
          _
        $region64: #{custom_clip_forward.1} parent=11 // pred_fallthru
          _
        // Predicated region
        $region65: #{custom_clip_forward.1} parent=11 // pred_check
          %p1158 = pneg %p1020
        $region66: #{custom_clip_forward.1} parent=11 // pred_check_branch
          %1160 = sbr.rel (%p1158) target = $region68
        $region67: #{custom_clip_forward.1} parent=11 // pred_region
          _
        $region68: #{custom_clip_forward.1} parent=11 // pred_fallthru
          _
        // Predicated region
        $region69: #{custom_clip_forward.1} parent=11 // pred_check
          %p1161 = pneg %p1041
        $region70: #{custom_clip_forward.1} parent=11 // pred_check_branch
          %1163 = sbr.rel (%p1161) target = $region72
        $region71: #{custom_clip_forward.1} parent=11 // pred_region
          _
        $region72: #{custom_clip_forward.1} parent=11 // pred_fallthru
          _
        // Predicated region
        $region73: #{custom_clip_forward.1} parent=11 // pred_check
          %p1164 = pneg %p1062
        $region74: #{custom_clip_forward.1} parent=11 // pred_check_branch
          %1166 = sbr.rel (%p1164) target = $region76
        $region75: #{custom_clip_forward.1} parent=11 // pred_region
          _
        $region76: #{custom_clip_forward.1} parent=11 // pred_fallthru
          _
        // Predicated region
        $region77: #{custom_clip_forward.1} parent=11 // pred_check
          %p1167 = pneg %p1083
        $region78: #{custom_clip_forward.1} parent=11 // pred_check_branch
          %1169 = sbr.rel (%p1167) target = $region80
        $region79: #{custom_clip_forward.1} parent=11 // pred_region
          _
        $region80: #{custom_clip_forward.1} parent=11 // pred_fallthru
          _
      $region12: #{custom_clip_forward.1} parent=5 // pred_fallthru
        _
      %p1170 = scmp.lt.s32.totalorder %s102, 2
      // Predicated region
      $region81: #{custom_clip_forward.1} parent=5 // pred_check
        %p1171 = pneg %p1170
      $region82: #{custom_clip_forward.1} parent=5 // pred_check_branch
        %1173 = sbr.rel (%p1171) target = $region84
      $region83: #{custom_clip_forward.1} parent=5 // pred_region
        // Predicated region
        $region85: #{custom_clip_forward.1} parent=83 // pred_check
          %p1174 = pneg %p248
        $region86: #{custom_clip_forward.1} parent=83 // pred_check_branch
          %1176 = sbr.rel (%p1174) target = $region88
        $region87: #{custom_clip_forward.1} parent=83 // pred_region
          %p1177 = scmp.lt.s32.totalorder %s102, 1
          %s1178 = scalar_select %p1177, %s102, 1
          %s1179 = scalar_lea.vmem %s15, %s1178
        $region88: #{custom_clip_forward.1} parent=83 // pred_fallthru
          _
        // Predicated region
        $region89: #{custom_clip_forward.1} parent=83 // pred_check
          %p1180 = pneg %p274
        $region90: #{custom_clip_forward.1} parent=83 // pred_check_branch
          %1182 = sbr.rel (%p1180) target = $region92
        $region91: #{custom_clip_forward.1} parent=83 // pred_region
          %p1183 = scmp.lt.s32.totalorder %s102, 1
          %s1184 = scalar_select %p1183, %s102, 1
          %s1185 = scalar_lea.vmem %s17, %s1184
        $region92: #{custom_clip_forward.1} parent=83 // pred_fallthru
          _
        // Predicated region
        $region93: #{custom_clip_forward.1} parent=83 // pred_check
          %p1186 = pneg %p300
        $region94: #{custom_clip_forward.1} parent=83 // pred_check_branch
          %1188 = sbr.rel (%p1186) target = $region96
        $region95: #{custom_clip_forward.1} parent=83 // pred_region
          %p1189 = scmp.lt.s32.totalorder %s102, 1
          %s1190 = scalar_select %p1189, %s102, 1
          %s1191 = smul.addr %s1190, 4
          %s1192 = smul.addr %s1191, 4
          %s1193 = scalar_lea.vmem %s19, %s1192
        $region96: #{custom_clip_forward.1} parent=83 // pred_fallthru
          _
        // Predicated region
        $region97: #{custom_clip_forward.1} parent=83 // pred_check
          %p1194 = pneg %p326
        $region98: #{custom_clip_forward.1} parent=83 // pred_check_branch
          %1196 = sbr.rel (%p1194) target = $region100
        $region99: #{custom_clip_forward.1} parent=83 // pred_region
          %p1197 = scmp.lt.s32.totalorder %s102, 1
          %s1198 = scalar_select %p1197, %s102, 1
          %s1199 = scalar_lea.vmem %s21, %s1198
        $region100: #{custom_clip_forward.1} parent=83 // pred_fallthru
          _
        // Predicated region
        $region101: #{custom_clip_forward.1} parent=83 // pred_check
          %p1200 = pneg %p352
        $region102: #{custom_clip_forward.1} parent=83 // pred_check_branch
          %1202 = sbr.rel (%p1200) target = $region104
        $region103: #{custom_clip_forward.1} parent=83 // pred_region
          %p1203 = scmp.lt.s32.totalorder %s102, 1
          %s1204 = scalar_select %p1203, %s102, 1
          %s1205 = smul.addr %s1204, 4
          %s1206 = smul.addr %s1205, 4
          %s1207 = scalar_lea.vmem %s23, %s1206
        $region104: #{custom_clip_forward.1} parent=83 // pred_fallthru
          _
        // Predicated region
        $region105: #{custom_clip_forward.1} parent=83 // pred_check
          %p1208 = pneg %p378
        $region106: #{custom_clip_forward.1} parent=83 // pred_check_branch
          %1210 = sbr.rel (%p1208) target = $region108
        $region107: #{custom_clip_forward.1} parent=83 // pred_region
          %p1211 = scmp.lt.s32.totalorder %s102, 1
          %s1212 = scalar_select %p1211, %s102, 1
          %s1213 = scalar_lea.vmem %s25, %s1212
        $region108: #{custom_clip_forward.1} parent=83 // pred_fallthru
          _
        // Predicated region
        $region109: #{custom_clip_forward.1} parent=83 // pred_check
          %p1214 = pneg %p404
        $region110: #{custom_clip_forward.1} parent=83 // pred_check_branch
          %1216 = sbr.rel (%p1214) target = $region112
        $region111: #{custom_clip_forward.1} parent=83 // pred_region
          %p1217 = scmp.lt.s32.totalorder %s102, 1
          %s1218 = scalar_select %p1217, %s102, 1
          %s1219 = scalar_lea.vmem %s27, %s1218
        $region112: #{custom_clip_forward.1} parent=83 // pred_fallthru
          _
        // Predicated region
        $region113: #{custom_clip_forward.1} parent=83 // pred_check
          %p1220 = pneg %p430
        $region114: #{custom_clip_forward.1} parent=83 // pred_check_branch
          %1222 = sbr.rel (%p1220) target = $region116
        $region115: #{custom_clip_forward.1} parent=83 // pred_region
          %p1223 = scmp.lt.s32.totalorder %s102, 1
          %s1224 = scalar_select %p1223, %s102, 1
          %s1225 = scalar_lea.vmem %s29, %s1224
        $region116: #{custom_clip_forward.1} parent=83 // pred_fallthru
          _
        // Predicated region
        $region117: #{custom_clip_forward.1} parent=83 // pred_check
          %p1226 = pneg %p456
        $region118: #{custom_clip_forward.1} parent=83 // pred_check_branch
          %1228 = sbr.rel (%p1226) target = $region120
        $region119: #{custom_clip_forward.1} parent=83 // pred_region
          %p1229 = scmp.lt.s32.totalorder %s102, 1
          %s1230 = scalar_select %p1229, %s102, 1
          %s1231 = smul.addr %s1230, 4
          %s1232 = smul.addr %s1231, 4
          %s1233 = scalar_lea.vmem %s31, %s1232
        $region120: #{custom_clip_forward.1} parent=83 // pred_fallthru
          _
        // Predicated region
        $region121: #{custom_clip_forward.1} parent=83 // pred_check
          %p1234 = pneg %p482
        $region122: #{custom_clip_forward.1} parent=83 // pred_check_branch
          %1236 = sbr.rel (%p1234) target = $region124
        $region123: #{custom_clip_forward.1} parent=83 // pred_region
          %p1237 = scmp.lt.s32.totalorder %s102, 1
          %s1238 = scalar_select %p1237, %s102, 1
          %s1239 = scalar_lea.vmem %s33, %s1238
        $region124: #{custom_clip_forward.1} parent=83 // pred_fallthru
          _
        // Predicated region
        $region125: #{custom_clip_forward.1} parent=83 // pred_check
          %p1240 = pneg %p508
        $region126: #{custom_clip_forward.1} parent=83 // pred_check_branch
          %1242 = sbr.rel (%p1240) target = $region128
        $region127: #{custom_clip_forward.1} parent=83 // pred_region
          %p1243 = scmp.lt.s32.totalorder %s102, 1
          %s1244 = scalar_select %p1243, %s102, 1
          %s1245 = smul.addr %s1244, 16
          %s1246 = smul.addr %s1245, 4
          %s1247 = scalar_lea.vmem %s35, %s1246
        $region128: #{custom_clip_forward.1} parent=83 // pred_fallthru
          _
        // Predicated region
        $region129: #{custom_clip_forward.1} parent=83 // pred_check
          %p1248 = pneg %p534
        $region130: #{custom_clip_forward.1} parent=83 // pred_check_branch
          %1250 = sbr.rel (%p1248) target = $region132
        $region131: #{custom_clip_forward.1} parent=83 // pred_region
          %p1251 = scmp.lt.s32.totalorder %s102, 1
          %s1252 = scalar_select %p1251, %s102, 1
          %s1253 = scalar_lea.vmem %s37, %s1252
        $region132: #{custom_clip_forward.1} parent=83 // pred_fallthru
          _
        // Predicated region
        $region133: #{custom_clip_forward.1} parent=83 // pred_check
          %p1254 = pneg %p707
        $region134: #{custom_clip_forward.1} parent=83 // pred_check_branch
          %1256 = sbr.rel (%p1254) target = $region136
        $region135: #{custom_clip_forward.1} parent=83 // pred_region
          %p1257 = scmp.lt.s32.totalorder %s102, 1
          %s1258 = scalar_select %p1257, %s102, 1
          %s1259 = scalar_lea.vmem %s53, %s1258
        $region136: #{custom_clip_forward.1} parent=83 // pred_fallthru
          _
        // Predicated region
        $region137: #{custom_clip_forward.1} parent=83 // pred_check
          %p1260 = pneg %p733
        $region138: #{custom_clip_forward.1} parent=83 // pred_check_branch
          %1262 = sbr.rel (%p1260) target = $region140
        $region139: #{custom_clip_forward.1} parent=83 // pred_region
          %p1263 = scmp.lt.s32.totalorder %s102, 1
          %s1264 = scalar_select %p1263, %s102, 1
          %s1265 = scalar_lea.vmem %s55, %s1264
        $region140: #{custom_clip_forward.1} parent=83 // pred_fallthru
          _
        // Predicated region
        $region141: #{custom_clip_forward.1} parent=83 // pred_check
          %p1266 = pneg %p759
        $region142: #{custom_clip_forward.1} parent=83 // pred_check_branch
          %1268 = sbr.rel (%p1266) target = $region144
        $region143: #{custom_clip_forward.1} parent=83 // pred_region
          %p1269 = scmp.lt.s32.totalorder %s102, 1
          %s1270 = scalar_select %p1269, %s102, 1
          %s1271 = smul.addr %s1270, 4
          %s1272 = smul.addr %s1271, 4
          %s1273 = scalar_lea.vmem %s57, %s1272
        $region144: #{custom_clip_forward.1} parent=83 // pred_fallthru
          _
        // Predicated region
        $region145: #{custom_clip_forward.1} parent=83 // pred_check
          %p1274 = pneg %p785
        $region146: #{custom_clip_forward.1} parent=83 // pred_check_branch
          %1276 = sbr.rel (%p1274) target = $region148
        $region147: #{custom_clip_forward.1} parent=83 // pred_region
          %p1277 = scmp.lt.s32.totalorder %s102, 1
          %s1278 = scalar_select %p1277, %s102, 1
          %s1279 = scalar_lea.vmem %s59, %s1278
        $region148: #{custom_clip_forward.1} parent=83 // pred_fallthru
          _
        // Predicated region
        $region149: #{custom_clip_forward.1} parent=83 // pred_check
          %p1280 = pneg %p811
        $region150: #{custom_clip_forward.1} parent=83 // pred_check_branch
          %1282 = sbr.rel (%p1280) target = $region152
        $region151: #{custom_clip_forward.1} parent=83 // pred_region
          %p1283 = scmp.lt.s32.totalorder %s102, 1
          %s1284 = scalar_select %p1283, %s102, 1
          %s1285 = smul.addr %s1284, 4
          %s1286 = smul.addr %s1285, 4
          %s1287 = scalar_lea.vmem %s61, %s1286
        $region152: #{custom_clip_forward.1} parent=83 // pred_fallthru
          _
        // Predicated region
        $region153: #{custom_clip_forward.1} parent=83 // pred_check
          %p1288 = pneg %p837
        $region154: #{custom_clip_forward.1} parent=83 // pred_check_branch
          %1290 = sbr.rel (%p1288) target = $region156
        $region155: #{custom_clip_forward.1} parent=83 // pred_region
          %p1291 = scmp.lt.s32.totalorder %s102, 1
          %s1292 = scalar_select %p1291, %s102, 1
          %s1293 = scalar_lea.vmem %s63, %s1292
        $region156: #{custom_clip_forward.1} parent=83 // pred_fallthru
          _
        // Predicated region
        $region157: #{custom_clip_forward.1} parent=83 // pred_check
          %p1294 = pneg %p863
        $region158: #{custom_clip_forward.1} parent=83 // pred_check_branch
          %1296 = sbr.rel (%p1294) target = $region160
        $region159: #{custom_clip_forward.1} parent=83 // pred_region
          %p1297 = scmp.lt.s32.totalorder %s102, 1
          %s1298 = scalar_select %p1297, %s102, 1
          %s1299 = scalar_lea.vmem %s65, %s1298
        $region160: #{custom_clip_forward.1} parent=83 // pred_fallthru
          _
        // Predicated region
        $region161: #{custom_clip_forward.1} parent=83 // pred_check
          %p1300 = pneg %p889
        $region162: #{custom_clip_forward.1} parent=83 // pred_check_branch
          %1302 = sbr.rel (%p1300) target = $region164
        $region163: #{custom_clip_forward.1} parent=83 // pred_region
          %p1303 = scmp.lt.s32.totalorder %s102, 1
          %s1304 = scalar_select %p1303, %s102, 1
          %s1305 = scalar_lea.vmem %s67, %s1304
        $region164: #{custom_clip_forward.1} parent=83 // pred_fallthru
          _
        // Predicated region
        $region165: #{custom_clip_forward.1} parent=83 // pred_check
          %p1306 = pneg %p915
        $region166: #{custom_clip_forward.1} parent=83 // pred_check_branch
          %1308 = sbr.rel (%p1306) target = $region168
        $region167: #{custom_clip_forward.1} parent=83 // pred_region
          %p1309 = scmp.lt.s32.totalorder %s102, 1
          %s1310 = scalar_select %p1309, %s102, 1
          %s1311 = smul.addr %s1310, 4
          %s1312 = smul.addr %s1311, 4
          %s1313 = scalar_lea.vmem %s69, %s1312
        $region168: #{custom_clip_forward.1} parent=83 // pred_fallthru
          _
        // Predicated region
        $region169: #{custom_clip_forward.1} parent=83 // pred_check
          %p1314 = pneg %p941
        $region170: #{custom_clip_forward.1} parent=83 // pred_check_branch
          %1316 = sbr.rel (%p1314) target = $region172
        $region171: #{custom_clip_forward.1} parent=83 // pred_region
          %p1317 = scmp.lt.s32.totalorder %s102, 1
          %s1318 = scalar_select %p1317, %s102, 1
          %s1319 = scalar_lea.vmem %s71, %s1318
        $region172: #{custom_clip_forward.1} parent=83 // pred_fallthru
          _
        // Predicated region
        $region173: #{custom_clip_forward.1} parent=83 // pred_check
          %p1320 = pneg %p967
        $region174: #{custom_clip_forward.1} parent=83 // pred_check_branch
          %1322 = sbr.rel (%p1320) target = $region176
        $region175: #{custom_clip_forward.1} parent=83 // pred_region
          %p1323 = scmp.lt.s32.totalorder %s102, 1
          %s1324 = scalar_select %p1323, %s102, 1
          %s1325 = smul.addr %s1324, 16
          %s1326 = smul.addr %s1325, 4
          %s1327 = scalar_lea.vmem %s73, %s1326
        $region176: #{custom_clip_forward.1} parent=83 // pred_fallthru
          _
        // Predicated region
        $region177: #{custom_clip_forward.1} parent=83 // pred_check
          %p1328 = pneg %p993
        $region178: #{custom_clip_forward.1} parent=83 // pred_check_branch
          %1330 = sbr.rel (%p1328) target = $region180
        $region179: #{custom_clip_forward.1} parent=83 // pred_region
          %p1331 = scmp.lt.s32.totalorder %s102, 1
          %s1332 = scalar_select %p1331, %s102, 1
          %s1333 = scalar_lea.vmem %s75, %s1332
        $region180: #{custom_clip_forward.1} parent=83 // pred_fallthru
          _
      $region84: #{custom_clip_forward.1} parent=5 // pred_fallthru
        _
      %p1334 = scmp.le.s32.totalorder 1, %s102
      %p1335 = scmp.lt.s32.totalorder %s102, 3
      %p1336 = pnand %p1334, %p1335
      %p1337 = pneg %p1336
      // Predicated region
      $region181: #{custom_clip_forward.1} parent=5 // pred_check
        _
      $region182: #{custom_clip_forward.1} parent=5 // pred_check_branch
        %1339 = sbr.rel (%p1336) target = $region184
      $region183: #{custom_clip_forward.1} parent=5 // pred_region
        %s1340 = ssub.s32 %s102, 1
        %p1341 = pneg %p123
        %p1342 = pneg %p120
        %p1343 = pneg %p144
        %p1344 = pneg %p141
        %p1345 = pneg %p165
        %p1346 = pneg %p162
        %p1347 = pneg %p186
        %p1348 = pneg %p183
        %p1349 = pneg %p207
        %p1350 = pneg %p204
        %p1351 = pneg %p228
        %p1352 = pneg %p225
        %p1353 = scmp.lt.s32.totalorder %s107, 1
        %s1354 = scalar_select %p1353, %s107, 1
        %s1355 = scalar_lea.vmem %s15, %s1354
        %p1356 = pneg %p254
        %p1357 = pneg %p251
        %p1358 = scmp.lt.s32.totalorder %s107, 1
        %s1359 = scalar_select %p1358, %s107, 1
        %s1360 = scalar_lea.vmem %s17, %s1359
        %p1361 = pneg %p280
        %p1362 = pneg %p277
        %p1363 = scmp.lt.s32.totalorder %s107, 1
        %s1364 = scalar_select %p1363, %s107, 1
        %s1365 = smul.addr %s1364, 4
        %s1366 = smul.addr %s1365, 4
        %s1367 = scalar_lea.vmem %s19, %s1366
        %p1368 = pneg %p306
        %p1369 = pneg %p303
        %p1370 = scmp.lt.s32.totalorder %s107, 1
        %s1371 = scalar_select %p1370, %s107, 1
        %s1372 = scalar_lea.vmem %s21, %s1371
        %p1373 = pneg %p332
        %p1374 = pneg %p329
        %p1375 = scmp.lt.s32.totalorder %s107, 1
        %s1376 = scalar_select %p1375, %s107, 1
        %s1377 = smul.addr %s1376, 4
        %s1378 = smul.addr %s1377, 4
        %s1379 = scalar_lea.vmem %s23, %s1378
        %p1380 = pneg %p358
        %p1381 = pneg %p355
        %p1382 = scmp.lt.s32.totalorder %s107, 1
        %s1383 = scalar_select %p1382, %s107, 1
        %s1384 = scalar_lea.vmem %s25, %s1383
        %p1385 = pneg %p384
        %p1386 = pneg %p381
        %p1387 = scmp.lt.s32.totalorder %s107, 1
        %s1388 = scalar_select %p1387, %s107, 1
        %s1389 = scalar_lea.vmem %s27, %s1388
        %p1390 = pneg %p410
        %p1391 = pneg %p407
        %p1392 = scmp.lt.s32.totalorder %s107, 1
        %s1393 = scalar_select %p1392, %s107, 1
        %s1394 = scalar_lea.vmem %s29, %s1393
        %p1395 = pneg %p436
        %p1396 = pneg %p433
        %p1397 = scmp.lt.s32.totalorder %s107, 1
        %s1398 = scalar_select %p1397, %s107, 1
        %s1399 = smul.addr %s1398, 4
        %s1400 = smul.addr %s1399, 4
        %s1401 = scalar_lea.vmem %s31, %s1400
        %p1402 = pneg %p462
        %p1403 = pneg %p459
        %p1404 = scmp.lt.s32.totalorder %s107, 1
        %s1405 = scalar_select %p1404, %s107, 1
        %s1406 = scalar_lea.vmem %s33, %s1405
        %p1407 = pneg %p488
        %p1408 = pneg %p485
        %p1409 = scmp.lt.s32.totalorder %s107, 1
        %s1410 = scalar_select %p1409, %s107, 1
        %s1411 = smul.addr %s1410, 16
        %s1412 = smul.addr %s1411, 4
        %s1413 = scalar_lea.vmem %s35, %s1412
        %p1414 = pneg %p514
        %p1415 = pneg %p511
        %p1416 = scmp.lt.s32.totalorder %s107, 1
        %s1417 = scalar_select %p1416, %s107, 1
        %s1418 = scalar_lea.vmem %s37, %s1417
        %p1419 = pneg %p540
        %p1420 = pneg %p537
        %p1421 = pneg %p561
        %p1422 = pneg %p558
        %p1423 = pneg %p582
        %p1424 = pneg %p579
        %p1425 = pneg %p603
        %p1426 = pneg %p600
        %p1427 = pneg %p624
        %p1428 = pneg %p621
        %p1429 = pneg %p645
        %p1430 = pneg %p642
        %p1431 = pneg %p666
        %p1432 = pneg %p663
        %p1433 = pneg %p687
        %p1434 = pneg %p684
        %p1435 = scmp.lt.s32.totalorder %s107, 1
        %s1436 = scalar_select %p1435, %s107, 1
        %s1437 = scalar_lea.vmem %s53, %s1436
        %p1438 = pneg %p713
        %p1439 = pneg %p710
        %p1440 = scmp.lt.s32.totalorder %s107, 1
        %s1441 = scalar_select %p1440, %s107, 1
        %s1442 = scalar_lea.vmem %s55, %s1441
        %p1443 = pneg %p739
        %p1444 = pneg %p736
        %p1445 = scmp.lt.s32.totalorder %s107, 1
        %s1446 = scalar_select %p1445, %s107, 1
        %s1447 = smul.addr %s1446, 4
        %s1448 = smul.addr %s1447, 4
        %s1449 = scalar_lea.vmem %s57, %s1448
        %p1450 = pneg %p765
        %p1451 = pneg %p762
        %p1452 = scmp.lt.s32.totalorder %s107, 1
        %s1453 = scalar_select %p1452, %s107, 1
        %s1454 = scalar_lea.vmem %s59, %s1453
        %p1455 = pneg %p791
        %p1456 = pneg %p788
        %p1457 = scmp.lt.s32.totalorder %s107, 1
        %s1458 = scalar_select %p1457, %s107, 1
        %s1459 = smul.addr %s1458, 4
        %s1460 = smul.addr %s1459, 4
        %s1461 = scalar_lea.vmem %s61, %s1460
        %p1462 = pneg %p817
        %p1463 = pneg %p814
        %p1464 = scmp.lt.s32.totalorder %s107, 1
        %s1465 = scalar_select %p1464, %s107, 1
        %s1466 = scalar_lea.vmem %s63, %s1465
        %p1467 = pneg %p843
        %p1468 = pneg %p840
        %p1469 = scmp.lt.s32.totalorder %s107, 1
        %s1470 = scalar_select %p1469, %s107, 1
        %s1471 = scalar_lea.vmem %s65, %s1470
        %p1472 = pneg %p869
        %p1473 = pneg %p866
        %p1474 = scmp.lt.s32.totalorder %s107, 1
        %s1475 = scalar_select %p1474, %s107, 1
        %s1476 = scalar_lea.vmem %s67, %s1475
        %p1477 = pneg %p895
        %p1478 = pneg %p892
        %p1479 = scmp.lt.s32.totalorder %s107, 1
        %s1480 = scalar_select %p1479, %s107, 1
        %s1481 = smul.addr %s1480, 4
        %s1482 = smul.addr %s1481, 4
        %s1483 = scalar_lea.vmem %s69, %s1482
        %p1484 = pneg %p921
        %p1485 = pneg %p918
        %p1486 = scmp.lt.s32.totalorder %s107, 1
        %s1487 = scalar_select %p1486, %s107, 1
        %s1488 = scalar_lea.vmem %s71, %s1487
        %p1489 = pneg %p947
        %p1490 = pneg %p944
        %p1491 = scmp.lt.s32.totalorder %s107, 1
        %s1492 = scalar_select %p1491, %s107, 1
        %s1493 = smul.addr %s1492, 16
        %s1494 = smul.addr %s1493, 4
        %s1495 = scalar_lea.vmem %s73, %s1494
        %p1496 = pneg %p973
        %p1497 = pneg %p970
        %p1498 = scmp.lt.s32.totalorder %s107, 1
        %s1499 = scalar_select %p1498, %s107, 1
        %s1500 = scalar_lea.vmem %s75, %s1499
        %p1501 = pneg %p999
        %p1502 = pneg %p996
        %p1503 = pneg %p1020
        %p1504 = pneg %p1017
        %p1505 = pneg %p1041
        %p1506 = pneg %p1038
        %p1507 = pneg %p1062
        %p1508 = pneg %p1059
        %p1509 = pneg %p1083
        %p1510 = pneg %p1080
        %p1511 = pneg %p1104
        %p1512 = pneg %p1101
        %p1513 = scmp.lt.s32.totalorder %s107, 1
        %s1514 = scalar_select %p1513, %s107, 1
        %s1515 = scalar_lea.vmem %s15, %s1514
        %p1516 = scmp.lt.s32.totalorder %s107, 1
        %s1517 = scalar_select %p1516, %s107, 1
        %s1518 = scalar_lea.vmem %s17, %s1517
        %p1519 = scmp.lt.s32.totalorder %s107, 1
        %s1520 = scalar_select %p1519, %s107, 1
        %s1521 = smul.addr %s1520, 4
        %s1522 = smul.addr %s1521, 4
        %s1523 = scalar_lea.vmem %s19, %s1522
        %p1524 = scmp.lt.s32.totalorder %s107, 1
        %s1525 = scalar_select %p1524, %s107, 1
        %s1526 = scalar_lea.vmem %s21, %s1525
        %p1527 = scmp.lt.s32.totalorder %s107, 1
        %s1528 = scalar_select %p1527, %s107, 1
        %s1529 = smul.addr %s1528, 4
        %s1530 = smul.addr %s1529, 4
        %s1531 = scalar_lea.vmem %s23, %s1530
        %p1532 = scmp.lt.s32.totalorder %s107, 1
        %s1533 = scalar_select %p1532, %s107, 1
        %s1534 = scalar_lea.vmem %s25, %s1533
        %p1535 = scmp.lt.s32.totalorder %s107, 1
        %s1536 = scalar_select %p1535, %s107, 1
        %s1537 = scalar_lea.vmem %s27, %s1536
        %p1538 = scmp.lt.s32.totalorder %s107, 1
        %s1539 = scalar_select %p1538, %s107, 1
        %s1540 = scalar_lea.vmem %s29, %s1539
        %p1541 = scmp.lt.s32.totalorder %s107, 1
        %s1542 = scalar_select %p1541, %s107, 1
        %s1543 = smul.addr %s1542, 4
        %s1544 = smul.addr %s1543, 4
        %s1545 = scalar_lea.vmem %s31, %s1544
        %p1546 = scmp.lt.s32.totalorder %s107, 1
        %s1547 = scalar_select %p1546, %s107, 1
        %s1548 = scalar_lea.vmem %s33, %s1547
        %p1549 = scmp.lt.s32.totalorder %s107, 1
        %s1550 = scalar_select %p1549, %s107, 1
        %s1551 = smul.addr %s1550, 16
        %s1552 = smul.addr %s1551, 4
        %s1553 = scalar_lea.vmem %s35, %s1552
        %p1554 = scmp.lt.s32.totalorder %s107, 1
        %s1555 = scalar_select %p1554, %s107, 1
        %s1556 = scalar_lea.vmem %s37, %s1555
        %p1557 = scmp.lt.s32.totalorder %s107, 1
        %s1558 = scalar_select %p1557, %s107, 1
        %s1559 = scalar_lea.vmem %s53, %s1558
        %p1560 = scmp.lt.s32.totalorder %s107, 1
        %s1561 = scalar_select %p1560, %s107, 1
        %s1562 = scalar_lea.vmem %s55, %s1561
        %p1563 = scmp.lt.s32.totalorder %s107, 1
        %s1564 = scalar_select %p1563, %s107, 1
        %s1565 = smul.addr %s1564, 4
        %s1566 = smul.addr %s1565, 4
        %s1567 = scalar_lea.vmem %s57, %s1566
        %p1568 = scmp.lt.s32.totalorder %s107, 1
        %s1569 = scalar_select %p1568, %s107, 1
        %s1570 = scalar_lea.vmem %s59, %s1569
        %p1571 = scmp.lt.s32.totalorder %s107, 1
        %s1572 = scalar_select %p1571, %s107, 1
        %s1573 = smul.addr %s1572, 4
        %s1574 = smul.addr %s1573, 4
        %s1575 = scalar_lea.vmem %s61, %s1574
        %p1576 = scmp.lt.s32.totalorder %s107, 1
        %s1577 = scalar_select %p1576, %s107, 1
        %s1578 = scalar_lea.vmem %s63, %s1577
        %p1579 = scmp.lt.s32.totalorder %s107, 1
        %s1580 = scalar_select %p1579, %s107, 1
        %s1581 = scalar_lea.vmem %s65, %s1580
        %p1582 = scmp.lt.s32.totalorder %s107, 1
        %s1583 = scalar_select %p1582, %s107, 1
        %s1584 = scalar_lea.vmem %s67, %s1583
        %p1585 = scmp.lt.s32.totalorder %s107, 1
        %s1586 = scalar_select %p1585, %s107, 1
        %s1587 = smul.addr %s1586, 4
        %s1588 = smul.addr %s1587, 4
        %s1589 = scalar_lea.vmem %s69, %s1588
        %p1590 = scmp.lt.s32.totalorder %s107, 1
        %s1591 = scalar_select %p1590, %s107, 1
        %s1592 = scalar_lea.vmem %s71, %s1591
        %p1593 = scmp.lt.s32.totalorder %s107, 1
        %s1594 = scalar_select %p1593, %s107, 1
        %s1595 = smul.addr %s1594, 16
        %s1596 = smul.addr %s1595, 4
        %s1597 = scalar_lea.vmem %s73, %s1596
        %p1598 = scmp.lt.s32.totalorder %s107, 1
        %s1599 = scalar_select %p1598, %s107, 1
        %s1600 = scalar_lea.vmem %s75, %s1599
        %p1602 = scmp.eq.s32.totalorder %s107, 0
        // Predicated region
        $region185: #{custom_clip_forward.1} parent=183 // pred_check
          %p1603 = pneg %p1602
        $region186: #{custom_clip_forward.1} parent=183 // pred_check_branch
          %1605 = sbr.rel (%p1603) target = $region188
        $region187: #{custom_clip_forward.1} parent=183 // pred_region
          %v1606 = vld [vmem:[%s3] sm:$0xff]
          %v1607 = vld [vmem:[%s3 + $0x8] sm:$0xff]
          %v1608 = vld [vmem:[%s5] sm:$0xf]
          %v1609 = vld [vmem:[%s5 + $0x4] sm:$0xf]
          %v1610 = vld [vmem:[%s5 + $0x8] sm:$0xf]
          %v1611 = vld [vmem:[%s5 + $0xc] sm:$0xf]
          %v1612 = vld [vmem:[%s5 + $0x10] sm:$0xf]
          %v1613 = vld [vmem:[%s5 + $0x14] sm:$0xf]
          %v1614 = vld [vmem:[%s5 + $0x18] sm:$0xf]
          %v1615 = vld [vmem:[%s5 + $0x1c] sm:$0xf]
          %v1616 = vld [vmem:[%s5 + $0x20] sm:$0xf]
          %v1617 = vld [vmem:[%s5 + $0x24] sm:$0xf]
          %v1618 = vld [vmem:[%s5 + $0x28] sm:$0xf]
          %v1619 = vld [vmem:[%s5 + $0x2c] sm:$0xf]
          %v1620 = vld [vmem:[%s5 + $0x30] sm:$0xf]
          %v1621 = vld [vmem:[%s5 + $0x34] sm:$0xf]
          %v1622 = vld [vmem:[%s5 + $0x38] sm:$0xf]
          %v1623 = vld [vmem:[%s5 + $0x3c] sm:$0xf]
          %v1624 = vld [vmem:[%s5 + $0x40] sm:$0xf]
          %v1625 = vld [vmem:[%s5 + $0x44] sm:$0xf]
          %v1626 = vld [vmem:[%s5 + $0x48] sm:$0xf]
          %v1627 = vld [vmem:[%s5 + $0x4c] sm:$0xf]
          %v1628 = vld [vmem:[%s5 + $0x50] sm:$0xf]
          %v1629 = vld [vmem:[%s5 + $0x54] sm:$0xf]
          %v1630 = vld [vmem:[%s5 + $0x58] sm:$0xf]
          %v1631 = vld [vmem:[%s5 + $0x5c] sm:$0xf]
          %v1632 = vpack.c.bf16 %v1606, %v1606
          %v1633 = vpack.c.bf16 %v1607, %v1607
          %v1658 = vunpack.c.l.b16 %v1608
          %v1659 = vunpack.c.l.b16 %v1609
          %v1660 = vunpack.c.l.b16 %v1610
          %v1661 = vunpack.c.l.b16 %v1611
          %v1662 = vunpack.c.l.b16 %v1612
          %v1663 = vunpack.c.l.b16 %v1613
          %v1664 = vunpack.c.l.b16 %v1614
          %v1665 = vunpack.c.l.b16 %v1615
          %v1666 = vunpack.c.l.b16 %v1616
          %v1667 = vunpack.c.l.b16 %v1617
          %v1668 = vunpack.c.l.b16 %v1618
          %v1669 = vunpack.c.l.b16 %v1619
          %v1670 = vunpack.c.l.b16 %v1620
          %v1671 = vunpack.c.l.b16 %v1621
          %v1672 = vunpack.c.l.b16 %v1622
          %v1673 = vunpack.c.l.b16 %v1623
          %v1674 = vunpack.c.l.b16 %v1624
          %v1675 = vunpack.c.l.b16 %v1625
          %v1676 = vunpack.c.l.b16 %v1626
          %v1677 = vunpack.c.l.b16 %v1627
          %v1678 = vunpack.c.l.b16 %v1628
          %v1679 = vunpack.c.l.b16 %v1629
          %v1680 = vunpack.c.l.b16 %v1630
          %v1681 = vunpack.c.l.b16 %v1631
          %v1682 = vpack.c.b16 %v1659, %v1658
          %v1683 = vpack.c.b16 %v1661, %v1660
          %v1684 = vpack.c.b16 %v1663, %v1662
          %v1685 = vpack.c.b16 %v1665, %v1664
          %v1686 = vpack.c.b16 %v1667, %v1666
          %v1687 = vpack.c.b16 %v1669, %v1668
          %v1688 = vpack.c.b16 %v1671, %v1670
          %v1689 = vpack.c.b16 %v1673, %v1672
          %v1690 = vpack.c.b16 %v1675, %v1674
          %v1691 = vpack.c.b16 %v1677, %v1676
          %v1692 = vpack.c.b16 %v1679, %v1678
          %v1693 = vpack.c.b16 %v1681, %v1680
          %vm1706 = vcmask 523264
          %v1708 = vsel %vm1706, %v1633, 0
          %1710 = vmatpush.bf16.msra.mxu0 %v1689
          %1711 = vmatpush.bf16.msra.mxu0 %v1688
          %1712 = vmatpush.bf16.msra.mxu0 %v1687
          %1713 = vmatpush.bf16.msra.mxu0 %v1686
          %1714 = vmatpush.bf16.msra.mxu0 %v1685
          %1715 = vmatpush.bf16.msra.mxu0 %v1684
          %1716 = vmatpush.bf16.msra.mxu0 %v1683
          %1717 = vmatpush.bf16.msra.mxu0 %v1682
          %1718 = vmatmul.bf16.gmra.mxu0 %v1632
          %v1719 = vpop.f32.mrf.mxu0
          %v1720 = vadd.f32 0.0, %v1719
          %v1721 = vpop.f32.mrf.mxu0
          %1722 = vdwg.mxu0
          %1723 = vmatpush.bf16.msra.mxu0 0
          %1724 = vmatpush.bf16.msra.mxu0 0
          %1725 = vmatpush.bf16.msra.mxu0 0
          %1726 = vmatpush.bf16.msra.mxu0 0
          %1727 = vmatpush.bf16.msra.mxu0 %v1693
          %1728 = vmatpush.bf16.msra.mxu0 %v1692
          %1729 = vmatpush.bf16.msra.mxu0 %v1691
          %1730 = vmatpush.bf16.msra.mxu0 %v1690
          %1731 = vmatmul.bf16.gmra.mxu0 %v1708
          %v1732 = vpop.f32.mrf.mxu0
          %v1733 = vadd.f32 %v1720, %v1732
          %v1734 = vpop.f32.mrf.mxu0
          %1735 = vdwg.mxu0
          %v1736 = vld [vmem:[%s7] sm:$0x1]
          %v1737 = vld [vmem:[%s9] sm:$0x1f]
          %v1738 = vld [vmem:[%s11] sm:$0x1]
          %v1739 = vld [vmem:[%s13] sm:$0x1]
          %v1741 = vrot.slane %v1733, 7
          %vm1743 = vcmask 1040384
          %v1744 = vsel %vm1743, %v1736, %v1741
          %v1745 = vadd.f32 %v1744, %v1737
          %vm1746 = vcmask 258048
          %v1747 = vsel %vm1746, %v1745, 0.0
          %1748 = vadd.xlane.f32.xlu0 %v1747
          %v1749 = vpop.xlane.xlu0 %1748
          %v1750 = vrcp.pop 32.0
          %v1751 = vmul.f32 32.0, %v1750
          %v1752 = vsub.f32 1.0, %v1751
          %v1753 = vmul.f32 %v1750, %v1752
          %v1754 = vadd.f32 %v1750, %v1753
          %vm1755 = vweird.f32 %v1750
          %v1756 = vsel %vm1755, %v1750, %v1754
          %v1757 = vmul.f32 %v1749, %v1756
          %v1758 = vsub.f32 %v1745, %v1757
          %v1759 = vmul.f32 %v1758, %v1758
          %v1760 = vsel %vm1746, %v1759, 0.0
          %1761 = vadd.xlane.f32.xlu0 %v1760
          %v1762 = vpop.xlane.xlu0 %1761
          %v1763 = vmul.f32 %v1762, %v1756
          %v1764 = vadd.f32 %v1763, 1e-05
          %v1765 = vrsqrt.pop %v1764
          %v1766 = vmul.f32 %v1765, %v1764
          %v1767 = vmul.f32 %v1766, %v1765
          %v1768 = vmul.f32 0.5, %v1767
          %v1769 = vsub.f32 1.5, %v1768
          %v1770 = vmul.f32 %v1765, %v1769
          %vm1771 = vweird.f32 %v1764
          %vm1772 = vweird.f32 %v1765
          %vm1773 = vmor %vm1771, %vm1772
          %v1774 = vsel %vm1773, %v1765, %v1770
          %v1775 = vmul.f32 %v1758, %v1774
          %v1777 = vperm.slane %v1738, 0
          %v1779 = vmul.f32 %v1775, %v1777
          %v1781 = vperm.slane %v1739, 0
          %v1783 = vadd.f32 %v1779, %v1781
          %1784 = vst.msk [vmem:[#allocation2] sm:$0x1f] %vm1746, %v1783
          %v1785 = vrot.slane %v1733, 3
          %v1787 = vsel %vm1743, %v1736, %v1785
          %v1788 = vadd.f32 %v1787, %v1737
          %v1789 = vsel %vm1746, %v1788, 0.0
          %1790 = vadd.xlane.f32.xlu0 %v1789
          %v1791 = vpop.xlane.xlu0 %1790
          %v1792 = vmul.f32 %v1791, %v1756
          %v1793 = vsub.f32 %v1788, %v1792
          %v1794 = vmul.f32 %v1793, %v1793
          %v1795 = vsel %vm1746, %v1794, 0.0
          %1796 = vadd.xlane.f32.xlu0 %v1795
          %v1797 = vpop.xlane.xlu0 %1796
          %v1798 = vmul.f32 %v1797, %v1756
          %v1799 = vadd.f32 %v1798, 1e-05
          %v1800 = vrsqrt.pop %v1799
          %v1801 = vmul.f32 %v1800, %v1799
          %v1802 = vmul.f32 %v1801, %v1800
          %v1803 = vmul.f32 0.5, %v1802
          %v1804 = vsub.f32 1.5, %v1803
          %v1805 = vmul.f32 %v1800, %v1804
          %vm1806 = vweird.f32 %v1799
          %vm1807 = vweird.f32 %v1800
          %vm1808 = vmor %vm1806, %vm1807
          %v1809 = vsel %vm1808, %v1800, %v1805
          %v1810 = vmul.f32 %v1793, %v1809
          %v1811 = vmul.f32 %v1810, %v1777
          %v1812 = vadd.f32 %v1811, %v1781
          %s1813 = scalar_lea.vmem [#allocation2], 8
          %1814 = vst.msk [vmem:[%s1813] sm:$0x1f] %vm1746, %v1812
          %v1815 = vld [vmem:[%s47] sm:$0xf]
          %v1816 = vld [vmem:[%s51] sm:$0xff]
          %v1817 = vld [vmem:[%s45] sm:$0x1]
          %v1818 = vld [vmem:[%s49] sm:$0x7]
          %v1820 = vrot.slane %v1815, 7
          %v1823 = vrot.slane %v1818, 3
          %v1825 = vsel %vm1743, %v1817, %v1820
          %vm1826 = vcmask 1044480
          %v1827 = vsel %vm1826, %v1825, %v1823
          %v1828 = vadd.f32 %v1827, %v1816
          %vm1829 = vcmask 261120
          %1830 = vst.msk [vmem:[#allocation3] sm:$0xff] %vm1829, %v1828
          %s1831 = scalar_lea.vmem %s45, 1
          %v1832 = vld [vmem:[%s1831] sm:$0x1]
          %s1833 = scalar_lea.vmem %s49, 4
          %v1834 = vld [vmem:[%s1833] sm:$0x7]
          %v1836 = vrot.slane %v1834, 3
          %v1838 = vsel %vm1743, %v1832, %v1820
          %v1839 = vsel %vm1826, %v1838, %v1836
          %v1840 = vadd.f32 %v1839, %v1816
          %s1841 = scalar_lea.vmem [#allocation3], 8
          %1842 = vst.msk [vmem:[%s1841] sm:$0xff] %vm1829, %v1840
          %s1843 = scalar_lea.vmem %s45, 2
          %v1844 = vld [vmem:[%s1843] sm:$0x1]
          %s1845 = scalar_lea.vmem %s49, 8
          %v1846 = vld [vmem:[%s1845] sm:$0x7]
          %v1848 = vrot.slane %v1846, 3
          %v1850 = vsel %vm1743, %v1844, %v1820
          %v1851 = vsel %vm1826, %v1850, %v1848
          %v1852 = vadd.f32 %v1851, %v1816
          %s1853 = scalar_lea.vmem [#allocation3], 16
          %1854 = vst.msk [vmem:[%s1853] sm:$0xff] %vm1829, %v1852
          %v1855 = vlaneseq
          %v1856 = vshrl.u32 %v1855, 7
          %v1857 = vlaneseq
          %v1858 = vand.u32 %v1857, 127
          %vm1859 = vcmp.gt.s32.totalorder %v1858, %v1856
          %v1860 = vsel %vm1859, -1e+30, 0.0
          %vm1861 = vcmask 64512
          %1862 = vst.msk [vmem:[#allocation4] sm:$0xff] %vm1861, %v1860
        $region188: #{custom_clip_forward.1} parent=183 // pred_fallthru
          _
        %v1863 = vld [vmem:[%s1515] sm:$0x1]
        %v1864 = vld [vmem:[%s1518] sm:$0x1]
        %v1865 = vld [vmem:[%s1537] sm:$0x1]
        %v1866 = vld [vmem:[%s1540] sm:$0x1]
        %v1867 = vld [vmem:[%s1523] sm:$0xf]
        %v1868 = vld [vmem:[%s1523 + $0x4] sm:$0xf]
        %v1869 = vld [vmem:[%s1523 + $0x8] sm:$0xf]
        %v1870 = vld [vmem:[%s1523 + $0xc] sm:$0xf]
        %v1871 = vld [vmem:[%s1526] sm:$0x1]
        %v1872 = vld [vmem:[%s1531] sm:$0xf]
        %v1873 = vld [vmem:[%s1531 + $0x4] sm:$0xf]
        %v1874 = vld [vmem:[%s1531 + $0x8] sm:$0xf]
        %v1875 = vld [vmem:[%s1531 + $0xc] sm:$0xf]
        %v1876 = vld [vmem:[%s1534] sm:$0x1]
        %v1877 = vld [vmem:[%s1545] sm:$0xf]
        %v1878 = vld [vmem:[%s1545 + $0x4] sm:$0xf]
        %v1879 = vld [vmem:[%s1545 + $0x8] sm:$0xf]
        %v1880 = vld [vmem:[%s1545 + $0xc] sm:$0xf]
        %v1881 = vld [vmem:[%s1548] sm:$0x1]
        %v1882 = vld [vmem:[%s1553] sm:$0xf]
        %v1883 = vld [vmem:[%s1553 + $0x4] sm:$0xf]
        %v1884 = vld [vmem:[%s1553 + $0x8] sm:$0xf]
        %v1885 = vld [vmem:[%s1553 + $0xc] sm:$0xf]
        %v1886 = vld [vmem:[%s1553 + $0x10] sm:$0xf]
        %v1887 = vld [vmem:[%s1553 + $0x14] sm:$0xf]
        %v1888 = vld [vmem:[%s1553 + $0x18] sm:$0xf]
        %v1889 = vld [vmem:[%s1553 + $0x1c] sm:$0xf]
        %v1890 = vld [vmem:[%s1553 + $0x20] sm:$0xf]
        %v1891 = vld [vmem:[%s1553 + $0x24] sm:$0xf]
        %v1892 = vld [vmem:[%s1553 + $0x28] sm:$0xf]
        %v1893 = vld [vmem:[%s1553 + $0x2c] sm:$0xf]
        %v1894 = vld [vmem:[%s1553 + $0x30] sm:$0xf]
        %v1895 = vld [vmem:[%s1553 + $0x34] sm:$0xf]
        %v1896 = vld [vmem:[%s1553 + $0x38] sm:$0xf]
        %v1897 = vld [vmem:[%s1553 + $0x3c] sm:$0xf]
        %v1898 = vld [vmem:[%s1556] sm:$0x1]
        %v1899 = vld [vmem:[#allocation2] sm:$0x1f]
        %vm1900 = vcmask 258048
        %v1901 = vsel %vm1900, %v1899, 0.0
        %1902 = vadd.xlane.f32.xlu0 %v1901
        %v1903 = vpop.xlane.xlu0 %1902
        %v1904 = vrcp.pop 32.0
        %v1905 = vmul.f32 32.0, %v1904
        %v1906 = vsub.f32 1.0, %v1905
        %v1907 = vmul.f32 %v1904, %v1906
        %v1908 = vadd.f32 %v1904, %v1907
        %vm1909 = vweird.f32 %v1904
        %v1910 = vsel %vm1909, %v1904, %v1908
        %v1911 = vmul.f32 %v1903, %v1910
        %v1912 = vsub.f32 %v1899, %v1911
        %v1913 = vmul.f32 %v1912, %v1912
        %v1914 = vsel %vm1900, %v1913, 0.0
        %1915 = vadd.xlane.f32.xlu0 %v1914
        %v1916 = vpop.xlane.xlu0 %1915
        %v1917 = vmul.f32 %v1916, %v1910
        %v1918 = vadd.f32 %v1917, 1e-05
        %v1919 = vrsqrt.pop %v1918
        %v1920 = vmul.f32 %v1919, %v1918
        %v1921 = vmul.f32 %v1920, %v1919
        %v1922 = vmul.f32 0.5, %v1921
        %v1923 = vsub.f32 1.5, %v1922
        %v1924 = vmul.f32 %v1919, %v1923
        %vm1925 = vweird.f32 %v1918
        %vm1926 = vweird.f32 %v1919
        %vm1927 = vmor %vm1925, %vm1926
        %v1928 = vsel %vm1927, %v1919, %v1924
        %v1929 = vmul.f32 %v1912, %v1928
        %v1931 = vperm.slane %v1863, 0
        %v1933 = vmul.f32 %v1929, %v1931
        %v1935 = vperm.slane %v1864, 0
        %v1937 = vadd.f32 %v1933, %v1935
        %v1938 = vpack.c.bf16 %v1937, %v1937
        %v1940 = vperm.slane %v1871, 0
        %v1946 = vunpack.c.l.b16 %v1867
        %v1947 = vunpack.c.l.b16 %v1868
        %v1948 = vunpack.c.l.b16 %v1869
        %v1949 = vunpack.c.l.b16 %v1870
        %v1950 = vpack.c.b16 %v1947, %v1946
        %v1951 = vpack.c.b16 %v1949, %v1948
        %vm1954 = vcmask 261120
        %v1956 = vsel %vm1954, %v1938, 0
        %1958 = vmatpush.bf16.msra.mxu0 0
        %1959 = vmatpush.bf16.msra.mxu0 0
        %1960 = vmatpush.bf16.msra.mxu0 0
        %1961 = vmatpush.bf16.msra.mxu0 0
        %1962 = vmatpush.bf16.msra.mxu0 0
        %1963 = vmatpush.bf16.msra.mxu0 0
        %1964 = vmatpush.bf16.msra.mxu0 %v1951
        %1965 = vmatpush.bf16.msra.mxu0 %v1950
        %1966 = vmatmul.bf16.gmra.mxu0 %v1956
        %v1967 = vpop.f32.mrf.mxu0
        %v1968 = vadd.f32 %v1940, %v1967
        %v1969 = vpop.f32.mrf.mxu0
        %1970 = vdwg.mxu0
        %v1971 = vpack.c.bf16 %v1968, %v1968
        %1973 = vrot.lane.b32.xlu0 %v1971, 96
        %v1974 = vpop.permute.xlu0 %1973
        %vm1975 = vcmask 64512
        %v1977 = vsel %vm1975, %v1971, 0
        %v1980 = vsel %vm1975, %v1974, 0
        %1982 = vmatpush.bf16.xpose.msra.mxu0 0
        %1983 = vmatpush.bf16.xpose.msra.mxu0 0
        %1984 = vmatpush.bf16.xpose.msra.mxu0 0
        %1985 = vmatpush.bf16.xpose.msra.mxu0 0
        %1986 = vmatpush.bf16.xpose.msra.mxu0 0
        %1987 = vmatpush.bf16.xpose.msra.mxu0 0
        %1988 = vmatpush.bf16.xpose.msra.mxu0 0
        %1989 = vmatpush.bf16.xpose.msra.mxu0 %v1980
        %1990 = vmatmul.bf16.gmra.mxu0 %v1977
        %v1991 = vpop.f32.mrf.mxu0
        %v1992 = vadd.f32 0.0, %v1991
        %v1993 = vpop.f32.mrf.mxu0
        %1994 = vdwg.mxu0
        %v1995 = vmul.f32 %v1992, 0.35355338
        %vm1996 = vcmask 36864
        %v1997 = vsel %vm1996, %v1995, -inf
        %1998 = vmax.xlane.f32.xlu0 %v1997
        %v1999 = vpop.xlane.xlu0 %1998
        %v2000 = vsub.f32 %v1995, %v1999
        %v2001 = vmul.f32 %v2000, 1.442695
        %v2002 = vpow.pop %v2001
        %v2003 = vsel %vm1996, %v2002, 0.0
        %2004 = vadd.xlane.f32.xlu0 %v2003
        %v2005 = vpop.xlane.xlu0 %2004
        %v2006 = vrcp.pop %v2005
        %v2007 = vmul.f32 %v2002, %v2006
        %v2008 = vpack.c.bf16 %v2007, %v2007
        %2009 = vrot.lane.b32.xlu0 %v1971, 64
        %v2010 = vpop.permute.xlu0 %2009
        %vm2011 = vcmask 39936
        %v2013 = vsel %vm2011, %v2008, 0
        %vm2015 = vcmask 1041408
        %vm2016 = vcmask 1042432
        %v2017 = vsel %vm2015, 4294967295, 65535
        %v2018 = vsel %vm2016, %v2017, 0
        %v2020 = vand.u32 %v2010, %v2018
        %2022 = vmatpush.bf16.msra.mxu0 0
        %2023 = vmatpush.bf16.msra.mxu0 0
        %2024 = vmatpush.bf16.msra.mxu0 0
        %2025 = vmatpush.bf16.msra.mxu0 0
        %2026 = vmatpush.bf16.msra.mxu0 0
        %2027 = vmatpush.bf16.msra.mxu0 0
        %2028 = vmatpush.bf16.msra.mxu0 0
        %2029 = vmatpush.bf16.msra.mxu0 %v2020
        %2030 = vmatmul.bf16.gmra.mxu0 %v2013
        %v2031 = vpop.f32.mrf.mxu0
        %v2032 = vadd.f32 0.0, %v2031
        %v2033 = vpop.f32.mrf.mxu0
        %2034 = vdwg.mxu0
        %2035 = vrot.lane.b32.xlu0 %v1971, 120
        %v2036 = vpop.permute.xlu0 %2035
        %2037 = vrot.lane.b32.xlu0 %v1971, 88
        %v2038 = vpop.permute.xlu0 %2037
        %v2040 = vsel %vm1975, %v2036, 0
        %v2043 = vsel %vm1975, %v2038, 0
        %2045 = vmatpush.bf16.xpose.msra.mxu0 0
        %2046 = vmatpush.bf16.xpose.msra.mxu0 0
        %2047 = vmatpush.bf16.xpose.msra.mxu0 0
        %2048 = vmatpush.bf16.xpose.msra.mxu0 0
        %2049 = vmatpush.bf16.xpose.msra.mxu0 0
        %2050 = vmatpush.bf16.xpose.msra.mxu0 0
        %2051 = vmatpush.bf16.xpose.msra.mxu0 0
        %2052 = vmatpush.bf16.xpose.msra.mxu0 %v2043
        %2053 = vmatmul.bf16.gmra.mxu0 %v2040
        %v2054 = vpop.f32.mrf.mxu0
        %v2055 = vadd.f32 0.0, %v2054
        %v2056 = vpop.f32.mrf.mxu0
        %2057 = vdwg.mxu0
        %v2058 = vmul.f32 %v2055, 0.35355338
        %v2059 = vsel %vm1996, %v2058, -inf
        %2060 = vmax.xlane.f32.xlu0 %v2059
        %v2061 = vpop.xlane.xlu0 %2060
        %v2062 = vsub.f32 %v2058, %v2061
        %v2063 = vmul.f32 %v2062, 1.442695
        %v2064 = vpow.pop %v2063
        %v2065 = vsel %vm1996, %v2064, 0.0
        %2066 = vadd.xlane.f32.xlu0 %v2065
        %v2067 = vpop.xlane.xlu0 %2066
        %v2068 = vrcp.pop %v2067
        %v2069 = vmul.f32 %v2064, %v2068
        %v2070 = vpack.c.bf16 %v2069, %v2069
        %2071 = vrot.lane.b32.xlu0 %v1971, 56
        %v2072 = vpop.permute.xlu0 %2071
        %v2074 = vsel %vm2011, %v2070, 0
        %v2077 = vand.u32 %v2072, %v2018
        %2079 = vmatpush.bf16.msra.mxu0 0
        %2080 = vmatpush.bf16.msra.mxu0 0
        %2081 = vmatpush.bf16.msra.mxu0 0
        %2082 = vmatpush.bf16.msra.mxu0 0
        %2083 = vmatpush.bf16.msra.mxu0 0
        %2084 = vmatpush.bf16.msra.mxu0 0
        %2085 = vmatpush.bf16.msra.mxu0 0
        %2086 = vmatpush.bf16.msra.mxu0 %v2077
        %2087 = vmatmul.bf16.gmra.mxu0 %v2074
        %v2088 = vpop.f32.mrf.mxu0
        %v2089 = vadd.f32 0.0, %v2088
        %v2090 = vpop.f32.mrf.mxu0
        %2091 = vdwg.mxu0
        %2092 = vrot.lane.b32.xlu0 %v1971, 112
        %v2093 = vpop.permute.xlu0 %2092
        %2094 = vrot.lane.b32.xlu0 %v1971, 80
        %v2095 = vpop.permute.xlu0 %2094
        %v2097 = vsel %vm1975, %v2093, 0
        %v2100 = vsel %vm1975, %v2095, 0
        %2102 = vmatpush.bf16.xpose.msra.mxu0 0
        %2103 = vmatpush.bf16.xpose.msra.mxu0 0
        %2104 = vmatpush.bf16.xpose.msra.mxu0 0
        %2105 = vmatpush.bf16.xpose.msra.mxu0 0
        %2106 = vmatpush.bf16.xpose.msra.mxu0 0
        %2107 = vmatpush.bf16.xpose.msra.mxu0 0
        %2108 = vmatpush.bf16.xpose.msra.mxu0 0
        %2109 = vmatpush.bf16.xpose.msra.mxu0 %v2100
        %2110 = vmatmul.bf16.gmra.mxu0 %v2097
        %v2111 = vpop.f32.mrf.mxu0
        %v2112 = vadd.f32 0.0, %v2111
        %v2113 = vpop.f32.mrf.mxu0
        %2114 = vdwg.mxu0
        %v2115 = vmul.f32 %v2112, 0.35355338
        %v2116 = vsel %vm1996, %v2115, -inf
        %2117 = vmax.xlane.f32.xlu0 %v2116
        %v2118 = vpop.xlane.xlu0 %2117
        %v2119 = vsub.f32 %v2115, %v2118
        %v2120 = vmul.f32 %v2119, 1.442695
        %v2121 = vpow.pop %v2120
        %v2122 = vsel %vm1996, %v2121, 0.0
        %2123 = vadd.xlane.f32.xlu0 %v2122
        %v2124 = vpop.xlane.xlu0 %2123
        %v2125 = vrcp.pop %v2124
        %v2126 = vmul.f32 %v2121, %v2125
        %v2127 = vpack.c.bf16 %v2126, %v2126
        %2128 = vrot.lane.b32.xlu0 %v1971, 48
        %v2129 = vpop.permute.xlu0 %2128
        %v2131 = vsel %vm2011, %v2127, 0
        %v2134 = vand.u32 %v2129, %v2018
        %2136 = vmatpush.bf16.msra.mxu0 0
        %2137 = vmatpush.bf16.msra.mxu0 0
        %2138 = vmatpush.bf16.msra.mxu0 0
        %2139 = vmatpush.bf16.msra.mxu0 0
        %2140 = vmatpush.bf16.msra.mxu0 0
        %2141 = vmatpush.bf16.msra.mxu0 0
        %2142 = vmatpush.bf16.msra.mxu0 0
        %2143 = vmatpush.bf16.msra.mxu0 %v2134
        %2144 = vmatmul.bf16.gmra.mxu0 %v2131
        %v2145 = vpop.f32.mrf.mxu0
        %v2146 = vadd.f32 0.0, %v2145
        %v2147 = vpop.f32.mrf.mxu0
        %2148 = vdwg.mxu0
        %2149 = vrot.lane.b32.xlu0 %v1971, 104
        %v2150 = vpop.permute.xlu0 %2149
        %2151 = vrot.lane.b32.xlu0 %v1971, 72
        %v2152 = vpop.permute.xlu0 %2151
        %v2154 = vsel %vm1975, %v2150, 0
        %v2157 = vsel %vm1975, %v2152, 0
        %2159 = vmatpush.bf16.xpose.msra.mxu0 0
        %2160 = vmatpush.bf16.xpose.msra.mxu0 0
        %2161 = vmatpush.bf16.xpose.msra.mxu0 0
        %2162 = vmatpush.bf16.xpose.msra.mxu0 0
        %2163 = vmatpush.bf16.xpose.msra.mxu0 0
        %2164 = vmatpush.bf16.xpose.msra.mxu0 0
        %2165 = vmatpush.bf16.xpose.msra.mxu0 0
        %2166 = vmatpush.bf16.xpose.msra.mxu0 %v2157
        %2167 = vmatmul.bf16.gmra.mxu0 %v2154
        %v2168 = vpop.f32.mrf.mxu0
        %v2169 = vadd.f32 0.0, %v2168
        %v2170 = vpop.f32.mrf.mxu0
        %2171 = vdwg.mxu0
        %v2172 = vmul.f32 %v2169, 0.35355338
        %v2173 = vsel %vm1996, %v2172, -inf
        %2174 = vmax.xlane.f32.xlu0 %v2173
        %v2175 = vpop.xlane.xlu0 %2174
        %v2176 = vsub.f32 %v2172, %v2175
        %v2177 = vmul.f32 %v2176, 1.442695
        %v2178 = vpow.pop %v2177
        %v2179 = vsel %vm1996, %v2178, 0.0
        %2180 = vadd.xlane.f32.xlu0 %v2179
        %v2181 = vpop.xlane.xlu0 %2180
        %v2182 = vrcp.pop %v2181
        %v2183 = vmul.f32 %v2178, %v2182
        %v2184 = vpack.c.bf16 %v2183, %v2183
        %2185 = vrot.lane.b32.xlu0 %v1971, 40
        %v2186 = vpop.permute.xlu0 %2185
        %v2188 = vsel %vm2011, %v2184, 0
        %v2191 = vand.u32 %v2186, %v2018
        %2193 = vmatpush.bf16.msra.mxu0 0
        %2194 = vmatpush.bf16.msra.mxu0 0
        %2195 = vmatpush.bf16.msra.mxu0 0
        %2196 = vmatpush.bf16.msra.mxu0 0
        %2197 = vmatpush.bf16.msra.mxu0 0
        %2198 = vmatpush.bf16.msra.mxu0 0
        %2199 = vmatpush.bf16.msra.mxu0 0
        %2200 = vmatpush.bf16.msra.mxu0 %v2191
        %2201 = vmatmul.bf16.gmra.mxu0 %v2188
        %v2202 = vpop.f32.mrf.mxu0
        %v2203 = vadd.f32 0.0, %v2202
        %v2204 = vpop.f32.mrf.mxu0
        %2205 = vdwg.mxu0
        %2207 = vrot.lane.b32.xlu0 %v2089, 8
        %v2208 = vpop.permute.xlu0 %2207
        %2211 = vrot.lane.b32.xlu0 %v2146, 16
        %v2212 = vpop.permute.xlu0 %2211
        %2215 = vrot.lane.b32.xlu0 %v2203, 24
        %v2216 = vpop.permute.xlu0 %2215
        %v2218 = vsel %vm1975, %v2032, %v2208
        %vm2219 = vcmask 130048
        %v2220 = vsel %vm2219, %v2218, %v2212
        %vm2221 = vcmask 195584
        %v2222 = vsel %vm2221, %v2220, %v2216
        %v2223 = vpack.c.bf16 %v2222, %v2222
        %v2228 = vunpack.c.l.b16 %v1872
        %v2229 = vunpack.c.l.b16 %v1873
        %v2230 = vunpack.c.l.b16 %v1874
        %v2231 = vunpack.c.l.b16 %v1875
        %v2232 = vpack.c.b16 %v2229, %v2228
        %v2233 = vpack.c.b16 %v2231, %v2230
        %v2237 = vsel %vm1954, %v2223, 0
        %2239 = vmatpush.bf16.msra.mxu0 0
        %2240 = vmatpush.bf16.msra.mxu0 0
        %2241 = vmatpush.bf16.msra.mxu0 0
        %2242 = vmatpush.bf16.msra.mxu0 0
        %2243 = vmatpush.bf16.msra.mxu0 0
        %2244 = vmatpush.bf16.msra.mxu0 0
        %2245 = vmatpush.bf16.msra.mxu0 %v2233
        %2246 = vmatpush.bf16.msra.mxu0 %v2232
        %2247 = vmatmul.bf16.gmra.mxu0 %v2237
        %v2248 = vpop.f32.mrf.mxu0
        %v2249 = vadd.f32 0.0, %v2248
        %v2250 = vpop.f32.mrf.mxu0
        %2251 = vdwg.mxu0
        %v2252 = vadd.f32 %v1899, %v2249
        %v2254 = vperm.slane %v1876, 0
        %v2256 = vadd.f32 %v2252, %v2254
        %v2257 = vsel %vm1900, %v2256, 0.0
        %2258 = vadd.xlane.f32.xlu0 %v2257
        %v2259 = vpop.xlane.xlu0 %2258
        %v2260 = vmul.f32 %v2259, %v1910
        %v2261 = vsub.f32 %v2256, %v2260
        %v2262 = vmul.f32 %v2261, %v2261
        %v2263 = vsel %vm1900, %v2262, 0.0
        %2264 = vadd.xlane.f32.xlu0 %v2263
        %v2265 = vpop.xlane.xlu0 %2264
        %v2266 = vmul.f32 %v2265, %v1910
        %v2267 = vadd.f32 %v2266, 1e-05
        %v2268 = vrsqrt.pop %v2267
        %v2269 = vmul.f32 %v2268, %v2267
        %v2270 = vmul.f32 %v2269, %v2268
        %v2271 = vmul.f32 0.5, %v2270
        %v2272 = vsub.f32 1.5, %v2271
        %v2273 = vmul.f32 %v2268, %v2272
        %vm2274 = vweird.f32 %v2267
        %vm2275 = vweird.f32 %v2268
        %vm2276 = vmor %vm2274, %vm2275
        %v2277 = vsel %vm2276, %v2268, %v2273
        %v2278 = vmul.f32 %v2261, %v2277
        %v2280 = vperm.slane %v1865, 0
        %v2282 = vmul.f32 %v2278, %v2280
        %v2284 = vperm.slane %v1866, 0
        %v2286 = vadd.f32 %v2282, %v2284
        %v2287 = vpack.c.bf16 %v2286, %v2286
        %v2289 = vperm.slane %v1881, 0
        %v2295 = vunpack.c.l.b16 %v1877
        %v2296 = vunpack.c.l.b16 %v1878
        %v2297 = vunpack.c.l.b16 %v1879
        %v2298 = vunpack.c.l.b16 %v1880
        %v2299 = vpack.c.b16 %v2296, %v2295
        %v2300 = vpack.c.b16 %v2298, %v2297
        %v2304 = vsel %vm1954, %v2287, 0
        %2306 = vmatpush.bf16.msra.mxu0 0
        %2307 = vmatpush.bf16.msra.mxu0 0
        %2308 = vmatpush.bf16.msra.mxu0 0
        %2309 = vmatpush.bf16.msra.mxu0 0
        %2310 = vmatpush.bf16.msra.mxu0 0
        %2311 = vmatpush.bf16.msra.mxu0 0
        %2312 = vmatpush.bf16.msra.mxu0 %v2300
        %2313 = vmatpush.bf16.msra.mxu0 %v2299
        %2314 = vmatmul.bf16.gmra.mxu0 %v2304
        %v2315 = vpop.f32.mrf.mxu0
        %v2316 = vadd.f32 %v2289, %v2315
        %v2317 = vpop.f32.mrf.mxu0
        %2318 = vdwg.mxu0
        %v2319 = vmul.f32 %v2316, -1.702
        %v2320 = vmul.f32 %v2319, 1.442695
        %v2321 = vpow.pop %v2320
        %v2322 = vadd.f32 %v2321, 1.0
        %v2323 = vrcp.pop %v2322
        %v2324 = vmul.f32 %v2316, %v2323
        %v2325 = vpack.c.bf16 %v2324, %v2324
        %v2342 = vunpack.c.l.b16 %v1882
        %v2343 = vunpack.c.l.b16 %v1883
        %v2344 = vunpack.c.l.b16 %v1884
        %v2345 = vunpack.c.l.b16 %v1885
        %v2346 = vunpack.c.l.b16 %v1886
        %v2347 = vunpack.c.l.b16 %v1887
        %v2348 = vunpack.c.l.b16 %v1888
        %v2349 = vunpack.c.l.b16 %v1889
        %v2350 = vunpack.c.l.b16 %v1890
        %v2351 = vunpack.c.l.b16 %v1891
        %v2352 = vunpack.c.l.b16 %v1892
        %v2353 = vunpack.c.l.b16 %v1893
        %v2354 = vunpack.c.l.b16 %v1894
        %v2355 = vunpack.c.l.b16 %v1895
        %v2356 = vunpack.c.l.b16 %v1896
        %v2357 = vunpack.c.l.b16 %v1897
        %v2358 = vpack.c.b16 %v2343, %v2342
        %v2359 = vpack.c.b16 %v2345, %v2344
        %v2360 = vpack.c.b16 %v2347, %v2346
        %v2361 = vpack.c.b16 %v2349, %v2348
        %v2362 = vpack.c.b16 %v2351, %v2350
        %v2363 = vpack.c.b16 %v2353, %v2352
        %v2364 = vpack.c.b16 %v2355, %v2354
        %v2365 = vpack.c.b16 %v2357, %v2356
        %2374 = vmatpush.bf16.msra.mxu0 %v2365
        %2375 = vmatpush.bf16.msra.mxu0 %v2364
        %2376 = vmatpush.bf16.msra.mxu0 %v2363
        %2377 = vmatpush.bf16.msra.mxu0 %v2362
        %2378 = vmatpush.bf16.msra.mxu0 %v2361
        %2379 = vmatpush.bf16.msra.mxu0 %v2360
        %2380 = vmatpush.bf16.msra.mxu0 %v2359
        %2381 = vmatpush.bf16.msra.mxu0 %v2358
        %2382 = vmatmul.bf16.gmra.mxu0 %v2325
        %v2383 = vpop.f32.mrf.mxu0
        %v2384 = vadd.f32 0.0, %v2383
        %v2385 = vpop.f32.mrf.mxu0
        %2386 = vdwg.mxu0
        %v2387 = vadd.f32 %v2256, %v2384
        %v2389 = vperm.slane %v1898, 0
        %v2391 = vadd.f32 %v2387, %v2389
        %2392 = vst.msk [vmem:[#allocation2] sm:$0x1f] %vm1900, %v2391
        %s2393 = scalar_lea.vmem [#allocation2], 8
        %v2394 = vld [vmem:[%s2393] sm:$0x1f]
        %v2395 = vsel %vm1900, %v2394, 0.0
        %2396 = vadd.xlane.f32.xlu0 %v2395
        %v2397 = vpop.xlane.xlu0 %2396
        %v2398 = vmul.f32 %v2397, %v1910
        %v2399 = vsub.f32 %v2394, %v2398
        %v2400 = vmul.f32 %v2399, %v2399
        %v2401 = vsel %vm1900, %v2400, 0.0
        %2402 = vadd.xlane.f32.xlu0 %v2401
        %v2403 = vpop.xlane.xlu0 %2402
        %v2404 = vmul.f32 %v2403, %v1910
        %v2405 = vadd.f32 %v2404, 1e-05
        %v2406 = vrsqrt.pop %v2405
        %v2407 = vmul.f32 %v2406, %v2405
        %v2408 = vmul.f32 %v2407, %v2406
        %v2409 = vmul.f32 0.5, %v2408
        %v2410 = vsub.f32 1.5, %v2409
        %v2411 = vmul.f32 %v2406, %v2410
        %vm2412 = vweird.f32 %v2405
        %vm2413 = vweird.f32 %v2406
        %vm2414 = vmor %vm2412, %vm2413
        %v2415 = vsel %vm2414, %v2406, %v2411
        %v2416 = vmul.f32 %v2399, %v2415
        %v2417 = vmul.f32 %v2416, %v1931
        %v2418 = vadd.f32 %v2417, %v1935
        %v2419 = vpack.c.bf16 %v2418, %v2418
        %v2421 = vsel %vm1954, %v2419, 0
        %2423 = vmatpush.bf16.msra.mxu0 0
        %2424 = vmatpush.bf16.msra.mxu0 0
        %2425 = vmatpush.bf16.msra.mxu0 0
        %2426 = vmatpush.bf16.msra.mxu0 0
        %2427 = vmatpush.bf16.msra.mxu0 0
        %2428 = vmatpush.bf16.msra.mxu0 0
        %2429 = vmatpush.bf16.msra.mxu0 %v1951
        %2430 = vmatpush.bf16.msra.mxu0 %v1950
        %2431 = vmatmul.bf16.gmra.mxu0 %v2421
        %v2432 = vpop.f32.mrf.mxu0
        %v2433 = vadd.f32 %v1940, %v2432
        %v2434 = vpop.f32.mrf.mxu0
        %2435 = vdwg.mxu0
        %v2436 = vpack.c.bf16 %v2433, %v2433
        %2438 = vrot.lane.b32.xlu0 %v2436, 96
        %v2439 = vpop.permute.xlu0 %2438
        %v2441 = vsel %vm1975, %v2436, 0
        %v2444 = vsel %vm1975, %v2439, 0
        %2446 = vmatpush.bf16.xpose.msra.mxu0 0
        %2447 = vmatpush.bf16.xpose.msra.mxu0 0
        %2448 = vmatpush.bf16.xpose.msra.mxu0 0
        %2449 = vmatpush.bf16.xpose.msra.mxu0 0
        %2450 = vmatpush.bf16.xpose.msra.mxu0 0
        %2451 = vmatpush.bf16.xpose.msra.mxu0 0
        %2452 = vmatpush.bf16.xpose.msra.mxu0 0
        %2453 = vmatpush.bf16.xpose.msra.mxu0 %v2444
        %2454 = vmatmul.bf16.gmra.mxu0 %v2441
        %v2455 = vpop.f32.mrf.mxu0
        %v2456 = vadd.f32 0.0, %v2455
        %v2457 = vpop.f32.mrf.mxu0
        %2458 = vdwg.mxu0
        %v2459 = vmul.f32 %v2456, 0.35355338
        %v2460 = vsel %vm1996, %v2459, -inf
        %2461 = vmax.xlane.f32.xlu0 %v2460
        %v2462 = vpop.xlane.xlu0 %2461
        %v2463 = vsub.f32 %v2459, %v2462
        %v2464 = vmul.f32 %v2463, 1.442695
        %v2465 = vpow.pop %v2464
        %v2466 = vsel %vm1996, %v2465, 0.0
        %2467 = vadd.xlane.f32.xlu0 %v2466
        %v2468 = vpop.xlane.xlu0 %2467
        %v2469 = vrcp.pop %v2468
        %v2470 = vmul.f32 %v2465, %v2469
        %v2471 = vpack.c.bf16 %v2470, %v2470
        %2472 = vrot.lane.b32.xlu0 %v2436, 64
        %v2473 = vpop.permute.xlu0 %2472
        %v2475 = vsel %vm2011, %v2471, 0
        %v2478 = vand.u32 %v2473, %v2018
        %2480 = vmatpush.bf16.msra.mxu0 0
        %2481 = vmatpush.bf16.msra.mxu0 0
        %2482 = vmatpush.bf16.msra.mxu0 0
        %2483 = vmatpush.bf16.msra.mxu0 0
        %2484 = vmatpush.bf16.msra.mxu0 0
        %2485 = vmatpush.bf16.msra.mxu0 0
        %2486 = vmatpush.bf16.msra.mxu0 0
        %2487 = vmatpush.bf16.msra.mxu0 %v2478
        %2488 = vmatmul.bf16.gmra.mxu0 %v2475
        %v2489 = vpop.f32.mrf.mxu0
        %v2490 = vadd.f32 0.0, %v2489
        %v2491 = vpop.f32.mrf.mxu0
        %2492 = vdwg.mxu0
        %2493 = vrot.lane.b32.xlu0 %v2436, 120
        %v2494 = vpop.permute.xlu0 %2493
        %2495 = vrot.lane.b32.xlu0 %v2436, 88
        %v2496 = vpop.permute.xlu0 %2495
        %v2498 = vsel %vm1975, %v2494, 0
        %v2501 = vsel %vm1975, %v2496, 0
        %2503 = vmatpush.bf16.xpose.msra.mxu0 0
        %2504 = vmatpush.bf16.xpose.msra.mxu0 0
        %2505 = vmatpush.bf16.xpose.msra.mxu0 0
        %2506 = vmatpush.bf16.xpose.msra.mxu0 0
        %2507 = vmatpush.bf16.xpose.msra.mxu0 0
        %2508 = vmatpush.bf16.xpose.msra.mxu0 0
        %2509 = vmatpush.bf16.xpose.msra.mxu0 0
        %2510 = vmatpush.bf16.xpose.msra.mxu0 %v2501
        %2511 = vmatmul.bf16.gmra.mxu0 %v2498
        %v2512 = vpop.f32.mrf.mxu0
        %v2513 = vadd.f32 0.0, %v2512
        %v2514 = vpop.f32.mrf.mxu0
        %2515 = vdwg.mxu0
        %v2516 = vmul.f32 %v2513, 0.35355338
        %v2517 = vsel %vm1996, %v2516, -inf
        %2518 = vmax.xlane.f32.xlu0 %v2517
        %v2519 = vpop.xlane.xlu0 %2518
        %v2520 = vsub.f32 %v2516, %v2519
        %v2521 = vmul.f32 %v2520, 1.442695
        %v2522 = vpow.pop %v2521
        %v2523 = vsel %vm1996, %v2522, 0.0
        %2524 = vadd.xlane.f32.xlu0 %v2523
        %v2525 = vpop.xlane.xlu0 %2524
        %v2526 = vrcp.pop %v2525
        %v2527 = vmul.f32 %v2522, %v2526
        %v2528 = vpack.c.bf16 %v2527, %v2527
        %2529 = vrot.lane.b32.xlu0 %v2436, 56
        %v2530 = vpop.permute.xlu0 %2529
        %v2532 = vsel %vm2011, %v2528, 0
        %v2535 = vand.u32 %v2530, %v2018
        %2537 = vmatpush.bf16.msra.mxu0 0
        %2538 = vmatpush.bf16.msra.mxu0 0
        %2539 = vmatpush.bf16.msra.mxu0 0
        %2540 = vmatpush.bf16.msra.mxu0 0
        %2541 = vmatpush.bf16.msra.mxu0 0
        %2542 = vmatpush.bf16.msra.mxu0 0
        %2543 = vmatpush.bf16.msra.mxu0 0
        %2544 = vmatpush.bf16.msra.mxu0 %v2535
        %2545 = vmatmul.bf16.gmra.mxu0 %v2532
        %v2546 = vpop.f32.mrf.mxu0
        %v2547 = vadd.f32 0.0, %v2546
        %v2548 = vpop.f32.mrf.mxu0
        %2549 = vdwg.mxu0
        %2550 = vrot.lane.b32.xlu0 %v2436, 112
        %v2551 = vpop.permute.xlu0 %2550
        %2552 = vrot.lane.b32.xlu0 %v2436, 80
        %v2553 = vpop.permute.xlu0 %2552
        %v2555 = vsel %vm1975, %v2551, 0
        %v2558 = vsel %vm1975, %v2553, 0
        %2560 = vmatpush.bf16.xpose.msra.mxu0 0
        %2561 = vmatpush.bf16.xpose.msra.mxu0 0
        %2562 = vmatpush.bf16.xpose.msra.mxu0 0
        %2563 = vmatpush.bf16.xpose.msra.mxu0 0
        %2564 = vmatpush.bf16.xpose.msra.mxu0 0
        %2565 = vmatpush.bf16.xpose.msra.mxu0 0
        %2566 = vmatpush.bf16.xpose.msra.mxu0 0
        %2567 = vmatpush.bf16.xpose.msra.mxu0 %v2558
        %2568 = vmatmul.bf16.gmra.mxu0 %v2555
        %v2569 = vpop.f32.mrf.mxu0
        %v2570 = vadd.f32 0.0, %v2569
        %v2571 = vpop.f32.mrf.mxu0
        %2572 = vdwg.mxu0
        %v2573 = vmul.f32 %v2570, 0.35355338
        %v2574 = vsel %vm1996, %v2573, -inf
        %2575 = vmax.xlane.f32.xlu0 %v2574
        %v2576 = vpop.xlane.xlu0 %2575
        %v2577 = vsub.f32 %v2573, %v2576
        %v2578 = vmul.f32 %v2577, 1.442695
        %v2579 = vpow.pop %v2578
        %v2580 = vsel %vm1996, %v2579, 0.0
        %2581 = vadd.xlane.f32.xlu0 %v2580
        %v2582 = vpop.xlane.xlu0 %2581
        %v2583 = vrcp.pop %v2582
        %v2584 = vmul.f32 %v2579, %v2583
        %v2585 = vpack.c.bf16 %v2584, %v2584
        %2586 = vrot.lane.b32.xlu0 %v2436, 48
        %v2587 = vpop.permute.xlu0 %2586
        %v2589 = vsel %vm2011, %v2585, 0
        %v2592 = vand.u32 %v2587, %v2018
        %2594 = vmatpush.bf16.msra.mxu0 0
        %2595 = vmatpush.bf16.msra.mxu0 0
        %2596 = vmatpush.bf16.msra.mxu0 0
        %2597 = vmatpush.bf16.msra.mxu0 0
        %2598 = vmatpush.bf16.msra.mxu0 0
        %2599 = vmatpush.bf16.msra.mxu0 0
        %2600 = vmatpush.bf16.msra.mxu0 0
        %2601 = vmatpush.bf16.msra.mxu0 %v2592
        %2602 = vmatmul.bf16.gmra.mxu0 %v2589
        %v2603 = vpop.f32.mrf.mxu0
        %v2604 = vadd.f32 0.0, %v2603
        %v2605 = vpop.f32.mrf.mxu0
        %2606 = vdwg.mxu0
        %2607 = vrot.lane.b32.xlu0 %v2436, 104
        %v2608 = vpop.permute.xlu0 %2607
        %2609 = vrot.lane.b32.xlu0 %v2436, 72
        %v2610 = vpop.permute.xlu0 %2609
        %v2612 = vsel %vm1975, %v2608, 0
        %v2615 = vsel %vm1975, %v2610, 0
        %2617 = vmatpush.bf16.xpose.msra.mxu0 0
        %2618 = vmatpush.bf16.xpose.msra.mxu0 0
        %2619 = vmatpush.bf16.xpose.msra.mxu0 0
        %2620 = vmatpush.bf16.xpose.msra.mxu0 0
        %2621 = vmatpush.bf16.xpose.msra.mxu0 0
        %2622 = vmatpush.bf16.xpose.msra.mxu0 0
        %2623 = vmatpush.bf16.xpose.msra.mxu0 0
        %2624 = vmatpush.bf16.xpose.msra.mxu0 %v2615
        %2625 = vmatmul.bf16.gmra.mxu0 %v2612
        %v2626 = vpop.f32.mrf.mxu0
        %v2627 = vadd.f32 0.0, %v2626
        %v2628 = vpop.f32.mrf.mxu0
        %2629 = vdwg.mxu0
        %v2630 = vmul.f32 %v2627, 0.35355338
        %v2631 = vsel %vm1996, %v2630, -inf
        %2632 = vmax.xlane.f32.xlu0 %v2631
        %v2633 = vpop.xlane.xlu0 %2632
        %v2634 = vsub.f32 %v2630, %v2633
        %v2635 = vmul.f32 %v2634, 1.442695
        %v2636 = vpow.pop %v2635
        %v2637 = vsel %vm1996, %v2636, 0.0
        %2638 = vadd.xlane.f32.xlu0 %v2637
        %v2639 = vpop.xlane.xlu0 %2638
        %v2640 = vrcp.pop %v2639
        %v2641 = vmul.f32 %v2636, %v2640
        %v2642 = vpack.c.bf16 %v2641, %v2641
        %2643 = vrot.lane.b32.xlu0 %v2436, 40
        %v2644 = vpop.permute.xlu0 %2643
        %v2646 = vsel %vm2011, %v2642, 0
        %v2649 = vand.u32 %v2644, %v2018
        %2651 = vmatpush.bf16.msra.mxu0 0
        %2652 = vmatpush.bf16.msra.mxu0 0
        %2653 = vmatpush.bf16.msra.mxu0 0
        %2654 = vmatpush.bf16.msra.mxu0 0
        %2655 = vmatpush.bf16.msra.mxu0 0
        %2656 = vmatpush.bf16.msra.mxu0 0
        %2657 = vmatpush.bf16.msra.mxu0 0
        %2658 = vmatpush.bf16.msra.mxu0 %v2649
        %2659 = vmatmul.bf16.gmra.mxu0 %v2646
        %v2660 = vpop.f32.mrf.mxu0
        %v2661 = vadd.f32 0.0, %v2660
        %v2662 = vpop.f32.mrf.mxu0
        %2663 = vdwg.mxu0
        %2665 = vrot.lane.b32.xlu0 %v2547, 8
        %v2666 = vpop.permute.xlu0 %2665
        %2669 = vrot.lane.b32.xlu0 %v2604, 16
        %v2670 = vpop.permute.xlu0 %2669
        %2673 = vrot.lane.b32.xlu0 %v2661, 24
        %v2674 = vpop.permute.xlu0 %2673
        %v2676 = vsel %vm1975, %v2490, %v2666
        %v2677 = vsel %vm2219, %v2676, %v2670
        %v2678 = vsel %vm2221, %v2677, %v2674
        %v2679 = vpack.c.bf16 %v2678, %v2678
        %v2681 = vsel %vm1954, %v2679, 0
        %2683 = vmatpush.bf16.msra.mxu0 0
        %2684 = vmatpush.bf16.msra.mxu0 0
        %2685 = vmatpush.bf16.msra.mxu0 0
        %2686 = vmatpush.bf16.msra.mxu0 0
        %2687 = vmatpush.bf16.msra.mxu0 0
        %2688 = vmatpush.bf16.msra.mxu0 0
        %2689 = vmatpush.bf16.msra.mxu0 %v2233
        %2690 = vmatpush.bf16.msra.mxu0 %v2232
        %2691 = vmatmul.bf16.gmra.mxu0 %v2681
        %v2692 = vpop.f32.mrf.mxu0
        %v2693 = vadd.f32 0.0, %v2692
        %v2694 = vpop.f32.mrf.mxu0
        %2695 = vdwg.mxu0
        %v2696 = vadd.f32 %v2394, %v2693
        %v2697 = vadd.f32 %v2696, %v2254
        %v2698 = vsel %vm1900, %v2697, 0.0
        %2699 = vadd.xlane.f32.xlu0 %v2698
        %v2700 = vpop.xlane.xlu0 %2699
        %v2701 = vmul.f32 %v2700, %v1910
        %v2702 = vsub.f32 %v2697, %v2701
        %v2703 = vmul.f32 %v2702, %v2702
        %v2704 = vsel %vm1900, %v2703, 0.0
        %2705 = vadd.xlane.f32.xlu0 %v2704
        %v2706 = vpop.xlane.xlu0 %2705
        %v2707 = vmul.f32 %v2706, %v1910
        %v2708 = vadd.f32 %v2707, 1e-05
        %v2709 = vrsqrt.pop %v2708
        %v2710 = vmul.f32 %v2709, %v2708
        %v2711 = vmul.f32 %v2710, %v2709
        %v2712 = vmul.f32 0.5, %v2711
        %v2713 = vsub.f32 1.5, %v2712
        %v2714 = vmul.f32 %v2709, %v2713
        %vm2715 = vweird.f32 %v2708
        %vm2716 = vweird.f32 %v2709
        %vm2717 = vmor %vm2715, %vm2716
        %v2718 = vsel %vm2717, %v2709, %v2714
        %v2719 = vmul.f32 %v2702, %v2718
        %v2720 = vmul.f32 %v2719, %v2280
        %v2721 = vadd.f32 %v2720, %v2284
        %v2722 = vpack.c.bf16 %v2721, %v2721
        %v2724 = vsel %vm1954, %v2722, 0
        %2726 = vmatpush.bf16.msra.mxu0 0
        %2727 = vmatpush.bf16.msra.mxu0 0
        %2728 = vmatpush.bf16.msra.mxu0 0
        %2729 = vmatpush.bf16.msra.mxu0 0
        %2730 = vmatpush.bf16.msra.mxu0 0
        %2731 = vmatpush.bf16.msra.mxu0 0
        %2732 = vmatpush.bf16.msra.mxu0 %v2300
        %2733 = vmatpush.bf16.msra.mxu0 %v2299
        %2734 = vmatmul.bf16.gmra.mxu0 %v2724
        %v2735 = vpop.f32.mrf.mxu0
        %v2736 = vadd.f32 %v2289, %v2735
        %v2737 = vpop.f32.mrf.mxu0
        %2738 = vdwg.mxu0
        %v2739 = vmul.f32 %v2736, -1.702
        %v2740 = vmul.f32 %v2739, 1.442695
        %v2741 = vpow.pop %v2740
        %v2742 = vadd.f32 %v2741, 1.0
        %v2743 = vrcp.pop %v2742
        %v2744 = vmul.f32 %v2736, %v2743
        %v2745 = vpack.c.bf16 %v2744, %v2744
        %2746 = vmatpush.bf16.msra.mxu0 %v2365
        %2747 = vmatpush.bf16.msra.mxu0 %v2364
        %2748 = vmatpush.bf16.msra.mxu0 %v2363
        %2749 = vmatpush.bf16.msra.mxu0 %v2362
        %2750 = vmatpush.bf16.msra.mxu0 %v2361
        %2751 = vmatpush.bf16.msra.mxu0 %v2360
        %2752 = vmatpush.bf16.msra.mxu0 %v2359
        %2753 = vmatpush.bf16.msra.mxu0 %v2358
        %2754 = vmatmul.bf16.gmra.mxu0 %v2745
        %v2755 = vpop.f32.mrf.mxu0
        %v2756 = vadd.f32 0.0, %v2755
        %v2757 = vpop.f32.mrf.mxu0
        %2758 = vdwg.mxu0
        %v2759 = vadd.f32 %v2697, %v2756
        %v2760 = vadd.f32 %v2759, %v2389
        %2761 = vst.msk [vmem:[%s2393] sm:$0x1f] %vm1900, %v2760
        %v2762 = vld [vmem:[#allocation4] sm:$0xff]
        %v2763 = vld [vmem:[%s1559] sm:$0x1]
        %v2764 = vld [vmem:[%s1562] sm:$0x1]
        %v2765 = vld [vmem:[%s1581] sm:$0x1]
        %v2766 = vld [vmem:[%s1584] sm:$0x1]
        %v2767 = vld [vmem:[%s1567] sm:$0xf]
        %v2768 = vld [vmem:[%s1567 + $0x4] sm:$0xf]
        %v2769 = vld [vmem:[%s1567 + $0x8] sm:$0xf]
        %v2770 = vld [vmem:[%s1567 + $0xc] sm:$0xf]
        %v2771 = vld [vmem:[%s1570] sm:$0x1]
        %v2772 = vld [vmem:[%s1575] sm:$0xf]
        %v2773 = vld [vmem:[%s1575 + $0x4] sm:$0xf]
        %v2774 = vld [vmem:[%s1575 + $0x8] sm:$0xf]
        %v2775 = vld [vmem:[%s1575 + $0xc] sm:$0xf]
        %v2776 = vld [vmem:[%s1578] sm:$0x1]
        %v2777 = vld [vmem:[%s1589] sm:$0xf]
        %v2778 = vld [vmem:[%s1589 + $0x4] sm:$0xf]
        %v2779 = vld [vmem:[%s1589 + $0x8] sm:$0xf]
        %v2780 = vld [vmem:[%s1589 + $0xc] sm:$0xf]
        %v2781 = vld [vmem:[%s1592] sm:$0x1]
        %v2782 = vld [vmem:[%s1597] sm:$0xf]
        %v2783 = vld [vmem:[%s1597 + $0x4] sm:$0xf]
        %v2784 = vld [vmem:[%s1597 + $0x8] sm:$0xf]
        %v2785 = vld [vmem:[%s1597 + $0xc] sm:$0xf]
        %v2786 = vld [vmem:[%s1597 + $0x10] sm:$0xf]
        %v2787 = vld [vmem:[%s1597 + $0x14] sm:$0xf]
        %v2788 = vld [vmem:[%s1597 + $0x18] sm:$0xf]
        %v2789 = vld [vmem:[%s1597 + $0x1c] sm:$0xf]
        %v2790 = vld [vmem:[%s1597 + $0x20] sm:$0xf]
        %v2791 = vld [vmem:[%s1597 + $0x24] sm:$0xf]
        %v2792 = vld [vmem:[%s1597 + $0x28] sm:$0xf]
        %v2793 = vld [vmem:[%s1597 + $0x2c] sm:$0xf]
        %v2794 = vld [vmem:[%s1597 + $0x30] sm:$0xf]
        %v2795 = vld [vmem:[%s1597 + $0x34] sm:$0xf]
        %v2796 = vld [vmem:[%s1597 + $0x38] sm:$0xf]
        %v2797 = vld [vmem:[%s1597 + $0x3c] sm:$0xf]
        %v2798 = vld [vmem:[%s1600] sm:$0x1]
        %v2799 = vld [vmem:[#allocation3] sm:$0xff]
        %v2800 = vsel %vm1954, %v2799, 0.0
        %2801 = vadd.xlane.f32.xlu0 %v2800
        %v2802 = vpop.xlane.xlu0 %2801
        %v2803 = vmul.f32 %v2802, %v1910
        %v2804 = vsub.f32 %v2799, %v2803
        %v2805 = vmul.f32 %v2804, %v2804
        %v2806 = vsel %vm1954, %v2805, 0.0
        %2807 = vadd.xlane.f32.xlu0 %v2806
        %v2808 = vpop.xlane.xlu0 %2807
        %v2809 = vmul.f32 %v2808, %v1910
        %v2810 = vadd.f32 %v2809, 1e-05
        %v2811 = vrsqrt.pop %v2810
        %v2812 = vmul.f32 %v2811, %v2810
        %v2813 = vmul.f32 %v2812, %v2811
        %v2814 = vmul.f32 0.5, %v2813
        %v2815 = vsub.f32 1.5, %v2814
        %v2816 = vmul.f32 %v2811, %v2815
        %vm2817 = vweird.f32 %v2810
        %vm2818 = vweird.f32 %v2811
        %vm2819 = vmor %vm2817, %vm2818
        %v2820 = vsel %vm2819, %v2811, %v2816
        %v2821 = vmul.f32 %v2804, %v2820
        %v2823 = vperm.slane %v2763, 0
        %v2825 = vmul.f32 %v2821, %v2823
        %v2827 = vperm.slane %v2764, 0
        %v2829 = vadd.f32 %v2825, %v2827
        %v2830 = vpack.c.bf16 %v2829, %v2829
        %v2832 = vperm.slane %v2771, 0
        %v2838 = vunpack.c.l.b16 %v2767
        %v2839 = vunpack.c.l.b16 %v2768
        %v2840 = vunpack.c.l.b16 %v2769
        %v2841 = vunpack.c.l.b16 %v2770
        %v2842 = vpack.c.b16 %v2839, %v2838
        %v2843 = vpack.c.b16 %v2841, %v2840
        %v2847 = vsel %vm1954, %v2830, 0
        %2849 = vmatpush.bf16.msra.mxu0 0
        %2850 = vmatpush.bf16.msra.mxu0 0
        %2851 = vmatpush.bf16.msra.mxu0 0
        %2852 = vmatpush.bf16.msra.mxu0 0
        %2853 = vmatpush.bf16.msra.mxu0 0
        %2854 = vmatpush.bf16.msra.mxu0 0
        %2855 = vmatpush.bf16.msra.mxu0 %v2843
        %2856 = vmatpush.bf16.msra.mxu0 %v2842
        %2857 = vmatmul.bf16.gmra.mxu0 %v2847
        %v2858 = vpop.f32.mrf.mxu0
        %v2859 = vadd.f32 %v2832, %v2858
        %v2860 = vpop.f32.mrf.mxu0
        %2861 = vdwg.mxu0
        %v2862 = vpack.c.bf16 %v2859, %v2859
        %2864 = vrot.lane.b32.xlu0 %v2862, 96
        %v2865 = vpop.permute.xlu0 %2864
        %v2867 = vsel %vm1975, %v2862, 0
        %v2870 = vsel %vm1975, %v2865, 0
        %2872 = vmatpush.bf16.xpose.msra.mxu0 0
        %2873 = vmatpush.bf16.xpose.msra.mxu0 0
        %2874 = vmatpush.bf16.xpose.msra.mxu0 0
        %2875 = vmatpush.bf16.xpose.msra.mxu0 0
        %2876 = vmatpush.bf16.xpose.msra.mxu0 0
        %2877 = vmatpush.bf16.xpose.msra.mxu0 0
        %2878 = vmatpush.bf16.xpose.msra.mxu0 0
        %2879 = vmatpush.bf16.xpose.msra.mxu0 %v2870
        %2880 = vmatmul.bf16.gmra.mxu0 %v2867
        %v2881 = vpop.f32.mrf.mxu0
        %v2882 = vadd.f32 0.0, %v2881
        %v2883 = vpop.f32.mrf.mxu0
        %2884 = vdwg.mxu0
        %v2885 = vmul.f32 %v2882, 0.35355338
        %v2886 = vadd.f32 %v2885, %v2762
        %v2887 = vsel %vm1975, %v2886, -inf
        %2888 = vmax.xlane.f32.xlu0 %v2887
        %v2889 = vpop.xlane.xlu0 %2888
        %v2890 = vsub.f32 %v2886, %v2889
        %v2891 = vmul.f32 %v2890, 1.442695
        %v2892 = vpow.pop %v2891
        %v2893 = vsel %vm1975, %v2892, 0.0
        %2894 = vadd.xlane.f32.xlu0 %v2893
        %v2895 = vpop.xlane.xlu0 %2894
        %v2896 = vrcp.pop %v2895
        %v2897 = vmul.f32 %v2892, %v2896
        %v2898 = vpack.c.bf16 %v2897, %v2897
        %2899 = vrot.lane.b32.xlu0 %v2862, 64
        %v2900 = vpop.permute.xlu0 %2899
        %v2902 = vsel %vm1975, %v2898, 0
        %vm2904 = vcmask 1043456
        %v2906 = vsel %vm2904, %v2900, 0
        %2908 = vmatpush.bf16.msra.mxu0 0
        %2909 = vmatpush.bf16.msra.mxu0 0
        %2910 = vmatpush.bf16.msra.mxu0 0
        %2911 = vmatpush.bf16.msra.mxu0 0
        %2912 = vmatpush.bf16.msra.mxu0 0
        %2913 = vmatpush.bf16.msra.mxu0 0
        %2914 = vmatpush.bf16.msra.mxu0 0
        %2915 = vmatpush.bf16.msra.mxu0 %v2906
        %2916 = vmatmul.bf16.gmra.mxu0 %v2902
        %v2917 = vpop.f32.mrf.mxu0
        %v2918 = vadd.f32 0.0, %v2917
        %v2919 = vpop.f32.mrf.mxu0
        %2920 = vdwg.mxu0
        %2921 = vrot.lane.b32.xlu0 %v2862, 120
        %v2922 = vpop.permute.xlu0 %2921
        %2923 = vrot.lane.b32.xlu0 %v2862, 88
        %v2924 = vpop.permute.xlu0 %2923
        %v2926 = vsel %vm1975, %v2922, 0
        %v2929 = vsel %vm1975, %v2924, 0
        %2931 = vmatpush.bf16.xpose.msra.mxu0 0
        %2932 = vmatpush.bf16.xpose.msra.mxu0 0
        %2933 = vmatpush.bf16.xpose.msra.mxu0 0
        %2934 = vmatpush.bf16.xpose.msra.mxu0 0
        %2935 = vmatpush.bf16.xpose.msra.mxu0 0
        %2936 = vmatpush.bf16.xpose.msra.mxu0 0
        %2937 = vmatpush.bf16.xpose.msra.mxu0 0
        %2938 = vmatpush.bf16.xpose.msra.mxu0 %v2929
        %2939 = vmatmul.bf16.gmra.mxu0 %v2926
        %v2940 = vpop.f32.mrf.mxu0
        %v2941 = vadd.f32 0.0, %v2940
        %v2942 = vpop.f32.mrf.mxu0
        %2943 = vdwg.mxu0
        %v2944 = vmul.f32 %v2941, 0.35355338
        %v2945 = vadd.f32 %v2944, %v2762
        %v2946 = vsel %vm1975, %v2945, -inf
        %2947 = vmax.xlane.f32.xlu0 %v2946
        %v2948 = vpop.xlane.xlu0 %2947
        %v2949 = vsub.f32 %v2945, %v2948
        %v2950 = vmul.f32 %v2949, 1.442695
        %v2951 = vpow.pop %v2950
        %v2952 = vsel %vm1975, %v2951, 0.0
        %2953 = vadd.xlane.f32.xlu0 %v2952
        %v2954 = vpop.xlane.xlu0 %2953
        %v2955 = vrcp.pop %v2954
        %v2956 = vmul.f32 %v2951, %v2955
        %v2957 = vpack.c.bf16 %v2956, %v2956
        %2958 = vrot.lane.b32.xlu0 %v2862, 56
        %v2959 = vpop.permute.xlu0 %2958
        %v2961 = vsel %vm1975, %v2957, 0
        %v2964 = vsel %vm2904, %v2959, 0
        %2966 = vmatpush.bf16.msra.mxu0 0
        %2967 = vmatpush.bf16.msra.mxu0 0
        %2968 = vmatpush.bf16.msra.mxu0 0
        %2969 = vmatpush.bf16.msra.mxu0 0
        %2970 = vmatpush.bf16.msra.mxu0 0
        %2971 = vmatpush.bf16.msra.mxu0 0
        %2972 = vmatpush.bf16.msra.mxu0 0
        %2973 = vmatpush.bf16.msra.mxu0 %v2964
        %2974 = vmatmul.bf16.gmra.mxu0 %v2961
        %v2975 = vpop.f32.mrf.mxu0
        %v2976 = vadd.f32 0.0, %v2975
        %v2977 = vpop.f32.mrf.mxu0
        %2978 = vdwg.mxu0
        %2979 = vrot.lane.b32.xlu0 %v2862, 112
        %v2980 = vpop.permute.xlu0 %2979
        %2981 = vrot.lane.b32.xlu0 %v2862, 80
        %v2982 = vpop.permute.xlu0 %2981
        %v2984 = vsel %vm1975, %v2980, 0
        %v2987 = vsel %vm1975, %v2982, 0
        %2989 = vmatpush.bf16.xpose.msra.mxu0 0
        %2990 = vmatpush.bf16.xpose.msra.mxu0 0
        %2991 = vmatpush.bf16.xpose.msra.mxu0 0
        %2992 = vmatpush.bf16.xpose.msra.mxu0 0
        %2993 = vmatpush.bf16.xpose.msra.mxu0 0
        %2994 = vmatpush.bf16.xpose.msra.mxu0 0
        %2995 = vmatpush.bf16.xpose.msra.mxu0 0
        %2996 = vmatpush.bf16.xpose.msra.mxu0 %v2987
        %2997 = vmatmul.bf16.gmra.mxu0 %v2984
        %v2998 = vpop.f32.mrf.mxu0
        %v2999 = vadd.f32 0.0, %v2998
        %v3000 = vpop.f32.mrf.mxu0
        %3001 = vdwg.mxu0
        %v3002 = vmul.f32 %v2999, 0.35355338
        %v3003 = vadd.f32 %v3002, %v2762
        %v3004 = vsel %vm1975, %v3003, -inf
        %3005 = vmax.xlane.f32.xlu0 %v3004
        %v3006 = vpop.xlane.xlu0 %3005
        %v3007 = vsub.f32 %v3003, %v3006
        %v3008 = vmul.f32 %v3007, 1.442695
        %v3009 = vpow.pop %v3008
        %v3010 = vsel %vm1975, %v3009, 0.0
        %3011 = vadd.xlane.f32.xlu0 %v3010
        %v3012 = vpop.xlane.xlu0 %3011
        %v3013 = vrcp.pop %v3012
        %v3014 = vmul.f32 %v3009, %v3013
        %v3015 = vpack.c.bf16 %v3014, %v3014
        %3016 = vrot.lane.b32.xlu0 %v2862, 48
        %v3017 = vpop.permute.xlu0 %3016
        %v3019 = vsel %vm1975, %v3015, 0
        %v3022 = vsel %vm2904, %v3017, 0
        %3024 = vmatpush.bf16.msra.mxu0 0
        %3025 = vmatpush.bf16.msra.mxu0 0
        %3026 = vmatpush.bf16.msra.mxu0 0
        %3027 = vmatpush.bf16.msra.mxu0 0
        %3028 = vmatpush.bf16.msra.mxu0 0
        %3029 = vmatpush.bf16.msra.mxu0 0
        %3030 = vmatpush.bf16.msra.mxu0 0
        %3031 = vmatpush.bf16.msra.mxu0 %v3022
        %3032 = vmatmul.bf16.gmra.mxu0 %v3019
        %v3033 = vpop.f32.mrf.mxu0
        %v3034 = vadd.f32 0.0, %v3033
        %v3035 = vpop.f32.mrf.mxu0
        %3036 = vdwg.mxu0
        %3037 = vrot.lane.b32.xlu0 %v2862, 104
        %v3038 = vpop.permute.xlu0 %3037
        %3039 = vrot.lane.b32.xlu0 %v2862, 72
        %v3040 = vpop.permute.xlu0 %3039
        %v3042 = vsel %vm1975, %v3038, 0
        %v3045 = vsel %vm1975, %v3040, 0
        %3047 = vmatpush.bf16.xpose.msra.mxu0 0
        %3048 = vmatpush.bf16.xpose.msra.mxu0 0
        %3049 = vmatpush.bf16.xpose.msra.mxu0 0
        %3050 = vmatpush.bf16.xpose.msra.mxu0 0
        %3051 = vmatpush.bf16.xpose.msra.mxu0 0
        %3052 = vmatpush.bf16.xpose.msra.mxu0 0
        %3053 = vmatpush.bf16.xpose.msra.mxu0 0
        %3054 = vmatpush.bf16.xpose.msra.mxu0 %v3045
        %3055 = vmatmul.bf16.gmra.mxu0 %v3042
        %v3056 = vpop.f32.mrf.mxu0
        %v3057 = vadd.f32 0.0, %v3056
        %v3058 = vpop.f32.mrf.mxu0
        %3059 = vdwg.mxu0
        %v3060 = vmul.f32 %v3057, 0.35355338
        %v3061 = vadd.f32 %v3060, %v2762
        %v3062 = vsel %vm1975, %v3061, -inf
        %3063 = vmax.xlane.f32.xlu0 %v3062
        %v3064 = vpop.xlane.xlu0 %3063
        %v3065 = vsub.f32 %v3061, %v3064
        %v3066 = vmul.f32 %v3065, 1.442695
        %v3067 = vpow.pop %v3066
        %v3068 = vsel %vm1975, %v3067, 0.0
        %3069 = vadd.xlane.f32.xlu0 %v3068
        %v3070 = vpop.xlane.xlu0 %3069
        %v3071 = vrcp.pop %v3070
        %v3072 = vmul.f32 %v3067, %v3071
        %v3073 = vpack.c.bf16 %v3072, %v3072
        %3074 = vrot.lane.b32.xlu0 %v2862, 40
        %v3075 = vpop.permute.xlu0 %3074
        %v3077 = vsel %vm1975, %v3073, 0
        %v3080 = vsel %vm2904, %v3075, 0
        %3082 = vmatpush.bf16.msra.mxu0 0
        %3083 = vmatpush.bf16.msra.mxu0 0
        %3084 = vmatpush.bf16.msra.mxu0 0
        %3085 = vmatpush.bf16.msra.mxu0 0
        %3086 = vmatpush.bf16.msra.mxu0 0
        %3087 = vmatpush.bf16.msra.mxu0 0
        %3088 = vmatpush.bf16.msra.mxu0 0
        %3089 = vmatpush.bf16.msra.mxu0 %v3080
        %3090 = vmatmul.bf16.gmra.mxu0 %v3077
        %v3091 = vpop.f32.mrf.mxu0
        %v3092 = vadd.f32 0.0, %v3091
        %v3093 = vpop.f32.mrf.mxu0
        %3094 = vdwg.mxu0
        %3096 = vrot.lane.b32.xlu0 %v2976, 8
        %v3097 = vpop.permute.xlu0 %3096
        %3100 = vrot.lane.b32.xlu0 %v3034, 16
        %v3101 = vpop.permute.xlu0 %3100
        %3104 = vrot.lane.b32.xlu0 %v3092, 24
        %v3105 = vpop.permute.xlu0 %3104
        %v3107 = vsel %vm1975, %v2918, %v3097
        %v3108 = vsel %vm2219, %v3107, %v3101
        %v3109 = vsel %vm2221, %v3108, %v3105
        %v3110 = vpack.c.bf16 %v3109, %v3109
        %v3115 = vunpack.c.l.b16 %v2772
        %v3116 = vunpack.c.l.b16 %v2773
        %v3117 = vunpack.c.l.b16 %v2774
        %v3118 = vunpack.c.l.b16 %v2775
        %v3119 = vpack.c.b16 %v3116, %v3115
        %v3120 = vpack.c.b16 %v3118, %v3117
        %v3124 = vsel %vm1954, %v3110, 0
        %3126 = vmatpush.bf16.msra.mxu0 0
        %3127 = vmatpush.bf16.msra.mxu0 0
        %3128 = vmatpush.bf16.msra.mxu0 0
        %3129 = vmatpush.bf16.msra.mxu0 0
        %3130 = vmatpush.bf16.msra.mxu0 0
        %3131 = vmatpush.bf16.msra.mxu0 0
        %3132 = vmatpush.bf16.msra.mxu0 %v3120
        %3133 = vmatpush.bf16.msra.mxu0 %v3119
        %3134 = vmatmul.bf16.gmra.mxu0 %v3124
        %v3135 = vpop.f32.mrf.mxu0
        %v3136 = vadd.f32 0.0, %v3135
        %v3137 = vpop.f32.mrf.mxu0
        %3138 = vdwg.mxu0
        %v3139 = vadd.f32 %v2799, %v3136
        %v3141 = vperm.slane %v2776, 0
        %v3143 = vadd.f32 %v3139, %v3141
        %v3144 = vsel %vm1954, %v3143, 0.0
        %3145 = vadd.xlane.f32.xlu0 %v3144
        %v3146 = vpop.xlane.xlu0 %3145
        %v3147 = vmul.f32 %v3146, %v1910
        %v3148 = vsub.f32 %v3143, %v3147
        %v3149 = vmul.f32 %v3148, %v3148
        %v3150 = vsel %vm1954, %v3149, 0.0
        %3151 = vadd.xlane.f32.xlu0 %v3150
        %v3152 = vpop.xlane.xlu0 %3151
        %v3153 = vmul.f32 %v3152, %v1910
        %v3154 = vadd.f32 %v3153, 1e-05
        %v3155 = vrsqrt.pop %v3154
        %v3156 = vmul.f32 %v3155, %v3154
        %v3157 = vmul.f32 %v3156, %v3155
        %v3158 = vmul.f32 0.5, %v3157
        %v3159 = vsub.f32 1.5, %v3158
        %v3160 = vmul.f32 %v3155, %v3159
        %vm3161 = vweird.f32 %v3154
        %vm3162 = vweird.f32 %v3155
        %vm3163 = vmor %vm3161, %vm3162
        %v3164 = vsel %vm3163, %v3155, %v3160
        %v3165 = vmul.f32 %v3148, %v3164
        %v3167 = vperm.slane %v2765, 0
        %v3169 = vmul.f32 %v3165, %v3167
        %v3171 = vperm.slane %v2766, 0
        %v3173 = vadd.f32 %v3169, %v3171
        %v3174 = vpack.c.bf16 %v3173, %v3173
        %v3176 = vperm.slane %v2781, 0
        %v3182 = vunpack.c.l.b16 %v2777
        %v3183 = vunpack.c.l.b16 %v2778
        %v3184 = vunpack.c.l.b16 %v2779
        %v3185 = vunpack.c.l.b16 %v2780
        %v3186 = vpack.c.b16 %v3183, %v3182
        %v3187 = vpack.c.b16 %v3185, %v3184
        %v3191 = vsel %vm1954, %v3174, 0
        %3193 = vmatpush.bf16.msra.mxu0 0
        %3194 = vmatpush.bf16.msra.mxu0 0
        %3195 = vmatpush.bf16.msra.mxu0 0
        %3196 = vmatpush.bf16.msra.mxu0 0
        %3197 = vmatpush.bf16.msra.mxu0 0
        %3198 = vmatpush.bf16.msra.mxu0 0
        %3199 = vmatpush.bf16.msra.mxu0 %v3187
        %3200 = vmatpush.bf16.msra.mxu0 %v3186
        %3201 = vmatmul.bf16.gmra.mxu0 %v3191
        %v3202 = vpop.f32.mrf.mxu0
        %v3203 = vadd.f32 %v3176, %v3202
        %v3204 = vpop.f32.mrf.mxu0
        %3205 = vdwg.mxu0
        %v3206 = vmul.f32 %v3203, -1.702
        %v3207 = vmul.f32 %v3206, 1.442695
        %v3208 = vpow.pop %v3207
        %v3209 = vadd.f32 %v3208, 1.0
        %v3210 = vrcp.pop %v3209
        %v3211 = vmul.f32 %v3203, %v3210
        %v3212 = vpack.c.bf16 %v3211, %v3211
        %v3229 = vunpack.c.l.b16 %v2782
        %v3230 = vunpack.c.l.b16 %v2783
        %v3231 = vunpack.c.l.b16 %v2784
        %v3232 = vunpack.c.l.b16 %v2785
        %v3233 = vunpack.c.l.b16 %v2786
        %v3234 = vunpack.c.l.b16 %v2787
        %v3235 = vunpack.c.l.b16 %v2788
        %v3236 = vunpack.c.l.b16 %v2789
        %v3237 = vunpack.c.l.b16 %v2790
        %v3238 = vunpack.c.l.b16 %v2791
        %v3239 = vunpack.c.l.b16 %v2792
        %v3240 = vunpack.c.l.b16 %v2793
        %v3241 = vunpack.c.l.b16 %v2794
        %v3242 = vunpack.c.l.b16 %v2795
        %v3243 = vunpack.c.l.b16 %v2796
        %v3244 = vunpack.c.l.b16 %v2797
        %v3245 = vpack.c.b16 %v3230, %v3229
        %v3246 = vpack.c.b16 %v3232, %v3231
        %v3247 = vpack.c.b16 %v3234, %v3233
        %v3248 = vpack.c.b16 %v3236, %v3235
        %v3249 = vpack.c.b16 %v3238, %v3237
        %v3250 = vpack.c.b16 %v3240, %v3239
        %v3251 = vpack.c.b16 %v3242, %v3241
        %v3252 = vpack.c.b16 %v3244, %v3243
        %3261 = vmatpush.bf16.msra.mxu0 %v3252
        %3262 = vmatpush.bf16.msra.mxu0 %v3251
        %3263 = vmatpush.bf16.msra.mxu0 %v3250
        %3264 = vmatpush.bf16.msra.mxu0 %v3249
        %3265 = vmatpush.bf16.msra.mxu0 %v3248
        %3266 = vmatpush.bf16.msra.mxu0 %v3247
        %3267 = vmatpush.bf16.msra.mxu0 %v3246
        %3268 = vmatpush.bf16.msra.mxu0 %v3245
        %3269 = vmatmul.bf16.gmra.mxu0 %v3212
        %v3270 = vpop.f32.mrf.mxu0
        %v3271 = vadd.f32 0.0, %v3270
        %v3272 = vpop.f32.mrf.mxu0
        %3273 = vdwg.mxu0
        %v3274 = vadd.f32 %v3143, %v3271
        %v3276 = vperm.slane %v2798, 0
        %v3278 = vadd.f32 %v3274, %v3276
        %3279 = vst.msk [vmem:[#allocation3] sm:$0xff] %vm1954, %v3278
        %s3280 = scalar_lea.vmem [#allocation3], 8
        %v3281 = vld [vmem:[%s3280] sm:$0xff]
        %v3282 = vsel %vm1954, %v3281, 0.0
        %3283 = vadd.xlane.f32.xlu0 %v3282
        %v3284 = vpop.xlane.xlu0 %3283
        %v3285 = vmul.f32 %v3284, %v1910
        %v3286 = vsub.f32 %v3281, %v3285
        %v3287 = vmul.f32 %v3286, %v3286
        %v3288 = vsel %vm1954, %v3287, 0.0
        %3289 = vadd.xlane.f32.xlu0 %v3288
        %v3290 = vpop.xlane.xlu0 %3289
        %v3291 = vmul.f32 %v3290, %v1910
        %v3292 = vadd.f32 %v3291, 1e-05
        %v3293 = vrsqrt.pop %v3292
        %v3294 = vmul.f32 %v3293, %v3292
        %v3295 = vmul.f32 %v3294, %v3293
        %v3296 = vmul.f32 0.5, %v3295
        %v3297 = vsub.f32 1.5, %v3296
        %v3298 = vmul.f32 %v3293, %v3297
        %vm3299 = vweird.f32 %v3292
        %vm3300 = vweird.f32 %v3293
        %vm3301 = vmor %vm3299, %vm3300
        %v3302 = vsel %vm3301, %v3293, %v3298
        %v3303 = vmul.f32 %v3286, %v3302
        %v3304 = vmul.f32 %v3303, %v2823
        %v3305 = vadd.f32 %v3304, %v2827
        %v3306 = vpack.c.bf16 %v3305, %v3305
        %v3308 = vsel %vm1954, %v3306, 0
        %3310 = vmatpush.bf16.msra.mxu0 0
        %3311 = vmatpush.bf16.msra.mxu0 0
        %3312 = vmatpush.bf16.msra.mxu0 0
        %3313 = vmatpush.bf16.msra.mxu0 0
        %3314 = vmatpush.bf16.msra.mxu0 0
        %3315 = vmatpush.bf16.msra.mxu0 0
        %3316 = vmatpush.bf16.msra.mxu0 %v2843
        %3317 = vmatpush.bf16.msra.mxu0 %v2842
        %3318 = vmatmul.bf16.gmra.mxu0 %v3308
        %v3319 = vpop.f32.mrf.mxu0
        %v3320 = vadd.f32 %v2832, %v3319
        %v3321 = vpop.f32.mrf.mxu0
        %3322 = vdwg.mxu0
        %v3323 = vpack.c.bf16 %v3320, %v3320
        %3325 = vrot.lane.b32.xlu0 %v3323, 96
        %v3326 = vpop.permute.xlu0 %3325
        %v3328 = vsel %vm1975, %v3323, 0
        %v3331 = vsel %vm1975, %v3326, 0
        %3333 = vmatpush.bf16.xpose.msra.mxu0 0
        %3334 = vmatpush.bf16.xpose.msra.mxu0 0
        %3335 = vmatpush.bf16.xpose.msra.mxu0 0
        %3336 = vmatpush.bf16.xpose.msra.mxu0 0
        %3337 = vmatpush.bf16.xpose.msra.mxu0 0
        %3338 = vmatpush.bf16.xpose.msra.mxu0 0
        %3339 = vmatpush.bf16.xpose.msra.mxu0 0
        %3340 = vmatpush.bf16.xpose.msra.mxu0 %v3331
        %3341 = vmatmul.bf16.gmra.mxu0 %v3328
        %v3342 = vpop.f32.mrf.mxu0
        %v3343 = vadd.f32 0.0, %v3342
        %v3344 = vpop.f32.mrf.mxu0
        %3345 = vdwg.mxu0
        %v3346 = vmul.f32 %v3343, 0.35355338
        %v3347 = vadd.f32 %v3346, %v2762
        %v3348 = vsel %vm1975, %v3347, -inf
        %3349 = vmax.xlane.f32.xlu0 %v3348
        %v3350 = vpop.xlane.xlu0 %3349
        %v3351 = vsub.f32 %v3347, %v3350
        %v3352 = vmul.f32 %v3351, 1.442695
        %v3353 = vpow.pop %v3352
        %v3354 = vsel %vm1975, %v3353, 0.0
        %3355 = vadd.xlane.f32.xlu0 %v3354
        %v3356 = vpop.xlane.xlu0 %3355
        %v3357 = vrcp.pop %v3356
        %v3358 = vmul.f32 %v3353, %v3357
        %v3359 = vpack.c.bf16 %v3358, %v3358
        %3360 = vrot.lane.b32.xlu0 %v3323, 64
        %v3361 = vpop.permute.xlu0 %3360
        %v3363 = vsel %vm1975, %v3359, 0
        %v3366 = vsel %vm2904, %v3361, 0
        %3368 = vmatpush.bf16.msra.mxu0 0
        %3369 = vmatpush.bf16.msra.mxu0 0
        %3370 = vmatpush.bf16.msra.mxu0 0
        %3371 = vmatpush.bf16.msra.mxu0 0
        %3372 = vmatpush.bf16.msra.mxu0 0
        %3373 = vmatpush.bf16.msra.mxu0 0
        %3374 = vmatpush.bf16.msra.mxu0 0
        %3375 = vmatpush.bf16.msra.mxu0 %v3366
        %3376 = vmatmul.bf16.gmra.mxu0 %v3363
        %v3377 = vpop.f32.mrf.mxu0
        %v3378 = vadd.f32 0.0, %v3377
        %v3379 = vpop.f32.mrf.mxu0
        %3380 = vdwg.mxu0
        %3381 = vrot.lane.b32.xlu0 %v3323, 120
        %v3382 = vpop.permute.xlu0 %3381
        %3383 = vrot.lane.b32.xlu0 %v3323, 88
        %v3384 = vpop.permute.xlu0 %3383
        %v3386 = vsel %vm1975, %v3382, 0
        %v3389 = vsel %vm1975, %v3384, 0
        %3391 = vmatpush.bf16.xpose.msra.mxu0 0
        %3392 = vmatpush.bf16.xpose.msra.mxu0 0
        %3393 = vmatpush.bf16.xpose.msra.mxu0 0
        %3394 = vmatpush.bf16.xpose.msra.mxu0 0
        %3395 = vmatpush.bf16.xpose.msra.mxu0 0
        %3396 = vmatpush.bf16.xpose.msra.mxu0 0
        %3397 = vmatpush.bf16.xpose.msra.mxu0 0
        %3398 = vmatpush.bf16.xpose.msra.mxu0 %v3389
        %3399 = vmatmul.bf16.gmra.mxu0 %v3386
        %v3400 = vpop.f32.mrf.mxu0
        %v3401 = vadd.f32 0.0, %v3400
        %v3402 = vpop.f32.mrf.mxu0
        %3403 = vdwg.mxu0
        %v3404 = vmul.f32 %v3401, 0.35355338
        %v3405 = vadd.f32 %v3404, %v2762
        %v3406 = vsel %vm1975, %v3405, -inf
        %3407 = vmax.xlane.f32.xlu0 %v3406
        %v3408 = vpop.xlane.xlu0 %3407
        %v3409 = vsub.f32 %v3405, %v3408
        %v3410 = vmul.f32 %v3409, 1.442695
        %v3411 = vpow.pop %v3410
        %v3412 = vsel %vm1975, %v3411, 0.0
        %3413 = vadd.xlane.f32.xlu0 %v3412
        %v3414 = vpop.xlane.xlu0 %3413
        %v3415 = vrcp.pop %v3414
        %v3416 = vmul.f32 %v3411, %v3415
        %v3417 = vpack.c.bf16 %v3416, %v3416
        %3418 = vrot.lane.b32.xlu0 %v3323, 56
        %v3419 = vpop.permute.xlu0 %3418
        %v3421 = vsel %vm1975, %v3417, 0
        %v3424 = vsel %vm2904, %v3419, 0
        %3426 = vmatpush.bf16.msra.mxu0 0
        %3427 = vmatpush.bf16.msra.mxu0 0
        %3428 = vmatpush.bf16.msra.mxu0 0
        %3429 = vmatpush.bf16.msra.mxu0 0
        %3430 = vmatpush.bf16.msra.mxu0 0
        %3431 = vmatpush.bf16.msra.mxu0 0
        %3432 = vmatpush.bf16.msra.mxu0 0
        %3433 = vmatpush.bf16.msra.mxu0 %v3424
        %3434 = vmatmul.bf16.gmra.mxu0 %v3421
        %v3435 = vpop.f32.mrf.mxu0
        %v3436 = vadd.f32 0.0, %v3435
        %v3437 = vpop.f32.mrf.mxu0
        %3438 = vdwg.mxu0
        %3439 = vrot.lane.b32.xlu0 %v3323, 112
        %v3440 = vpop.permute.xlu0 %3439
        %3441 = vrot.lane.b32.xlu0 %v3323, 80
        %v3442 = vpop.permute.xlu0 %3441
        %v3444 = vsel %vm1975, %v3440, 0
        %v3447 = vsel %vm1975, %v3442, 0
        %3449 = vmatpush.bf16.xpose.msra.mxu0 0
        %3450 = vmatpush.bf16.xpose.msra.mxu0 0
        %3451 = vmatpush.bf16.xpose.msra.mxu0 0
        %3452 = vmatpush.bf16.xpose.msra.mxu0 0
        %3453 = vmatpush.bf16.xpose.msra.mxu0 0
        %3454 = vmatpush.bf16.xpose.msra.mxu0 0
        %3455 = vmatpush.bf16.xpose.msra.mxu0 0
        %3456 = vmatpush.bf16.xpose.msra.mxu0 %v3447
        %3457 = vmatmul.bf16.gmra.mxu0 %v3444
        %v3458 = vpop.f32.mrf.mxu0
        %v3459 = vadd.f32 0.0, %v3458
        %v3460 = vpop.f32.mrf.mxu0
        %3461 = vdwg.mxu0
        %v3462 = vmul.f32 %v3459, 0.35355338
        %v3463 = vadd.f32 %v3462, %v2762
        %v3464 = vsel %vm1975, %v3463, -inf
        %3465 = vmax.xlane.f32.xlu0 %v3464
        %v3466 = vpop.xlane.xlu0 %3465
        %v3467 = vsub.f32 %v3463, %v3466
        %v3468 = vmul.f32 %v3467, 1.442695
        %v3469 = vpow.pop %v3468
        %v3470 = vsel %vm1975, %v3469, 0.0
        %3471 = vadd.xlane.f32.xlu0 %v3470
        %v3472 = vpop.xlane.xlu0 %3471
        %v3473 = vrcp.pop %v3472
        %v3474 = vmul.f32 %v3469, %v3473
        %v3475 = vpack.c.bf16 %v3474, %v3474
        %3476 = vrot.lane.b32.xlu0 %v3323, 48
        %v3477 = vpop.permute.xlu0 %3476
        %v3479 = vsel %vm1975, %v3475, 0
        %v3482 = vsel %vm2904, %v3477, 0
        %3484 = vmatpush.bf16.msra.mxu0 0
        %3485 = vmatpush.bf16.msra.mxu0 0
        %3486 = vmatpush.bf16.msra.mxu0 0
        %3487 = vmatpush.bf16.msra.mxu0 0
        %3488 = vmatpush.bf16.msra.mxu0 0
        %3489 = vmatpush.bf16.msra.mxu0 0
        %3490 = vmatpush.bf16.msra.mxu0 0
        %3491 = vmatpush.bf16.msra.mxu0 %v3482
        %3492 = vmatmul.bf16.gmra.mxu0 %v3479
        %v3493 = vpop.f32.mrf.mxu0
        %v3494 = vadd.f32 0.0, %v3493
        %v3495 = vpop.f32.mrf.mxu0
        %3496 = vdwg.mxu0
        %3497 = vrot.lane.b32.xlu0 %v3323, 104
        %v3498 = vpop.permute.xlu0 %3497
        %3499 = vrot.lane.b32.xlu0 %v3323, 72
        %v3500 = vpop.permute.xlu0 %3499
        %v3502 = vsel %vm1975, %v3498, 0
        %v3505 = vsel %vm1975, %v3500, 0
        %3507 = vmatpush.bf16.xpose.msra.mxu0 0
        %3508 = vmatpush.bf16.xpose.msra.mxu0 0
        %3509 = vmatpush.bf16.xpose.msra.mxu0 0
        %3510 = vmatpush.bf16.xpose.msra.mxu0 0
        %3511 = vmatpush.bf16.xpose.msra.mxu0 0
        %3512 = vmatpush.bf16.xpose.msra.mxu0 0
        %3513 = vmatpush.bf16.xpose.msra.mxu0 0
        %3514 = vmatpush.bf16.xpose.msra.mxu0 %v3505
        %3515 = vmatmul.bf16.gmra.mxu0 %v3502
        %v3516 = vpop.f32.mrf.mxu0
        %v3517 = vadd.f32 0.0, %v3516
        %v3518 = vpop.f32.mrf.mxu0
        %3519 = vdwg.mxu0
        %v3520 = vmul.f32 %v3517, 0.35355338
        %v3521 = vadd.f32 %v3520, %v2762
        %v3522 = vsel %vm1975, %v3521, -inf
        %3523 = vmax.xlane.f32.xlu0 %v3522
        %v3524 = vpop.xlane.xlu0 %3523
        %v3525 = vsub.f32 %v3521, %v3524
        %v3526 = vmul.f32 %v3525, 1.442695
        %v3527 = vpow.pop %v3526
        %v3528 = vsel %vm1975, %v3527, 0.0
        %3529 = vadd.xlane.f32.xlu0 %v3528
        %v3530 = vpop.xlane.xlu0 %3529
        %v3531 = vrcp.pop %v3530
        %v3532 = vmul.f32 %v3527, %v3531
        %v3533 = vpack.c.bf16 %v3532, %v3532
        %3534 = vrot.lane.b32.xlu0 %v3323, 40
        %v3535 = vpop.permute.xlu0 %3534
        %v3537 = vsel %vm1975, %v3533, 0
        %v3540 = vsel %vm2904, %v3535, 0
        %3542 = vmatpush.bf16.msra.mxu0 0
        %3543 = vmatpush.bf16.msra.mxu0 0
        %3544 = vmatpush.bf16.msra.mxu0 0
        %3545 = vmatpush.bf16.msra.mxu0 0
        %3546 = vmatpush.bf16.msra.mxu0 0
        %3547 = vmatpush.bf16.msra.mxu0 0
        %3548 = vmatpush.bf16.msra.mxu0 0
        %3549 = vmatpush.bf16.msra.mxu0 %v3540
        %3550 = vmatmul.bf16.gmra.mxu0 %v3537
        %v3551 = vpop.f32.mrf.mxu0
        %v3552 = vadd.f32 0.0, %v3551
        %v3553 = vpop.f32.mrf.mxu0
        %3554 = vdwg.mxu0
        %3556 = vrot.lane.b32.xlu0 %v3436, 8
        %v3557 = vpop.permute.xlu0 %3556
        %3560 = vrot.lane.b32.xlu0 %v3494, 16
        %v3561 = vpop.permute.xlu0 %3560
        %3564 = vrot.lane.b32.xlu0 %v3552, 24
        %v3565 = vpop.permute.xlu0 %3564
        %v3567 = vsel %vm1975, %v3378, %v3557
        %v3568 = vsel %vm2219, %v3567, %v3561
        %v3569 = vsel %vm2221, %v3568, %v3565
        %v3570 = vpack.c.bf16 %v3569, %v3569
        %v3572 = vsel %vm1954, %v3570, 0
        %3574 = vmatpush.bf16.msra.mxu0 0
        %3575 = vmatpush.bf16.msra.mxu0 0
        %3576 = vmatpush.bf16.msra.mxu0 0
        %3577 = vmatpush.bf16.msra.mxu0 0
        %3578 = vmatpush.bf16.msra.mxu0 0
        %3579 = vmatpush.bf16.msra.mxu0 0
        %3580 = vmatpush.bf16.msra.mxu0 %v3120
        %3581 = vmatpush.bf16.msra.mxu0 %v3119
        %3582 = vmatmul.bf16.gmra.mxu0 %v3572
        %v3583 = vpop.f32.mrf.mxu0
        %v3584 = vadd.f32 0.0, %v3583
        %v3585 = vpop.f32.mrf.mxu0
        %3586 = vdwg.mxu0
        %v3587 = vadd.f32 %v3281, %v3584
        %v3588 = vadd.f32 %v3587, %v3141
        %v3589 = vsel %vm1954, %v3588, 0.0
        %3590 = vadd.xlane.f32.xlu0 %v3589
        %v3591 = vpop.xlane.xlu0 %3590
        %v3592 = vmul.f32 %v3591, %v1910
        %v3593 = vsub.f32 %v3588, %v3592
        %v3594 = vmul.f32 %v3593, %v3593
        %v3595 = vsel %vm1954, %v3594, 0.0
        %3596 = vadd.xlane.f32.xlu0 %v3595
        %v3597 = vpop.xlane.xlu0 %3596
        %v3598 = vmul.f32 %v3597, %v1910
        %v3599 = vadd.f32 %v3598, 1e-05
        %v3600 = vrsqrt.pop %v3599
        %v3601 = vmul.f32 %v3600, %v3599
        %v3602 = vmul.f32 %v3601, %v3600
        %v3603 = vmul.f32 0.5, %v3602
        %v3604 = vsub.f32 1.5, %v3603
        %v3605 = vmul.f32 %v3600, %v3604
        %vm3606 = vweird.f32 %v3599
        %vm3607 = vweird.f32 %v3600
        %vm3608 = vmor %vm3606, %vm3607
        %v3609 = vsel %vm3608, %v3600, %v3605
        %v3610 = vmul.f32 %v3593, %v3609
        %v3611 = vmul.f32 %v3610, %v3167
        %v3612 = vadd.f32 %v3611, %v3171
        %v3613 = vpack.c.bf16 %v3612, %v3612
        %v3615 = vsel %vm1954, %v3613, 0
        %3617 = vmatpush.bf16.msra.mxu0 0
        %3618 = vmatpush.bf16.msra.mxu0 0
        %3619 = vmatpush.bf16.msra.mxu0 0
        %3620 = vmatpush.bf16.msra.mxu0 0
        %3621 = vmatpush.bf16.msra.mxu0 0
        %3622 = vmatpush.bf16.msra.mxu0 0
        %3623 = vmatpush.bf16.msra.mxu0 %v3187
        %3624 = vmatpush.bf16.msra.mxu0 %v3186
        %3625 = vmatmul.bf16.gmra.mxu0 %v3615
        %v3626 = vpop.f32.mrf.mxu0
        %v3627 = vadd.f32 %v3176, %v3626
        %v3628 = vpop.f32.mrf.mxu0
        %3629 = vdwg.mxu0
        %v3630 = vmul.f32 %v3627, -1.702
        %v3631 = vmul.f32 %v3630, 1.442695
        %v3632 = vpow.pop %v3631
        %v3633 = vadd.f32 %v3632, 1.0
        %v3634 = vrcp.pop %v3633
        %v3635 = vmul.f32 %v3627, %v3634
        %v3636 = vpack.c.bf16 %v3635, %v3635
        %3637 = vmatpush.bf16.msra.mxu0 %v3252
        %3638 = vmatpush.bf16.msra.mxu0 %v3251
        %3639 = vmatpush.bf16.msra.mxu0 %v3250
        %3640 = vmatpush.bf16.msra.mxu0 %v3249
        %3641 = vmatpush.bf16.msra.mxu0 %v3248
        %3642 = vmatpush.bf16.msra.mxu0 %v3247
        %3643 = vmatpush.bf16.msra.mxu0 %v3246
        %3644 = vmatpush.bf16.msra.mxu0 %v3245
        %3645 = vmatmul.bf16.gmra.mxu0 %v3636
        %v3646 = vpop.f32.mrf.mxu0
        %v3647 = vadd.f32 0.0, %v3646
        %v3648 = vpop.f32.mrf.mxu0
        %3649 = vdwg.mxu0
        %v3650 = vadd.f32 %v3588, %v3647
        %v3651 = vadd.f32 %v3650, %v3276
        %3652 = vst.msk [vmem:[%s3280] sm:$0xff] %vm1954, %v3651
        %s3653 = scalar_lea.vmem [#allocation3], 16
        %v3654 = vld [vmem:[%s3653] sm:$0xff]
        %v3655 = vsel %vm1954, %v3654, 0.0
        %3656 = vadd.xlane.f32.xlu0 %v3655
        %v3657 = vpop.xlane.xlu0 %3656
        %v3658 = vmul.f32 %v3657, %v1910
        %v3659 = vsub.f32 %v3654, %v3658
        %v3660 = vmul.f32 %v3659, %v3659
        %v3661 = vsel %vm1954, %v3660, 0.0
        %3662 = vadd.xlane.f32.xlu0 %v3661
        %v3663 = vpop.xlane.xlu0 %3662
        %v3664 = vmul.f32 %v3663, %v1910
        %v3665 = vadd.f32 %v3664, 1e-05
        %v3666 = vrsqrt.pop %v3665
        %v3667 = vmul.f32 %v3666, %v3665
        %v3668 = vmul.f32 %v3667, %v3666
        %v3669 = vmul.f32 0.5, %v3668
        %v3670 = vsub.f32 1.5, %v3669
        %v3671 = vmul.f32 %v3666, %v3670
        %vm3672 = vweird.f32 %v3665
        %vm3673 = vweird.f32 %v3666
        %vm3674 = vmor %vm3672, %vm3673
        %v3675 = vsel %vm3674, %v3666, %v3671
        %v3676 = vmul.f32 %v3659, %v3675
        %v3677 = vmul.f32 %v3676, %v2823
        %v3678 = vadd.f32 %v3677, %v2827
        %v3679 = vpack.c.bf16 %v3678, %v3678
        %v3681 = vsel %vm1954, %v3679, 0
        %3683 = vmatpush.bf16.msra.mxu0 0
        %3684 = vmatpush.bf16.msra.mxu0 0
        %3685 = vmatpush.bf16.msra.mxu0 0
        %3686 = vmatpush.bf16.msra.mxu0 0
        %3687 = vmatpush.bf16.msra.mxu0 0
        %3688 = vmatpush.bf16.msra.mxu0 0
        %3689 = vmatpush.bf16.msra.mxu0 %v2843
        %3690 = vmatpush.bf16.msra.mxu0 %v2842
        %3691 = vmatmul.bf16.gmra.mxu0 %v3681
        %v3692 = vpop.f32.mrf.mxu0
        %v3693 = vadd.f32 %v2832, %v3692
        %v3694 = vpop.f32.mrf.mxu0
        %3695 = vdwg.mxu0
        %v3696 = vpack.c.bf16 %v3693, %v3693
        %3698 = vrot.lane.b32.xlu0 %v3696, 96
        %v3699 = vpop.permute.xlu0 %3698
        %v3701 = vsel %vm1975, %v3696, 0
        %v3704 = vsel %vm1975, %v3699, 0
        %3706 = vmatpush.bf16.xpose.msra.mxu0 0
        %3707 = vmatpush.bf16.xpose.msra.mxu0 0
        %3708 = vmatpush.bf16.xpose.msra.mxu0 0
        %3709 = vmatpush.bf16.xpose.msra.mxu0 0
        %3710 = vmatpush.bf16.xpose.msra.mxu0 0
        %3711 = vmatpush.bf16.xpose.msra.mxu0 0
        %3712 = vmatpush.bf16.xpose.msra.mxu0 0
        %3713 = vmatpush.bf16.xpose.msra.mxu0 %v3704
        %3714 = vmatmul.bf16.gmra.mxu0 %v3701
        %v3715 = vpop.f32.mrf.mxu0
        %v3716 = vadd.f32 0.0, %v3715
        %v3717 = vpop.f32.mrf.mxu0
        %3718 = vdwg.mxu0
        %v3719 = vmul.f32 %v3716, 0.35355338
        %v3720 = vadd.f32 %v3719, %v2762
        %v3721 = vsel %vm1975, %v3720, -inf
        %3722 = vmax.xlane.f32.xlu0 %v3721
        %v3723 = vpop.xlane.xlu0 %3722
        %v3724 = vsub.f32 %v3720, %v3723
        %v3725 = vmul.f32 %v3724, 1.442695
        %v3726 = vpow.pop %v3725
        %v3727 = vsel %vm1975, %v3726, 0.0
        %3728 = vadd.xlane.f32.xlu0 %v3727
        %v3729 = vpop.xlane.xlu0 %3728
        %v3730 = vrcp.pop %v3729
        %v3731 = vmul.f32 %v3726, %v3730
        %v3732 = vpack.c.bf16 %v3731, %v3731
        %3733 = vrot.lane.b32.xlu0 %v3696, 64
        %v3734 = vpop.permute.xlu0 %3733
        %v3736 = vsel %vm1975, %v3732, 0
        %v3739 = vsel %vm2904, %v3734, 0
        %3741 = vmatpush.bf16.msra.mxu0 0
        %3742 = vmatpush.bf16.msra.mxu0 0
        %3743 = vmatpush.bf16.msra.mxu0 0
        %3744 = vmatpush.bf16.msra.mxu0 0
        %3745 = vmatpush.bf16.msra.mxu0 0
        %3746 = vmatpush.bf16.msra.mxu0 0
        %3747 = vmatpush.bf16.msra.mxu0 0
        %3748 = vmatpush.bf16.msra.mxu0 %v3739
        %3749 = vmatmul.bf16.gmra.mxu0 %v3736
        %v3750 = vpop.f32.mrf.mxu0
        %v3751 = vadd.f32 0.0, %v3750
        %v3752 = vpop.f32.mrf.mxu0
        %3753 = vdwg.mxu0
        %3754 = vrot.lane.b32.xlu0 %v3696, 120
        %v3755 = vpop.permute.xlu0 %3754
        %3756 = vrot.lane.b32.xlu0 %v3696, 88
        %v3757 = vpop.permute.xlu0 %3756
        %v3759 = vsel %vm1975, %v3755, 0
        %v3762 = vsel %vm1975, %v3757, 0
        %3764 = vmatpush.bf16.xpose.msra.mxu0 0
        %3765 = vmatpush.bf16.xpose.msra.mxu0 0
        %3766 = vmatpush.bf16.xpose.msra.mxu0 0
        %3767 = vmatpush.bf16.xpose.msra.mxu0 0
        %3768 = vmatpush.bf16.xpose.msra.mxu0 0
        %3769 = vmatpush.bf16.xpose.msra.mxu0 0
        %3770 = vmatpush.bf16.xpose.msra.mxu0 0
        %3771 = vmatpush.bf16.xpose.msra.mxu0 %v3762
        %3772 = vmatmul.bf16.gmra.mxu0 %v3759
        %v3773 = vpop.f32.mrf.mxu0
        %v3774 = vadd.f32 0.0, %v3773
        %v3775 = vpop.f32.mrf.mxu0
        %3776 = vdwg.mxu0
        %v3777 = vmul.f32 %v3774, 0.35355338
        %v3778 = vadd.f32 %v3777, %v2762
        %v3779 = vsel %vm1975, %v3778, -inf
        %3780 = vmax.xlane.f32.xlu0 %v3779
        %v3781 = vpop.xlane.xlu0 %3780
        %v3782 = vsub.f32 %v3778, %v3781
        %v3783 = vmul.f32 %v3782, 1.442695
        %v3784 = vpow.pop %v3783
        %v3785 = vsel %vm1975, %v3784, 0.0
        %3786 = vadd.xlane.f32.xlu0 %v3785
        %v3787 = vpop.xlane.xlu0 %3786
        %v3788 = vrcp.pop %v3787
        %v3789 = vmul.f32 %v3784, %v3788
        %v3790 = vpack.c.bf16 %v3789, %v3789
        %3791 = vrot.lane.b32.xlu0 %v3696, 56
        %v3792 = vpop.permute.xlu0 %3791
        %v3794 = vsel %vm1975, %v3790, 0
        %v3797 = vsel %vm2904, %v3792, 0
        %3799 = vmatpush.bf16.msra.mxu0 0
        %3800 = vmatpush.bf16.msra.mxu0 0
        %3801 = vmatpush.bf16.msra.mxu0 0
        %3802 = vmatpush.bf16.msra.mxu0 0
        %3803 = vmatpush.bf16.msra.mxu0 0
        %3804 = vmatpush.bf16.msra.mxu0 0
        %3805 = vmatpush.bf16.msra.mxu0 0
        %3806 = vmatpush.bf16.msra.mxu0 %v3797
        %3807 = vmatmul.bf16.gmra.mxu0 %v3794
        %v3808 = vpop.f32.mrf.mxu0
        %v3809 = vadd.f32 0.0, %v3808
        %v3810 = vpop.f32.mrf.mxu0
        %3811 = vdwg.mxu0
        %3812 = vrot.lane.b32.xlu0 %v3696, 112
        %v3813 = vpop.permute.xlu0 %3812
        %3814 = vrot.lane.b32.xlu0 %v3696, 80
        %v3815 = vpop.permute.xlu0 %3814
        %v3817 = vsel %vm1975, %v3813, 0
        %v3820 = vsel %vm1975, %v3815, 0
        %3822 = vmatpush.bf16.xpose.msra.mxu0 0
        %3823 = vmatpush.bf16.xpose.msra.mxu0 0
        %3824 = vmatpush.bf16.xpose.msra.mxu0 0
        %3825 = vmatpush.bf16.xpose.msra.mxu0 0
        %3826 = vmatpush.bf16.xpose.msra.mxu0 0
        %3827 = vmatpush.bf16.xpose.msra.mxu0 0
        %3828 = vmatpush.bf16.xpose.msra.mxu0 0
        %3829 = vmatpush.bf16.xpose.msra.mxu0 %v3820
        %3830 = vmatmul.bf16.gmra.mxu0 %v3817
        %v3831 = vpop.f32.mrf.mxu0
        %v3832 = vadd.f32 0.0, %v3831
        %v3833 = vpop.f32.mrf.mxu0
        %3834 = vdwg.mxu0
        %v3835 = vmul.f32 %v3832, 0.35355338
        %v3836 = vadd.f32 %v3835, %v2762
        %v3837 = vsel %vm1975, %v3836, -inf
        %3838 = vmax.xlane.f32.xlu0 %v3837
        %v3839 = vpop.xlane.xlu0 %3838
        %v3840 = vsub.f32 %v3836, %v3839
        %v3841 = vmul.f32 %v3840, 1.442695
        %v3842 = vpow.pop %v3841
        %v3843 = vsel %vm1975, %v3842, 0.0
        %3844 = vadd.xlane.f32.xlu0 %v3843
        %v3845 = vpop.xlane.xlu0 %3844
        %v3846 = vrcp.pop %v3845
        %v3847 = vmul.f32 %v3842, %v3846
        %v3848 = vpack.c.bf16 %v3847, %v3847
        %3849 = vrot.lane.b32.xlu0 %v3696, 48
        %v3850 = vpop.permute.xlu0 %3849
        %v3852 = vsel %vm1975, %v3848, 0
        %v3855 = vsel %vm2904, %v3850, 0
        %3857 = vmatpush.bf16.msra.mxu0 0
        %3858 = vmatpush.bf16.msra.mxu0 0
        %3859 = vmatpush.bf16.msra.mxu0 0
        %3860 = vmatpush.bf16.msra.mxu0 0
        %3861 = vmatpush.bf16.msra.mxu0 0
        %3862 = vmatpush.bf16.msra.mxu0 0
        %3863 = vmatpush.bf16.msra.mxu0 0
        %3864 = vmatpush.bf16.msra.mxu0 %v3855
        %3865 = vmatmul.bf16.gmra.mxu0 %v3852
        %v3866 = vpop.f32.mrf.mxu0
        %v3867 = vadd.f32 0.0, %v3866
        %v3868 = vpop.f32.mrf.mxu0
        %3869 = vdwg.mxu0
        %3870 = vrot.lane.b32.xlu0 %v3696, 104
        %v3871 = vpop.permute.xlu0 %3870
        %3872 = vrot.lane.b32.xlu0 %v3696, 72
        %v3873 = vpop.permute.xlu0 %3872
        %v3875 = vsel %vm1975, %v3871, 0
        %v3878 = vsel %vm1975, %v3873, 0
        %3880 = vmatpush.bf16.xpose.msra.mxu0 0
        %3881 = vmatpush.bf16.xpose.msra.mxu0 0
        %3882 = vmatpush.bf16.xpose.msra.mxu0 0
        %3883 = vmatpush.bf16.xpose.msra.mxu0 0
        %3884 = vmatpush.bf16.xpose.msra.mxu0 0
        %3885 = vmatpush.bf16.xpose.msra.mxu0 0
        %3886 = vmatpush.bf16.xpose.msra.mxu0 0
        %3887 = vmatpush.bf16.xpose.msra.mxu0 %v3878
        %3888 = vmatmul.bf16.gmra.mxu0 %v3875
        %v3889 = vpop.f32.mrf.mxu0
        %v3890 = vadd.f32 0.0, %v3889
        %v3891 = vpop.f32.mrf.mxu0
        %3892 = vdwg.mxu0
        %v3893 = vmul.f32 %v3890, 0.35355338
        %v3894 = vadd.f32 %v3893, %v2762
        %v3895 = vsel %vm1975, %v3894, -inf
        %3896 = vmax.xlane.f32.xlu0 %v3895
        %v3897 = vpop.xlane.xlu0 %3896
        %v3898 = vsub.f32 %v3894, %v3897
        %v3899 = vmul.f32 %v3898, 1.442695
        %v3900 = vpow.pop %v3899
        %v3901 = vsel %vm1975, %v3900, 0.0
        %3902 = vadd.xlane.f32.xlu0 %v3901
        %v3903 = vpop.xlane.xlu0 %3902
        %v3904 = vrcp.pop %v3903
        %v3905 = vmul.f32 %v3900, %v3904
        %v3906 = vpack.c.bf16 %v3905, %v3905
        %3907 = vrot.lane.b32.xlu0 %v3696, 40
        %v3908 = vpop.permute.xlu0 %3907
        %v3910 = vsel %vm1975, %v3906, 0
        %v3913 = vsel %vm2904, %v3908, 0
        %3915 = vmatpush.bf16.msra.mxu0 0
        %3916 = vmatpush.bf16.msra.mxu0 0
        %3917 = vmatpush.bf16.msra.mxu0 0
        %3918 = vmatpush.bf16.msra.mxu0 0
        %3919 = vmatpush.bf16.msra.mxu0 0
        %3920 = vmatpush.bf16.msra.mxu0 0
        %3921 = vmatpush.bf16.msra.mxu0 0
        %3922 = vmatpush.bf16.msra.mxu0 %v3913
        %3923 = vmatmul.bf16.gmra.mxu0 %v3910
        %v3924 = vpop.f32.mrf.mxu0
        %v3925 = vadd.f32 0.0, %v3924
        %v3926 = vpop.f32.mrf.mxu0
        %3927 = vdwg.mxu0
        %3929 = vrot.lane.b32.xlu0 %v3809, 8
        %v3930 = vpop.permute.xlu0 %3929
        %3933 = vrot.lane.b32.xlu0 %v3867, 16
        %v3934 = vpop.permute.xlu0 %3933
        %3937 = vrot.lane.b32.xlu0 %v3925, 24
        %v3938 = vpop.permute.xlu0 %3937
        %v3940 = vsel %vm1975, %v3751, %v3930
        %v3941 = vsel %vm2219, %v3940, %v3934
        %v3942 = vsel %vm2221, %v3941, %v3938
        %v3943 = vpack.c.bf16 %v3942, %v3942
        %v3945 = vsel %vm1954, %v3943, 0
        %3947 = vmatpush.bf16.msra.mxu0 0
        %3948 = vmatpush.bf16.msra.mxu0 0
        %3949 = vmatpush.bf16.msra.mxu0 0
        %3950 = vmatpush.bf16.msra.mxu0 0
        %3951 = vmatpush.bf16.msra.mxu0 0
        %3952 = vmatpush.bf16.msra.mxu0 0
        %3953 = vmatpush.bf16.msra.mxu0 %v3120
        %3954 = vmatpush.bf16.msra.mxu0 %v3119
        %3955 = vmatmul.bf16.gmra.mxu0 %v3945
        %v3956 = vpop.f32.mrf.mxu0
        %v3957 = vadd.f32 0.0, %v3956
        %v3958 = vpop.f32.mrf.mxu0
        %3959 = vdwg.mxu0
        %v3960 = vadd.f32 %v3654, %v3957
        %v3961 = vadd.f32 %v3960, %v3141
        %v3962 = vsel %vm1954, %v3961, 0.0
        %3963 = vadd.xlane.f32.xlu0 %v3962
        %v3964 = vpop.xlane.xlu0 %3963
        %v3965 = vmul.f32 %v3964, %v1910
        %v3966 = vsub.f32 %v3961, %v3965
        %v3967 = vmul.f32 %v3966, %v3966
        %v3968 = vsel %vm1954, %v3967, 0.0
        %3969 = vadd.xlane.f32.xlu0 %v3968
        %v3970 = vpop.xlane.xlu0 %3969
        %v3971 = vmul.f32 %v3970, %v1910
        %v3972 = vadd.f32 %v3971, 1e-05
        %v3973 = vrsqrt.pop %v3972
        %v3974 = vmul.f32 %v3973, %v3972
        %v3975 = vmul.f32 %v3974, %v3973
        %v3976 = vmul.f32 0.5, %v3975
        %v3977 = vsub.f32 1.5, %v3976
        %v3978 = vmul.f32 %v3973, %v3977
        %vm3979 = vweird.f32 %v3972
        %vm3980 = vweird.f32 %v3973
        %vm3981 = vmor %vm3979, %vm3980
        %v3982 = vsel %vm3981, %v3973, %v3978
        %v3983 = vmul.f32 %v3966, %v3982
        %v3984 = vmul.f32 %v3983, %v3167
        %v3985 = vadd.f32 %v3984, %v3171
        %v3986 = vpack.c.bf16 %v3985, %v3985
        %v3988 = vsel %vm1954, %v3986, 0
        %3990 = vmatpush.bf16.msra.mxu0 0
        %3991 = vmatpush.bf16.msra.mxu0 0
        %3992 = vmatpush.bf16.msra.mxu0 0
        %3993 = vmatpush.bf16.msra.mxu0 0
        %3994 = vmatpush.bf16.msra.mxu0 0
        %3995 = vmatpush.bf16.msra.mxu0 0
        %3996 = vmatpush.bf16.msra.mxu0 %v3187
        %3997 = vmatpush.bf16.msra.mxu0 %v3186
        %3998 = vmatmul.bf16.gmra.mxu0 %v3988
        %v3999 = vpop.f32.mrf.mxu0
        %v4000 = vadd.f32 %v3176, %v3999
        %v4001 = vpop.f32.mrf.mxu0
        %4002 = vdwg.mxu0
        %v4003 = vmul.f32 %v4000, -1.702
        %v4004 = vmul.f32 %v4003, 1.442695
        %v4005 = vpow.pop %v4004
        %v4006 = vadd.f32 %v4005, 1.0
        %v4007 = vrcp.pop %v4006
        %v4008 = vmul.f32 %v4000, %v4007
        %v4009 = vpack.c.bf16 %v4008, %v4008
        %4010 = vmatpush.bf16.msra.mxu0 %v3252
        %4011 = vmatpush.bf16.msra.mxu0 %v3251
        %4012 = vmatpush.bf16.msra.mxu0 %v3250
        %4013 = vmatpush.bf16.msra.mxu0 %v3249
        %4014 = vmatpush.bf16.msra.mxu0 %v3248
        %4015 = vmatpush.bf16.msra.mxu0 %v3247
        %4016 = vmatpush.bf16.msra.mxu0 %v3246
        %4017 = vmatpush.bf16.msra.mxu0 %v3245
        %4018 = vmatmul.bf16.gmra.mxu0 %v4009
        %v4019 = vpop.f32.mrf.mxu0
        %v4020 = vadd.f32 0.0, %v4019
        %v4021 = vpop.f32.mrf.mxu0
        %4022 = vdwg.mxu0
        %v4023 = vadd.f32 %v3961, %v4020
        %v4024 = vadd.f32 %v4023, %v3276
        %4025 = vst.msk [vmem:[%s3653] sm:$0xff] %vm1954, %v4024
        %p4026 = scmp.eq.s32.totalorder %s107, 1
        // Predicated region
        $region189: #{custom_clip_forward.1} parent=183 // pred_check
          %p4027 = pneg %p4026
        $region190: #{custom_clip_forward.1} parent=183 // pred_check_branch
          %4029 = sbr.rel (%p4027) target = $region192
        $region191: #{custom_clip_forward.1} parent=183 // pred_region
          %v4030 = vld [vmem:[%s39] sm:$0x1]
          %v4031 = vld [vmem:[%s41] sm:$0x1]
          %v4032 = vld [vmem:[%s43] sm:$0xf]
          %v4033 = vld [vmem:[%s43 + $0x4] sm:$0xf]
          %v4034 = vld [vmem:[%s43 + $0x8] sm:$0xf]
          %v4035 = vld [vmem:[%s43 + $0xc] sm:$0xf]
          %v4036 = vld [vmem:[#allocation2] sm:$0x1]
          %vm4037 = vcmask 253952
          %v4038 = vsel %vm4037, %v4036, 0.0
          %4039 = vadd.xlane.f32.xlu0 %v4038
          %v4040 = vpop.xlane.xlu0 %4039
          %v4041 = vmul.f32 %v4040, %v1910
          %v4042 = vsub.f32 %v4036, %v4041
          %v4043 = vmul.f32 %v4042, %v4042
          %v4044 = vsel %vm4037, %v4043, 0.0
          %4045 = vadd.xlane.f32.xlu0 %v4044
          %v4046 = vpop.xlane.xlu0 %4045
          %v4047 = vmul.f32 %v4046, %v1910
          %v4048 = vadd.f32 %v4047, 1e-05
          %v4049 = vrsqrt.pop %v4048
          %v4050 = vmul.f32 %v4049, %v4048
          %v4051 = vmul.f32 %v4050, %v4049
          %v4052 = vmul.f32 0.5, %v4051
          %v4053 = vsub.f32 1.5, %v4052
          %v4054 = vmul.f32 %v4049, %v4053
          %vm4055 = vweird.f32 %v4048
          %vm4056 = vweird.f32 %v4049
          %vm4057 = vmor %vm4055, %vm4056
          %v4058 = vsel %vm4057, %v4049, %v4054
          %v4059 = vmul.f32 %v4042, %v4058
          %v4060 = vmul.f32 %v4059, %v4030
          %v4061 = vadd.f32 %v4060, %v4031
          %v4062 = vpack.c.bf16 %v4061, %v4061
          %v4067 = vunpack.c.l.b16 %v4032
          %v4068 = vunpack.c.l.b16 %v4033
          %v4069 = vunpack.c.l.b16 %v4034
          %v4070 = vunpack.c.l.b16 %v4035
          %v4071 = vpack.c.b16 %v4068, %v4067
          %v4072 = vpack.c.b16 %v4070, %v4069
          %v4076 = vsel %vm1954, %v4062, 0
          %4078 = vmatpush.bf16.msra.mxu0 0
          %4079 = vmatpush.bf16.msra.mxu0 0
          %4080 = vmatpush.bf16.msra.mxu0 0
          %4081 = vmatpush.bf16.msra.mxu0 0
          %4082 = vmatpush.bf16.msra.mxu0 0
          %4083 = vmatpush.bf16.msra.mxu0 0
          %4084 = vmatpush.bf16.msra.mxu0 %v4072
          %4085 = vmatpush.bf16.msra.mxu0 %v4071
          %4086 = vmatmul.bf16.gmra.mxu0 %v4076
          %v4087 = vpop.f32.mrf.mxu0
          %v4088 = vadd.f32 0.0, %v4087
          %v4089 = vpop.f32.mrf.mxu0
          %4090 = vdwg.mxu0
          %v4091 = vld [vmem:[%s2393] sm:$0x1]
          %v4092 = vsel %vm4037, %v4091, 0.0
          %4093 = vadd.xlane.f32.xlu0 %v4092
          %v4094 = vpop.xlane.xlu0 %4093
          %v4095 = vmul.f32 %v4094, %v1910
          %v4096 = vsub.f32 %v4091, %v4095
          %v4097 = vmul.f32 %v4096, %v4096
          %v4098 = vsel %vm4037, %v4097, 0.0
          %4099 = vadd.xlane.f32.xlu0 %v4098
          %v4100 = vpop.xlane.xlu0 %4099
          %v4101 = vmul.f32 %v4100, %v1910
          %v4102 = vadd.f32 %v4101, 1e-05
          %v4103 = vrsqrt.pop %v4102
          %v4104 = vmul.f32 %v4103, %v4102
          %v4105 = vmul.f32 %v4104, %v4103
          %v4106 = vmul.f32 0.5, %v4105
          %v4107 = vsub.f32 1.5, %v4106
          %v4108 = vmul.f32 %v4103, %v4107
          %vm4109 = vweird.f32 %v4102
          %vm4110 = vweird.f32 %v4103
          %vm4111 = vmor %vm4109, %vm4110
          %v4112 = vsel %vm4111, %v4103, %v4108
          %v4113 = vmul.f32 %v4096, %v4112
          %v4114 = vmul.f32 %v4113, %v4030
          %v4115 = vadd.f32 %v4114, %v4031
          %v4116 = vpack.c.bf16 %v4115, %v4115
          %v4118 = vsel %vm1954, %v4116, 0
          %4120 = vmatpush.bf16.msra.mxu0 0
          %4121 = vmatpush.bf16.msra.mxu0 0
          %4122 = vmatpush.bf16.msra.mxu0 0
          %4123 = vmatpush.bf16.msra.mxu0 0
          %4124 = vmatpush.bf16.msra.mxu0 0
          %4125 = vmatpush.bf16.msra.mxu0 0
          %4126 = vmatpush.bf16.msra.mxu0 %v4072
          %4127 = vmatpush.bf16.msra.mxu0 %v4071
          %4128 = vmatmul.bf16.gmra.mxu0 %v4118
          %v4129 = vpop.f32.mrf.mxu0
          %v4130 = vadd.f32 0.0, %v4129
          %v4131 = vpop.f32.mrf.mxu0
          %4132 = vdwg.mxu0
          %v4134 = vrot.slane %v4130, 7
          %vm4136 = vcmask 1040384
          %v4137 = vsel %vm4136, %v4088, %v4134
          %v4138 = vld [vmem:[%s77] sm:$0x1]
          %v4139 = vld [vmem:[%s79] sm:$0x1]
          %v4140 = vld [vmem:[%s81] sm:$0xf]
          %v4141 = vld [vmem:[%s81 + $0x4] sm:$0xf]
          %v4142 = vld [vmem:[%s81 + $0x8] sm:$0xf]
          %v4143 = vld [vmem:[%s81 + $0xc] sm:$0xf]
          %s4144 = sld [smem:[#allocation6]]
          %s4145 = scalar_lea.vmem [#allocation3], %s4144
          %v4146 = vld [vmem:[%s4145] sm:$0x1]
          %v4147 = vsel %vm4037, %v4146, 0.0
          %4148 = vadd.xlane.f32.xlu0 %v4147
          %v4149 = vpop.xlane.xlu0 %4148
          %v4150 = vmul.f32 %v4149, %v1910
          %v4151 = vsub.f32 %v4146, %v4150
          %v4152 = vmul.f32 %v4151, %v4151
          %v4153 = vsel %vm4037, %v4152, 0.0
          %4154 = vadd.xlane.f32.xlu0 %v4153
          %v4155 = vpop.xlane.xlu0 %4154
          %v4156 = vmul.f32 %v4155, %v1910
          %v4157 = vadd.f32 %v4156, 1e-05
          %v4158 = vrsqrt.pop %v4157
          %v4159 = vmul.f32 %v4158, %v4157
          %v4160 = vmul.f32 %v4159, %v4158
          %v4161 = vmul.f32 0.5, %v4160
          %v4162 = vsub.f32 1.5, %v4161
          %v4163 = vmul.f32 %v4158, %v4162
          %vm4164 = vweird.f32 %v4157
          %vm4165 = vweird.f32 %v4158
          %vm4166 = vmor %vm4164, %vm4165
          %v4167 = vsel %vm4166, %v4158, %v4163
          %v4168 = vmul.f32 %v4151, %v4167
          %v4169 = vmul.f32 %v4168, %v4138
          %v4170 = vadd.f32 %v4169, %v4139
          %v4171 = vpack.c.bf16 %v4170, %v4170
          %v4176 = vunpack.c.l.b16 %v4140
          %v4177 = vunpack.c.l.b16 %v4141
          %v4178 = vunpack.c.l.b16 %v4142
          %v4179 = vunpack.c.l.b16 %v4143
          %v4180 = vpack.c.b16 %v4177, %v4176
          %v4181 = vpack.c.b16 %v4179, %v4178
          %v4185 = vsel %vm1954, %v4171, 0
          %4187 = vmatpush.bf16.msra.mxu0 0
          %4188 = vmatpush.bf16.msra.mxu0 0
          %4189 = vmatpush.bf16.msra.mxu0 0
          %4190 = vmatpush.bf16.msra.mxu0 0
          %4191 = vmatpush.bf16.msra.mxu0 0
          %4192 = vmatpush.bf16.msra.mxu0 0
          %4193 = vmatpush.bf16.msra.mxu0 %v4181
          %4194 = vmatpush.bf16.msra.mxu0 %v4180
          %4195 = vmatmul.bf16.gmra.mxu0 %v4185
          %v4196 = vpop.f32.mrf.mxu0
          %v4197 = vadd.f32 0.0, %v4196
          %v4198 = vpop.f32.mrf.mxu0
          %4199 = vdwg.mxu0
          %s4200 = sld [smem:[#allocation6 + $0x1]]
          %s4201 = sadd.s32 %s4200, 8
          %s4202 = scalar_lea.vmem [#allocation3], %s4201
          %v4203 = vld [vmem:[%s4202] sm:$0x1]
          %v4204 = vsel %vm4037, %v4203, 0.0
          %4205 = vadd.xlane.f32.xlu0 %v4204
          %v4206 = vpop.xlane.xlu0 %4205
          %v4207 = vmul.f32 %v4206, %v1910
          %v4208 = vsub.f32 %v4203, %v4207
          %v4209 = vmul.f32 %v4208, %v4208
          %v4210 = vsel %vm4037, %v4209, 0.0
          %4211 = vadd.xlane.f32.xlu0 %v4210
          %v4212 = vpop.xlane.xlu0 %4211
          %v4213 = vmul.f32 %v4212, %v1910
          %v4214 = vadd.f32 %v4213, 1e-05
          %v4215 = vrsqrt.pop %v4214
          %v4216 = vmul.f32 %v4215, %v4214
          %v4217 = vmul.f32 %v4216, %v4215
          %v4218 = vmul.f32 0.5, %v4217
          %v4219 = vsub.f32 1.5, %v4218
          %v4220 = vmul.f32 %v4215, %v4219
          %vm4221 = vweird.f32 %v4214
          %vm4222 = vweird.f32 %v4215
          %vm4223 = vmor %vm4221, %vm4222
          %v4224 = vsel %vm4223, %v4215, %v4220
          %v4225 = vmul.f32 %v4208, %v4224
          %v4226 = vmul.f32 %v4225, %v4138
          %v4227 = vadd.f32 %v4226, %v4139
          %v4228 = vpack.c.bf16 %v4227, %v4227
          %v4230 = vsel %vm1954, %v4228, 0
          %4232 = vmatpush.bf16.msra.mxu0 0
          %4233 = vmatpush.bf16.msra.mxu0 0
          %4234 = vmatpush.bf16.msra.mxu0 0
          %4235 = vmatpush.bf16.msra.mxu0 0
          %4236 = vmatpush.bf16.msra.mxu0 0
          %4237 = vmatpush.bf16.msra.mxu0 0
          %4238 = vmatpush.bf16.msra.mxu0 %v4181
          %4239 = vmatpush.bf16.msra.mxu0 %v4180
          %4240 = vmatmul.bf16.gmra.mxu0 %v4230
          %v4241 = vpop.f32.mrf.mxu0
          %v4242 = vadd.f32 0.0, %v4241
          %v4243 = vpop.f32.mrf.mxu0
          %4244 = vdwg.mxu0
          %s4245 = sld [smem:[#allocation6 + $0x2]]
          %s4246 = sadd.s32 %s4245, 16
          %s4247 = scalar_lea.vmem [#allocation3], %s4246
          %v4248 = vld [vmem:[%s4247] sm:$0x1]
          %v4249 = vsel %vm4037, %v4248, 0.0
          %4250 = vadd.xlane.f32.xlu0 %v4249
          %v4251 = vpop.xlane.xlu0 %4250
          %v4252 = vmul.f32 %v4251, %v1910
          %v4253 = vsub.f32 %v4248, %v4252
          %v4254 = vmul.f32 %v4253, %v4253
          %v4255 = vsel %vm4037, %v4254, 0.0
          %4256 = vadd.xlane.f32.xlu0 %v4255
          %v4257 = vpop.xlane.xlu0 %4256
          %v4258 = vmul.f32 %v4257, %v1910
          %v4259 = vadd.f32 %v4258, 1e-05
          %v4260 = vrsqrt.pop %v4259
          %v4261 = vmul.f32 %v4260, %v4259
          %v4262 = vmul.f32 %v4261, %v4260
          %v4263 = vmul.f32 0.5, %v4262
          %v4264 = vsub.f32 1.5, %v4263
          %v4265 = vmul.f32 %v4260, %v4264
          %vm4266 = vweird.f32 %v4259
          %vm4267 = vweird.f32 %v4260
          %vm4268 = vmor %vm4266, %vm4267
          %v4269 = vsel %vm4268, %v4260, %v4265
          %v4270 = vmul.f32 %v4253, %v4269
          %v4271 = vmul.f32 %v4270, %v4138
          %v4272 = vadd.f32 %v4271, %v4139
          %v4273 = vpack.c.bf16 %v4272, %v4272
          %v4275 = vsel %vm1954, %v4273, 0
          %4277 = vmatpush.bf16.msra.mxu0 0
          %4278 = vmatpush.bf16.msra.mxu0 0
          %4279 = vmatpush.bf16.msra.mxu0 0
          %4280 = vmatpush.bf16.msra.mxu0 0
          %4281 = vmatpush.bf16.msra.mxu0 0
          %4282 = vmatpush.bf16.msra.mxu0 0
          %4283 = vmatpush.bf16.msra.mxu0 %v4181
          %4284 = vmatpush.bf16.msra.mxu0 %v4180
          %4285 = vmatmul.bf16.gmra.mxu0 %v4275
          %v4286 = vpop.f32.mrf.mxu0
          %v4287 = vadd.f32 0.0, %v4286
          %v4288 = vpop.f32.mrf.mxu0
          %4289 = vdwg.mxu0
          %v4291 = vrot.slane %v4242, 7
          %v4294 = vrot.slane %v4287, 6
          %v4296 = vsel %vm4136, %v4197, %v4291
          %v4297 = vsel %vm2015, %v4296, %v4294
          %v4298 = vmul.f32 %v4137, %v4137
          %vm4299 = vcmask 254976
          %v4300 = vsel %vm4299, %v4298, 0.0
          %4301 = vadd.xlane.f32.xlu0 %v4300
          %v4302 = vpop.xlane.xlu0 %4301
          %v4303 = vrsqrt.pop %v4302
          %v4304 = vmul.f32 %v4303, %v4302
          %v4305 = vmul.f32 %v4304, %v4303
          %v4306 = vmul.f32 0.5, %v4305
          %v4307 = vsub.f32 1.5, %v4306
          %v4308 = vmul.f32 %v4303, %v4307
          %vm4309 = vweird.f32 %v4302
          %vm4310 = vweird.f32 %v4303
          %vm4311 = vmor %vm4309, %vm4310
          %v4312 = vsel %vm4311, %v4303, %v4308
          %v4313 = vmul.f32 %v4137, %v4312
          %v4314 = vmul.f32 %v4297, %v4297
          %vm4315 = vcmask 256000
          %v4316 = vsel %vm4315, %v4314, 0.0
          %4317 = vadd.xlane.f32.xlu0 %v4316
          %v4318 = vpop.xlane.xlu0 %4317
          %v4319 = vrsqrt.pop %v4318
          %v4320 = vmul.f32 %v4319, %v4318
          %v4321 = vmul.f32 %v4320, %v4319
          %v4322 = vmul.f32 0.5, %v4321
          %v4323 = vsub.f32 1.5, %v4322
          %v4324 = vmul.f32 %v4319, %v4323
          %vm4325 = vweird.f32 %v4318
          %vm4326 = vweird.f32 %v4319
          %vm4327 = vmor %vm4325, %vm4326
          %v4328 = vsel %vm4327, %v4319, %v4324
          %v4329 = vmul.f32 %v4297, %v4328
          %v4331 = vsel %vm1954, %v4313, 0
          %v4334 = vsel %vm1954, %v4329, 0
          %4336 = vmatpush.xpose.msra.mxu0 0.0
          %4337 = vmatpush.xpose.msra.mxu0 0.0
          %4338 = vmatpush.xpose.msra.mxu0 0.0
          %4339 = vmatpush.xpose.msra.mxu0 0.0
          %4340 = vmatpush.xpose.msra.mxu0 0.0
          %4341 = vmatpush.xpose.msra.mxu0 0.0
          %4342 = vmatpush.xpose.msra.mxu0 0.0
          %4343 = vmatpush.xpose.msra.mxu0 0.0
          %4344 = vmatpush.xpose.msra.mxu0 0.0
          %4345 = vmatpush.xpose.msra.mxu0 0.0
          %4346 = vmatpush.xpose.msra.mxu0 0.0
          %4347 = vmatpush.xpose.msra.mxu0 0.0
          %4348 = vmatpush.xpose.msra.mxu0 0.0
          %4349 = vmatpush.xpose.msra.mxu0 0.0
          %4350 = vmatpush.xpose.msra.mxu0 0.0
          %4351 = vmatpush.xpose.msra.mxu0 %v4334
          %4352 = vmatmul.f32.gmra.mxu0 %v4331
          %v4353 = vpop.f32.mrf.mxu0
          %v4354 = vadd.f32 0.0, %v4353
          %4355 = vdwg.mxu0
          %v4356 = vld [vmem:[#allocation7] sm:$0x1]
          %v4357 = vmul.f32 %v4356, 1.442695
          %v4358 = vpow.pop %v4357
          %v4360 = vperm.slane %v4358, 0
          %4361 = vset.pattern.permute.xlu0 0
          %4362 = vperm.xlu0 %4361, %v4360
          %v4363 = vpop.permute.xlu0 %4362
          %v4365 = vmul.f32 %v4354, %v4363
          %vm4366 = vcmask 17408
          %4367 = vst.msk [vmem:[#allocation8] sm:$0x3] %vm4366, %v4365
        $region192: #{custom_clip_forward.1} parent=183 // pred_fallthru
          _
        // Predicated region
        $region193: #{custom_clip_forward.1} parent=183 // pred_check
          %p4368 = pneg %p1101
        $region194: #{custom_clip_forward.1} parent=183 // pred_check_branch
          %4370 = sbr.rel (%p4368) target = $region196
        $region195: #{custom_clip_forward.1} parent=183 // pred_region
          %4372 = vsyncadd [#allocation9], 0
          %s4374 = sshll.u32 [#allocation8], 4
          %s4375 = int_to_ptr.vmem [resolvable:$true] %s4374
          %s4376 = sshll.u32 %s85, 4
          %s4377 = int_to_ptr.hbm [resolvable:$true] %s4376
          %4379 = dma.vmem_to_hbm [thread:$0]  %s4375, 32, %s4377, [#allocation9]
        $region196: #{custom_clip_forward.1} parent=183 // pred_fallthru
          _
        // Predicated region
        $region197: #{custom_clip_forward.1} parent=183 // pred_check
          %p4380 = pneg %p1101
        $region198: #{custom_clip_forward.1} parent=183 // pred_check_branch
          %4382 = sbr.rel (%p4380) target = $region200
        $region199: #{custom_clip_forward.1} parent=183 // pred_region
          %4384 = dma.done [#allocation9], 32
        $region200: #{custom_clip_forward.1} parent=183 // pred_fallthru
          _
      $region184: #{custom_clip_forward.1} parent=5 // pred_fallthru
        _
      %p4385 = scmp.le.s32.totalorder 2, %s102
      // Predicated region
      $region201: #{custom_clip_forward.1} parent=5 // pred_check
        %p4386 = pneg %p4385
      $region202: #{custom_clip_forward.1} parent=5 // pred_check_branch
        %4388 = sbr.rel (%p4386) target = $region204
      $region203: #{custom_clip_forward.1} parent=5 // pred_region
        %s4389 = ssub.s32 %s102, 2
      $region204: #{custom_clip_forward.1} parent=5 // pred_fallthru
        _
    $region6: #{custom_clip_forward.1} parent=1 // loop_footer
      %s106 = sadd.s32 1, %s102
    $region7: #{custom_clip_forward.1} parent=1 // loop_footer_branch
      %101 = sbr.rel target = $region3
    $region8: #{custom_clip_forward.1} parent=1 // loop_exit
      _
    %4390 = vsyncpa [#allocation9], 1
    %s4391 = scalar_lea.sflag [#allocation9], 1
    %4392 = vsyncpa %s4391, 1

</llo_original>
